<compile_context>
chip_gen: v7x
topology: tpu7x:2x2x1
jax: 0.10.0
libtpu: 0.0.40
codegen_flags: <defaults>
</compile_context>

<pallas_src>
import jax
import jax.numpy as jnp
from jax.experimental import pallas as pl
from jax.experimental.pallas import tpu as pltpu

LANE = 128
SUB = 8
BN_EPS = 1e-5

# Module hyper-parameters (from the training script).
NUM_AR_FEATURES = 58
NUM_FLAG_FEATURES = 58
NUM_VAR_FEATURES = 12
SEQUENCE_LENGTH = 24
AR_HIDDEN, FLAG_HIDDEN, VAR_HIDDEN = 150, 100, 50
COMB_DIMS = (256, 128, 128, 128)

D_AR = NUM_AR_FEATURES * SEQUENCE_LENGTH    # 1392 (8-multiple, left unpadded)
D_FL = NUM_FLAG_FEATURES * SEQUENCE_LENGTH  # 1392
D_VR = NUM_VAR_FEATURES * SEQUENCE_LENGTH   # 288


def _round_up(n, m):
    return ((n + m - 1) // m) * m


def _pad2(x, rows, cols):
    return jnp.pad(x, ((0, rows - x.shape[0]), (0, cols - x.shape[1])))


def _bn_affine(p):
    """Eval-mode BatchNorm1d as per-feature (scale, shift)."""
    s = p["gamma"] / jnp.sqrt(p["rvar"] + BN_EPS)
    c = p["beta"] - p["rmean"] * s
    return s, c


# --------------------------------------------------------------------------
# Pallas kernel: the whole MLP for one batch tile.
# --------------------------------------------------------------------------
def _base_predictor_kernel(ar_ref, fl_ref, vr_ref,
                           w_ar_ref, b_ar_ref,
                           w_fl_ref, b_fl_ref,
                           w_vr_ref, b_vr_ref,
                           w1_ref, b1_ref,
                           w2_ref, b2_ref,
                           w3_ref, b3_ref,
                           w4_ref, b4_ref,
                           w5_ref, b5_ref,
                           out_ref):
    def mm(x, w_ref):
        # bf16 x bf16 -> f32 accumulation on the MXU.
        return jnp.dot(x, w_ref[...], preferred_element_type=jnp.float32)

    def relu_bf16(acc, b_ref):
        # bias + ReLU stay in f32 (v5e VPU has no bf16 ALUs); narrow to bf16
        # only for the next matmul's operands.
        return jnp.maximum(acc + b_ref[...], 0.0).astype(jnp.bfloat16)

    # Branch Linear + ReLU (branch BatchNorms are folded into W1/b1).
    h_ar = relu_bf16(mm(ar_ref[...], w_ar_ref), b_ar_ref)   # (tb, 256)
    h_fl = relu_bf16(mm(fl_ref[...], w_fl_ref), b_fl_ref)   # (tb, 128)
    h_vr = relu_bf16(mm(vr_ref[...], w_vr_ref), b_vr_ref)   # (tb, 128)

    # concat(150+100+50): every segment is 128-lane aligned, so this is a pure
    # vreg placement (no XLU shuffles); layer-1 accumulation then happens in a
    # single K=512 MXU pass against the stacked W1.
    h = jnp.concatenate([h_ar, h_fl, h_vr], axis=-1)          # (tb, 512) bf16

    y = relu_bf16(mm(h, w1_ref), b1_ref)                      # 300 -> 256
    y = relu_bf16(mm(y, w2_ref), b2_ref)                      # 256 -> 128
    y = relu_bf16(mm(y, w3_ref), b3_ref)                      # 128 -> 128
    y = relu_bf16(mm(y, w4_ref), b4_ref)                      # 128 -> 128

    out_ref[...] = (mm(y, w5_ref) + b5_ref[...]).astype(out_ref.dtype)


# --------------------------------------------------------------------------
# Host-side parameter preparation: fold BN affines forward, pad N-dims to lane
# multiples (K-dims stay unpadded), cast weights to bf16, keep biases in f32.
# Weight layout: (in_features, out_features_padded); bias: (1, out_features_padded).
# --------------------------------------------------------------------------
def _prepare_kernel_params(params, num_classes):
    h_ar_p = _round_up(AR_HIDDEN, LANE)    # 256  (v5e note: 106 dead lanes)
    h_fl_p = _round_up(FLAG_HIDDEN, LANE)  # 128
    h_vr_p = _round_up(VAR_HIDDEN, LANE)   # 128
    c1, c2, c3, c4 = COMB_DIMS
    out_p = _round_up(num_classes, LANE)
    bf16 = jnp.bfloat16

    # Branch linears (K = 1392 / 1392 / 288 left unpadded).
    w_ar = _pad2(params["ar"]["W"].T, D_AR, h_ar_p).astype(bf16)
    b_ar = _pad2(params["ar"]["b"][None, :], 1, h_ar_p)
    w_fl = _pad2(params["flag"]["W"].T, D_FL, h_fl_p).astype(bf16)
    b_fl = _pad2(params["flag"]["b"][None, :], 1, h_fl_p)
    w_vr = _pad2(params["var"]["W"].T, D_VR, h_vr_p).astype(bf16)
    b_vr = _pad2(params["var"]["b"][None, :], 1, h_vr_p)

    # Eval-mode branch BatchNorms fold into the first combined Linear.
    s_ar, c_ar = _bn_affine(params["ar"])
    s_fl, c_fl = _bn_affine(params["flag"])
    s_vr, c_vr = _bn_affine(params["var"])
    s_cat = jnp.concatenate([s_ar, s_fl, s_vr])   # (300,)
    c_cat = jnp.concatenate([c_ar, c_fl, c_vr])   # (300,)

    p1 = params["comb"][0]
    w1t = p1["W"].T * s_cat[:, None]              # (300, 256)
    b1 = (p1["b"] + c_cat @ p1["W"].T)[None, :]   # (1, 256)

    # Stack W1's per-branch row blocks at the padded offsets (0 / 256 / 384) so
    # the kernel does ONE (tb,512)@(512,256) matmul.  Padded rows are zero and
    # meet only zero activations, so they contribute nothing.
    w1 = jnp.zeros((h_ar_p + h_fl_p + h_vr_p, c1), jnp.float32)
    w1 = w1.at[:AR_HIDDEN].set(w1t[:AR_HIDDEN])
    w1 = w1.at[h_ar_p:h_ar_p + FLAG_HIDDEN].set(
        w1t[AR_HIDDEN:AR_HIDDEN + FLAG_HIDDEN])
    w1 = w1.at[h_ar_p + h_fl_p:h_ar_p + h_fl_p + VAR_HIDDEN].set(
        w1t[AR_HIDDEN + FLAG_HIDDEN:])
    w1 = w1.astype(bf16)

    def fold_next(prev_bn_layer, lin):
        s, c = _bn_affine(prev_bn_layer)
        wt = lin["W"].T * s[:, None]
        b = (lin["b"] + c @ lin["W"].T)[None, :]
        return wt, b

    w2, b2 = fold_next(params["comb"][0], params["comb"][1])   # (256, 128)
    w3, b3 = fold_next(params["comb"][1], params["comb"][2])   # (128, 128)
    w4, b4 = fold_next(params["comb"][2], params["comb"][3])   # (128, 128)
    w5, b5 = fold_next(params["comb"][3], params["out"])       # (128, nc)

    w5 = _pad2(w5, c4, out_p)
    b5 = _pad2(b5, 1, out_p)

    return (w_ar, b_ar, w_fl, b_fl, w_vr, b_vr,
            w1, b1,
            w2.astype(bf16), b2,
            w3.astype(bf16), b3,
            w4.astype(bf16), b4,
            w5.astype(bf16), b5)


# --------------------------------------------------------------------------
# Wrapper: pad batch (only), cast to bf16, build grid/BlockSpecs, call kernel.
# --------------------------------------------------------------------------
def base_predictor_forward(params, ar_x, fl_x, vr_x, num_classes, batch_tile=512):
    batch = ar_x.shape[0]
    out_p = _round_up(num_classes, LANE)

    # Batch tile: big enough to amortize per-grid-step overhead, but always at
    # least 2 grid steps so v7x megacore can shard the "parallel" axis.
    half = _round_up(max(1, -(-batch // 2)), SUB)
    tb = max(SUB, min(batch_tile, half))
    b_pad = max(_round_up(batch, tb), 2 * tb)
    grid = (b_pad // tb,)

    def prep_input(x):
        # Only the batch dim is padded; the feature dim (1392 / 288) stays
        # unpadded and is passed as a full-array block dim.  The pad and the
        # bf16 cast fuse into one XLA pass over the activations.
        return jnp.pad(x.astype(jnp.bfloat16), ((0, b_pad - batch), (0, 0)))

    ar_p, fl_p, vr_p = prep_input(ar_x), prep_input(fl_x), prep_input(vr_x)

    kernel_params = _prepare_kernel_params(params, num_classes)

    # Advisory cost estimate (helps XLA schedule the surrounding cast/pad/slice).
    flops_per_row = 2 * (D_AR * AR_HIDDEN + D_FL * FLAG_HIDDEN + D_VR * VAR_HIDDEN
                         + (AR_HIDDEN + FLAG_HIDDEN + VAR_HIDDEN) * COMB_DIMS[0]
                         + COMB_DIMS[0] * COMB_DIMS[1]
                         + COMB_DIMS[1] * COMB_DIMS[2]
                         + COMB_DIMS[2] * COMB_DIMS[3]
                         + COMB_DIMS[3] * num_classes)
    weight_bytes = sum(int(a.size) * a.dtype.itemsize for a in kernel_params)
    cost = pl.CostEstimate(
        flops=int(flops_per_row * b_pad),
        transcendentals=0,
        bytes_accessed=int(b_pad * (D_AR + D_FL + D_VR) * 2
                           + b_pad * out_p * 4 + weight_bytes),
    )

    def row_spec(d):
        return pl.BlockSpec((tb, d), lambda i: (i, 0))

    def make_in_specs(single_buffer_weights):
        def resident_spec(arr):
            # Full array, same block every grid step -> stays resident in VMEM.
            if single_buffer_weights:
                # Constant blocks need no double buffer (saves ~1.5 MiB VMEM).
                return pl.BlockSpec(arr.shape, lambda i: (0, 0),
                                    pipeline_mode=pl.Buffered(1))
            return pl.BlockSpec(arr.shape, lambda i: (0, 0))
        return ([row_spec(D_AR), row_spec(D_FL), row_spec(D_VR)]
                + [resident_spec(a) for a in kernel_params])

    def run(single_buffer_weights):
        fn = pl.pallas_call(
            _base_predictor_kernel,
            out_shape=jax.ShapeDtypeStruct((b_pad, out_p), jnp.float32),
            grid_spec=pltpu.PrefetchScalarGridSpec(
                num_scalar_prefetch=0,
                grid=grid,
                in_specs=make_in_specs(single_buffer_weights),
                out_specs=pl.BlockSpec((tb, out_p), lambda i: (i, 0)),
            ),
            compiler_params=pltpu.CompilerParams(
                dimension_semantics=("parallel",),      # batch tiles independent
                vmem_limit_bytes=32 * 1024 * 1024,      # headroom for tb=512 on v5e
            ),
            cost_estimate=cost,
        )
        return jax.block_until_ready(fn(ar_p, fl_p, vr_p, *kernel_params))

    if hasattr(pl, "Buffered"):
        try:
            out = run(True)
        except Exception:
            # pipeline_mode / Buffered(1) unsupported on this jax version: fall
            # back to default double-buffered (still fits VMEM with bf16).
            out = run(False)
    else:
        out = run(False)

    return out[:batch, :num_classes]


# --------------------------------------------------------------------------
# Pure-JAX reference (faithful to the PyTorch eval-mode forward).
# --------------------------------------------------------------------------
def _reference_forward(params, ar_x, fl_x, vr_x):
    prec = jax.lax.Precision.HIGHEST

    def block(x, p):
        z = jnp.dot(x, p["W"].T, precision=prec) + p["b"]
        z = jnp.maximum(z, 0.0)
        s, c = _bn_affine(p)
        return z * s + c            # Dropout: eval-mode identity.

    h = jnp.concatenate(
        [block(ar_x, params["ar"]),
         block(fl_x, params["flag"]),
         block(vr_x, params["var"])], axis=1)
    for lp in params["comb"]:
        h = block(h, lp)
    return jnp.dot(h, params["out"]["W"].T, precision=prec) + params["out"]["b"]


def _make_params(key, num_classes):
    def linear(k, out_d, in_d):
        kw, kb = jax.random.split(k)
        w = jax.random.normal(kw, (out_d, in_d), jnp.float32) * jnp.sqrt(2.0 / in_d)
        b = 0.01 * jax.random.normal(kb, (out_d,), jnp.float32)
        return w, b

    def bn(k, d):
        k1, k2, k3, k4 = jax.random.split(k, 4)
        return dict(
            gamma=1.0 + 0.1 * jax.random.normal(k1, (d,), jnp.float32),
            beta=0.1 * jax.random.normal(k2, (d,), jnp.float32),
            rmean=0.1 * jax.random.normal(k3, (d,), jnp.float32),
            rvar=jax.random.uniform(k4, (d,), jnp.float32, minval=0.5, maxval=1.5),
        )

    def layer(k_lin, k_bn, out_d, in_d):
        w, b = linear(k_lin, out_d, in_d)
        p = dict(W=w, b=b)
        p.update(bn(k_bn, out_d))
        return p

    keys = jax.random.split(key, 16)
    params = dict(
        ar=layer(keys[0], keys[1], AR_HIDDEN, D_AR),
        flag=layer(keys[2], keys[3], FLAG_HIDDEN, D_FL),
        var=layer(keys[4], keys[5], VAR_HIDDEN, D_VR),
    )
    comb_in = (AR_HIDDEN + FLAG_HIDDEN + VAR_HIDDEN,) + COMB_DIMS[:-1]
    params["comb"] = [
        layer(keys[6 + 2 * i], keys[7 + 2 * i], out_d, in_d)
        for i, (in_d, out_d) in enumerate(zip(comb_in, COMB_DIMS))
    ]
    w, b = linear(keys[14], num_classes, COMB_DIMS[-1])
    params["out"] = dict(W=w, b=b)
    return params


if __name__ == "__main__":
    key = jax.random.PRNGKey(0)
    kp, ka, kf, kv = jax.random.split(key, 4)

    batch = 2
    num_classes = 2

    params = _make_params(kp, num_classes)
    ar_x = jax.random.normal(ka, (batch, D_AR), jnp.float32)
    fl_x = jax.random.normal(kf, (batch, D_FL), jnp.float32)
    vr_x = jax.random.normal(kv, (batch, D_VR), jnp.float32)

    out = base_predictor_forward(params, ar_x, fl_x, vr_x, num_classes)
    out = jax.block_until_ready(out)

    ref = jax.block_until_ready(_reference_forward(params, ar_x, fl_x, vr_x))
    assert out.shape == (batch, num_classes), out.shape
    # bf16 matmul operands (f32 accumulation) -> slightly wider tolerance than
    # the all-f32 version.
    assert jnp.allclose(out, ref, rtol=3e-2, atol=3e-2), (out, ref)

    print("KERNEL_OK")
</pallas_src>

<mosaic_0001>
module attributes {stable_mosaic.version = 11 : i64} {
  func.func @_base_predictor_kernel(%arg0: i32, %arg1: memref<8x1392xbf16, #tpu.memory_space<vmem>>, %arg2: memref<8x1392xbf16, #tpu.memory_space<vmem>>, %arg3: memref<8x288xbf16, #tpu.memory_space<vmem>>, %arg4: memref<1392x256xbf16, #tpu.memory_space<vmem>>, %arg5: memref<1x256xf32, #tpu.memory_space<vmem>>, %arg6: memref<1392x128xbf16, #tpu.memory_space<vmem>>, %arg7: memref<1x128xf32, #tpu.memory_space<vmem>>, %arg8: memref<288x128xbf16, #tpu.memory_space<vmem>>, %arg9: memref<1x128xf32, #tpu.memory_space<vmem>>, %arg10: memref<512x256xbf16, #tpu.memory_space<vmem>>, %arg11: memref<1x256xf32, #tpu.memory_space<vmem>>, %arg12: memref<256x128xbf16, #tpu.memory_space<vmem>>, %arg13: memref<1x128xf32, #tpu.memory_space<vmem>>, %arg14: memref<128x128xbf16, #tpu.memory_space<vmem>>, %arg15: memref<1x128xf32, #tpu.memory_space<vmem>>, %arg16: memref<128x128xbf16, #tpu.memory_space<vmem>>, %arg17: memref<1x128xf32, #tpu.memory_space<vmem>>, %arg18: memref<128x128xbf16, #tpu.memory_space<vmem>>, %arg19: memref<1x128xf32, #tpu.memory_space<vmem>>, %arg20: memref<8x128xf32, #tpu.memory_space<vmem>>) attributes {dimension_semantics = [#tpu.dimension_semantics<parallel>], iteration_bounds = array<i64: 2>, scalar_prefetch = 0 : i64, scratch_operands = 0 : i64, tpu.core_type = #tpu.core_type<tc>, window_params = [{transform_indices = @transform_0, window_bounds = array<i64: 8, 1392>}, {transform_indices = @transform_1, window_bounds = array<i64: 8, 1392>}, {transform_indices = @transform_2, window_bounds = array<i64: 8, 288>}, {pipeline_mode = #tpu.pipeline_mode<synchronous>, transform_indices = @transform_3, window_bounds = array<i64: 1392, 256>}, {pipeline_mode = #tpu.pipeline_mode<synchronous>, transform_indices = @transform_4, window_bounds = array<i64: 1, 256>}, {pipeline_mode = #tpu.pipeline_mode<synchronous>, transform_indices = @transform_5, window_bounds = array<i64: 1392, 128>}, {pipeline_mode = #tpu.pipeline_mode<synchronous>, transform_indices = @transform_6, window_bounds = array<i64: 1, 128>}, {pipeline_mode = #tpu.pipeline_mode<synchronous>, transform_indices = @transform_7, window_bounds = array<i64: 288, 128>}, {pipeline_mode = #tpu.pipeline_mode<synchronous>, transform_indices = @transform_8, window_bounds = array<i64: 1, 128>}, {pipeline_mode = #tpu.pipeline_mode<synchronous>, transform_indices = @transform_9, window_bounds = array<i64: 512, 256>}, {pipeline_mode = #tpu.pipeline_mode<synchronous>, transform_indices = @transform_10, window_bounds = array<i64: 1, 256>}, {pipeline_mode = #tpu.pipeline_mode<synchronous>, transform_indices = @transform_11, window_bounds = array<i64: 256, 128>}, {pipeline_mode = #tpu.pipeline_mode<synchronous>, transform_indices = @transform_12, window_bounds = array<i64: 1, 128>}, {pipeline_mode = #tpu.pipeline_mode<synchronous>, transform_indices = @transform_13, window_bounds = array<i64: 128, 128>}, {pipeline_mode = #tpu.pipeline_mode<synchronous>, transform_indices = @transform_14, window_bounds = array<i64: 1, 128>}, {pipeline_mode = #tpu.pipeline_mode<synchronous>, transform_indices = @transform_15, window_bounds = array<i64: 128, 128>}, {pipeline_mode = #tpu.pipeline_mode<synchronous>, transform_indices = @transform_16, window_bounds = array<i64: 1, 128>}, {pipeline_mode = #tpu.pipeline_mode<synchronous>, transform_indices = @transform_17, window_bounds = array<i64: 128, 128>}, {pipeline_mode = #tpu.pipeline_mode<synchronous>, transform_indices = @transform_18, window_bounds = array<i64: 1, 128>}, {transform_indices = @transform_19, window_bounds = array<i64: 8, 128>}]} {
    %c0 = arith.constant 0 : index
    %c0_0 = arith.constant 0 : index
    %0 = vector.load %arg1[%c0, %c0_0] : memref<8x1392xbf16, #tpu.memory_space<vmem>>, vector<8x1392xbf16>
    %c0_1 = arith.constant 0 : index
    %c0_2 = arith.constant 0 : index
    %1 = vector.load %arg4[%c0_1, %c0_2] : memref<1392x256xbf16, #tpu.memory_space<vmem>>, vector<1392x256xbf16>
    %cst = arith.constant dense<0.000000e+00> : vector<8x256xf32>
    %2 = tpu.matmul %0, %1, %cst {dimension_numbers = #tpu.dot_dimension_numbers<[1], [0], [0], [1], [0, 0, 1, 1], [], []>} : vector<8x1392xbf16>, vector<1392x256xbf16>, vector<8x256xf32> -> vector<8x256xf32>
    %c0_3 = arith.constant 0 : index
    %c0_4 = arith.constant 0 : index
    %3 = vector.load %arg5[%c0_3, %c0_4] : memref<1x256xf32, #tpu.memory_space<vmem>>, vector<1x256xf32>
    %4 = vector.broadcast %3 : vector<1x256xf32> to vector<8x256xf32>
    %5 = arith.addf %2, %4 : vector<8x256xf32>
    %cst_5 = arith.constant 0.000000e+00 : f32
    %6 = vector.broadcast %cst_5 : f32 to vector<8x256xf32>
    %7 = arith.maximumf %5, %6 : vector<8x256xf32>
    %8 = arith.truncf %7 : vector<8x256xf32> to vector<8x256xbf16>
    %c0_6 = arith.constant 0 : index
    %c0_7 = arith.constant 0 : index
    %9 = vector.load %arg2[%c0_6, %c0_7] : memref<8x1392xbf16, #tpu.memory_space<vmem>>, vector<8x1392xbf16>
    %c0_8 = arith.constant 0 : index
    %c0_9 = arith.constant 0 : index
    %10 = vector.load %arg6[%c0_8, %c0_9] : memref<1392x128xbf16, #tpu.memory_space<vmem>>, vector<1392x128xbf16>
    %cst_10 = arith.constant dense<0.000000e+00> : vector<8x128xf32>
    %11 = tpu.matmul %9, %10, %cst_10 {dimension_numbers = #tpu.dot_dimension_numbers<[1], [0], [0], [1], [0, 0, 1, 1], [], []>} : vector<8x1392xbf16>, vector<1392x128xbf16>, vector<8x128xf32> -> vector<8x128xf32>
    %c0_11 = arith.constant 0 : index
    %c0_12 = arith.constant 0 : index
    %12 = vector.load %arg7[%c0_11, %c0_12] : memref<1x128xf32, #tpu.memory_space<vmem>>, vector<1x128xf32>
    %13 = vector.broadcast %12 : vector<1x128xf32> to vector<8x128xf32>
    %14 = arith.addf %11, %13 : vector<8x128xf32>
    %cst_13 = arith.constant 0.000000e+00 : f32
    %15 = vector.broadcast %cst_13 : f32 to vector<8x128xf32>
    %16 = arith.maximumf %14, %15 : vector<8x128xf32>
    %17 = arith.truncf %16 : vector<8x128xf32> to vector<8x128xbf16>
    %c0_14 = arith.constant 0 : index
    %c0_15 = arith.constant 0 : index
    %18 = vector.load %arg3[%c0_14, %c0_15] : memref<8x288xbf16, #tpu.memory_space<vmem>>, vector<8x288xbf16>
    %c0_16 = arith.constant 0 : index
    %c0_17 = arith.constant 0 : index
    %19 = vector.load %arg8[%c0_16, %c0_17] : memref<288x128xbf16, #tpu.memory_space<vmem>>, vector<288x128xbf16>
    %cst_18 = arith.constant dense<0.000000e+00> : vector<8x128xf32>
    %20 = tpu.matmul %18, %19, %cst_18 {dimension_numbers = #tpu.dot_dimension_numbers<[1], [0], [0], [1], [0, 0, 1, 1], [], []>} : vector<8x288xbf16>, vector<288x128xbf16>, vector<8x128xf32> -> vector<8x128xf32>
    %c0_19 = arith.constant 0 : index
    %c0_20 = arith.constant 0 : index
    %21 = vector.load %arg9[%c0_19, %c0_20] : memref<1x128xf32, #tpu.memory_space<vmem>>, vector<1x128xf32>
    %22 = vector.broadcast %21 : vector<1x128xf32> to vector<8x128xf32>
    %23 = arith.addf %20, %22 : vector<8x128xf32>
    %cst_21 = arith.constant 0.000000e+00 : f32
    %24 = vector.broadcast %cst_21 : f32 to vector<8x128xf32>
    %25 = arith.maximumf %23, %24 : vector<8x128xf32>
    %26 = arith.truncf %25 : vector<8x128xf32> to vector<8x128xbf16>
    %27 = tpu.concatenate %8, %17, %26 in 1 : vector<8x256xbf16>, vector<8x128xbf16>, vector<8x128xbf16> -> vector<8x512xbf16>
    %c0_22 = arith.constant 0 : index
    %c0_23 = arith.constant 0 : index
    %28 = vector.load %arg10[%c0_22, %c0_23] : memref<512x256xbf16, #tpu.memory_space<vmem>>, vector<512x256xbf16>
    %cst_24 = arith.constant dense<0.000000e+00> : vector<8x256xf32>
    %29 = tpu.matmul %27, %28, %cst_24 {dimension_numbers = #tpu.dot_dimension_numbers<[1], [0], [0], [1], [0, 0, 1, 1], [], []>} : vector<8x512xbf16>, vector<512x256xbf16>, vector<8x256xf32> -> vector<8x256xf32>
    %c0_25 = arith.constant 0 : index
    %c0_26 = arith.constant 0 : index
    %30 = vector.load %arg11[%c0_25, %c0_26] : memref<1x256xf32, #tpu.memory_space<vmem>>, vector<1x256xf32>
    %31 = vector.broadcast %30 : vector<1x256xf32> to vector<8x256xf32>
    %32 = arith.addf %29, %31 : vector<8x256xf32>
    %cst_27 = arith.constant 0.000000e+00 : f32
    %33 = vector.broadcast %cst_27 : f32 to vector<8x256xf32>
    %34 = arith.maximumf %32, %33 : vector<8x256xf32>
    %35 = arith.truncf %34 : vector<8x256xf32> to vector<8x256xbf16>
    %c0_28 = arith.constant 0 : index
    %c0_29 = arith.constant 0 : index
    %36 = vector.load %arg12[%c0_28, %c0_29] : memref<256x128xbf16, #tpu.memory_space<vmem>>, vector<256x128xbf16>
    %cst_30 = arith.constant dense<0.000000e+00> : vector<8x128xf32>
    %37 = tpu.matmul %35, %36, %cst_30 {dimension_numbers = #tpu.dot_dimension_numbers<[1], [0], [0], [1], [0, 0, 1, 1], [], []>} : vector<8x256xbf16>, vector<256x128xbf16>, vector<8x128xf32> -> vector<8x128xf32>
    %c0_31 = arith.constant 0 : index
    %c0_32 = arith.constant 0 : index
    %38 = vector.load %arg13[%c0_31, %c0_32] : memref<1x128xf32, #tpu.memory_space<vmem>>, vector<1x128xf32>
    %39 = vector.broadcast %38 : vector<1x128xf32> to vector<8x128xf32>
    %40 = arith.addf %37, %39 : vector<8x128xf32>
    %cst_33 = arith.constant 0.000000e+00 : f32
    %41 = vector.broadcast %cst_33 : f32 to vector<8x128xf32>
    %42 = arith.maximumf %40, %41 : vector<8x128xf32>
    %43 = arith.truncf %42 : vector<8x128xf32> to vector<8x128xbf16>
    %c0_34 = arith.constant 0 : index
    %c0_35 = arith.constant 0 : index
    %44 = vector.load %arg14[%c0_34, %c0_35] : memref<128x128xbf16, #tpu.memory_space<vmem>>, vector<128x128xbf16>
    %cst_36 = arith.constant dense<0.000000e+00> : vector<8x128xf32>
    %45 = tpu.matmul %43, %44, %cst_36 {dimension_numbers = #tpu.dot_dimension_numbers<[1], [0], [0], [1], [0, 0, 1, 1], [], []>} : vector<8x128xbf16>, vector<128x128xbf16>, vector<8x128xf32> -> vector<8x128xf32>
    %c0_37 = arith.constant 0 : index
    %c0_38 = arith.constant 0 : index
    %46 = vector.load %arg15[%c0_37, %c0_38] : memref<1x128xf32, #tpu.memory_space<vmem>>, vector<1x128xf32>
    %47 = vector.broadcast %46 : vector<1x128xf32> to vector<8x128xf32>
    %48 = arith.addf %45, %47 : vector<8x128xf32>
    %cst_39 = arith.constant 0.000000e+00 : f32
    %49 = vector.broadcast %cst_39 : f32 to vector<8x128xf32>
    %50 = arith.maximumf %48, %49 : vector<8x128xf32>
    %51 = arith.truncf %50 : vector<8x128xf32> to vector<8x128xbf16>
    %c0_40 = arith.constant 0 : index
    %c0_41 = arith.constant 0 : index
    %52 = vector.load %arg16[%c0_40, %c0_41] : memref<128x128xbf16, #tpu.memory_space<vmem>>, vector<128x128xbf16>
    %cst_42 = arith.constant dense<0.000000e+00> : vector<8x128xf32>
    %53 = tpu.matmul %51, %52, %cst_42 {dimension_numbers = #tpu.dot_dimension_numbers<[1], [0], [0], [1], [0, 0, 1, 1], [], []>} : vector<8x128xbf16>, vector<128x128xbf16>, vector<8x128xf32> -> vector<8x128xf32>
    %c0_43 = arith.constant 0 : index
    %c0_44 = arith.constant 0 : index
    %54 = vector.load %arg17[%c0_43, %c0_44] : memref<1x128xf32, #tpu.memory_space<vmem>>, vector<1x128xf32>
    %55 = vector.broadcast %54 : vector<1x128xf32> to vector<8x128xf32>
    %56 = arith.addf %53, %55 : vector<8x128xf32>
    %cst_45 = arith.constant 0.000000e+00 : f32
    %57 = vector.broadcast %cst_45 : f32 to vector<8x128xf32>
    %58 = arith.maximumf %56, %57 : vector<8x128xf32>
    %59 = arith.truncf %58 : vector<8x128xf32> to vector<8x128xbf16>
    %c0_46 = arith.constant 0 : index
    %c0_47 = arith.constant 0 : index
    %60 = vector.load %arg18[%c0_46, %c0_47] : memref<128x128xbf16, #tpu.memory_space<vmem>>, vector<128x128xbf16>
    %cst_48 = arith.constant dense<0.000000e+00> : vector<8x128xf32>
    %61 = tpu.matmul %59, %60, %cst_48 {dimension_numbers = #tpu.dot_dimension_numbers<[1], [0], [0], [1], [0, 0, 1, 1], [], []>} : vector<8x128xbf16>, vector<128x128xbf16>, vector<8x128xf32> -> vector<8x128xf32>
    %c0_49 = arith.constant 0 : index
    %c0_50 = arith.constant 0 : index
    %62 = vector.load %arg19[%c0_49, %c0_50] : memref<1x128xf32, #tpu.memory_space<vmem>>, vector<1x128xf32>
    %63 = vector.broadcast %62 : vector<1x128xf32> to vector<8x128xf32>
    %64 = arith.addf %61, %63 : vector<8x128xf32>
    %c0_51 = arith.constant 0 : index
    %c0_52 = arith.constant 0 : index
    %65 = vector.load %arg20[%c0_51, %c0_52] : memref<8x128xf32, #tpu.memory_space<vmem>>, vector<8x128xf32>
    tpu.vector_store %arg20[%c0_51, %c0_52], %64 {strides = array<i32>} : memref<8x128xf32, #tpu.memory_space<vmem>>, vector<8x128xf32>,
    return
  }
  func.func @transform_0(%arg0: i32) -> (i32, i32) {
    %c0_i32 = arith.constant 0 : i32
    %c0_i32_0 = arith.constant 0 : i32
    return %arg0, %c0_i32 : i32, i32
  }
  func.func @transform_1(%arg0: i32) -> (i32, i32) {
    %c0_i32 = arith.constant 0 : i32
    %c0_i32_0 = arith.constant 0 : i32
    return %arg0, %c0_i32 : i32, i32
  }
  func.func @transform_2(%arg0: i32) -> (i32, i32) {
    %c0_i32 = arith.constant 0 : i32
    %c0_i32_0 = arith.constant 0 : i32
    return %arg0, %c0_i32 : i32, i32
  }
  func.func @transform_3(%arg0: i32) -> (i32, i32) {
    %c0_i32 = arith.constant 0 : i32
    %c0_i32_0 = arith.constant 0 : i32
    %c0_i32_1 = arith.constant 0 : i32
    return %c0_i32, %c0_i32_0 : i32, i32
  }
  func.func @transform_4(%arg0: i32) -> (i32, i32) {
    %c0_i32 = arith.constant 0 : i32
    %c0_i32_0 = arith.constant 0 : i32
    %c0_i32_1 = arith.constant 0 : i32
    return %c0_i32, %c0_i32_0 : i32, i32
  }
  func.func @transform_5(%arg0: i32) -> (i32, i32) {
    %c0_i32 = arith.constant 0 : i32
    %c0_i32_0 = arith.constant 0 : i32
    %c0_i32_1 = arith.constant 0 : i32
    return %c0_i32, %c0_i32_0 : i32, i32
  }
  func.func @transform_6(%arg0: i32) -> (i32, i32) {
    %c0_i32 = arith.constant 0 : i32
    %c0_i32_0 = arith.constant 0 : i32
    %c0_i32_1 = arith.constant 0 : i32
    return %c0_i32, %c0_i32_0 : i32, i32
  }
  func.func @transform_7(%arg0: i32) -> (i32, i32) {
    %c0_i32 = arith.constant 0 : i32
    %c0_i32_0 = arith.constant 0 : i32
    %c0_i32_1 = arith.constant 0 : i32
    return %c0_i32, %c0_i32_0 : i32, i32
  }
  func.func @transform_8(%arg0: i32) -> (i32, i32) {
    %c0_i32 = arith.constant 0 : i32
    %c0_i32_0 = arith.constant 0 : i32
    %c0_i32_1 = arith.constant 0 : i32
    return %c0_i32, %c0_i32_0 : i32, i32
  }
  func.func @transform_9(%arg0: i32) -> (i32, i32) {
    %c0_i32 = arith.constant 0 : i32
    %c0_i32_0 = arith.constant 0 : i32
    %c0_i32_1 = arith.constant 0 : i32
    return %c0_i32, %c0_i32_0 : i32, i32
  }
  func.func @transform_10(%arg0: i32) -> (i32, i32) {
    %c0_i32 = arith.constant 0 : i32
    %c0_i32_0 = arith.constant 0 : i32
    %c0_i32_1 = arith.constant 0 : i32
    return %c0_i32, %c0_i32_0 : i32, i32
  }
  func.func @transform_11(%arg0: i32) -> (i32, i32) {
    %c0_i32 = arith.constant 0 : i32
    %c0_i32_0 = arith.constant 0 : i32
    %c0_i32_1 = arith.constant 0 : i32
    return %c0_i32, %c0_i32_0 : i32, i32
  }
  func.func @transform_12(%arg0: i32) -> (i32, i32) {
    %c0_i32 = arith.constant 0 : i32
    %c0_i32_0 = arith.constant 0 : i32
    %c0_i32_1 = arith.constant 0 : i32
    return %c0_i32, %c0_i32_0 : i32, i32
  }
  func.func @transform_13(%arg0: i32) -> (i32, i32) {
    %c0_i32 = arith.constant 0 : i32
    %c0_i32_0 = arith.constant 0 : i32
    %c0_i32_1 = arith.constant 0 : i32
    return %c0_i32, %c0_i32_0 : i32, i32
  }
  func.func @transform_14(%arg0: i32) -> (i32, i32) {
    %c0_i32 = arith.constant 0 : i32
    %c0_i32_0 = arith.constant 0 : i32
    %c0_i32_1 = arith.constant 0 : i32
    return %c0_i32, %c0_i32_0 : i32, i32
  }
  func.func @transform_15(%arg0: i32) -> (i32, i32) {
    %c0_i32 = arith.constant 0 : i32
    %c0_i32_0 = arith.constant 0 : i32
    %c0_i32_1 = arith.constant 0 : i32
    return %c0_i32, %c0_i32_0 : i32, i32
  }
  func.func @transform_16(%arg0: i32) -> (i32, i32) {
    %c0_i32 = arith.constant 0 : i32
    %c0_i32_0 = arith.constant 0 : i32
    %c0_i32_1 = arith.constant 0 : i32
    return %c0_i32, %c0_i32_0 : i32, i32
  }
  func.func @transform_17(%arg0: i32) -> (i32, i32) {
    %c0_i32 = arith.constant 0 : i32
    %c0_i32_0 = arith.constant 0 : i32
    %c0_i32_1 = arith.constant 0 : i32
    return %c0_i32, %c0_i32_0 : i32, i32
  }
  func.func @transform_18(%arg0: i32) -> (i32, i32) {
    %c0_i32 = arith.constant 0 : i32
    %c0_i32_0 = arith.constant 0 : i32
    %c0_i32_1 = arith.constant 0 : i32
    return %c0_i32, %c0_i32_0 : i32, i32
  }
  func.func @transform_19(%arg0: i32) -> (i32, i32) {
    %c0_i32 = arith.constant 0 : i32
    %c0_i32_0 = arith.constant 0 : i32
    return %arg0, %c0_i32 : i32, i32
  }
}

module attributes {stable_mosaic.version = 11 : i64} {
  func.func @_base_predictor_kernel(%arg0: i32, %arg1: memref<8x1392xbf16, #tpu.memory_space<vmem>>, %arg2: memref<8x1392xbf16, #tpu.memory_space<vmem>>, %arg3: memref<8x288xbf16, #tpu.memory_space<vmem>>, %arg4: memref<1392x256xbf16, #tpu.memory_space<vmem>>, %arg5: memref<1x256xf32, #tpu.memory_space<vmem>>, %arg6: memref<1392x128xbf16, #tpu.memory_space<vmem>>, %arg7: memref<1x128xf32, #tpu.memory_space<vmem>>, %arg8: memref<288x128xbf16, #tpu.memory_space<vmem>>, %arg9: memref<1x128xf32, #tpu.memory_space<vmem>>, %arg10: memref<512x256xbf16, #tpu.memory_space<vmem>>, %arg11: memref<1x256xf32, #tpu.memory_space<vmem>>, %arg12: memref<256x128xbf16, #tpu.memory_space<vmem>>, %arg13: memref<1x128xf32, #tpu.memory_space<vmem>>, %arg14: memref<128x128xbf16, #tpu.memory_space<vmem>>, %arg15: memref<1x128xf32, #tpu.memory_space<vmem>>, %arg16: memref<128x128xbf16, #tpu.memory_space<vmem>>, %arg17: memref<1x128xf32, #tpu.memory_space<vmem>>, %arg18: memref<128x128xbf16, #tpu.memory_space<vmem>>, %arg19: memref<1x128xf32, #tpu.memory_space<vmem>>, %arg20: memref<8x128xf32, #tpu.memory_space<vmem>>) attributes {dimension_semantics = [#tpu.dimension_semantics<parallel>], iteration_bounds = array<i64: 2>, scalar_prefetch = 0 : i64, scratch_operands = 0 : i64, tpu.core_type = #tpu.core_type<tc>, window_params = [{transform_indices = @transform_0, window_bounds = array<i64: 8, 1392>}, {transform_indices = @transform_1, window_bounds = array<i64: 8, 1392>}, {transform_indices = @transform_2, window_bounds = array<i64: 8, 288>}, {pipeline_mode = #tpu.pipeline_mode<synchronous>, transform_indices = @transform_3, window_bounds = array<i64: 1392, 256>}, {pipeline_mode = #tpu.pipeline_mode<synchronous>, transform_indices = @transform_4, window_bounds = array<i64: 1, 256>}, {pipeline_mode = #tpu.pipeline_mode<synchronous>, transform_indices = @transform_5, window_bounds = array<i64: 1392, 128>}, {pipeline_mode = #tpu.pipeline_mode<synchronous>, transform_indices = @transform_6, window_bounds = array<i64: 1, 128>}, {pipeline_mode = #tpu.pipeline_mode<synchronous>, transform_indices = @transform_7, window_bounds = array<i64: 288, 128>}, {pipeline_mode = #tpu.pipeline_mode<synchronous>, transform_indices = @transform_8, window_bounds = array<i64: 1, 128>}, {pipeline_mode = #tpu.pipeline_mode<synchronous>, transform_indices = @transform_9, window_bounds = array<i64: 512, 256>}, {pipeline_mode = #tpu.pipeline_mode<synchronous>, transform_indices = @transform_10, window_bounds = array<i64: 1, 256>}, {pipeline_mode = #tpu.pipeline_mode<synchronous>, transform_indices = @transform_11, window_bounds = array<i64: 256, 128>}, {pipeline_mode = #tpu.pipeline_mode<synchronous>, transform_indices = @transform_12, window_bounds = array<i64: 1, 128>}, {pipeline_mode = #tpu.pipeline_mode<synchronous>, transform_indices = @transform_13, window_bounds = array<i64: 128, 128>}, {pipeline_mode = #tpu.pipeline_mode<synchronous>, transform_indices = @transform_14, window_bounds = array<i64: 1, 128>}, {pipeline_mode = #tpu.pipeline_mode<synchronous>, transform_indices = @transform_15, window_bounds = array<i64: 128, 128>}, {pipeline_mode = #tpu.pipeline_mode<synchronous>, transform_indices = @transform_16, window_bounds = array<i64: 1, 128>}, {pipeline_mode = #tpu.pipeline_mode<synchronous>, transform_indices = @transform_17, window_bounds = array<i64: 128, 128>}, {pipeline_mode = #tpu.pipeline_mode<synchronous>, transform_indices = @transform_18, window_bounds = array<i64: 1, 128>}, {transform_indices = @transform_19, window_bounds = array<i64: 8, 128>}]} {
    %c0 = arith.constant 0 : index
    %c0_0 = arith.constant 0 : index
    %0 = vector.load %arg1[%c0, %c0_0] : memref<8x1392xbf16, #tpu.memory_space<vmem>>, vector<8x1392xbf16>
    %c0_1 = arith.constant 0 : index
    %c0_2 = arith.constant 0 : index
    %1 = vector.load %arg4[%c0_1, %c0_2] : memref<1392x256xbf16, #tpu.memory_space<vmem>>, vector<1392x256xbf16>
    %cst = arith.constant dense<0.000000e+00> : vector<8x256xf32>
    %2 = tpu.matmul %0, %1, %cst {dimension_numbers = #tpu.dot_dimension_numbers<[1], [0], [0], [1], [0, 0, 1, 1], [], []>} : vector<8x1392xbf16>, vector<1392x256xbf16>, vector<8x256xf32> -> vector<8x256xf32>
    %c0_3 = arith.constant 0 : index
    %c0_4 = arith.constant 0 : index
    %3 = vector.load %arg5[%c0_3, %c0_4] : memref<1x256xf32, #tpu.memory_space<vmem>>, vector<1x256xf32>
    %4 = vector.broadcast %3 : vector<1x256xf32> to vector<8x256xf32>
    %5 = arith.addf %2, %4 : vector<8x256xf32>
    %cst_5 = arith.constant 0.000000e+00 : f32
    %6 = vector.broadcast %cst_5 : f32 to vector<8x256xf32>
    %7 = arith.maximumf %5, %6 : vector<8x256xf32>
    %8 = arith.truncf %7 : vector<8x256xf32> to vector<8x256xbf16>
    %c0_6 = arith.constant 0 : index
    %c0_7 = arith.constant 0 : index
    %9 = vector.load %arg2[%c0_6, %c0_7] : memref<8x1392xbf16, #tpu.memory_space<vmem>>, vector<8x1392xbf16>
    %c0_8 = arith.constant 0 : index
    %c0_9 = arith.constant 0 : index
    %10 = vector.load %arg6[%c0_8, %c0_9] : memref<1392x128xbf16, #tpu.memory_space<vmem>>, vector<1392x128xbf16>
    %cst_10 = arith.constant dense<0.000000e+00> : vector<8x128xf32>
    %11 = tpu.matmul %9, %10, %cst_10 {dimension_numbers = #tpu.dot_dimension_numbers<[1], [0], [0], [1], [0, 0, 1, 1], [], []>} : vector<8x1392xbf16>, vector<1392x128xbf16>, vector<8x128xf32> -> vector<8x128xf32>
    %c0_11 = arith.constant 0 : index
    %c0_12 = arith.constant 0 : index
    %12 = vector.load %arg7[%c0_11, %c0_12] : memref<1x128xf32, #tpu.memory_space<vmem>>, vector<1x128xf32>
    %13 = vector.broadcast %12 : vector<1x128xf32> to vector<8x128xf32>
    %14 = arith.addf %11, %13 : vector<8x128xf32>
    %cst_13 = arith.constant 0.000000e+00 : f32
    %15 = vector.broadcast %cst_13 : f32 to vector<8x128xf32>
    %16 = arith.maximumf %14, %15 : vector<8x128xf32>
    %17 = arith.truncf %16 : vector<8x128xf32> to vector<8x128xbf16>
    %c0_14 = arith.constant 0 : index
    %c0_15 = arith.constant 0 : index
    %18 = vector.load %arg3[%c0_14, %c0_15] : memref<8x288xbf16, #tpu.memory_space<vmem>>, vector<8x288xbf16>
    %c0_16 = arith.constant 0 : index
    %c0_17 = arith.constant 0 : index
    %19 = vector.load %arg8[%c0_16, %c0_17] : memref<288x128xbf16, #tpu.memory_space<vmem>>, vector<288x128xbf16>
    %cst_18 = arith.constant dense<0.000000e+00> : vector<8x128xf32>
    %20 = tpu.matmul %18, %19, %cst_18 {dimension_numbers = #tpu.dot_dimension_numbers<[1], [0], [0], [1], [0, 0, 1, 1], [], []>} : vector<8x288xbf16>, vector<288x128xbf16>, vector<8x128xf32> -> vector<8x128xf32>
    %c0_19 = arith.constant 0 : index
    %c0_20 = arith.constant 0 : index
    %21 = vector.load %arg9[%c0_19, %c0_20] : memref<1x128xf32, #tpu.memory_space<vmem>>, vector<1x128xf32>
    %22 = vector.broadcast %21 : vector<1x128xf32> to vector<8x128xf32>
    %23 = arith.addf %20, %22 : vector<8x128xf32>
    %cst_21 = arith.constant 0.000000e+00 : f32
    %24 = vector.broadcast %cst_21 : f32 to vector<8x128xf32>
    %25 = arith.maximumf %23, %24 : vector<8x128xf32>
    %26 = arith.truncf %25 : vector<8x128xf32> to vector<8x128xbf16>
    %27 = tpu.concatenate %8, %17, %26 in 1 : vector<8x256xbf16>, vector<8x128xbf16>, vector<8x128xbf16> -> vector<8x512xbf16>
    %c0_22 = arith.constant 0 : index
    %c0_23 = arith.constant 0 : index
    %28 = vector.load %arg10[%c0_22, %c0_23] : memref<512x256xbf16, #tpu.memory_space<vmem>>, vector<512x256xbf16>
    %cst_24 = arith.constant dense<0.000000e+00> : vector<8x256xf32>
    %29 = tpu.matmul %27, %28, %cst_24 {dimension_numbers = #tpu.dot_dimension_numbers<[1], [0], [0], [1], [0, 0, 1, 1], [], []>} : vector<8x512xbf16>, vector<512x256xbf16>, vector<8x256xf32> -> vector<8x256xf32>
    %c0_25 = arith.constant 0 : index
    %c0_26 = arith.constant 0 : index
    %30 = vector.load %arg11[%c0_25, %c0_26] : memref<1x256xf32, #tpu.memory_space<vmem>>, vector<1x256xf32>
    %31 = vector.broadcast %30 : vector<1x256xf32> to vector<8x256xf32>
    %32 = arith.addf %29, %31 : vector<8x256xf32>
    %cst_27 = arith.constant 0.000000e+00 : f32
    %33 = vector.broadcast %cst_27 : f32 to vector<8x256xf32>
    %34 = arith.maximumf %32, %33 : vector<8x256xf32>
    %35 = arith.truncf %34 : vector<8x256xf32> to vector<8x256xbf16>
    %c0_28 = arith.constant 0 : index
    %c0_29 = arith.constant 0 : index
    %36 = vector.load %arg12[%c0_28, %c0_29] : memref<256x128xbf16, #tpu.memory_space<vmem>>, vector<256x128xbf16>
    %cst_30 = arith.constant dense<0.000000e+00> : vector<8x128xf32>
    %37 = tpu.matmul %35, %36, %cst_30 {dimension_numbers = #tpu.dot_dimension_numbers<[1], [0], [0], [1], [0, 0, 1, 1], [], []>} : vector<8x256xbf16>, vector<256x128xbf16>, vector<8x128xf32> -> vector<8x128xf32>
    %c0_31 = arith.constant 0 : index
    %c0_32 = arith.constant 0 : index
    %38 = vector.load %arg13[%c0_31, %c0_32] : memref<1x128xf32, #tpu.memory_space<vmem>>, vector<1x128xf32>
    %39 = vector.broadcast %38 : vector<1x128xf32> to vector<8x128xf32>
    %40 = arith.addf %37, %39 : vector<8x128xf32>
    %cst_33 = arith.constant 0.000000e+00 : f32
    %41 = vector.broadcast %cst_33 : f32 to vector<8x128xf32>
    %42 = arith.maximumf %40, %41 : vector<8x128xf32>
    %43 = arith.truncf %42 : vector<8x128xf32> to vector<8x128xbf16>
    %c0_34 = arith.constant 0 : index
    %c0_35 = arith.constant 0 : index
    %44 = vector.load %arg14[%c0_34, %c0_35] : memref<128x128xbf16, #tpu.memory_space<vmem>>, vector<128x128xbf16>
    %cst_36 = arith.constant dense<0.000000e+00> : vector<8x128xf32>
    %45 = tpu.matmul %43, %44, %cst_36 {dimension_numbers = #tpu.dot_dimension_numbers<[1], [0], [0], [1], [0, 0, 1, 1], [], []>} : vector<8x128xbf16>, vector<128x128xbf16>, vector<8x128xf32> -> vector<8x128xf32>
    %c0_37 = arith.constant 0 : index
    %c0_38 = arith.constant 0 : index
    %46 = vector.load %arg15[%c0_37, %c0_38] : memref<1x128xf32, #tpu.memory_space<vmem>>, vector<1x128xf32>
    %47 = vector.broadcast %46 : vector<1x128xf32> to vector<8x128xf32>
    %48 = arith.addf %45, %47 : vector<8x128xf32>
    %cst_39 = arith.constant 0.000000e+00 : f32
    %49 = vector.broadcast %cst_39 : f32 to vector<8x128xf32>
    %50 = arith.maximumf %48, %49 : vector<8x128xf32>
    %51 = arith.truncf %50 : vector<8x128xf32> to vector<8x128xbf16>
    %c0_40 = arith.constant 0 : index
    %c0_41 = arith.constant 0 : index
    %52 = vector.load %arg16[%c0_40, %c0_41] : memref<128x128xbf16, #tpu.memory_space<vmem>>, vector<128x128xbf16>
    %cst_42 = arith.constant dense<0.000000e+00> : vector<8x128xf32>
    %53 = tpu.matmul %51, %52, %cst_42 {dimension_numbers = #tpu.dot_dimension_numbers<[1], [0], [0], [1], [0, 0, 1, 1], [], []>} : vector<8x128xbf16>, vector<128x128xbf16>, vector<8x128xf32> -> vector<8x128xf32>
    %c0_43 = arith.constant 0 : index
    %c0_44 = arith.constant 0 : index
    %54 = vector.load %arg17[%c0_43, %c0_44] : memref<1x128xf32, #tpu.memory_space<vmem>>, vector<1x128xf32>
    %55 = vector.broadcast %54 : vector<1x128xf32> to vector<8x128xf32>
    %56 = arith.addf %53, %55 : vector<8x128xf32>
    %cst_45 = arith.constant 0.000000e+00 : f32
    %57 = vector.broadcast %cst_45 : f32 to vector<8x128xf32>
    %58 = arith.maximumf %56, %57 : vector<8x128xf32>
    %59 = arith.truncf %58 : vector<8x128xf32> to vector<8x128xbf16>
    %c0_46 = arith.constant 0 : index
    %c0_47 = arith.constant 0 : index
    %60 = vector.load %arg18[%c0_46, %c0_47] : memref<128x128xbf16, #tpu.memory_space<vmem>>, vector<128x128xbf16>
    %cst_48 = arith.constant dense<0.000000e+00> : vector<8x128xf32>
    %61 = tpu.matmul %59, %60, %cst_48 {dimension_numbers = #tpu.dot_dimension_numbers<[1], [0], [0], [1], [0, 0, 1, 1], [], []>} : vector<8x128xbf16>, vector<128x128xbf16>, vector<8x128xf32> -> vector<8x128xf32>
    %c0_49 = arith.constant 0 : index
    %c0_50 = arith.constant 0 : index
    %62 = vector.load %arg19[%c0_49, %c0_50] : memref<1x128xf32, #tpu.memory_space<vmem>>, vector<1x128xf32>
    %63 = vector.broadcast %62 : vector<1x128xf32> to vector<8x128xf32>
    %64 = arith.addf %61, %63 : vector<8x128xf32>
    %c0_51 = arith.constant 0 : index
    %c0_52 = arith.constant 0 : index
    %65 = vector.load %arg20[%c0_51, %c0_52] : memref<8x128xf32, #tpu.memory_space<vmem>>, vector<8x128xf32>
    tpu.vector_store %arg20[%c0_51, %c0_52], %64 {strides = array<i32>} : memref<8x128xf32, #tpu.memory_space<vmem>>, vector<8x128xf32>,
    return
  }
  func.func @transform_0(%arg0: i32) -> (i32, i32) {
    %c0_i32 = arith.constant 0 : i32
    %c0_i32_0 = arith.constant 0 : i32
    return %arg0, %c0_i32 : i32, i32
  }
  func.func @transform_1(%arg0: i32) -> (i32, i32) {
    %c0_i32 = arith.constant 0 : i32
    %c0_i32_0 = arith.constant 0 : i32
    return %arg0, %c0_i32 : i32, i32
  }
  func.func @transform_2(%arg0: i32) -> (i32, i32) {
    %c0_i32 = arith.constant 0 : i32
    %c0_i32_0 = arith.constant 0 : i32
    return %arg0, %c0_i32 : i32, i32
  }
  func.func @transform_3(%arg0: i32) -> (i32, i32) {
    %c0_i32 = arith.constant 0 : i32
    %c0_i32_0 = arith.constant 0 : i32
    %c0_i32_1 = arith.constant 0 : i32
    return %c0_i32, %c0_i32_0 : i32, i32
  }
  func.func @transform_4(%arg0: i32) -> (i32, i32) {
    %c0_i32 = arith.constant 0 : i32
    %c0_i32_0 = arith.constant 0 : i32
    %c0_i32_1 = arith.constant 0 : i32
    return %c0_i32, %c0_i32_0 : i32, i32
  }
  func.func @transform_5(%arg0: i32) -> (i32, i32) {
    %c0_i32 = arith.constant 0 : i32
    %c0_i32_0 = arith.constant 0 : i32
    %c0_i32_1 = arith.constant 0 : i32
    return %c0_i32, %c0_i32_0 : i32, i32
  }
  func.func @transform_6(%arg0: i32) -> (i32, i32) {
    %c0_i32 = arith.constant 0 : i32
    %c0_i32_0 = arith.constant 0 : i32
    %c0_i32_1 = arith.constant 0 : i32
    return %c0_i32, %c0_i32_0 : i32, i32
  }
  func.func @transform_7(%arg0: i32) -> (i32, i32) {
    %c0_i32 = arith.constant 0 : i32
    %c0_i32_0 = arith.constant 0 : i32
    %c0_i32_1 = arith.constant 0 : i32
    return %c0_i32, %c0_i32_0 : i32, i32
  }
  func.func @transform_8(%arg0: i32) -> (i32, i32) {
    %c0_i32 = arith.constant 0 : i32
    %c0_i32_0 = arith.constant 0 : i32
    %c0_i32_1 = arith.constant 0 : i32
    return %c0_i32, %c0_i32_0 : i32, i32
  }
  func.func @transform_9(%arg0: i32) -> (i32, i32) {
    %c0_i32 = arith.constant 0 : i32
    %c0_i32_0 = arith.constant 0 : i32
    %c0_i32_1 = arith.constant 0 : i32
    return %c0_i32, %c0_i32_0 : i32, i32
  }
  func.func @transform_10(%arg0: i32) -> (i32, i32) {
    %c0_i32 = arith.constant 0 : i32
    %c0_i32_0 = arith.constant 0 : i32
    %c0_i32_1 = arith.constant 0 : i32
    return %c0_i32, %c0_i32_0 : i32, i32
  }
  func.func @transform_11(%arg0: i32) -> (i32, i32) {
    %c0_i32 = arith.constant 0 : i32
    %c0_i32_0 = arith.constant 0 : i32
    %c0_i32_1 = arith.constant 0 : i32
    return %c0_i32, %c0_i32_0 : i32, i32
  }
  func.func @transform_12(%arg0: i32) -> (i32, i32) {
    %c0_i32 = arith.constant 0 : i32
    %c0_i32_0 = arith.constant 0 : i32
    %c0_i32_1 = arith.constant 0 : i32
    return %c0_i32, %c0_i32_0 : i32, i32
  }
  func.func @transform_13(%arg0: i32) -> (i32, i32) {
    %c0_i32 = arith.constant 0 : i32
    %c0_i32_0 = arith.constant 0 : i32
    %c0_i32_1 = arith.constant 0 : i32
    return %c0_i32, %c0_i32_0 : i32, i32
  }
  func.func @transform_14(%arg0: i32) -> (i32, i32) {
    %c0_i32 = arith.constant 0 : i32
    %c0_i32_0 = arith.constant 0 : i32
    %c0_i32_1 = arith.constant 0 : i32
    return %c0_i32, %c0_i32_0 : i32, i32
  }
  func.func @transform_15(%arg0: i32) -> (i32, i32) {
    %c0_i32 = arith.constant 0 : i32
    %c0_i32_0 = arith.constant 0 : i32
    %c0_i32_1 = arith.constant 0 : i32
    return %c0_i32, %c0_i32_0 : i32, i32
  }
  func.func @transform_16(%arg0: i32) -> (i32, i32) {
    %c0_i32 = arith.constant 0 : i32
    %c0_i32_0 = arith.constant 0 : i32
    %c0_i32_1 = arith.constant 0 : i32
    return %c0_i32, %c0_i32_0 : i32, i32
  }
  func.func @transform_17(%arg0: i32) -> (i32, i32) {
    %c0_i32 = arith.constant 0 : i32
    %c0_i32_0 = arith.constant 0 : i32
    %c0_i32_1 = arith.constant 0 : i32
    return %c0_i32, %c0_i32_0 : i32, i32
  }
  func.func @transform_18(%arg0: i32) -> (i32, i32) {
    %c0_i32 = arith.constant 0 : i32
    %c0_i32_0 = arith.constant 0 : i32
    %c0_i32_1 = arith.constant 0 : i32
    return %c0_i32, %c0_i32_0 : i32, i32
  }
  func.func @transform_19(%arg0: i32) -> (i32, i32) {
    %c0_i32 = arith.constant 0 : i32
    %c0_i32_0 = arith.constant 0 : i32
    return %arg0, %c0_i32 : i32, i32
  }
}

</mosaic_0001>

<llo_original>
// kernel: tpu_custom_call.1
$region0: #{tpu_custom_call.1}
  #allocation0 [shape = 'u32[]', space=smem, size = 0x4, offset = 0x4, fixed_abs, tag = 'smem constant byte address 0x4 - core index']
  #allocation1 [shape = 'u32[144,128]{1,0:T(1,128)}', space=vmem, size = 0x12000, scoped, tag = 'internal scratch']
  %s0 = inlined_call_operand.hbm [shape: bf16[16,1392], index: 0, kind: input, shape index: {}]
  %s1 = inlined_call_operand.hbm [shape: bf16[16,1392], index: 1, kind: input, shape index: {}]
  %s2 = inlined_call_operand.hbm [shape: bf16[16,288], index: 2, kind: input, shape index: {}]
  %s3 = inlined_call_operand.hbm [shape: bf16[1392,256], index: 3, kind: input, shape index: {}]
  %s4 = inlined_call_operand.hbm [shape: f32[1,256], index: 4, kind: input, shape index: {}]
  %s5 = inlined_call_operand.hbm [shape: bf16[1392,128], index: 5, kind: input, shape index: {}]
  %s6 = inlined_call_operand.hbm [shape: f32[1,128], index: 6, kind: input, shape index: {}]
  %s7 = inlined_call_operand.hbm [shape: bf16[288,128], index: 7, kind: input, shape index: {}]
  %s8 = inlined_call_operand.hbm [shape: f32[1,128], index: 8, kind: input, shape index: {}]
  %s9 = inlined_call_operand.hbm [shape: bf16[512,256], index: 9, kind: input, shape index: {}]
  %s10 = inlined_call_operand.hbm [shape: f32[1,256], index: 10, kind: input, shape index: {}]
  %s11 = inlined_call_operand.hbm [shape: bf16[256,128], index: 11, kind: input, shape index: {}]
  %s12 = inlined_call_operand.hbm [shape: f32[1,128], index: 12, kind: input, shape index: {}]
  %s13 = inlined_call_operand.hbm [shape: bf16[128,128], index: 13, kind: input, shape index: {}]
  %s14 = inlined_call_operand.hbm [shape: f32[1,128], index: 14, kind: input, shape index: {}]
  %s15 = inlined_call_operand.hbm [shape: bf16[128,128], index: 15, kind: input, shape index: {}]
  %s16 = inlined_call_operand.hbm [shape: f32[1,128], index: 16, kind: input, shape index: {}]
  %s17 = inlined_call_operand.vmem [shape: bf16[128,128], index: 17, kind: input, shape index: {}]
  %s18 = inlined_call_operand.vmem [shape: f32[1,128], index: 18, kind: input, shape index: {}]
  %s19 = inlined_call_operand.hbm [shape: f32[16,128], index: 19, kind: output, shape index: {}]
  %s20 = sld [smem:[#allocation0]]
  $region177: #{tpu_custom_call.1} parent=0
    _
  %s22 = ssub.s32 1, %s20
  %s23 = scalar_select 0, %s22, %s20
  $region1: #{tpu_custom_call.1} parent=0
    #allocation2 [shape = 'u8[45056]{0}', space=vmem, size = 0xb000, scoped, tag = 'input window, operand 0']
    #allocation3 [shape = 's32[2]{0}', space=sflag, size = 0x8, scoped, tag = 'scoped memory for tpu_custom_call.1']
    #allocation4 [shape = 's32[2]{0}', space=sflag, size = 0x8, scoped, tag = 'scoped memory for tpu_custom_call.1']
    #allocation5 [shape = 'u8[45056]{0}', space=vmem, size = 0xb000, scoped, tag = 'input window, operand 1']
    #allocation6 [shape = 's32[2]{0}', space=sflag, size = 0x8, scoped, tag = 'scoped memory for tpu_custom_call.1']
    #allocation7 [shape = 'u8[12288]{0}', space=vmem, size = 0x3000, scoped, tag = 'input window, operand 2']
    #allocation8 [shape = 'u8[712704]{0}', space=vmem, size = 0xae000, scoped, tag = 'input window, operand 3, single buffered']
    #allocation9 [shape = 's32[1]{0}', space=sflag, size = 0x4, scoped, tag = 'scoped memory for tpu_custom_call.1']
    #allocation10 [shape = 'u8[1024]{0}', space=vmem, size = 0x400, scoped, tag = 'input window, operand 4, single buffered']
    #allocation11 [shape = 'u8[356352]{0}', space=vmem, size = 0x57000, scoped, tag = 'input window, operand 5, single buffered']
    #allocation12 [shape = 's32[1]{0}', space=sflag, size = 0x4, scoped, tag = 'scoped memory for tpu_custom_call.1']
    #allocation13 [shape = 'u8[512]{0}', space=vmem, size = 0x400, scoped, tag = 'input window, operand 6, single buffered']
    #allocation14 [shape = 'u8[73728]{0}', space=vmem, size = 0x12000, scoped, tag = 'input window, operand 7, single buffered']
    #allocation15 [shape = 's32[1]{0}', space=sflag, size = 0x4, scoped, tag = 'scoped memory for tpu_custom_call.1']
    #allocation16 [shape = 'u8[512]{0}', space=vmem, size = 0x400, scoped, tag = 'input window, operand 8, single buffered']
    #allocation17 [shape = 'u8[262144]{0}', space=vmem, size = 0x40000, scoped, tag = 'input window, operand 9, single buffered']
    #allocation18 [shape = 's32[1]{0}', space=sflag, size = 0x4, scoped, tag = 'scoped memory for tpu_custom_call.1']
    #allocation19 [shape = 'u8[1024]{0}', space=vmem, size = 0x400, scoped, tag = 'input window, operand 10, single buffered']
    #allocation20 [shape = 'u8[65536]{0}', space=vmem, size = 0x10000, scoped, tag = 'input window, operand 11, single buffered']
    #allocation21 [shape = 's32[1]{0}', space=sflag, size = 0x4, scoped, tag = 'scoped memory for tpu_custom_call.1']
    #allocation22 [shape = 'u8[512]{0}', space=vmem, size = 0x400, scoped, tag = 'input window, operand 12, single buffered']
    #allocation23 [shape = 'u8[32768]{0}', space=vmem, size = 0x8000, scoped, tag = 'input window, operand 13, single buffered']
    #allocation24 [shape = 's32[1]{0}', space=sflag, size = 0x4, scoped, tag = 'scoped memory for tpu_custom_call.1']
    #allocation25 [shape = 'u8[512]{0}', space=vmem, size = 0x400, scoped, tag = 'input window, operand 14, single buffered']
    #allocation26 [shape = 'u8[32768]{0}', space=vmem, size = 0x8000, scoped, tag = 'input window, operand 15, single buffered']
    #allocation27 [shape = 's32[1]{0}', space=sflag, size = 0x4, scoped, tag = 'scoped memory for tpu_custom_call.1']
    #allocation28 [shape = 'u8[512]{0}', space=vmem, size = 0x400, scoped, tag = 'input window, operand 16, single buffered']
    #allocation29 [shape = 'u8[8192]{0}', space=vmem, size = 0x2000, scoped, tag = 'output window, operand 0']
    %24 = vsyncpa [#allocation3], 0
    %s25 = scalar_lea.sflag [#allocation3], 1
    %26 = vsyncpa %s25, 0
    %27 = vsyncpa [#allocation6], 0
    %s28 = scalar_lea.sflag [#allocation6], 1
    %29 = vsyncpa %s28, 0
    %30 = vsyncpa [#allocation9], 0
    %31 = vsyncpa [#allocation12], 0
    %32 = vsyncpa [#allocation15], 0
    %33 = vsyncpa [#allocation18], 0
    %34 = vsyncpa [#allocation21], 0
    %35 = vsyncpa [#allocation24], 0
    %36 = vsyncpa [#allocation27], 0
    %37 = vsyncpa [#allocation4], 0
    %s38 = scalar_lea.sflag [#allocation4], 1
    %39 = vsyncpa %s38, 0
    loop: start=0, step=1, limit=4
    $region2: #{tpu_custom_call.1} parent=1 // loop_pre_header
      _
    $region3: #{tpu_custom_call.1} parent=1 // loop_header
      %s41 = sphi 0, %s45
      %p42 = scmp.ge.s32.totalorder %s41, 4
      %s51 = sphi 0, %s53
      %s54 = sphi 0, %s51
      %s55 = sphi 0, %s54
      %s71 = sphi 0, %s55
      %s77 = sphi 0, %s79
      %s80 = sphi 0, %s77
      %s81 = sphi 0, %s80
      %s97 = sphi 0, %s81
      %s103 = sphi 0, %s105
      %s106 = sphi 0, %s103
      %s107 = sphi 0, %s106
      %s123 = sphi 0, %s107
      %s127 = sphi 0, %s127
      %s129 = sphi 0, %s127
      %s130 = sphi 0, %s129
      %s144 = sphi 0, %s130
      %s148 = sphi 0, %s148
      %s150 = sphi 0, %s148
      %s151 = sphi 0, %s150
      %s165 = sphi 0, %s151
      %s169 = sphi 0, %s169
      %s171 = sphi 0, %s169
      %s172 = sphi 0, %s171
      %s186 = sphi 0, %s172
      %s190 = sphi 0, %s190
      %s192 = sphi 0, %s190
      %s193 = sphi 0, %s192
      %s207 = sphi 0, %s193
      %s211 = sphi 0, %s211
      %s213 = sphi 0, %s211
      %s214 = sphi 0, %s213
      %s228 = sphi 0, %s214
      %s232 = sphi 0, %s232
      %s234 = sphi 0, %s232
      %s235 = sphi 0, %s234
      %s249 = sphi 0, %s235
      %s253 = sphi 0, %s253
      %s255 = sphi 0, %s253
      %s256 = sphi 0, %s255
      %s270 = sphi 0, %s256
      %s274 = sphi 0, %s274
      %s276 = sphi 0, %s274
      %s277 = sphi 0, %s276
      %s291 = sphi 0, %s277
      %s295 = sphi 0, %s295
      %s297 = sphi 0, %s295
      %s298 = sphi 0, %s297
      %s312 = sphi 0, %s298
      %s316 = sphi 0, %s316
      %s318 = sphi 0, %s316
      %s319 = sphi 0, %s318
      %s333 = sphi 0, %s319
      %s337 = sphi 0, %s337
      %s339 = sphi 0, %s337
      %s340 = sphi 0, %s339
      %s354 = sphi 0, %s340
      %s358 = sphi 0, %s358
      %s360 = sphi 0, %s358
      %s361 = sphi 0, %s360
      %s375 = sphi 0, %s361
      %s379 = sphi 0, %s379
      %s381 = sphi 0, %s379
      %s382 = sphi 0, %s381
      %s396 = sphi 0, %s382
      %s400 = sphi 0, %s400
      %s402 = sphi 0, %s400
      %s403 = sphi 0, %s402
      %s417 = sphi 0, %s403
      %s421 = sphi 0, %s421
      %s423 = sphi 0, %s421
      %s424 = sphi 0, %s423
      %s438 = sphi 0, %s424
      %s442 = sphi 0, %s442
      %s444 = sphi 0, %s442
      %s445 = sphi 0, %s444
      %s459 = sphi 0, %s445
      %s465 = sphi 0, %s467
      %s468 = sphi 0, %s465
      %s469 = sphi 0, %s468
      %s485 = sphi 0, %s469
    $region4: #{tpu_custom_call.1} parent=1 // loop_header_branch
      %44 = sbr.rel (%p42) target = $region8
    $region5: #{tpu_custom_call.1} parent=1 // loop_body
      %s46 = ssub.s32 %s41, 1
      %s47 = ssub.s32 %s41, 2
      %s48 = sadd.s32 %s41, 1
      %s49 = ssub.s32 %s41, %s48
      %p50 = scmp.eq.s32.totalorder %s49, 0
      %s52 = sadd.s32 %s51, 1
      %s53 = scalar_select %p50, %s51, %s52
      %p56 = pneg %p50
      %p57 = scmp.eq.s32.totalorder %s41, 1
      %p58 = por %p56, %p57
      %p59 = scmp.ne.s32.totalorder %s51, %s54
      %p60 = scmp.eq.s32.totalorder %s41, 0
      %p61 = por %p59, %p60
      %p62 = scmp.ne.s32.totalorder %s51, %s54
      %p63 = scmp.eq.s32.totalorder %s46, 1
      %p64 = por %p62, %p63
      %p65 = scmp.ne.s32.totalorder %s54, %s55
      %p66 = scmp.eq.s32.totalorder %s46, 0
      %p67 = por %p65, %p66
      %p68 = scmp.ne.s32.totalorder %s54, %s55
      %p69 = scmp.eq.s32.totalorder %s47, 1
      %p70 = por %p68, %p69
      %p72 = scmp.ne.s32.totalorder %s55, %s71
      %p73 = scmp.eq.s32.totalorder %s47, 0
      %p74 = por %p72, %p73
      %s75 = ssub.s32 %s41, %s48
      %p76 = scmp.eq.s32.totalorder %s75, 0
      %s78 = sadd.s32 %s77, 1
      %s79 = scalar_select %p76, %s77, %s78
      %p82 = pneg %p76
      %p83 = scmp.eq.s32.totalorder %s41, 1
      %p84 = por %p82, %p83
      %p85 = scmp.ne.s32.totalorder %s77, %s80
      %p86 = scmp.eq.s32.totalorder %s41, 0
      %p87 = por %p85, %p86
      %p88 = scmp.ne.s32.totalorder %s77, %s80
      %p89 = scmp.eq.s32.totalorder %s46, 1
      %p90 = por %p88, %p89
      %p91 = scmp.ne.s32.totalorder %s80, %s81
      %p92 = scmp.eq.s32.totalorder %s46, 0
      %p93 = por %p91, %p92
      %p94 = scmp.ne.s32.totalorder %s80, %s81
      %p95 = scmp.eq.s32.totalorder %s47, 1
      %p96 = por %p94, %p95
      %p98 = scmp.ne.s32.totalorder %s81, %s97
      %p99 = scmp.eq.s32.totalorder %s47, 0
      %p100 = por %p98, %p99
      %s101 = ssub.s32 %s41, %s48
      %p102 = scmp.eq.s32.totalorder %s101, 0
      %s104 = sadd.s32 %s103, 1
      %s105 = scalar_select %p102, %s103, %s104
      %p108 = pneg %p102
      %p109 = scmp.eq.s32.totalorder %s41, 1
      %p110 = por %p108, %p109
      %p111 = scmp.ne.s32.totalorder %s103, %s106
      %p112 = scmp.eq.s32.totalorder %s41, 0
      %p113 = por %p111, %p112
      %p114 = scmp.ne.s32.totalorder %s103, %s106
      %p115 = scmp.eq.s32.totalorder %s46, 1
      %p116 = por %p114, %p115
      %p117 = scmp.ne.s32.totalorder %s106, %s107
      %p118 = scmp.eq.s32.totalorder %s46, 0
      %p119 = por %p117, %p118
      %p120 = scmp.ne.s32.totalorder %s106, %s107
      %p121 = scmp.eq.s32.totalorder %s47, 1
      %p122 = por %p120, %p121
      %p124 = scmp.ne.s32.totalorder %s107, %s123
      %p125 = scmp.eq.s32.totalorder %s47, 0
      %p126 = por %p124, %p125
      %s128 = sadd.s32 %s127, 1
      %p131 = scmp.eq.s32.totalorder %s41, 1
      %p132 = scmp.ne.s32.totalorder %s127, %s129
      %p133 = scmp.eq.s32.totalorder %s41, 0
      %p134 = por %p132, %p133
      %p135 = scmp.ne.s32.totalorder %s127, %s129
      %p136 = scmp.eq.s32.totalorder %s46, 1
      %p137 = por %p135, %p136
      %p138 = scmp.ne.s32.totalorder %s129, %s130
      %p139 = scmp.eq.s32.totalorder %s46, 0
      %p140 = por %p138, %p139
      %p141 = scmp.ne.s32.totalorder %s129, %s130
      %p142 = scmp.eq.s32.totalorder %s47, 1
      %p143 = por %p141, %p142
      %p145 = scmp.ne.s32.totalorder %s130, %s144
      %p146 = scmp.eq.s32.totalorder %s47, 0
      %p147 = por %p145, %p146
      %s149 = sadd.s32 %s148, 1
      %p152 = scmp.eq.s32.totalorder %s41, 1
      %p153 = scmp.ne.s32.totalorder %s148, %s150
      %p154 = scmp.eq.s32.totalorder %s41, 0
      %p155 = por %p153, %p154
      %p156 = scmp.ne.s32.totalorder %s148, %s150
      %p157 = scmp.eq.s32.totalorder %s46, 1
      %p158 = por %p156, %p157
      %p159 = scmp.ne.s32.totalorder %s150, %s151
      %p160 = scmp.eq.s32.totalorder %s46, 0
      %p161 = por %p159, %p160
      %p162 = scmp.ne.s32.totalorder %s150, %s151
      %p163 = scmp.eq.s32.totalorder %s47, 1
      %p164 = por %p162, %p163
      %p166 = scmp.ne.s32.totalorder %s151, %s165
      %p167 = scmp.eq.s32.totalorder %s47, 0
      %p168 = por %p166, %p167
      %s170 = sadd.s32 %s169, 1
      %p173 = scmp.eq.s32.totalorder %s41, 1
      %p174 = scmp.ne.s32.totalorder %s169, %s171
      %p175 = scmp.eq.s32.totalorder %s41, 0
      %p176 = por %p174, %p175
      %p177 = scmp.ne.s32.totalorder %s169, %s171
      %p178 = scmp.eq.s32.totalorder %s46, 1
      %p179 = por %p177, %p178
      %p180 = scmp.ne.s32.totalorder %s171, %s172
      %p181 = scmp.eq.s32.totalorder %s46, 0
      %p182 = por %p180, %p181
      %p183 = scmp.ne.s32.totalorder %s171, %s172
      %p184 = scmp.eq.s32.totalorder %s47, 1
      %p185 = por %p183, %p184
      %p187 = scmp.ne.s32.totalorder %s172, %s186
      %p188 = scmp.eq.s32.totalorder %s47, 0
      %p189 = por %p187, %p188
      %s191 = sadd.s32 %s190, 1
      %p194 = scmp.eq.s32.totalorder %s41, 1
      %p195 = scmp.ne.s32.totalorder %s190, %s192
      %p196 = scmp.eq.s32.totalorder %s41, 0
      %p197 = por %p195, %p196
      %p198 = scmp.ne.s32.totalorder %s190, %s192
      %p199 = scmp.eq.s32.totalorder %s46, 1
      %p200 = por %p198, %p199
      %p201 = scmp.ne.s32.totalorder %s192, %s193
      %p202 = scmp.eq.s32.totalorder %s46, 0
      %p203 = por %p201, %p202
      %p204 = scmp.ne.s32.totalorder %s192, %s193
      %p205 = scmp.eq.s32.totalorder %s47, 1
      %p206 = por %p204, %p205
      %p208 = scmp.ne.s32.totalorder %s193, %s207
      %p209 = scmp.eq.s32.totalorder %s47, 0
      %p210 = por %p208, %p209
      %s212 = sadd.s32 %s211, 1
      %p215 = scmp.eq.s32.totalorder %s41, 1
      %p216 = scmp.ne.s32.totalorder %s211, %s213
      %p217 = scmp.eq.s32.totalorder %s41, 0
      %p218 = por %p216, %p217
      %p219 = scmp.ne.s32.totalorder %s211, %s213
      %p220 = scmp.eq.s32.totalorder %s46, 1
      %p221 = por %p219, %p220
      %p222 = scmp.ne.s32.totalorder %s213, %s214
      %p223 = scmp.eq.s32.totalorder %s46, 0
      %p224 = por %p222, %p223
      %p225 = scmp.ne.s32.totalorder %s213, %s214
      %p226 = scmp.eq.s32.totalorder %s47, 1
      %p227 = por %p225, %p226
      %p229 = scmp.ne.s32.totalorder %s214, %s228
      %p230 = scmp.eq.s32.totalorder %s47, 0
      %p231 = por %p229, %p230
      %s233 = sadd.s32 %s232, 1
      %p236 = scmp.eq.s32.totalorder %s41, 1
      %p237 = scmp.ne.s32.totalorder %s232, %s234
      %p238 = scmp.eq.s32.totalorder %s41, 0
      %p239 = por %p237, %p238
      %p240 = scmp.ne.s32.totalorder %s232, %s234
      %p241 = scmp.eq.s32.totalorder %s46, 1
      %p242 = por %p240, %p241
      %p243 = scmp.ne.s32.totalorder %s234, %s235
      %p244 = scmp.eq.s32.totalorder %s46, 0
      %p245 = por %p243, %p244
      %p246 = scmp.ne.s32.totalorder %s234, %s235
      %p247 = scmp.eq.s32.totalorder %s47, 1
      %p248 = por %p246, %p247
      %p250 = scmp.ne.s32.totalorder %s235, %s249
      %p251 = scmp.eq.s32.totalorder %s47, 0
      %p252 = por %p250, %p251
      %s254 = sadd.s32 %s253, 1
      %p257 = scmp.eq.s32.totalorder %s41, 1
      %p258 = scmp.ne.s32.totalorder %s253, %s255
      %p259 = scmp.eq.s32.totalorder %s41, 0
      %p260 = por %p258, %p259
      %p261 = scmp.ne.s32.totalorder %s253, %s255
      %p262 = scmp.eq.s32.totalorder %s46, 1
      %p263 = por %p261, %p262
      %p264 = scmp.ne.s32.totalorder %s255, %s256
      %p265 = scmp.eq.s32.totalorder %s46, 0
      %p266 = por %p264, %p265
      %p267 = scmp.ne.s32.totalorder %s255, %s256
      %p268 = scmp.eq.s32.totalorder %s47, 1
      %p269 = por %p267, %p268
      %p271 = scmp.ne.s32.totalorder %s256, %s270
      %p272 = scmp.eq.s32.totalorder %s47, 0
      %p273 = por %p271, %p272
      %s275 = sadd.s32 %s274, 1
      %p278 = scmp.eq.s32.totalorder %s41, 1
      %p279 = scmp.ne.s32.totalorder %s274, %s276
      %p280 = scmp.eq.s32.totalorder %s41, 0
      %p281 = por %p279, %p280
      %p282 = scmp.ne.s32.totalorder %s274, %s276
      %p283 = scmp.eq.s32.totalorder %s46, 1
      %p284 = por %p282, %p283
      %p285 = scmp.ne.s32.totalorder %s276, %s277
      %p286 = scmp.eq.s32.totalorder %s46, 0
      %p287 = por %p285, %p286
      %p288 = scmp.ne.s32.totalorder %s276, %s277
      %p289 = scmp.eq.s32.totalorder %s47, 1
      %p290 = por %p288, %p289
      %p292 = scmp.ne.s32.totalorder %s277, %s291
      %p293 = scmp.eq.s32.totalorder %s47, 0
      %p294 = por %p292, %p293
      %s296 = sadd.s32 %s295, 1
      %p299 = scmp.eq.s32.totalorder %s41, 1
      %p300 = scmp.ne.s32.totalorder %s295, %s297
      %p301 = scmp.eq.s32.totalorder %s41, 0
      %p302 = por %p300, %p301
      %p303 = scmp.ne.s32.totalorder %s295, %s297
      %p304 = scmp.eq.s32.totalorder %s46, 1
      %p305 = por %p303, %p304
      %p306 = scmp.ne.s32.totalorder %s297, %s298
      %p307 = scmp.eq.s32.totalorder %s46, 0
      %p308 = por %p306, %p307
      %p309 = scmp.ne.s32.totalorder %s297, %s298
      %p310 = scmp.eq.s32.totalorder %s47, 1
      %p311 = por %p309, %p310
      %p313 = scmp.ne.s32.totalorder %s298, %s312
      %p314 = scmp.eq.s32.totalorder %s47, 0
      %p315 = por %p313, %p314
      %s317 = sadd.s32 %s316, 1
      %p320 = scmp.eq.s32.totalorder %s41, 1
      %p321 = scmp.ne.s32.totalorder %s316, %s318
      %p322 = scmp.eq.s32.totalorder %s41, 0
      %p323 = por %p321, %p322
      %p324 = scmp.ne.s32.totalorder %s316, %s318
      %p325 = scmp.eq.s32.totalorder %s46, 1
      %p326 = por %p324, %p325
      %p327 = scmp.ne.s32.totalorder %s318, %s319
      %p328 = scmp.eq.s32.totalorder %s46, 0
      %p329 = por %p327, %p328
      %p330 = scmp.ne.s32.totalorder %s318, %s319
      %p331 = scmp.eq.s32.totalorder %s47, 1
      %p332 = por %p330, %p331
      %p334 = scmp.ne.s32.totalorder %s319, %s333
      %p335 = scmp.eq.s32.totalorder %s47, 0
      %p336 = por %p334, %p335
      %s338 = sadd.s32 %s337, 1
      %p341 = scmp.eq.s32.totalorder %s41, 1
      %p342 = scmp.ne.s32.totalorder %s337, %s339
      %p343 = scmp.eq.s32.totalorder %s41, 0
      %p344 = por %p342, %p343
      %p345 = scmp.ne.s32.totalorder %s337, %s339
      %p346 = scmp.eq.s32.totalorder %s46, 1
      %p347 = por %p345, %p346
      %p348 = scmp.ne.s32.totalorder %s339, %s340
      %p349 = scmp.eq.s32.totalorder %s46, 0
      %p350 = por %p348, %p349
      %p351 = scmp.ne.s32.totalorder %s339, %s340
      %p352 = scmp.eq.s32.totalorder %s47, 1
      %p353 = por %p351, %p352
      %p355 = scmp.ne.s32.totalorder %s340, %s354
      %p356 = scmp.eq.s32.totalorder %s47, 0
      %p357 = por %p355, %p356
      %s359 = sadd.s32 %s358, 1
      %p362 = scmp.eq.s32.totalorder %s41, 1
      %p363 = scmp.ne.s32.totalorder %s358, %s360
      %p364 = scmp.eq.s32.totalorder %s41, 0
      %p365 = por %p363, %p364
      %p366 = scmp.ne.s32.totalorder %s358, %s360
      %p367 = scmp.eq.s32.totalorder %s46, 1
      %p368 = por %p366, %p367
      %p369 = scmp.ne.s32.totalorder %s360, %s361
      %p370 = scmp.eq.s32.totalorder %s46, 0
      %p371 = por %p369, %p370
      %p372 = scmp.ne.s32.totalorder %s360, %s361
      %p373 = scmp.eq.s32.totalorder %s47, 1
      %p374 = por %p372, %p373
      %p376 = scmp.ne.s32.totalorder %s361, %s375
      %p377 = scmp.eq.s32.totalorder %s47, 0
      %p378 = por %p376, %p377
      %s380 = sadd.s32 %s379, 1
      %p383 = scmp.eq.s32.totalorder %s41, 1
      %p384 = scmp.ne.s32.totalorder %s379, %s381
      %p385 = scmp.eq.s32.totalorder %s41, 0
      %p386 = por %p384, %p385
      %p387 = scmp.ne.s32.totalorder %s379, %s381
      %p388 = scmp.eq.s32.totalorder %s46, 1
      %p389 = por %p387, %p388
      %p390 = scmp.ne.s32.totalorder %s381, %s382
      %p391 = scmp.eq.s32.totalorder %s46, 0
      %p392 = por %p390, %p391
      %p393 = scmp.ne.s32.totalorder %s381, %s382
      %p394 = scmp.eq.s32.totalorder %s47, 1
      %p395 = por %p393, %p394
      %p397 = scmp.ne.s32.totalorder %s382, %s396
      %p398 = scmp.eq.s32.totalorder %s47, 0
      %p399 = por %p397, %p398
      %s401 = sadd.s32 %s400, 1
      %p404 = scmp.eq.s32.totalorder %s41, 1
      %p405 = scmp.ne.s32.totalorder %s400, %s402
      %p406 = scmp.eq.s32.totalorder %s41, 0
      %p407 = por %p405, %p406
      %p408 = scmp.ne.s32.totalorder %s400, %s402
      %p409 = scmp.eq.s32.totalorder %s46, 1
      %p410 = por %p408, %p409
      %p411 = scmp.ne.s32.totalorder %s402, %s403
      %p412 = scmp.eq.s32.totalorder %s46, 0
      %p413 = por %p411, %p412
      %p414 = scmp.ne.s32.totalorder %s402, %s403
      %p415 = scmp.eq.s32.totalorder %s47, 1
      %p416 = por %p414, %p415
      %p418 = scmp.ne.s32.totalorder %s403, %s417
      %p419 = scmp.eq.s32.totalorder %s47, 0
      %p420 = por %p418, %p419
      %s422 = sadd.s32 %s421, 1
      %p425 = scmp.eq.s32.totalorder %s41, 1
      %p426 = scmp.ne.s32.totalorder %s421, %s423
      %p427 = scmp.eq.s32.totalorder %s41, 0
      %p428 = por %p426, %p427
      %p429 = scmp.ne.s32.totalorder %s421, %s423
      %p430 = scmp.eq.s32.totalorder %s46, 1
      %p431 = por %p429, %p430
      %p432 = scmp.ne.s32.totalorder %s423, %s424
      %p433 = scmp.eq.s32.totalorder %s46, 0
      %p434 = por %p432, %p433
      %p435 = scmp.ne.s32.totalorder %s423, %s424
      %p436 = scmp.eq.s32.totalorder %s47, 1
      %p437 = por %p435, %p436
      %p439 = scmp.ne.s32.totalorder %s424, %s438
      %p440 = scmp.eq.s32.totalorder %s47, 0
      %p441 = por %p439, %p440
      %s443 = sadd.s32 %s442, 1
      %p446 = scmp.eq.s32.totalorder %s41, 1
      %p447 = scmp.ne.s32.totalorder %s442, %s444
      %p448 = scmp.eq.s32.totalorder %s41, 0
      %p449 = por %p447, %p448
      %p450 = scmp.ne.s32.totalorder %s442, %s444
      %p451 = scmp.eq.s32.totalorder %s46, 1
      %p452 = por %p450, %p451
      %p453 = scmp.ne.s32.totalorder %s444, %s445
      %p454 = scmp.eq.s32.totalorder %s46, 0
      %p455 = por %p453, %p454
      %p456 = scmp.ne.s32.totalorder %s444, %s445
      %p457 = scmp.eq.s32.totalorder %s47, 1
      %p458 = por %p456, %p457
      %p460 = scmp.ne.s32.totalorder %s445, %s459
      %p461 = scmp.eq.s32.totalorder %s47, 0
      %p462 = por %p460, %p461
      %s463 = ssub.s32 %s41, %s48
      %p464 = scmp.eq.s32.totalorder %s463, 0
      %s466 = sadd.s32 %s465, 1
      %s467 = scalar_select %p464, %s465, %s466
      %p470 = pneg %p464
      %p471 = scmp.eq.s32.totalorder %s41, 1
      %p472 = por %p470, %p471
      %p473 = scmp.ne.s32.totalorder %s465, %s468
      %p474 = scmp.eq.s32.totalorder %s41, 0
      %p475 = por %p473, %p474
      %p476 = scmp.ne.s32.totalorder %s465, %s468
      %p477 = scmp.eq.s32.totalorder %s46, 1
      %p478 = por %p476, %p477
      %p479 = scmp.ne.s32.totalorder %s468, %s469
      %p480 = scmp.eq.s32.totalorder %s46, 0
      %p481 = por %p479, %p480
      %p482 = scmp.ne.s32.totalorder %s468, %s469
      %p483 = scmp.eq.s32.totalorder %s47, 1
      %p484 = por %p482, %p483
      %p486 = scmp.ne.s32.totalorder %s469, %s485
      %p487 = scmp.eq.s32.totalorder %s47, 0
      %p488 = por %p486, %p487
      %p489 = scmp.le.s32.totalorder 1, %s41
      %p490 = scmp.lt.s32.totalorder %s41, 3
      %p491 = pnand %p489, %p490
      %p492 = pneg %p491
      // Predicated region
      $region9: #{tpu_custom_call.1} parent=5 // pred_check
        _
      $region10: #{tpu_custom_call.1} parent=5 // pred_check_branch
        %494 = sbr.rel (%p491) target = $region12
      $region11: #{tpu_custom_call.1} parent=5 // pred_region
        %s495 = ssub.s32 %s41, 1
        // Predicated region
        $region13: #{tpu_custom_call.1} parent=11 // pred_check
          %p496 = pneg %p140
        $region14: #{tpu_custom_call.1} parent=11 // pred_check_branch
          %498 = sbr.rel (%p496) target = $region16
        $region15: #{tpu_custom_call.1} parent=11 // pred_region
          %s500 = ssub.s32 22272, 22272
          %501 = vsyncadd [#allocation9], %s500
          %s502 = sshll.u32 [#allocation8], 4
          %s503 = int_to_ptr.vmem [resolvable:$true] %s502
          %508 = dma.hbm_to_vmem [thread:$0]  %s3, 22272, %s503, [#allocation9], 128, 128, 8
        $region16: #{tpu_custom_call.1} parent=11 // pred_fallthru
          _
        // Predicated region
        $region17: #{tpu_custom_call.1} parent=11 // pred_check
          %p509 = pneg %p161
        $region18: #{tpu_custom_call.1} parent=11 // pred_check_branch
          %511 = sbr.rel (%p509) target = $region20
        $region19: #{tpu_custom_call.1} parent=11 // pred_region
          %s513 = ssub.s32 32, 32
          %514 = vsyncadd [#allocation9], %s513
          %s516 = sshll.u32 [#allocation10], 4
          %s517 = int_to_ptr.vmem [resolvable:$true] %s516
          %519 = dma.hbm_to_vmem [thread:$0]  %s4, 32, %s517, [#allocation9]
        $region20: #{tpu_custom_call.1} parent=11 // pred_fallthru
          _
        // Predicated region
        $region21: #{tpu_custom_call.1} parent=11 // pred_check
          %p520 = pneg %p182
        $region22: #{tpu_custom_call.1} parent=11 // pred_check_branch
          %522 = sbr.rel (%p520) target = $region24
        $region23: #{tpu_custom_call.1} parent=11 // pred_region
          %s524 = ssub.s32 11136, 11136
          %525 = vsyncadd [#allocation12], %s524
          %s526 = sshll.u32 [#allocation11], 4
          %s527 = int_to_ptr.vmem [resolvable:$true] %s526
          %532 = dma.hbm_to_vmem [thread:$0]  %s5, 11136, %s527, [#allocation12], 64, 64, 4
        $region24: #{tpu_custom_call.1} parent=11 // pred_fallthru
          _
        // Predicated region
        $region25: #{tpu_custom_call.1} parent=11 // pred_check
          %p533 = pneg %p203
        $region26: #{tpu_custom_call.1} parent=11 // pred_check_branch
          %535 = sbr.rel (%p533) target = $region28
        $region27: #{tpu_custom_call.1} parent=11 // pred_region
          %s537 = ssub.s32 16, 16
          %538 = vsyncadd [#allocation12], %s537
          %s540 = sshll.u32 [#allocation13], 4
          %s541 = int_to_ptr.vmem [resolvable:$true] %s540
          %543 = dma.hbm_to_vmem [thread:$0]  %s6, 16, %s541, [#allocation12]
        $region28: #{tpu_custom_call.1} parent=11 // pred_fallthru
          _
        // Predicated region
        $region29: #{tpu_custom_call.1} parent=11 // pred_check
          %p544 = pneg %p224
        $region30: #{tpu_custom_call.1} parent=11 // pred_check_branch
          %546 = sbr.rel (%p544) target = $region32
        $region31: #{tpu_custom_call.1} parent=11 // pred_region
          %s548 = ssub.s32 2304, 2304
          %549 = vsyncadd [#allocation15], %s548
          %s550 = sshll.u32 [#allocation14], 4
          %s551 = int_to_ptr.vmem [resolvable:$true] %s550
          %556 = dma.hbm_to_vmem [thread:$0]  %s7, 2304, %s551, [#allocation15], 64, 64, 4
        $region32: #{tpu_custom_call.1} parent=11 // pred_fallthru
          _
        // Predicated region
        $region33: #{tpu_custom_call.1} parent=11 // pred_check
          %p557 = pneg %p245
        $region34: #{tpu_custom_call.1} parent=11 // pred_check_branch
          %559 = sbr.rel (%p557) target = $region36
        $region35: #{tpu_custom_call.1} parent=11 // pred_region
          %s561 = ssub.s32 16, 16
          %562 = vsyncadd [#allocation15], %s561
          %s564 = sshll.u32 [#allocation16], 4
          %s565 = int_to_ptr.vmem [resolvable:$true] %s564
          %567 = dma.hbm_to_vmem [thread:$0]  %s8, 16, %s565, [#allocation15]
        $region36: #{tpu_custom_call.1} parent=11 // pred_fallthru
          _
        // Predicated region
        $region37: #{tpu_custom_call.1} parent=11 // pred_check
          %p568 = pneg %p266
        $region38: #{tpu_custom_call.1} parent=11 // pred_check_branch
          %570 = sbr.rel (%p568) target = $region40
        $region39: #{tpu_custom_call.1} parent=11 // pred_region
          %s572 = ssub.s32 8192, 8192
          %573 = vsyncadd [#allocation18], %s572
          %s574 = sshll.u32 [#allocation17], 4
          %s575 = int_to_ptr.vmem [resolvable:$true] %s574
          %580 = dma.hbm_to_vmem [thread:$0]  %s9, 8192, %s575, [#allocation18], 128, 128, 8
        $region40: #{tpu_custom_call.1} parent=11 // pred_fallthru
          _
        // Predicated region
        $region41: #{tpu_custom_call.1} parent=11 // pred_check
          %p581 = pneg %p287
        $region42: #{tpu_custom_call.1} parent=11 // pred_check_branch
          %583 = sbr.rel (%p581) target = $region44
        $region43: #{tpu_custom_call.1} parent=11 // pred_region
          %s585 = ssub.s32 32, 32
          %586 = vsyncadd [#allocation18], %s585
          %s588 = sshll.u32 [#allocation19], 4
          %s589 = int_to_ptr.vmem [resolvable:$true] %s588
          %591 = dma.hbm_to_vmem [thread:$0]  %s10, 32, %s589, [#allocation18]
        $region44: #{tpu_custom_call.1} parent=11 // pred_fallthru
          _
        // Predicated region
        $region45: #{tpu_custom_call.1} parent=11 // pred_check
          %p592 = pneg %p308
        $region46: #{tpu_custom_call.1} parent=11 // pred_check_branch
          %594 = sbr.rel (%p592) target = $region48
        $region47: #{tpu_custom_call.1} parent=11 // pred_region
          %s596 = ssub.s32 2048, 2048
          %597 = vsyncadd [#allocation21], %s596
          %s598 = sshll.u32 [#allocation20], 4
          %s599 = int_to_ptr.vmem [resolvable:$true] %s598
          %604 = dma.hbm_to_vmem [thread:$0]  %s11, 2048, %s599, [#allocation21], 64, 64, 4
        $region48: #{tpu_custom_call.1} parent=11 // pred_fallthru
          _
        // Predicated region
        $region49: #{tpu_custom_call.1} parent=11 // pred_check
          %p605 = pneg %p329
        $region50: #{tpu_custom_call.1} parent=11 // pred_check_branch
          %607 = sbr.rel (%p605) target = $region52
        $region51: #{tpu_custom_call.1} parent=11 // pred_region
          %s609 = ssub.s32 16, 16
          %610 = vsyncadd [#allocation21], %s609
          %s612 = sshll.u32 [#allocation22], 4
          %s613 = int_to_ptr.vmem [resolvable:$true] %s612
          %615 = dma.hbm_to_vmem [thread:$0]  %s12, 16, %s613, [#allocation21]
        $region52: #{tpu_custom_call.1} parent=11 // pred_fallthru
          _
        // Predicated region
        $region53: #{tpu_custom_call.1} parent=11 // pred_check
          %p616 = pneg %p350
        $region54: #{tpu_custom_call.1} parent=11 // pred_check_branch
          %618 = sbr.rel (%p616) target = $region56
        $region55: #{tpu_custom_call.1} parent=11 // pred_region
          %s620 = ssub.s32 1024, 1024
          %621 = vsyncadd [#allocation24], %s620
          %s622 = sshll.u32 [#allocation23], 4
          %s623 = int_to_ptr.vmem [resolvable:$true] %s622
          %628 = dma.hbm_to_vmem [thread:$0]  %s13, 1024, %s623, [#allocation24], 64, 64, 4
        $region56: #{tpu_custom_call.1} parent=11 // pred_fallthru
          _
        // Predicated region
        $region57: #{tpu_custom_call.1} parent=11 // pred_check
          %p629 = pneg %p371
        $region58: #{tpu_custom_call.1} parent=11 // pred_check_branch
          %631 = sbr.rel (%p629) target = $region60
        $region59: #{tpu_custom_call.1} parent=11 // pred_region
          %s633 = ssub.s32 16, 16
          %634 = vsyncadd [#allocation24], %s633
          %s636 = sshll.u32 [#allocation25], 4
          %s637 = int_to_ptr.vmem [resolvable:$true] %s636
          %639 = dma.hbm_to_vmem [thread:$0]  %s14, 16, %s637, [#allocation24]
        $region60: #{tpu_custom_call.1} parent=11 // pred_fallthru
          _
        // Predicated region
        $region61: #{tpu_custom_call.1} parent=11 // pred_check
          %p640 = pneg %p392
        $region62: #{tpu_custom_call.1} parent=11 // pred_check_branch
          %642 = sbr.rel (%p640) target = $region64
        $region63: #{tpu_custom_call.1} parent=11 // pred_region
          %s644 = ssub.s32 1024, 1024
          %645 = vsyncadd [#allocation27], %s644
          %s646 = sshll.u32 [#allocation26], 4
          %s647 = int_to_ptr.vmem [resolvable:$true] %s646
          %652 = dma.hbm_to_vmem [thread:$0]  %s15, 1024, %s647, [#allocation27], 64, 64, 4
        $region64: #{tpu_custom_call.1} parent=11 // pred_fallthru
          _
        // Predicated region
        $region65: #{tpu_custom_call.1} parent=11 // pred_check
          %p653 = pneg %p413
        $region66: #{tpu_custom_call.1} parent=11 // pred_check_branch
          %655 = sbr.rel (%p653) target = $region68
        $region67: #{tpu_custom_call.1} parent=11 // pred_region
          %s657 = ssub.s32 16, 16
          %658 = vsyncadd [#allocation27], %s657
          %s660 = sshll.u32 [#allocation28], 4
          %s661 = int_to_ptr.vmem [resolvable:$true] %s660
          %663 = dma.hbm_to_vmem [thread:$0]  %s16, 16, %s661, [#allocation27]
        $region68: #{tpu_custom_call.1} parent=11 // pred_fallthru
          _
        // Predicated region
        $region69: #{tpu_custom_call.1} parent=11 // pred_check
          %p664 = pneg %p434
        $region70: #{tpu_custom_call.1} parent=11 // pred_check_branch
          %666 = sbr.rel (%p664) target = $region72
        $region71: #{tpu_custom_call.1} parent=11 // pred_region
          _
        $region72: #{tpu_custom_call.1} parent=11 // pred_fallthru
          _
        // Predicated region
        $region73: #{tpu_custom_call.1} parent=11 // pred_check
          %p667 = pneg %p455
        $region74: #{tpu_custom_call.1} parent=11 // pred_check_branch
          %669 = sbr.rel (%p667) target = $region76
        $region75: #{tpu_custom_call.1} parent=11 // pred_region
          _
        $region76: #{tpu_custom_call.1} parent=11 // pred_fallthru
          _
      $region12: #{tpu_custom_call.1} parent=5 // pred_fallthru
        _
      %p670 = scmp.lt.s32.totalorder %s41, 2
      // Predicated region
      $region77: #{tpu_custom_call.1} parent=5 // pred_check
        %p671 = pneg %p670
      $region78: #{tpu_custom_call.1} parent=5 // pred_check_branch
        %673 = sbr.rel (%p671) target = $region80
      $region79: #{tpu_custom_call.1} parent=5 // pred_region
        // Predicated region
        $region81: #{tpu_custom_call.1} parent=79 // pred_check
          %p674 = pneg %p61
        $region82: #{tpu_custom_call.1} parent=79 // pred_check_branch
          %676 = sbr.rel (%p674) target = $region84
        $region83: #{tpu_custom_call.1} parent=79 // pred_region
          %s677 = sand.u32 %s51, 1
          %s678 = scalar_lea.sflag [#allocation3], %s677
          %s679 = sand.u32 %s51, 1
          %s680 = smul.addr %s679, 44
          %s681 = scalar_lea.vmem [#allocation2], %s680
          %s683 = ssub.s32 704, 704
          %684 = vsyncadd %s678, %s683
          %s685 = smul.addr %s41, 11
          %s686 = smul.addr %s685, 64
          %s687 = scalar_lea.hbm %s0, %s686
          %s689 = sshll.u32 %s681, 4
          %s690 = int_to_ptr.vmem [resolvable:$true] %s689
          %692 = dma.hbm_to_vmem [thread:$0]  %s687, 704, %s690, %s678
        $region84: #{tpu_custom_call.1} parent=79 // pred_fallthru
          _
        // Predicated region
        $region85: #{tpu_custom_call.1} parent=79 // pred_check
          %p693 = pneg %p87
        $region86: #{tpu_custom_call.1} parent=79 // pred_check_branch
          %695 = sbr.rel (%p693) target = $region88
        $region87: #{tpu_custom_call.1} parent=79 // pred_region
          %s696 = sand.u32 %s41, 1
          %s697 = scalar_lea.sflag [#allocation6], %s696
          %s698 = sand.u32 %s77, 1
          %s699 = smul.addr %s698, 44
          %s700 = scalar_lea.vmem [#allocation5], %s699
          %s702 = ssub.s32 704, 704
          %703 = vsyncadd %s697, %s702
          %s704 = smul.addr %s41, 11
          %s705 = smul.addr %s704, 64
          %s706 = scalar_lea.hbm %s1, %s705
          %s708 = sshll.u32 %s700, 4
          %s709 = int_to_ptr.vmem [resolvable:$true] %s708
          %711 = dma.hbm_to_vmem [thread:$0]  %s706, 704, %s709, %s697
        $region88: #{tpu_custom_call.1} parent=79 // pred_fallthru
          _
        // Predicated region
        $region89: #{tpu_custom_call.1} parent=79 // pred_check
          %p712 = pneg %p113
        $region90: #{tpu_custom_call.1} parent=79 // pred_check_branch
          %714 = sbr.rel (%p712) target = $region92
        $region91: #{tpu_custom_call.1} parent=79 // pred_region
          %s715 = sand.u32 %s41, 1
          %s716 = scalar_lea.sflag [#allocation6], %s715
          %s717 = sand.u32 %s103, 1
          %s718 = smul.addr %s717, 12
          %s719 = scalar_lea.vmem [#allocation7], %s718
          %s721 = ssub.s32 192, 192
          %722 = vsyncadd %s716, %s721
          %s723 = smul.addr %s41, 3
          %s724 = smul.addr %s723, 64
          %s725 = scalar_lea.hbm %s2, %s724
          %s727 = sshll.u32 %s719, 4
          %s728 = int_to_ptr.vmem [resolvable:$true] %s727
          %730 = dma.hbm_to_vmem [thread:$0]  %s725, 192, %s728, %s716
        $region92: #{tpu_custom_call.1} parent=79 // pred_fallthru
          _
      $region80: #{tpu_custom_call.1} parent=5 // pred_fallthru
        _
      %p731 = scmp.le.s32.totalorder 1, %s41
      %p732 = scmp.lt.s32.totalorder %s41, 3
      %p733 = pnand %p731, %p732
      %p734 = pneg %p733
      // Predicated region
      $region93: #{tpu_custom_call.1} parent=5 // pred_check
        _
      $region94: #{tpu_custom_call.1} parent=5 // pred_check_branch
        %736 = sbr.rel (%p733) target = $region96
      $region95: #{tpu_custom_call.1} parent=5 // pred_region
        %s737 = ssub.s32 %s41, 1
        %s738 = sand.u32 %s54, 1
        %s739 = scalar_lea.sflag [#allocation3], %s738
        %s740 = sand.u32 %s54, 1
        %s741 = smul.addr %s740, 44
        %s742 = scalar_lea.vmem [#allocation2], %s741
        // Predicated region
        $region97: #{tpu_custom_call.1} parent=95 // pred_check
          %p743 = pneg %p67
        $region98: #{tpu_custom_call.1} parent=95 // pred_check_branch
          %745 = sbr.rel (%p743) target = $region100
        $region99: #{tpu_custom_call.1} parent=95 // pred_region
          %746 = dma.done %s739, 704
        $region100: #{tpu_custom_call.1} parent=95 // pred_fallthru
          _
        %s747 = sand.u32 %s46, 1
        %s748 = scalar_lea.sflag [#allocation6], %s747
        %s749 = sand.u32 %s80, 1
        %s750 = smul.addr %s749, 44
        %s751 = scalar_lea.vmem [#allocation5], %s750
        // Predicated region
        $region101: #{tpu_custom_call.1} parent=95 // pred_check
          %p752 = pneg %p93
        $region102: #{tpu_custom_call.1} parent=95 // pred_check_branch
          %754 = sbr.rel (%p752) target = $region104
        $region103: #{tpu_custom_call.1} parent=95 // pred_region
          %755 = dma.done %s748, 704
        $region104: #{tpu_custom_call.1} parent=95 // pred_fallthru
          _
        %s756 = sand.u32 %s46, 1
        %s757 = scalar_lea.sflag [#allocation6], %s756
        %s758 = sand.u32 %s106, 1
        %s759 = smul.addr %s758, 12
        %s760 = scalar_lea.vmem [#allocation7], %s759
        // Predicated region
        $region105: #{tpu_custom_call.1} parent=95 // pred_check
          %p761 = pneg %p119
        $region106: #{tpu_custom_call.1} parent=95 // pred_check_branch
          %763 = sbr.rel (%p761) target = $region108
        $region107: #{tpu_custom_call.1} parent=95 // pred_region
          %764 = dma.done %s757, 192
        $region108: #{tpu_custom_call.1} parent=95 // pred_fallthru
          _
        // Predicated region
        $region109: #{tpu_custom_call.1} parent=95 // pred_check
          %p765 = pneg %p140
        $region110: #{tpu_custom_call.1} parent=95 // pred_check_branch
          %767 = sbr.rel (%p765) target = $region112
        $region111: #{tpu_custom_call.1} parent=95 // pred_region
          %768 = dma.done [#allocation9], 22272
        $region112: #{tpu_custom_call.1} parent=95 // pred_fallthru
          _
        // Predicated region
        $region113: #{tpu_custom_call.1} parent=95 // pred_check
          %p769 = pneg %p161
        $region114: #{tpu_custom_call.1} parent=95 // pred_check_branch
          %771 = sbr.rel (%p769) target = $region116
        $region115: #{tpu_custom_call.1} parent=95 // pred_region
          %772 = dma.done [#allocation9], 32
        $region116: #{tpu_custom_call.1} parent=95 // pred_fallthru
          _
        // Predicated region
        $region117: #{tpu_custom_call.1} parent=95 // pred_check
          %p773 = pneg %p182
        $region118: #{tpu_custom_call.1} parent=95 // pred_check_branch
          %775 = sbr.rel (%p773) target = $region120
        $region119: #{tpu_custom_call.1} parent=95 // pred_region
          %776 = dma.done [#allocation12], 11136
        $region120: #{tpu_custom_call.1} parent=95 // pred_fallthru
          _
        // Predicated region
        $region121: #{tpu_custom_call.1} parent=95 // pred_check
          %p777 = pneg %p203
        $region122: #{tpu_custom_call.1} parent=95 // pred_check_branch
          %779 = sbr.rel (%p777) target = $region124
        $region123: #{tpu_custom_call.1} parent=95 // pred_region
          %780 = dma.done [#allocation12], 16
        $region124: #{tpu_custom_call.1} parent=95 // pred_fallthru
          _
        // Predicated region
        $region125: #{tpu_custom_call.1} parent=95 // pred_check
          %p781 = pneg %p224
        $region126: #{tpu_custom_call.1} parent=95 // pred_check_branch
          %783 = sbr.rel (%p781) target = $region128
        $region127: #{tpu_custom_call.1} parent=95 // pred_region
          %784 = dma.done [#allocation15], 2304
        $region128: #{tpu_custom_call.1} parent=95 // pred_fallthru
          _
        // Predicated region
        $region129: #{tpu_custom_call.1} parent=95 // pred_check
          %p785 = pneg %p245
        $region130: #{tpu_custom_call.1} parent=95 // pred_check_branch
          %787 = sbr.rel (%p785) target = $region132
        $region131: #{tpu_custom_call.1} parent=95 // pred_region
          %788 = dma.done [#allocation15], 16
        $region132: #{tpu_custom_call.1} parent=95 // pred_fallthru
          _
        // Predicated region
        $region133: #{tpu_custom_call.1} parent=95 // pred_check
          %p789 = pneg %p266
        $region134: #{tpu_custom_call.1} parent=95 // pred_check_branch
          %791 = sbr.rel (%p789) target = $region136
        $region135: #{tpu_custom_call.1} parent=95 // pred_region
          %792 = dma.done [#allocation18], 8192
        $region136: #{tpu_custom_call.1} parent=95 // pred_fallthru
          _
        // Predicated region
        $region137: #{tpu_custom_call.1} parent=95 // pred_check
          %p793 = pneg %p287
        $region138: #{tpu_custom_call.1} parent=95 // pred_check_branch
          %795 = sbr.rel (%p793) target = $region140
        $region139: #{tpu_custom_call.1} parent=95 // pred_region
          %796 = dma.done [#allocation18], 32
        $region140: #{tpu_custom_call.1} parent=95 // pred_fallthru
          _
        // Predicated region
        $region141: #{tpu_custom_call.1} parent=95 // pred_check
          %p797 = pneg %p308
        $region142: #{tpu_custom_call.1} parent=95 // pred_check_branch
          %799 = sbr.rel (%p797) target = $region144
        $region143: #{tpu_custom_call.1} parent=95 // pred_region
          %800 = dma.done [#allocation21], 2048
        $region144: #{tpu_custom_call.1} parent=95 // pred_fallthru
          _
        // Predicated region
        $region145: #{tpu_custom_call.1} parent=95 // pred_check
          %p801 = pneg %p329
        $region146: #{tpu_custom_call.1} parent=95 // pred_check_branch
          %803 = sbr.rel (%p801) target = $region148
        $region147: #{tpu_custom_call.1} parent=95 // pred_region
          %804 = dma.done [#allocation21], 16
        $region148: #{tpu_custom_call.1} parent=95 // pred_fallthru
          _
        // Predicated region
        $region149: #{tpu_custom_call.1} parent=95 // pred_check
          %p805 = pneg %p350
        $region150: #{tpu_custom_call.1} parent=95 // pred_check_branch
          %807 = sbr.rel (%p805) target = $region152
        $region151: #{tpu_custom_call.1} parent=95 // pred_region
          %808 = dma.done [#allocation24], 1024
        $region152: #{tpu_custom_call.1} parent=95 // pred_fallthru
          _
        // Predicated region
        $region153: #{tpu_custom_call.1} parent=95 // pred_check
          %p809 = pneg %p371
        $region154: #{tpu_custom_call.1} parent=95 // pred_check_branch
          %811 = sbr.rel (%p809) target = $region156
        $region155: #{tpu_custom_call.1} parent=95 // pred_region
          %812 = dma.done [#allocation24], 16
        $region156: #{tpu_custom_call.1} parent=95 // pred_fallthru
          _
        // Predicated region
        $region157: #{tpu_custom_call.1} parent=95 // pred_check
          %p813 = pneg %p392
        $region158: #{tpu_custom_call.1} parent=95 // pred_check_branch
          %815 = sbr.rel (%p813) target = $region160
        $region159: #{tpu_custom_call.1} parent=95 // pred_region
          %816 = dma.done [#allocation27], 1024
        $region160: #{tpu_custom_call.1} parent=95 // pred_fallthru
          _
        // Predicated region
        $region161: #{tpu_custom_call.1} parent=95 // pred_check
          %p817 = pneg %p413
        $region162: #{tpu_custom_call.1} parent=95 // pred_check_branch
          %819 = sbr.rel (%p817) target = $region164
        $region163: #{tpu_custom_call.1} parent=95 // pred_region
          %820 = dma.done [#allocation27], 16
        $region164: #{tpu_custom_call.1} parent=95 // pred_fallthru
          _
        %s821 = sand.u32 %s54, 1
        %s822 = scalar_lea.sflag [#allocation3], %s821
        %s823 = sand.u32 %s54, 1
        %s824 = smul.addr %s823, 44
        %s825 = scalar_lea.vmem [#allocation2], %s824
        %p826 = pneg %p67
        %p827 = pneg %p64
        %s828 = sand.u32 %s46, 1
        %s829 = scalar_lea.sflag [#allocation6], %s828
        %s830 = sand.u32 %s80, 1
        %s831 = smul.addr %s830, 44
        %s832 = scalar_lea.vmem [#allocation5], %s831
        %p833 = pneg %p93
        %p834 = pneg %p90
        %s835 = sand.u32 %s46, 1
        %s836 = scalar_lea.sflag [#allocation6], %s835
        %s837 = sand.u32 %s106, 1
        %s838 = smul.addr %s837, 12
        %s839 = scalar_lea.vmem [#allocation7], %s838
        %p840 = pneg %p119
        %p841 = pneg %p116
        %p842 = pneg %p140
        %p843 = pneg %p137
        %p844 = pneg %p161
        %p845 = pneg %p158
        %p846 = pneg %p182
        %p847 = pneg %p179
        %p848 = pneg %p203
        %p849 = pneg %p200
        %p850 = pneg %p224
        %p851 = pneg %p221
        %p852 = pneg %p245
        %p853 = pneg %p242
        %p854 = pneg %p266
        %p855 = pneg %p263
        %p856 = pneg %p287
        %p857 = pneg %p284
        %p858 = pneg %p308
        %p859 = pneg %p305
        %p860 = pneg %p329
        %p861 = pneg %p326
        %p862 = pneg %p350
        %p863 = pneg %p347
        %p864 = pneg %p371
        %p865 = pneg %p368
        %p866 = pneg %p392
        %p867 = pneg %p389
        %p868 = pneg %p413
        %p869 = pneg %p410
        %p870 = pneg %p434
        %p871 = pneg %p431
        %p872 = pneg %p455
        %p873 = pneg %p452
        %p874 = pneg %p481
        %p875 = pneg %p478
        %s876 = sand.u32 %s468, 1
        %s877 = scalar_lea.sflag [#allocation4], %s876
        %s878 = sand.u32 %s468, 1
        %s879 = smul.addr %s878, 8
        %s880 = scalar_lea.vmem [#allocation29], %s879
        %v882 = vld [vmem:[%s742] sm:$0xff]
        %v883 = vld [vmem:[%s742 + $0x8] sm:$0xff]
        %v884 = vld [vmem:[%s742 + $0x10] sm:$0xff]
        %v885 = vld [vmem:[%s742 + $0x18] sm:$0xff]
        %v886 = vld [vmem:[%s742 + $0x20] sm:$0xff]
        %v887 = vld [vmem:[%s742 + $0x28] sm:$0xf]
        %v888 = vld [vmem:[#allocation8] sm:$0xff]
        %v889 = vld [vmem:[#allocation8 + $0x8] sm:$0xff]
        %v890 = vld [vmem:[#allocation8 + $0x10] sm:$0xff]
        %v891 = vld [vmem:[#allocation8 + $0x18] sm:$0xff]
        %v892 = vld [vmem:[#allocation8 + $0x20] sm:$0xff]
        %v893 = vld [vmem:[#allocation8 + $0x28] sm:$0xff]
        %v894 = vld [vmem:[#allocation8 + $0x30] sm:$0xff]
        %v895 = vld [vmem:[#allocation8 + $0x38] sm:$0xff]
        %v896 = vld [vmem:[#allocation8 + $0x40] sm:$0xff]
        %v897 = vld [vmem:[#allocation8 + $0x48] sm:$0xff]
        %v898 = vld [vmem:[#allocation8 + $0x50] sm:$0xff]
        %v899 = vld [vmem:[#allocation8 + $0x58] sm:$0xff]
        %v900 = vld [vmem:[#allocation8 + $0x60] sm:$0xff]
        %v901 = vld [vmem:[#allocation8 + $0x68] sm:$0xff]
        %v902 = vld [vmem:[#allocation8 + $0x70] sm:$0xff]
        %v903 = vld [vmem:[#allocation8 + $0x78] sm:$0xff]
        %v904 = vld [vmem:[#allocation8 + $0x80] sm:$0xff]
        %v905 = vld [vmem:[#allocation8 + $0x88] sm:$0xff]
        %v906 = vld [vmem:[#allocation8 + $0x90] sm:$0xff]
        %v907 = vld [vmem:[#allocation8 + $0x98] sm:$0xff]
        %v908 = vld [vmem:[#allocation8 + $0xa0] sm:$0xff]
        %v909 = vld [vmem:[#allocation8 + $0xa8] sm:$0xff]
        %v910 = vld [vmem:[#allocation8 + $0xb0] sm:$0xff]
        %v911 = vld [vmem:[#allocation8 + $0xb8] sm:$0xff]
        %v912 = vld [vmem:[#allocation8 + $0xc0] sm:$0xff]
        %v913 = vld [vmem:[#allocation8 + $0xc8] sm:$0xff]
        %v914 = vld [vmem:[#allocation8 + $0xd0] sm:$0xff]
        %v915 = vld [vmem:[#allocation8 + $0xd8] sm:$0xff]
        %v916 = vld [vmem:[#allocation8 + $0xe0] sm:$0xff]
        %v917 = vld [vmem:[#allocation8 + $0xe8] sm:$0xff]
        %v918 = vld [vmem:[#allocation8 + $0xf0] sm:$0xff]
        %v919 = vld [vmem:[#allocation8 + $0xf8] sm:$0xff]
        %v920 = vld [vmem:[#allocation8 + $0x100] sm:$0xff]
        %v921 = vld [vmem:[#allocation8 + $0x108] sm:$0xff]
        %v922 = vld [vmem:[#allocation8 + $0x110] sm:$0xff]
        %v923 = vld [vmem:[#allocation8 + $0x118] sm:$0xff]
        %v924 = vld [vmem:[#allocation8 + $0x120] sm:$0xff]
        %v925 = vld [vmem:[#allocation8 + $0x128] sm:$0xff]
        %v926 = vld [vmem:[#allocation8 + $0x130] sm:$0xff]
        %v927 = vld [vmem:[#allocation8 + $0x138] sm:$0xff]
        %v928 = vld [vmem:[#allocation8 + $0x140] sm:$0xff]
        %v929 = vld [vmem:[#allocation8 + $0x148] sm:$0xff]
        %v930 = vld [vmem:[#allocation8 + $0x150] sm:$0xff]
        %v931 = vld [vmem:[#allocation8 + $0x158] sm:$0xff]
        %v932 = vld [vmem:[#allocation8 + $0x160] sm:$0xff]
        %v933 = vld [vmem:[#allocation8 + $0x168] sm:$0xff]
        %v934 = vld [vmem:[#allocation8 + $0x170] sm:$0xff]
        %v935 = vld [vmem:[#allocation8 + $0x178] sm:$0xff]
        %v936 = vld [vmem:[#allocation8 + $0x180] sm:$0xff]
        %v937 = vld [vmem:[#allocation8 + $0x188] sm:$0xff]
        %v938 = vld [vmem:[#allocation8 + $0x190] sm:$0xff]
        %v939 = vld [vmem:[#allocation8 + $0x198] sm:$0xff]
        %v940 = vld [vmem:[#allocation8 + $0x1a0] sm:$0xff]
        %v941 = vld [vmem:[#allocation8 + $0x1a8] sm:$0xff]
        %v942 = vld [vmem:[#allocation8 + $0x1b0] sm:$0xff]
        %v943 = vld [vmem:[#allocation8 + $0x1b8] sm:$0xff]
        %v944 = vld [vmem:[#allocation8 + $0x1c0] sm:$0xff]
        %v945 = vld [vmem:[#allocation8 + $0x1c8] sm:$0xff]
        %v946 = vld [vmem:[#allocation8 + $0x1d0] sm:$0xff]
        %v947 = vld [vmem:[#allocation8 + $0x1d8] sm:$0xff]
        %v948 = vld [vmem:[#allocation8 + $0x1e0] sm:$0xff]
        %v949 = vld [vmem:[#allocation8 + $0x1e8] sm:$0xff]
        %v950 = vld [vmem:[#allocation8 + $0x1f0] sm:$0xff]
        %v951 = vld [vmem:[#allocation8 + $0x1f8] sm:$0xff]
        %v952 = vld [vmem:[#allocation8 + $0x200] sm:$0xff]
        %v953 = vld [vmem:[#allocation8 + $0x208] sm:$0xff]
        %v954 = vld [vmem:[#allocation8 + $0x210] sm:$0xff]
        %v955 = vld [vmem:[#allocation8 + $0x218] sm:$0xff]
        %v956 = vld [vmem:[#allocation8 + $0x220] sm:$0xff]
        %v957 = vld [vmem:[#allocation8 + $0x228] sm:$0xff]
        %v958 = vld [vmem:[#allocation8 + $0x230] sm:$0xff]
        %v959 = vld [vmem:[#allocation8 + $0x238] sm:$0xff]
        %v960 = vld [vmem:[#allocation8 + $0x240] sm:$0xff]
        %v961 = vld [vmem:[#allocation8 + $0x248] sm:$0xff]
        %v962 = vld [vmem:[#allocation8 + $0x250] sm:$0xff]
        %v963 = vld [vmem:[#allocation8 + $0x258] sm:$0xff]
        %v964 = vld [vmem:[#allocation8 + $0x260] sm:$0xff]
        %v965 = vld [vmem:[#allocation8 + $0x268] sm:$0xff]
        %v966 = vld [vmem:[#allocation8 + $0x270] sm:$0xff]
        %v967 = vld [vmem:[#allocation8 + $0x278] sm:$0xff]
        %v968 = vld [vmem:[#allocation8 + $0x280] sm:$0xff]
        %v969 = vld [vmem:[#allocation8 + $0x288] sm:$0xff]
        %v970 = vld [vmem:[#allocation8 + $0x290] sm:$0xff]
        %v971 = vld [vmem:[#allocation8 + $0x298] sm:$0xff]
        %v972 = vld [vmem:[#allocation8 + $0x2a0] sm:$0xff]
        %v973 = vld [vmem:[#allocation8 + $0x2a8] sm:$0xff]
        %v974 = vld [vmem:[#allocation8 + $0x2b0] sm:$0xff]
        %v975 = vld [vmem:[#allocation8 + $0x2b8] sm:$0xff]
        %v976 = vld [vmem:[#allocation8 + $0x2c0] sm:$0xff]
        %v977 = vld [vmem:[#allocation8 + $0x2c8] sm:$0xff]
        %v978 = vld [vmem:[#allocation8 + $0x2d0] sm:$0xff]
        %v979 = vld [vmem:[#allocation8 + $0x2d8] sm:$0xff]
        %v980 = vld [vmem:[#allocation8 + $0x2e0] sm:$0xff]
        %v981 = vld [vmem:[#allocation8 + $0x2e8] sm:$0xff]
        %v982 = vld [vmem:[#allocation8 + $0x2f0] sm:$0xff]
        %v983 = vld [vmem:[#allocation8 + $0x2f8] sm:$0xff]
        %v984 = vld [vmem:[#allocation8 + $0x300] sm:$0xff]
        %v985 = vld [vmem:[#allocation8 + $0x308] sm:$0xff]
        %v986 = vld [vmem:[#allocation8 + $0x310] sm:$0xff]
        %v987 = vld [vmem:[#allocation8 + $0x318] sm:$0xff]
        %v988 = vld [vmem:[#allocation8 + $0x320] sm:$0xff]
        %v989 = vld [vmem:[#allocation8 + $0x328] sm:$0xff]
        %v990 = vld [vmem:[#allocation8 + $0x330] sm:$0xff]
        %v991 = vld [vmem:[#allocation8 + $0x338] sm:$0xff]
        %v992 = vld [vmem:[#allocation8 + $0x340] sm:$0xff]
        %v993 = vld [vmem:[#allocation8 + $0x348] sm:$0xff]
        %v994 = vld [vmem:[#allocation8 + $0x350] sm:$0xff]
        %v995 = vld [vmem:[#allocation8 + $0x358] sm:$0xff]
        %v996 = vld [vmem:[#allocation8 + $0x360] sm:$0xff]
        %v997 = vld [vmem:[#allocation8 + $0x368] sm:$0xff]
        %v998 = vld [vmem:[#allocation8 + $0x370] sm:$0xff]
        %v999 = vld [vmem:[#allocation8 + $0x378] sm:$0xff]
        %v1000 = vld [vmem:[#allocation8 + $0x380] sm:$0xff]
        %v1001 = vld [vmem:[#allocation8 + $0x388] sm:$0xff]
        %v1002 = vld [vmem:[#allocation8 + $0x390] sm:$0xff]
        %v1003 = vld [vmem:[#allocation8 + $0x398] sm:$0xff]
        %v1004 = vld [vmem:[#allocation8 + $0x3a0] sm:$0xff]
        %v1005 = vld [vmem:[#allocation8 + $0x3a8] sm:$0xff]
        %v1006 = vld [vmem:[#allocation8 + $0x3b0] sm:$0xff]
        %v1007 = vld [vmem:[#allocation8 + $0x3b8] sm:$0xff]
        %v1008 = vld [vmem:[#allocation8 + $0x3c0] sm:$0xff]
        %v1009 = vld [vmem:[#allocation8 + $0x3c8] sm:$0xff]
        %v1010 = vld [vmem:[#allocation8 + $0x3d0] sm:$0xff]
        %v1011 = vld [vmem:[#allocation8 + $0x3d8] sm:$0xff]
        %v1012 = vld [vmem:[#allocation8 + $0x3e0] sm:$0xff]
        %v1013 = vld [vmem:[#allocation8 + $0x3e8] sm:$0xff]
        %v1014 = vld [vmem:[#allocation8 + $0x3f0] sm:$0xff]
        %v1015 = vld [vmem:[#allocation8 + $0x3f8] sm:$0xff]
        %v1016 = vld [vmem:[#allocation8 + $0x400] sm:$0xff]
        %v1017 = vld [vmem:[#allocation8 + $0x408] sm:$0xff]
        %v1018 = vld [vmem:[#allocation8 + $0x410] sm:$0xff]
        %v1019 = vld [vmem:[#allocation8 + $0x418] sm:$0xff]
        %v1020 = vld [vmem:[#allocation8 + $0x420] sm:$0xff]
        %v1021 = vld [vmem:[#allocation8 + $0x428] sm:$0xff]
        %v1022 = vld [vmem:[#allocation8 + $0x430] sm:$0xff]
        %v1023 = vld [vmem:[#allocation8 + $0x438] sm:$0xff]
        %v1024 = vld [vmem:[#allocation8 + $0x440] sm:$0xff]
        %v1025 = vld [vmem:[#allocation8 + $0x448] sm:$0xff]
        %v1026 = vld [vmem:[#allocation8 + $0x450] sm:$0xff]
        %v1027 = vld [vmem:[#allocation8 + $0x458] sm:$0xff]
        %v1028 = vld [vmem:[#allocation8 + $0x460] sm:$0xff]
        %v1029 = vld [vmem:[#allocation8 + $0x468] sm:$0xff]
        %v1030 = vld [vmem:[#allocation8 + $0x470] sm:$0xff]
        %v1031 = vld [vmem:[#allocation8 + $0x478] sm:$0xff]
        %v1032 = vld [vmem:[#allocation8 + $0x480] sm:$0xff]
        %v1033 = vld [vmem:[#allocation8 + $0x488] sm:$0xff]
        %v1034 = vld [vmem:[#allocation8 + $0x490] sm:$0xff]
        %v1035 = vld [vmem:[#allocation8 + $0x498] sm:$0xff]
        %v1036 = vld [vmem:[#allocation8 + $0x4a0] sm:$0xff]
        %v1037 = vld [vmem:[#allocation8 + $0x4a8] sm:$0xff]
        %v1038 = vld [vmem:[#allocation8 + $0x4b0] sm:$0xff]
        %v1039 = vld [vmem:[#allocation8 + $0x4b8] sm:$0xff]
        %v1040 = vld [vmem:[#allocation8 + $0x4c0] sm:$0xff]
        %v1041 = vld [vmem:[#allocation8 + $0x4c8] sm:$0xff]
        %v1042 = vld [vmem:[#allocation8 + $0x4d0] sm:$0xff]
        %v1043 = vld [vmem:[#allocation8 + $0x4d8] sm:$0xff]
        %v1044 = vld [vmem:[#allocation8 + $0x4e0] sm:$0xff]
        %v1045 = vld [vmem:[#allocation8 + $0x4e8] sm:$0xff]
        %v1046 = vld [vmem:[#allocation8 + $0x4f0] sm:$0xff]
        %v1047 = vld [vmem:[#allocation8 + $0x4f8] sm:$0xff]
        %v1048 = vld [vmem:[#allocation8 + $0x500] sm:$0xff]
        %v1049 = vld [vmem:[#allocation8 + $0x508] sm:$0xff]
        %v1050 = vld [vmem:[#allocation8 + $0x510] sm:$0xff]
        %v1051 = vld [vmem:[#allocation8 + $0x518] sm:$0xff]
        %v1052 = vld [vmem:[#allocation8 + $0x520] sm:$0xff]
        %v1053 = vld [vmem:[#allocation8 + $0x528] sm:$0xff]
        %v1054 = vld [vmem:[#allocation8 + $0x530] sm:$0xff]
        %v1055 = vld [vmem:[#allocation8 + $0x538] sm:$0xff]
        %v1056 = vld [vmem:[#allocation8 + $0x540] sm:$0xff]
        %v1057 = vld [vmem:[#allocation8 + $0x548] sm:$0xff]
        %v1058 = vld [vmem:[#allocation8 + $0x550] sm:$0xff]
        %v1059 = vld [vmem:[#allocation8 + $0x558] sm:$0xff]
        %v1060 = vld [vmem:[#allocation8 + $0x560] sm:$0xff]
        %v1061 = vld [vmem:[#allocation8 + $0x568] sm:$0xff]
        %v1062 = vld [vmem:[#allocation10] sm:$0x3]
        %v1064 = vlaneseq
        %v1065 = vshrl.u32 %v1064, 7
        %v1066 = vsub.s32 0, %v1065
        %v1067 = vrot.slane %v1062, %v1066
        %v1068 = vlaneseq
        %v1069 = vshrl.u32 %v1068, 7
        %v1070 = vsub.s32 1, %v1069
        %v1071 = vrot.slane %v1062, %v1070
        %v1080 = vunpack.c.l.b16 %v882
        %v1081 = vunpack.c.h.b16 %v882
        %v1082 = vunpack.c.l.b16 %v883
        %v1083 = vunpack.c.h.b16 %v883
        %v1084 = vunpack.c.l.b16 %v884
        %v1085 = vunpack.c.h.b16 %v884
        %v1086 = vunpack.c.l.b16 %v885
        %v1087 = vunpack.c.h.b16 %v885
        %v1088 = vunpack.c.l.b16 %v886
        %v1089 = vunpack.c.h.b16 %v886
        %v1090 = vunpack.c.l.b16 %v887
        %v1091 = vpack.c.b16 %v1080, %v1080
        %v1092 = vpack.c.b16 %v1081, %v1081
        %v1093 = vpack.c.b16 %v1082, %v1082
        %v1094 = vpack.c.b16 %v1083, %v1083
        %v1095 = vpack.c.b16 %v1084, %v1084
        %v1096 = vpack.c.b16 %v1085, %v1085
        %v1097 = vpack.c.b16 %v1086, %v1086
        %v1098 = vpack.c.b16 %v1087, %v1087
        %v1099 = vpack.c.b16 %v1088, %v1088
        %v1100 = vpack.c.b16 %v1089, %v1089
        %v1101 = vpack.c.b16 %v1090, %v1090
        %v1286 = vunpack.c.l.b16 %v888
        %v1287 = vunpack.c.h.b16 %v888
        %v1288 = vunpack.c.l.b16 %v889
        %v1289 = vunpack.c.h.b16 %v889
        %v1290 = vunpack.c.l.b16 %v890
        %v1291 = vunpack.c.h.b16 %v890
        %v1292 = vunpack.c.l.b16 %v891
        %v1293 = vunpack.c.h.b16 %v891
        %v1294 = vunpack.c.l.b16 %v892
        %v1295 = vunpack.c.h.b16 %v892
        %v1296 = vunpack.c.l.b16 %v893
        %v1297 = vunpack.c.h.b16 %v893
        %v1298 = vunpack.c.l.b16 %v894
        %v1299 = vunpack.c.h.b16 %v894
        %v1300 = vunpack.c.l.b16 %v895
        %v1301 = vunpack.c.h.b16 %v895
        %v1302 = vunpack.c.l.b16 %v896
        %v1303 = vunpack.c.h.b16 %v896
        %v1304 = vunpack.c.l.b16 %v897
        %v1305 = vunpack.c.h.b16 %v897
        %v1306 = vunpack.c.l.b16 %v898
        %v1307 = vunpack.c.h.b16 %v898
        %v1308 = vunpack.c.l.b16 %v899
        %v1309 = vunpack.c.h.b16 %v899
        %v1310 = vunpack.c.l.b16 %v900
        %v1311 = vunpack.c.h.b16 %v900
        %v1312 = vunpack.c.l.b16 %v901
        %v1313 = vunpack.c.h.b16 %v901
        %v1314 = vunpack.c.l.b16 %v902
        %v1315 = vunpack.c.h.b16 %v902
        %v1316 = vunpack.c.l.b16 %v903
        %v1317 = vunpack.c.h.b16 %v903
        %v1318 = vunpack.c.l.b16 %v904
        %v1319 = vunpack.c.h.b16 %v904
        %v1320 = vunpack.c.l.b16 %v905
        %v1321 = vunpack.c.h.b16 %v905
        %v1322 = vunpack.c.l.b16 %v906
        %v1323 = vunpack.c.h.b16 %v906
        %v1324 = vunpack.c.l.b16 %v907
        %v1325 = vunpack.c.h.b16 %v907
        %v1326 = vunpack.c.l.b16 %v908
        %v1327 = vunpack.c.h.b16 %v908
        %v1328 = vunpack.c.l.b16 %v909
        %v1329 = vunpack.c.h.b16 %v909
        %v1330 = vunpack.c.l.b16 %v910
        %v1331 = vunpack.c.h.b16 %v910
        %v1332 = vunpack.c.l.b16 %v911
        %v1333 = vunpack.c.h.b16 %v911
        %v1334 = vunpack.c.l.b16 %v912
        %v1335 = vunpack.c.h.b16 %v912
        %v1336 = vunpack.c.l.b16 %v913
        %v1337 = vunpack.c.h.b16 %v913
        %v1338 = vunpack.c.l.b16 %v914
        %v1339 = vunpack.c.h.b16 %v914
        %v1340 = vunpack.c.l.b16 %v915
        %v1341 = vunpack.c.h.b16 %v915
        %v1342 = vunpack.c.l.b16 %v916
        %v1343 = vunpack.c.h.b16 %v916
        %v1344 = vunpack.c.l.b16 %v917
        %v1345 = vunpack.c.h.b16 %v917
        %v1346 = vunpack.c.l.b16 %v918
        %v1347 = vunpack.c.h.b16 %v918
        %v1348 = vunpack.c.l.b16 %v919
        %v1349 = vunpack.c.h.b16 %v919
        %v1350 = vunpack.c.l.b16 %v920
        %v1351 = vunpack.c.h.b16 %v920
        %v1352 = vunpack.c.l.b16 %v921
        %v1353 = vunpack.c.h.b16 %v921
        %v1354 = vunpack.c.l.b16 %v922
        %v1355 = vunpack.c.h.b16 %v922
        %v1356 = vunpack.c.l.b16 %v923
        %v1357 = vunpack.c.h.b16 %v923
        %v1358 = vunpack.c.l.b16 %v924
        %v1359 = vunpack.c.h.b16 %v924
        %v1360 = vunpack.c.l.b16 %v925
        %v1361 = vunpack.c.h.b16 %v925
        %v1362 = vunpack.c.l.b16 %v926
        %v1363 = vunpack.c.h.b16 %v926
        %v1364 = vunpack.c.l.b16 %v927
        %v1365 = vunpack.c.h.b16 %v927
        %v1366 = vunpack.c.l.b16 %v928
        %v1367 = vunpack.c.h.b16 %v928
        %v1368 = vunpack.c.l.b16 %v929
        %v1369 = vunpack.c.h.b16 %v929
        %v1370 = vunpack.c.l.b16 %v930
        %v1371 = vunpack.c.h.b16 %v930
        %v1372 = vunpack.c.l.b16 %v931
        %v1373 = vunpack.c.h.b16 %v931
        %v1374 = vunpack.c.l.b16 %v932
        %v1375 = vunpack.c.h.b16 %v932
        %v1376 = vunpack.c.l.b16 %v933
        %v1377 = vunpack.c.h.b16 %v933
        %v1378 = vunpack.c.l.b16 %v934
        %v1379 = vunpack.c.h.b16 %v934
        %v1380 = vunpack.c.l.b16 %v935
        %v1381 = vunpack.c.h.b16 %v935
        %v1382 = vunpack.c.l.b16 %v936
        %v1383 = vunpack.c.h.b16 %v936
        %v1384 = vunpack.c.l.b16 %v937
        %v1385 = vunpack.c.h.b16 %v937
        %v1386 = vunpack.c.l.b16 %v938
        %v1387 = vunpack.c.h.b16 %v938
        %v1388 = vunpack.c.l.b16 %v939
        %v1389 = vunpack.c.h.b16 %v939
        %v1390 = vunpack.c.l.b16 %v940
        %v1391 = vunpack.c.h.b16 %v940
        %v1392 = vunpack.c.l.b16 %v941
        %v1393 = vunpack.c.h.b16 %v941
        %v1394 = vunpack.c.l.b16 %v942
        %v1395 = vunpack.c.h.b16 %v942
        %v1396 = vunpack.c.l.b16 %v943
        %v1397 = vunpack.c.h.b16 %v943
        %v1398 = vunpack.c.l.b16 %v944
        %v1399 = vunpack.c.h.b16 %v944
        %v1400 = vunpack.c.l.b16 %v945
        %v1401 = vunpack.c.h.b16 %v945
        %v1402 = vunpack.c.l.b16 %v946
        %v1403 = vunpack.c.h.b16 %v946
        %v1404 = vunpack.c.l.b16 %v947
        %v1405 = vunpack.c.h.b16 %v947
        %v1406 = vunpack.c.l.b16 %v948
        %v1407 = vunpack.c.h.b16 %v948
        %v1408 = vunpack.c.l.b16 %v949
        %v1409 = vunpack.c.h.b16 %v949
        %v1410 = vunpack.c.l.b16 %v950
        %v1411 = vunpack.c.h.b16 %v950
        %v1412 = vunpack.c.l.b16 %v951
        %v1413 = vunpack.c.h.b16 %v951
        %v1414 = vunpack.c.l.b16 %v952
        %v1415 = vunpack.c.h.b16 %v952
        %v1416 = vunpack.c.l.b16 %v953
        %v1417 = vunpack.c.h.b16 %v953
        %v1418 = vunpack.c.l.b16 %v954
        %v1419 = vunpack.c.h.b16 %v954
        %v1420 = vunpack.c.l.b16 %v955
        %v1421 = vunpack.c.h.b16 %v955
        %v1422 = vunpack.c.l.b16 %v956
        %v1423 = vunpack.c.h.b16 %v956
        %v1424 = vunpack.c.l.b16 %v957
        %v1425 = vunpack.c.h.b16 %v957
        %v1426 = vunpack.c.l.b16 %v958
        %v1427 = vunpack.c.h.b16 %v958
        %v1428 = vunpack.c.l.b16 %v959
        %v1429 = vunpack.c.h.b16 %v959
        %v1430 = vunpack.c.l.b16 %v960
        %v1431 = vunpack.c.h.b16 %v960
        %v1432 = vunpack.c.l.b16 %v961
        %v1433 = vunpack.c.h.b16 %v961
        %v1434 = vunpack.c.l.b16 %v962
        %v1435 = vunpack.c.h.b16 %v962
        %v1436 = vunpack.c.l.b16 %v963
        %v1437 = vunpack.c.h.b16 %v963
        %v1438 = vunpack.c.l.b16 %v964
        %v1439 = vunpack.c.h.b16 %v964
        %v1440 = vunpack.c.l.b16 %v965
        %v1441 = vunpack.c.h.b16 %v965
        %v1442 = vunpack.c.l.b16 %v966
        %v1443 = vunpack.c.h.b16 %v966
        %v1444 = vunpack.c.l.b16 %v967
        %v1445 = vunpack.c.h.b16 %v967
        %v1446 = vunpack.c.l.b16 %v968
        %v1447 = vunpack.c.h.b16 %v968
        %v1448 = vunpack.c.l.b16 %v969
        %v1449 = vunpack.c.h.b16 %v969
        %v1450 = vunpack.c.l.b16 %v970
        %v1451 = vunpack.c.h.b16 %v970
        %v1452 = vunpack.c.l.b16 %v971
        %v1453 = vunpack.c.h.b16 %v971
        %v1454 = vunpack.c.l.b16 %v972
        %v1455 = vunpack.c.h.b16 %v972
        %v1456 = vunpack.c.l.b16 %v973
        %v1457 = vunpack.c.h.b16 %v973
        %v1458 = vunpack.c.l.b16 %v974
        %v1459 = vunpack.c.h.b16 %v974
        %v1460 = vunpack.c.l.b16 %v975
        %v1461 = vunpack.c.h.b16 %v975
        %v1462 = vunpack.c.l.b16 %v976
        %v1463 = vunpack.c.h.b16 %v976
        %v1464 = vunpack.c.l.b16 %v977
        %v1465 = vunpack.c.h.b16 %v977
        %v1466 = vunpack.c.l.b16 %v978
        %v1467 = vunpack.c.h.b16 %v978
        %v1468 = vunpack.c.l.b16 %v979
        %v1469 = vunpack.c.h.b16 %v979
        %v1470 = vunpack.c.l.b16 %v980
        %v1471 = vunpack.c.h.b16 %v980
        %v1472 = vunpack.c.l.b16 %v981
        %v1473 = vunpack.c.h.b16 %v981
        %v1474 = vunpack.c.l.b16 %v982
        %v1475 = vunpack.c.h.b16 %v982
        %v1476 = vunpack.c.l.b16 %v983
        %v1477 = vunpack.c.h.b16 %v983
        %v1478 = vunpack.c.l.b16 %v984
        %v1479 = vunpack.c.h.b16 %v984
        %v1480 = vunpack.c.l.b16 %v985
        %v1481 = vunpack.c.h.b16 %v985
        %v1482 = vunpack.c.l.b16 %v986
        %v1483 = vunpack.c.h.b16 %v986
        %v1484 = vunpack.c.l.b16 %v987
        %v1485 = vunpack.c.h.b16 %v987
        %v1486 = vunpack.c.l.b16 %v988
        %v1487 = vunpack.c.h.b16 %v988
        %v1488 = vunpack.c.l.b16 %v989
        %v1489 = vunpack.c.h.b16 %v989
        %v1490 = vunpack.c.l.b16 %v990
        %v1491 = vunpack.c.h.b16 %v990
        %v1492 = vunpack.c.l.b16 %v991
        %v1493 = vunpack.c.h.b16 %v991
        %v1494 = vunpack.c.l.b16 %v992
        %v1495 = vunpack.c.h.b16 %v992
        %v1496 = vunpack.c.l.b16 %v993
        %v1497 = vunpack.c.h.b16 %v993
        %v1498 = vunpack.c.l.b16 %v994
        %v1499 = vunpack.c.h.b16 %v994
        %v1500 = vunpack.c.l.b16 %v995
        %v1501 = vunpack.c.h.b16 %v995
        %v1502 = vunpack.c.l.b16 %v996
        %v1503 = vunpack.c.h.b16 %v996
        %v1504 = vunpack.c.l.b16 %v997
        %v1505 = vunpack.c.h.b16 %v997
        %v1506 = vunpack.c.l.b16 %v998
        %v1507 = vunpack.c.h.b16 %v998
        %v1508 = vunpack.c.l.b16 %v999
        %v1509 = vunpack.c.h.b16 %v999
        %v1510 = vunpack.c.l.b16 %v1000
        %v1511 = vunpack.c.h.b16 %v1000
        %v1512 = vunpack.c.l.b16 %v1001
        %v1513 = vunpack.c.h.b16 %v1001
        %v1514 = vunpack.c.l.b16 %v1002
        %v1515 = vunpack.c.h.b16 %v1002
        %v1516 = vunpack.c.l.b16 %v1003
        %v1517 = vunpack.c.h.b16 %v1003
        %v1518 = vunpack.c.l.b16 %v1004
        %v1519 = vunpack.c.h.b16 %v1004
        %v1520 = vunpack.c.l.b16 %v1005
        %v1521 = vunpack.c.h.b16 %v1005
        %v1522 = vunpack.c.l.b16 %v1006
        %v1523 = vunpack.c.h.b16 %v1006
        %v1524 = vunpack.c.l.b16 %v1007
        %v1525 = vunpack.c.h.b16 %v1007
        %v1526 = vunpack.c.l.b16 %v1008
        %v1527 = vunpack.c.h.b16 %v1008
        %v1528 = vunpack.c.l.b16 %v1009
        %v1529 = vunpack.c.h.b16 %v1009
        %v1530 = vunpack.c.l.b16 %v1010
        %v1531 = vunpack.c.h.b16 %v1010
        %v1532 = vunpack.c.l.b16 %v1011
        %v1533 = vunpack.c.h.b16 %v1011
        %v1534 = vunpack.c.l.b16 %v1012
        %v1535 = vunpack.c.h.b16 %v1012
        %v1536 = vunpack.c.l.b16 %v1013
        %v1537 = vunpack.c.h.b16 %v1013
        %v1538 = vunpack.c.l.b16 %v1014
        %v1539 = vunpack.c.h.b16 %v1014
        %v1540 = vunpack.c.l.b16 %v1015
        %v1541 = vunpack.c.h.b16 %v1015
        %v1542 = vunpack.c.l.b16 %v1016
        %v1543 = vunpack.c.h.b16 %v1016
        %v1544 = vunpack.c.l.b16 %v1017
        %v1545 = vunpack.c.h.b16 %v1017
        %v1546 = vunpack.c.l.b16 %v1018
        %v1547 = vunpack.c.h.b16 %v1018
        %v1548 = vunpack.c.l.b16 %v1019
        %v1549 = vunpack.c.h.b16 %v1019
        %v1550 = vunpack.c.l.b16 %v1020
        %v1551 = vunpack.c.h.b16 %v1020
        %v1552 = vunpack.c.l.b16 %v1021
        %v1553 = vunpack.c.h.b16 %v1021
        %v1554 = vunpack.c.l.b16 %v1022
        %v1555 = vunpack.c.h.b16 %v1022
        %v1556 = vunpack.c.l.b16 %v1023
        %v1557 = vunpack.c.h.b16 %v1023
        %v1558 = vunpack.c.l.b16 %v1024
        %v1559 = vunpack.c.h.b16 %v1024
        %v1560 = vunpack.c.l.b16 %v1025
        %v1561 = vunpack.c.h.b16 %v1025
        %v1562 = vunpack.c.l.b16 %v1026
        %v1563 = vunpack.c.h.b16 %v1026
        %v1564 = vunpack.c.l.b16 %v1027
        %v1565 = vunpack.c.h.b16 %v1027
        %v1566 = vunpack.c.l.b16 %v1028
        %v1567 = vunpack.c.h.b16 %v1028
        %v1568 = vunpack.c.l.b16 %v1029
        %v1569 = vunpack.c.h.b16 %v1029
        %v1570 = vunpack.c.l.b16 %v1030
        %v1571 = vunpack.c.h.b16 %v1030
        %v1572 = vunpack.c.l.b16 %v1031
        %v1573 = vunpack.c.h.b16 %v1031
        %v1574 = vunpack.c.l.b16 %v1032
        %v1575 = vunpack.c.h.b16 %v1032
        %v1576 = vunpack.c.l.b16 %v1033
        %v1577 = vunpack.c.h.b16 %v1033
        %v1578 = vunpack.c.l.b16 %v1034
        %v1579 = vunpack.c.h.b16 %v1034
        %v1580 = vunpack.c.l.b16 %v1035
        %v1581 = vunpack.c.h.b16 %v1035
        %v1582 = vunpack.c.l.b16 %v1036
        %v1583 = vunpack.c.h.b16 %v1036
        %v1584 = vunpack.c.l.b16 %v1037
        %v1585 = vunpack.c.h.b16 %v1037
        %v1586 = vunpack.c.l.b16 %v1038
        %v1587 = vunpack.c.h.b16 %v1038
        %v1588 = vunpack.c.l.b16 %v1039
        %v1589 = vunpack.c.h.b16 %v1039
        %v1590 = vunpack.c.l.b16 %v1040
        %v1591 = vunpack.c.h.b16 %v1040
        %v1592 = vunpack.c.l.b16 %v1041
        %v1593 = vunpack.c.h.b16 %v1041
        %v1594 = vunpack.c.l.b16 %v1042
        %v1595 = vunpack.c.h.b16 %v1042
        %v1596 = vunpack.c.l.b16 %v1043
        %v1597 = vunpack.c.h.b16 %v1043
        %v1598 = vunpack.c.l.b16 %v1044
        %v1599 = vunpack.c.h.b16 %v1044
        %v1600 = vunpack.c.l.b16 %v1045
        %v1601 = vunpack.c.h.b16 %v1045
        %v1602 = vunpack.c.l.b16 %v1046
        %v1603 = vunpack.c.h.b16 %v1046
        %v1604 = vunpack.c.l.b16 %v1047
        %v1605 = vunpack.c.h.b16 %v1047
        %v1606 = vunpack.c.l.b16 %v1048
        %v1607 = vunpack.c.h.b16 %v1048
        %v1608 = vunpack.c.l.b16 %v1049
        %v1609 = vunpack.c.h.b16 %v1049
        %v1610 = vunpack.c.l.b16 %v1050
        %v1611 = vunpack.c.h.b16 %v1050
        %v1612 = vunpack.c.l.b16 %v1051
        %v1613 = vunpack.c.h.b16 %v1051
        %v1614 = vunpack.c.l.b16 %v1052
        %v1615 = vunpack.c.h.b16 %v1052
        %v1616 = vunpack.c.l.b16 %v1053
        %v1617 = vunpack.c.h.b16 %v1053
        %v1618 = vunpack.c.l.b16 %v1054
        %v1619 = vunpack.c.h.b16 %v1054
        %v1620 = vunpack.c.l.b16 %v1055
        %v1621 = vunpack.c.h.b16 %v1055
        %v1622 = vunpack.c.l.b16 %v1056
        %v1623 = vunpack.c.h.b16 %v1056
        %v1624 = vunpack.c.l.b16 %v1057
        %v1625 = vunpack.c.h.b16 %v1057
        %v1626 = vunpack.c.l.b16 %v1058
        %v1627 = vunpack.c.h.b16 %v1058
        %v1628 = vunpack.c.l.b16 %v1059
        %v1629 = vunpack.c.h.b16 %v1059
        %v1630 = vunpack.c.l.b16 %v1060
        %v1631 = vunpack.c.h.b16 %v1060
        %v1632 = vunpack.c.l.b16 %v1061
        %v1633 = vunpack.c.h.b16 %v1061
        %v1634 = vpack.c.b16 %v1288, %v1286
        %v1635 = vpack.c.b16 %v1289, %v1287
        %v1636 = vpack.c.b16 %v1292, %v1290
        %v1637 = vpack.c.b16 %v1293, %v1291
        %v1638 = vpack.c.b16 %v1296, %v1294
        %v1639 = vpack.c.b16 %v1297, %v1295
        %v1640 = vpack.c.b16 %v1300, %v1298
        %v1641 = vpack.c.b16 %v1301, %v1299
        %v1642 = vpack.c.b16 %v1304, %v1302
        %v1643 = vpack.c.b16 %v1305, %v1303
        %v1644 = vpack.c.b16 %v1308, %v1306
        %v1645 = vpack.c.b16 %v1309, %v1307
        %v1646 = vpack.c.b16 %v1312, %v1310
        %v1647 = vpack.c.b16 %v1313, %v1311
        %v1648 = vpack.c.b16 %v1316, %v1314
        %v1649 = vpack.c.b16 %v1317, %v1315
        %v1650 = vpack.c.b16 %v1320, %v1318
        %v1651 = vpack.c.b16 %v1321, %v1319
        %v1652 = vpack.c.b16 %v1324, %v1322
        %v1653 = vpack.c.b16 %v1325, %v1323
        %v1654 = vpack.c.b16 %v1328, %v1326
        %v1655 = vpack.c.b16 %v1329, %v1327
        %v1656 = vpack.c.b16 %v1332, %v1330
        %v1657 = vpack.c.b16 %v1333, %v1331
        %v1658 = vpack.c.b16 %v1336, %v1334
        %v1659 = vpack.c.b16 %v1337, %v1335
        %v1660 = vpack.c.b16 %v1340, %v1338
        %v1661 = vpack.c.b16 %v1341, %v1339
        %v1662 = vpack.c.b16 %v1344, %v1342
        %v1663 = vpack.c.b16 %v1345, %v1343
        %v1664 = vpack.c.b16 %v1348, %v1346
        %v1665 = vpack.c.b16 %v1349, %v1347
        %v1666 = vpack.c.b16 %v1352, %v1350
        %v1667 = vpack.c.b16 %v1353, %v1351
        %v1668 = vpack.c.b16 %v1356, %v1354
        %v1669 = vpack.c.b16 %v1357, %v1355
        %v1670 = vpack.c.b16 %v1360, %v1358
        %v1671 = vpack.c.b16 %v1361, %v1359
        %v1672 = vpack.c.b16 %v1364, %v1362
        %v1673 = vpack.c.b16 %v1365, %v1363
        %v1674 = vpack.c.b16 %v1368, %v1366
        %v1675 = vpack.c.b16 %v1369, %v1367
        %v1676 = vpack.c.b16 %v1372, %v1370
        %v1677 = vpack.c.b16 %v1373, %v1371
        %v1678 = vpack.c.b16 %v1376, %v1374
        %v1679 = vpack.c.b16 %v1377, %v1375
        %v1680 = vpack.c.b16 %v1380, %v1378
        %v1681 = vpack.c.b16 %v1381, %v1379
        %v1682 = vpack.c.b16 %v1384, %v1382
        %v1683 = vpack.c.b16 %v1385, %v1383
        %v1684 = vpack.c.b16 %v1388, %v1386
        %v1685 = vpack.c.b16 %v1389, %v1387
        %v1686 = vpack.c.b16 %v1392, %v1390
        %v1687 = vpack.c.b16 %v1393, %v1391
        %v1688 = vpack.c.b16 %v1396, %v1394
        %v1689 = vpack.c.b16 %v1397, %v1395
        %v1690 = vpack.c.b16 %v1400, %v1398
        %v1691 = vpack.c.b16 %v1401, %v1399
        %v1692 = vpack.c.b16 %v1404, %v1402
        %v1693 = vpack.c.b16 %v1405, %v1403
        %v1694 = vpack.c.b16 %v1408, %v1406
        %v1695 = vpack.c.b16 %v1409, %v1407
        %v1696 = vpack.c.b16 %v1412, %v1410
        %v1697 = vpack.c.b16 %v1413, %v1411
        %v1698 = vpack.c.b16 %v1416, %v1414
        %v1699 = vpack.c.b16 %v1417, %v1415
        %v1700 = vpack.c.b16 %v1420, %v1418
        %v1701 = vpack.c.b16 %v1421, %v1419
        %v1702 = vpack.c.b16 %v1424, %v1422
        %v1703 = vpack.c.b16 %v1425, %v1423
        %v1704 = vpack.c.b16 %v1428, %v1426
        %v1705 = vpack.c.b16 %v1429, %v1427
        %v1706 = vpack.c.b16 %v1432, %v1430
        %v1707 = vpack.c.b16 %v1433, %v1431
        %v1708 = vpack.c.b16 %v1436, %v1434
        %v1709 = vpack.c.b16 %v1437, %v1435
        %v1710 = vpack.c.b16 %v1440, %v1438
        %v1711 = vpack.c.b16 %v1441, %v1439
        %v1712 = vpack.c.b16 %v1444, %v1442
        %v1713 = vpack.c.b16 %v1445, %v1443
        %v1714 = vpack.c.b16 %v1448, %v1446
        %v1715 = vpack.c.b16 %v1449, %v1447
        %v1716 = vpack.c.b16 %v1452, %v1450
        %v1717 = vpack.c.b16 %v1453, %v1451
        %v1718 = vpack.c.b16 %v1456, %v1454
        %v1719 = vpack.c.b16 %v1457, %v1455
        %v1720 = vpack.c.b16 %v1460, %v1458
        %v1721 = vpack.c.b16 %v1461, %v1459
        %v1722 = vpack.c.b16 %v1464, %v1462
        %v1723 = vpack.c.b16 %v1465, %v1463
        %v1724 = vpack.c.b16 %v1468, %v1466
        %v1725 = vpack.c.b16 %v1469, %v1467
        %v1726 = vpack.c.b16 %v1472, %v1470
        %v1727 = vpack.c.b16 %v1473, %v1471
        %v1728 = vpack.c.b16 %v1476, %v1474
        %v1729 = vpack.c.b16 %v1477, %v1475
        %v1730 = vpack.c.b16 %v1480, %v1478
        %v1731 = vpack.c.b16 %v1481, %v1479
        %v1732 = vpack.c.b16 %v1484, %v1482
        %v1733 = vpack.c.b16 %v1485, %v1483
        %v1734 = vpack.c.b16 %v1488, %v1486
        %v1735 = vpack.c.b16 %v1489, %v1487
        %v1736 = vpack.c.b16 %v1492, %v1490
        %v1737 = vpack.c.b16 %v1493, %v1491
        %v1738 = vpack.c.b16 %v1496, %v1494
        %v1739 = vpack.c.b16 %v1497, %v1495
        %v1740 = vpack.c.b16 %v1500, %v1498
        %v1741 = vpack.c.b16 %v1501, %v1499
        %v1742 = vpack.c.b16 %v1504, %v1502
        %v1743 = vpack.c.b16 %v1505, %v1503
        %v1744 = vpack.c.b16 %v1508, %v1506
        %v1745 = vpack.c.b16 %v1509, %v1507
        %v1746 = vpack.c.b16 %v1512, %v1510
        %v1747 = vpack.c.b16 %v1513, %v1511
        %v1748 = vpack.c.b16 %v1516, %v1514
        %v1749 = vpack.c.b16 %v1517, %v1515
        %v1750 = vpack.c.b16 %v1520, %v1518
        %v1751 = vpack.c.b16 %v1521, %v1519
        %v1752 = vpack.c.b16 %v1524, %v1522
        %v1753 = vpack.c.b16 %v1525, %v1523
        %v1754 = vpack.c.b16 %v1528, %v1526
        %v1755 = vpack.c.b16 %v1529, %v1527
        %v1756 = vpack.c.b16 %v1532, %v1530
        %v1757 = vpack.c.b16 %v1533, %v1531
        %v1758 = vpack.c.b16 %v1536, %v1534
        %v1759 = vpack.c.b16 %v1537, %v1535
        %v1760 = vpack.c.b16 %v1540, %v1538
        %v1761 = vpack.c.b16 %v1541, %v1539
        %v1762 = vpack.c.b16 %v1544, %v1542
        %v1763 = vpack.c.b16 %v1545, %v1543
        %v1764 = vpack.c.b16 %v1548, %v1546
        %v1765 = vpack.c.b16 %v1549, %v1547
        %v1766 = vpack.c.b16 %v1552, %v1550
        %v1767 = vpack.c.b16 %v1553, %v1551
        %v1768 = vpack.c.b16 %v1556, %v1554
        %v1769 = vpack.c.b16 %v1557, %v1555
        %v1770 = vpack.c.b16 %v1560, %v1558
        %v1771 = vpack.c.b16 %v1561, %v1559
        %v1772 = vpack.c.b16 %v1564, %v1562
        %v1773 = vpack.c.b16 %v1565, %v1563
        %v1774 = vpack.c.b16 %v1568, %v1566
        %v1775 = vpack.c.b16 %v1569, %v1567
        %v1776 = vpack.c.b16 %v1572, %v1570
        %v1777 = vpack.c.b16 %v1573, %v1571
        %v1778 = vpack.c.b16 %v1576, %v1574
        %v1779 = vpack.c.b16 %v1577, %v1575
        %v1780 = vpack.c.b16 %v1580, %v1578
        %v1781 = vpack.c.b16 %v1581, %v1579
        %v1782 = vpack.c.b16 %v1584, %v1582
        %v1783 = vpack.c.b16 %v1585, %v1583
        %v1784 = vpack.c.b16 %v1588, %v1586
        %v1785 = vpack.c.b16 %v1589, %v1587
        %v1786 = vpack.c.b16 %v1592, %v1590
        %v1787 = vpack.c.b16 %v1593, %v1591
        %v1788 = vpack.c.b16 %v1596, %v1594
        %v1789 = vpack.c.b16 %v1597, %v1595
        %v1790 = vpack.c.b16 %v1600, %v1598
        %v1791 = vpack.c.b16 %v1601, %v1599
        %v1792 = vpack.c.b16 %v1604, %v1602
        %v1793 = vpack.c.b16 %v1605, %v1603
        %v1794 = vpack.c.b16 %v1608, %v1606
        %v1795 = vpack.c.b16 %v1609, %v1607
        %v1796 = vpack.c.b16 %v1612, %v1610
        %v1797 = vpack.c.b16 %v1613, %v1611
        %v1798 = vpack.c.b16 %v1616, %v1614
        %v1799 = vpack.c.b16 %v1617, %v1615
        %v1800 = vpack.c.b16 %v1620, %v1618
        %v1801 = vpack.c.b16 %v1621, %v1619
        %v1802 = vpack.c.b16 %v1624, %v1622
        %v1803 = vpack.c.b16 %v1625, %v1623
        %v1804 = vpack.c.b16 %v1628, %v1626
        %v1805 = vpack.c.b16 %v1629, %v1627
        %v1806 = vpack.c.b16 %v1632, %v1630
        %v1807 = vpack.c.b16 %v1633, %v1631
        %vm1982 = vcmask 916480
        %v1984 = vsel %vm1982, %v1101, 0
        %1986 = vmatprep.subr.bf16.mxu0 %v1635
        %1987 = vmatpush1.bf16.msra.mxu0 %v1634
        %1988 = vmatprep.subr.bf16.mxu0 %v1637
        %1989 = vmatpush1.bf16.msra.mxu0 %v1636
        %1990 = vmatprep.subr.bf16.mxu0 %v1639
        %1991 = vmatpush1.bf16.msra.mxu0 %v1638
        %1992 = vmatprep.subr.bf16.mxu0 %v1641
        %1993 = vmatpush1.bf16.msra.mxu0 %v1640
        %1994 = vmatprep.subr.bf16.mxu0 %v1643
        %1995 = vmatpush1.bf16.msra.mxu0 %v1642
        %1996 = vmatprep.subr.bf16.mxu0 %v1645
        %1997 = vmatpush1.bf16.msra.mxu0 %v1644
        %1998 = vmatprep.subr.bf16.mxu0 %v1647
        %1999 = vmatpush1.bf16.msra.mxu0 %v1646
        %2000 = vmatprep.subr.bf16.mxu0 %v1649
        %2001 = vmatpush1.bf16.msra.mxu0 %v1648
        %2002 = vmatprep.subr.bf16.mxu0 %v1651
        %2003 = vmatpush1.bf16.msra.mxu0 %v1650
        %2004 = vmatprep.subr.bf16.mxu0 %v1653
        %2005 = vmatpush1.bf16.msra.mxu0 %v1652
        %2006 = vmatprep.subr.bf16.mxu0 %v1655
        %2007 = vmatpush1.bf16.msra.mxu0 %v1654
        %2008 = vmatprep.subr.bf16.mxu0 %v1657
        %2009 = vmatpush1.bf16.msra.mxu0 %v1656
        %2010 = vmatprep.subr.bf16.mxu0 %v1659
        %2011 = vmatpush1.bf16.msra.mxu0 %v1658
        %2012 = vmatprep.subr.bf16.mxu0 %v1661
        %2013 = vmatpush1.bf16.msra.mxu0 %v1660
        %2014 = vmatprep.subr.bf16.mxu0 %v1663
        %2015 = vmatpush1.bf16.msra.mxu0 %v1662
        %2016 = vmatprep.subr.bf16.mxu0 %v1665
        %2017 = vmatpush1.bf16.msra.mxu0 %v1664
        %2018 = vmatprep.mubr.bf16.mxu0 %v1092
        %2019 = vmatmul.mubr.bf16.gmra.mrb[0].mxu0 %v1091
        %v2020 = vpop.f32.mrb[0].mxu0
        %v2021 = vadd.f32 %v1067, %v2020
        %v2022 = vpop.f32.mrb[0].mxu0
        %v2023 = vadd.f32 %v1071, %v2022
        %v2024 = vpop.f32.mrb[0].mxu0
        %v2025 = vpop.f32.mrb[0].mxu0
        %2026 = vdwg.mxu0
        %2027 = vmatprep.subr.bf16.mxu0 %v1667
        %2028 = vmatpush1.bf16.msra.mxu0 %v1666
        %2029 = vmatprep.subr.bf16.mxu0 %v1669
        %2030 = vmatpush1.bf16.msra.mxu0 %v1668
        %2031 = vmatprep.subr.bf16.mxu0 %v1671
        %2032 = vmatpush1.bf16.msra.mxu0 %v1670
        %2033 = vmatprep.subr.bf16.mxu0 %v1673
        %2034 = vmatpush1.bf16.msra.mxu0 %v1672
        %2035 = vmatprep.subr.bf16.mxu0 %v1675
        %2036 = vmatpush1.bf16.msra.mxu0 %v1674
        %2037 = vmatprep.subr.bf16.mxu0 %v1677
        %2038 = vmatpush1.bf16.msra.mxu0 %v1676
        %2039 = vmatprep.subr.bf16.mxu0 %v1679
        %2040 = vmatpush1.bf16.msra.mxu0 %v1678
        %2041 = vmatprep.subr.bf16.mxu0 %v1681
        %2042 = vmatpush1.bf16.msra.mxu0 %v1680
        %2043 = vmatprep.subr.bf16.mxu0 %v1683
        %2044 = vmatpush1.bf16.msra.mxu0 %v1682
        %2045 = vmatprep.subr.bf16.mxu0 %v1685
        %2046 = vmatpush1.bf16.msra.mxu0 %v1684
        %2047 = vmatprep.subr.bf16.mxu0 %v1687
        %2048 = vmatpush1.bf16.msra.mxu0 %v1686
        %2049 = vmatprep.subr.bf16.mxu0 %v1689
        %2050 = vmatpush1.bf16.msra.mxu0 %v1688
        %2051 = vmatprep.subr.bf16.mxu0 %v1691
        %2052 = vmatpush1.bf16.msra.mxu0 %v1690
        %2053 = vmatprep.subr.bf16.mxu0 %v1693
        %2054 = vmatpush1.bf16.msra.mxu0 %v1692
        %2055 = vmatprep.subr.bf16.mxu0 %v1695
        %2056 = vmatpush1.bf16.msra.mxu0 %v1694
        %2057 = vmatprep.subr.bf16.mxu0 %v1697
        %2058 = vmatpush1.bf16.msra.mxu0 %v1696
        %2059 = vmatprep.mubr.bf16.mxu0 %v1094
        %2060 = vmatmul.mubr.bf16.gmra.mrb[0].mxu0 %v1093
        %v2061 = vpop.f32.mrb[0].mxu0
        %v2062 = vadd.f32 %v2021, %v2061
        %v2063 = vpop.f32.mrb[0].mxu0
        %v2064 = vadd.f32 %v2023, %v2063
        %v2065 = vpop.f32.mrb[0].mxu0
        %v2066 = vpop.f32.mrb[0].mxu0
        %2067 = vdwg.mxu0
        %2068 = vmatprep.subr.bf16.mxu0 %v1699
        %2069 = vmatpush1.bf16.msra.mxu0 %v1698
        %2070 = vmatprep.subr.bf16.mxu0 %v1701
        %2071 = vmatpush1.bf16.msra.mxu0 %v1700
        %2072 = vmatprep.subr.bf16.mxu0 %v1703
        %2073 = vmatpush1.bf16.msra.mxu0 %v1702
        %2074 = vmatprep.subr.bf16.mxu0 %v1705
        %2075 = vmatpush1.bf16.msra.mxu0 %v1704
        %2076 = vmatprep.subr.bf16.mxu0 %v1707
        %2077 = vmatpush1.bf16.msra.mxu0 %v1706
        %2078 = vmatprep.subr.bf16.mxu0 %v1709
        %2079 = vmatpush1.bf16.msra.mxu0 %v1708
        %2080 = vmatprep.subr.bf16.mxu0 %v1711
        %2081 = vmatpush1.bf16.msra.mxu0 %v1710
        %2082 = vmatprep.subr.bf16.mxu0 %v1713
        %2083 = vmatpush1.bf16.msra.mxu0 %v1712
        %2084 = vmatprep.subr.bf16.mxu0 %v1715
        %2085 = vmatpush1.bf16.msra.mxu0 %v1714
        %2086 = vmatprep.subr.bf16.mxu0 %v1717
        %2087 = vmatpush1.bf16.msra.mxu0 %v1716
        %2088 = vmatprep.subr.bf16.mxu0 %v1719
        %2089 = vmatpush1.bf16.msra.mxu0 %v1718
        %2090 = vmatprep.subr.bf16.mxu0 %v1721
        %2091 = vmatpush1.bf16.msra.mxu0 %v1720
        %2092 = vmatprep.subr.bf16.mxu0 %v1723
        %2093 = vmatpush1.bf16.msra.mxu0 %v1722
        %2094 = vmatprep.subr.bf16.mxu0 %v1725
        %2095 = vmatpush1.bf16.msra.mxu0 %v1724
        %2096 = vmatprep.subr.bf16.mxu0 %v1727
        %2097 = vmatpush1.bf16.msra.mxu0 %v1726
        %2098 = vmatprep.subr.bf16.mxu0 %v1729
        %2099 = vmatpush1.bf16.msra.mxu0 %v1728
        %2100 = vmatprep.mubr.bf16.mxu0 %v1096
        %2101 = vmatmul.mubr.bf16.gmra.mrb[0].mxu0 %v1095
        %v2102 = vpop.f32.mrb[0].mxu0
        %v2103 = vadd.f32 %v2062, %v2102
        %v2104 = vpop.f32.mrb[0].mxu0
        %v2105 = vadd.f32 %v2064, %v2104
        %v2106 = vpop.f32.mrb[0].mxu0
        %v2107 = vpop.f32.mrb[0].mxu0
        %2108 = vdwg.mxu0
        %2109 = vmatprep.subr.bf16.mxu0 %v1731
        %2110 = vmatpush1.bf16.msra.mxu0 %v1730
        %2111 = vmatprep.subr.bf16.mxu0 %v1733
        %2112 = vmatpush1.bf16.msra.mxu0 %v1732
        %2113 = vmatprep.subr.bf16.mxu0 %v1735
        %2114 = vmatpush1.bf16.msra.mxu0 %v1734
        %2115 = vmatprep.subr.bf16.mxu0 %v1737
        %2116 = vmatpush1.bf16.msra.mxu0 %v1736
        %2117 = vmatprep.subr.bf16.mxu0 %v1739
        %2118 = vmatpush1.bf16.msra.mxu0 %v1738
        %2119 = vmatprep.subr.bf16.mxu0 %v1741
        %2120 = vmatpush1.bf16.msra.mxu0 %v1740
        %2121 = vmatprep.subr.bf16.mxu0 %v1743
        %2122 = vmatpush1.bf16.msra.mxu0 %v1742
        %2123 = vmatprep.subr.bf16.mxu0 %v1745
        %2124 = vmatpush1.bf16.msra.mxu0 %v1744
        %2125 = vmatprep.subr.bf16.mxu0 %v1747
        %2126 = vmatpush1.bf16.msra.mxu0 %v1746
        %2127 = vmatprep.subr.bf16.mxu0 %v1749
        %2128 = vmatpush1.bf16.msra.mxu0 %v1748
        %2129 = vmatprep.subr.bf16.mxu0 %v1751
        %2130 = vmatpush1.bf16.msra.mxu0 %v1750
        %2131 = vmatprep.subr.bf16.mxu0 %v1753
        %2132 = vmatpush1.bf16.msra.mxu0 %v1752
        %2133 = vmatprep.subr.bf16.mxu0 %v1755
        %2134 = vmatpush1.bf16.msra.mxu0 %v1754
        %2135 = vmatprep.subr.bf16.mxu0 %v1757
        %2136 = vmatpush1.bf16.msra.mxu0 %v1756
        %2137 = vmatprep.subr.bf16.mxu0 %v1759
        %2138 = vmatpush1.bf16.msra.mxu0 %v1758
        %2139 = vmatprep.subr.bf16.mxu0 %v1761
        %2140 = vmatpush1.bf16.msra.mxu0 %v1760
        %2141 = vmatprep.mubr.bf16.mxu0 %v1098
        %2142 = vmatmul.mubr.bf16.gmra.mrb[0].mxu0 %v1097
        %v2143 = vpop.f32.mrb[0].mxu0
        %v2144 = vadd.f32 %v2103, %v2143
        %v2145 = vpop.f32.mrb[0].mxu0
        %v2146 = vadd.f32 %v2105, %v2145
        %v2147 = vpop.f32.mrb[0].mxu0
        %v2148 = vpop.f32.mrb[0].mxu0
        %2149 = vdwg.mxu0
        %2150 = vmatprep.subr.bf16.mxu0 %v1763
        %2151 = vmatpush1.bf16.msra.mxu0 %v1762
        %2152 = vmatprep.subr.bf16.mxu0 %v1765
        %2153 = vmatpush1.bf16.msra.mxu0 %v1764
        %2154 = vmatprep.subr.bf16.mxu0 %v1767
        %2155 = vmatpush1.bf16.msra.mxu0 %v1766
        %2156 = vmatprep.subr.bf16.mxu0 %v1769
        %2157 = vmatpush1.bf16.msra.mxu0 %v1768
        %2158 = vmatprep.subr.bf16.mxu0 %v1771
        %2159 = vmatpush1.bf16.msra.mxu0 %v1770
        %2160 = vmatprep.subr.bf16.mxu0 %v1773
        %2161 = vmatpush1.bf16.msra.mxu0 %v1772
        %2162 = vmatprep.subr.bf16.mxu0 %v1775
        %2163 = vmatpush1.bf16.msra.mxu0 %v1774
        %2164 = vmatprep.subr.bf16.mxu0 %v1777
        %2165 = vmatpush1.bf16.msra.mxu0 %v1776
        %2166 = vmatprep.subr.bf16.mxu0 %v1779
        %2167 = vmatpush1.bf16.msra.mxu0 %v1778
        %2168 = vmatprep.subr.bf16.mxu0 %v1781
        %2169 = vmatpush1.bf16.msra.mxu0 %v1780
        %2170 = vmatprep.subr.bf16.mxu0 %v1783
        %2171 = vmatpush1.bf16.msra.mxu0 %v1782
        %2172 = vmatprep.subr.bf16.mxu0 %v1785
        %2173 = vmatpush1.bf16.msra.mxu0 %v1784
        %2174 = vmatprep.subr.bf16.mxu0 %v1787
        %2175 = vmatpush1.bf16.msra.mxu0 %v1786
        %2176 = vmatprep.subr.bf16.mxu0 %v1789
        %2177 = vmatpush1.bf16.msra.mxu0 %v1788
        %2178 = vmatprep.subr.bf16.mxu0 %v1791
        %2179 = vmatpush1.bf16.msra.mxu0 %v1790
        %2180 = vmatprep.subr.bf16.mxu0 %v1793
        %2181 = vmatpush1.bf16.msra.mxu0 %v1792
        %2182 = vmatprep.mubr.bf16.mxu0 %v1100
        %2183 = vmatmul.mubr.bf16.gmra.mrb[0].mxu0 %v1099
        %v2184 = vpop.f32.mrb[0].mxu0
        %v2185 = vadd.f32 %v2144, %v2184
        %v2186 = vpop.f32.mrb[0].mxu0
        %v2187 = vadd.f32 %v2146, %v2186
        %v2188 = vpop.f32.mrb[0].mxu0
        %v2189 = vpop.f32.mrb[0].mxu0
        %2190 = vdwg.mxu0
        %2191 = vmatprep.subr.bf16.mxu0 %v1795
        %2192 = vmatpush1.bf16.msra.mxu0 %v1794
        %2193 = vmatprep.subr.bf16.mxu0 %v1797
        %2194 = vmatpush1.bf16.msra.mxu0 %v1796
        %2195 = vmatprep.subr.bf16.mxu0 %v1799
        %2196 = vmatpush1.bf16.msra.mxu0 %v1798
        %2197 = vmatprep.subr.bf16.mxu0 %v1801
        %2198 = vmatpush1.bf16.msra.mxu0 %v1800
        %2199 = vmatprep.subr.bf16.mxu0 %v1803
        %2200 = vmatpush1.bf16.msra.mxu0 %v1802
        %2201 = vmatprep.subr.bf16.mxu0 %v1805
        %2202 = vmatpush1.bf16.msra.mxu0 %v1804
        %2203 = vmatprep.subr.bf16.mxu0 %v1807
        %2204 = vmatpush1.bf16.msra.mxu0 %v1806
        %2205 = vmatprep.subr.bf16.mxu0 0
        %2206 = vmatpush1.bf16.msra.mxu0 0
        %2207 = vmatprep.subr.bf16.mxu0 0
        %2208 = vmatpush1.bf16.msra.mxu0 0
        %2209 = vmatprep.subr.bf16.mxu0 0
        %2210 = vmatpush1.bf16.msra.mxu0 0
        %2211 = vmatprep.subr.bf16.mxu0 0
        %2212 = vmatpush1.bf16.msra.mxu0 0
        %2213 = vmatprep.subr.bf16.mxu0 0
        %2214 = vmatpush1.bf16.msra.mxu0 0
        %2215 = vmatprep.subr.bf16.mxu0 0
        %2216 = vmatpush1.bf16.msra.mxu0 0
        %2217 = vmatprep.subr.bf16.mxu0 0
        %2218 = vmatpush1.bf16.msra.mxu0 0
        %2219 = vmatprep.subr.bf16.mxu0 0
        %2220 = vmatpush1.bf16.msra.mxu0 0
        %2221 = vmatprep.subr.bf16.mxu0 0
        %2222 = vmatpush1.bf16.msra.mxu0 0
        %2223 = vmatprep.mubr.bf16.mxu0 0
        %2224 = vmatmul.mubr.bf16.gmra.mrb[0].mxu0 %v1984
        %v2225 = vpop.f32.mrb[0].mxu0
        %v2226 = vadd.f32 %v2185, %v2225
        %v2227 = vpop.f32.mrb[0].mxu0
        %v2228 = vadd.f32 %v2187, %v2227
        %v2229 = vpop.f32.mrb[0].mxu0
        %v2230 = vpop.f32.mrb[0].mxu0
        %2231 = vdwg.mxu0
        %v2232 = vmax.f32 %v2226, 0.0
        %v2233 = vmax.f32 %v2228, 0.0
        %v2234 = vpack.c.bf16 %v2232, %v2232
        %v2235 = vpack.c.bf16 %v2233, %v2233
        %v2236 = vld [vmem:[%s751] sm:$0xff]
        %v2237 = vld [vmem:[%s751 + $0x8] sm:$0xff]
        %v2238 = vld [vmem:[%s751 + $0x10] sm:$0xff]
        %v2239 = vld [vmem:[%s751 + $0x18] sm:$0xff]
        %v2240 = vld [vmem:[%s751 + $0x20] sm:$0xff]
        %v2241 = vld [vmem:[%s751 + $0x28] sm:$0xf]
        %v2242 = vld [vmem:[#allocation11] sm:$0xf]
        %v2243 = vld [vmem:[#allocation11 + $0x4] sm:$0xf]
        %v2244 = vld [vmem:[#allocation11 + $0x8] sm:$0xf]
        %v2245 = vld [vmem:[#allocation11 + $0xc] sm:$0xf]
        %v2246 = vld [vmem:[#allocation11 + $0x10] sm:$0xf]
        %v2247 = vld [vmem:[#allocation11 + $0x14] sm:$0xf]
        %v2248 = vld [vmem:[#allocation11 + $0x18] sm:$0xf]
        %v2249 = vld [vmem:[#allocation11 + $0x1c] sm:$0xf]
        %v2250 = vld [vmem:[#allocation11 + $0x20] sm:$0xf]
        %v2251 = vld [vmem:[#allocation11 + $0x24] sm:$0xf]
        %v2252 = vld [vmem:[#allocation11 + $0x28] sm:$0xf]
        %v2253 = vld [vmem:[#allocation11 + $0x2c] sm:$0xf]
        %v2254 = vld [vmem:[#allocation11 + $0x30] sm:$0xf]
        %v2255 = vld [vmem:[#allocation11 + $0x34] sm:$0xf]
        %v2256 = vld [vmem:[#allocation11 + $0x38] sm:$0xf]
        %v2257 = vld [vmem:[#allocation11 + $0x3c] sm:$0xf]
        %v2258 = vld [vmem:[#allocation11 + $0x40] sm:$0xf]
        %v2259 = vld [vmem:[#allocation11 + $0x44] sm:$0xf]
        %v2260 = vld [vmem:[#allocation11 + $0x48] sm:$0xf]
        %v2261 = vld [vmem:[#allocation11 + $0x4c] sm:$0xf]
        %v2262 = vld [vmem:[#allocation11 + $0x50] sm:$0xf]
        %v2263 = vld [vmem:[#allocation11 + $0x54] sm:$0xf]
        %v2264 = vld [vmem:[#allocation11 + $0x58] sm:$0xf]
        %v2265 = vld [vmem:[#allocation11 + $0x5c] sm:$0xf]
        %v2266 = vld [vmem:[#allocation11 + $0x60] sm:$0xf]
        %v2267 = vld [vmem:[#allocation11 + $0x64] sm:$0xf]
        %v2268 = vld [vmem:[#allocation11 + $0x68] sm:$0xf]
        %v2269 = vld [vmem:[#allocation11 + $0x6c] sm:$0xf]
        %v2270 = vld [vmem:[#allocation11 + $0x70] sm:$0xf]
        %v2271 = vld [vmem:[#allocation11 + $0x74] sm:$0xf]
        %v2272 = vld [vmem:[#allocation11 + $0x78] sm:$0xf]
        %v2273 = vld [vmem:[#allocation11 + $0x7c] sm:$0xf]
        %v2274 = vld [vmem:[#allocation11 + $0x80] sm:$0xf]
        %v2275 = vld [vmem:[#allocation11 + $0x84] sm:$0xf]
        %v2276 = vld [vmem:[#allocation11 + $0x88] sm:$0xf]
        %v2277 = vld [vmem:[#allocation11 + $0x8c] sm:$0xf]
        %v2278 = vld [vmem:[#allocation11 + $0x90] sm:$0xf]
        %v2279 = vld [vmem:[#allocation11 + $0x94] sm:$0xf]
        %v2280 = vld [vmem:[#allocation11 + $0x98] sm:$0xf]
        %v2281 = vld [vmem:[#allocation11 + $0x9c] sm:$0xf]
        %v2282 = vld [vmem:[#allocation11 + $0xa0] sm:$0xf]
        %v2283 = vld [vmem:[#allocation11 + $0xa4] sm:$0xf]
        %v2284 = vld [vmem:[#allocation11 + $0xa8] sm:$0xf]
        %v2285 = vld [vmem:[#allocation11 + $0xac] sm:$0xf]
        %v2286 = vld [vmem:[#allocation11 + $0xb0] sm:$0xf]
        %v2287 = vld [vmem:[#allocation11 + $0xb4] sm:$0xf]
        %v2288 = vld [vmem:[#allocation11 + $0xb8] sm:$0xf]
        %v2289 = vld [vmem:[#allocation11 + $0xbc] sm:$0xf]
        %v2290 = vld [vmem:[#allocation11 + $0xc0] sm:$0xf]
        %v2291 = vld [vmem:[#allocation11 + $0xc4] sm:$0xf]
        %v2292 = vld [vmem:[#allocation11 + $0xc8] sm:$0xf]
        %v2293 = vld [vmem:[#allocation11 + $0xcc] sm:$0xf]
        %v2294 = vld [vmem:[#allocation11 + $0xd0] sm:$0xf]
        %v2295 = vld [vmem:[#allocation11 + $0xd4] sm:$0xf]
        %v2296 = vld [vmem:[#allocation11 + $0xd8] sm:$0xf]
        %v2297 = vld [vmem:[#allocation11 + $0xdc] sm:$0xf]
        %v2298 = vld [vmem:[#allocation11 + $0xe0] sm:$0xf]
        %v2299 = vld [vmem:[#allocation11 + $0xe4] sm:$0xf]
        %v2300 = vld [vmem:[#allocation11 + $0xe8] sm:$0xf]
        %v2301 = vld [vmem:[#allocation11 + $0xec] sm:$0xf]
        %v2302 = vld [vmem:[#allocation11 + $0xf0] sm:$0xf]
        %v2303 = vld [vmem:[#allocation11 + $0xf4] sm:$0xf]
        %v2304 = vld [vmem:[#allocation11 + $0xf8] sm:$0xf]
        %v2305 = vld [vmem:[#allocation11 + $0xfc] sm:$0xf]
        %v2306 = vld [vmem:[#allocation11 + $0x100] sm:$0xf]
        %v2307 = vld [vmem:[#allocation11 + $0x104] sm:$0xf]
        %v2308 = vld [vmem:[#allocation11 + $0x108] sm:$0xf]
        %v2309 = vld [vmem:[#allocation11 + $0x10c] sm:$0xf]
        %v2310 = vld [vmem:[#allocation11 + $0x110] sm:$0xf]
        %v2311 = vld [vmem:[#allocation11 + $0x114] sm:$0xf]
        %v2312 = vld [vmem:[#allocation11 + $0x118] sm:$0xf]
        %v2313 = vld [vmem:[#allocation11 + $0x11c] sm:$0xf]
        %v2314 = vld [vmem:[#allocation11 + $0x120] sm:$0xf]
        %v2315 = vld [vmem:[#allocation11 + $0x124] sm:$0xf]
        %v2316 = vld [vmem:[#allocation11 + $0x128] sm:$0xf]
        %v2317 = vld [vmem:[#allocation11 + $0x12c] sm:$0xf]
        %v2318 = vld [vmem:[#allocation11 + $0x130] sm:$0xf]
        %v2319 = vld [vmem:[#allocation11 + $0x134] sm:$0xf]
        %v2320 = vld [vmem:[#allocation11 + $0x138] sm:$0xf]
        %v2321 = vld [vmem:[#allocation11 + $0x13c] sm:$0xf]
        %v2322 = vld [vmem:[#allocation11 + $0x140] sm:$0xf]
        %v2323 = vld [vmem:[#allocation11 + $0x144] sm:$0xf]
        %v2324 = vld [vmem:[#allocation11 + $0x148] sm:$0xf]
        %v2325 = vld [vmem:[#allocation11 + $0x14c] sm:$0xf]
        %v2326 = vld [vmem:[#allocation11 + $0x150] sm:$0xf]
        %v2327 = vld [vmem:[#allocation11 + $0x154] sm:$0xf]
        %v2328 = vld [vmem:[#allocation11 + $0x158] sm:$0xf]
        %v2329 = vld [vmem:[#allocation11 + $0x15c] sm:$0xf]
        %v2330 = vld [vmem:[#allocation11 + $0x160] sm:$0xf]
        %v2331 = vld [vmem:[#allocation11 + $0x164] sm:$0xf]
        %v2332 = vld [vmem:[#allocation11 + $0x168] sm:$0xf]
        %v2333 = vld [vmem:[#allocation11 + $0x16c] sm:$0xf]
        %v2334 = vld [vmem:[#allocation11 + $0x170] sm:$0xf]
        %v2335 = vld [vmem:[#allocation11 + $0x174] sm:$0xf]
        %v2336 = vld [vmem:[#allocation11 + $0x178] sm:$0xf]
        %v2337 = vld [vmem:[#allocation11 + $0x17c] sm:$0xf]
        %v2338 = vld [vmem:[#allocation11 + $0x180] sm:$0xf]
        %v2339 = vld [vmem:[#allocation11 + $0x184] sm:$0xf]
        %v2340 = vld [vmem:[#allocation11 + $0x188] sm:$0xf]
        %v2341 = vld [vmem:[#allocation11 + $0x18c] sm:$0xf]
        %v2342 = vld [vmem:[#allocation11 + $0x190] sm:$0xf]
        %v2343 = vld [vmem:[#allocation11 + $0x194] sm:$0xf]
        %v2344 = vld [vmem:[#allocation11 + $0x198] sm:$0xf]
        %v2345 = vld [vmem:[#allocation11 + $0x19c] sm:$0xf]
        %v2346 = vld [vmem:[#allocation11 + $0x1a0] sm:$0xf]
        %v2347 = vld [vmem:[#allocation11 + $0x1a4] sm:$0xf]
        %v2348 = vld [vmem:[#allocation11 + $0x1a8] sm:$0xf]
        %v2349 = vld [vmem:[#allocation11 + $0x1ac] sm:$0xf]
        %v2350 = vld [vmem:[#allocation11 + $0x1b0] sm:$0xf]
        %v2351 = vld [vmem:[#allocation11 + $0x1b4] sm:$0xf]
        %v2352 = vld [vmem:[#allocation11 + $0x1b8] sm:$0xf]
        %v2353 = vld [vmem:[#allocation11 + $0x1bc] sm:$0xf]
        %v2354 = vld [vmem:[#allocation11 + $0x1c0] sm:$0xf]
        %v2355 = vld [vmem:[#allocation11 + $0x1c4] sm:$0xf]
        %v2356 = vld [vmem:[#allocation11 + $0x1c8] sm:$0xf]
        %v2357 = vld [vmem:[#allocation11 + $0x1cc] sm:$0xf]
        %v2358 = vld [vmem:[#allocation11 + $0x1d0] sm:$0xf]
        %v2359 = vld [vmem:[#allocation11 + $0x1d4] sm:$0xf]
        %v2360 = vld [vmem:[#allocation11 + $0x1d8] sm:$0xf]
        %v2361 = vld [vmem:[#allocation11 + $0x1dc] sm:$0xf]
        %v2362 = vld [vmem:[#allocation11 + $0x1e0] sm:$0xf]
        %v2363 = vld [vmem:[#allocation11 + $0x1e4] sm:$0xf]
        %v2364 = vld [vmem:[#allocation11 + $0x1e8] sm:$0xf]
        %v2365 = vld [vmem:[#allocation11 + $0x1ec] sm:$0xf]
        %v2366 = vld [vmem:[#allocation11 + $0x1f0] sm:$0xf]
        %v2367 = vld [vmem:[#allocation11 + $0x1f4] sm:$0xf]
        %v2368 = vld [vmem:[#allocation11 + $0x1f8] sm:$0xf]
        %v2369 = vld [vmem:[#allocation11 + $0x1fc] sm:$0xf]
        %v2370 = vld [vmem:[#allocation11 + $0x200] sm:$0xf]
        %v2371 = vld [vmem:[#allocation11 + $0x204] sm:$0xf]
        %v2372 = vld [vmem:[#allocation11 + $0x208] sm:$0xf]
        %v2373 = vld [vmem:[#allocation11 + $0x20c] sm:$0xf]
        %v2374 = vld [vmem:[#allocation11 + $0x210] sm:$0xf]
        %v2375 = vld [vmem:[#allocation11 + $0x214] sm:$0xf]
        %v2376 = vld [vmem:[#allocation11 + $0x218] sm:$0xf]
        %v2377 = vld [vmem:[#allocation11 + $0x21c] sm:$0xf]
        %v2378 = vld [vmem:[#allocation11 + $0x220] sm:$0xf]
        %v2379 = vld [vmem:[#allocation11 + $0x224] sm:$0xf]
        %v2380 = vld [vmem:[#allocation11 + $0x228] sm:$0xf]
        %v2381 = vld [vmem:[#allocation11 + $0x22c] sm:$0xf]
        %v2382 = vld [vmem:[#allocation11 + $0x230] sm:$0xf]
        %v2383 = vld [vmem:[#allocation11 + $0x234] sm:$0xf]
        %v2384 = vld [vmem:[#allocation11 + $0x238] sm:$0xf]
        %v2385 = vld [vmem:[#allocation11 + $0x23c] sm:$0xf]
        %v2386 = vld [vmem:[#allocation11 + $0x240] sm:$0xf]
        %v2387 = vld [vmem:[#allocation11 + $0x244] sm:$0xf]
        %v2388 = vld [vmem:[#allocation11 + $0x248] sm:$0xf]
        %v2389 = vld [vmem:[#allocation11 + $0x24c] sm:$0xf]
        %v2390 = vld [vmem:[#allocation11 + $0x250] sm:$0xf]
        %v2391 = vld [vmem:[#allocation11 + $0x254] sm:$0xf]
        %v2392 = vld [vmem:[#allocation11 + $0x258] sm:$0xf]
        %v2393 = vld [vmem:[#allocation11 + $0x25c] sm:$0xf]
        %v2394 = vld [vmem:[#allocation11 + $0x260] sm:$0xf]
        %v2395 = vld [vmem:[#allocation11 + $0x264] sm:$0xf]
        %v2396 = vld [vmem:[#allocation11 + $0x268] sm:$0xf]
        %v2397 = vld [vmem:[#allocation11 + $0x26c] sm:$0xf]
        %v2398 = vld [vmem:[#allocation11 + $0x270] sm:$0xf]
        %v2399 = vld [vmem:[#allocation11 + $0x274] sm:$0xf]
        %v2400 = vld [vmem:[#allocation11 + $0x278] sm:$0xf]
        %v2401 = vld [vmem:[#allocation11 + $0x27c] sm:$0xf]
        %v2402 = vld [vmem:[#allocation11 + $0x280] sm:$0xf]
        %v2403 = vld [vmem:[#allocation11 + $0x284] sm:$0xf]
        %v2404 = vld [vmem:[#allocation11 + $0x288] sm:$0xf]
        %v2405 = vld [vmem:[#allocation11 + $0x28c] sm:$0xf]
        %v2406 = vld [vmem:[#allocation11 + $0x290] sm:$0xf]
        %v2407 = vld [vmem:[#allocation11 + $0x294] sm:$0xf]
        %v2408 = vld [vmem:[#allocation11 + $0x298] sm:$0xf]
        %v2409 = vld [vmem:[#allocation11 + $0x29c] sm:$0xf]
        %v2410 = vld [vmem:[#allocation11 + $0x2a0] sm:$0xf]
        %v2411 = vld [vmem:[#allocation11 + $0x2a4] sm:$0xf]
        %v2412 = vld [vmem:[#allocation11 + $0x2a8] sm:$0xf]
        %v2413 = vld [vmem:[#allocation11 + $0x2ac] sm:$0xf]
        %v2414 = vld [vmem:[#allocation11 + $0x2b0] sm:$0xf]
        %v2415 = vld [vmem:[#allocation11 + $0x2b4] sm:$0xf]
        %v2416 = vld [vmem:[#allocation13] sm:$0x1]
        %v2418 = vlaneseq
        %v2419 = vshrl.u32 %v2418, 7
        %v2420 = vsub.s32 0, %v2419
        %v2421 = vrot.slane %v2416, %v2420
        %v2429 = vunpack.c.l.b16 %v2236
        %v2430 = vunpack.c.h.b16 %v2236
        %v2431 = vunpack.c.l.b16 %v2237
        %v2432 = vunpack.c.h.b16 %v2237
        %v2433 = vunpack.c.l.b16 %v2238
        %v2434 = vunpack.c.h.b16 %v2238
        %v2435 = vunpack.c.l.b16 %v2239
        %v2436 = vunpack.c.h.b16 %v2239
        %v2437 = vunpack.c.l.b16 %v2240
        %v2438 = vunpack.c.h.b16 %v2240
        %v2439 = vunpack.c.l.b16 %v2241
        %v2440 = vpack.c.b16 %v2429, %v2429
        %v2441 = vpack.c.b16 %v2430, %v2430
        %v2442 = vpack.c.b16 %v2431, %v2431
        %v2443 = vpack.c.b16 %v2432, %v2432
        %v2444 = vpack.c.b16 %v2433, %v2433
        %v2445 = vpack.c.b16 %v2434, %v2434
        %v2446 = vpack.c.b16 %v2435, %v2435
        %v2447 = vpack.c.b16 %v2436, %v2436
        %v2448 = vpack.c.b16 %v2437, %v2437
        %v2449 = vpack.c.b16 %v2438, %v2438
        %v2450 = vpack.c.b16 %v2439, %v2439
        %v2635 = vunpack.c.l.b16 %v2242
        %v2636 = vunpack.c.l.b16 %v2243
        %v2637 = vunpack.c.l.b16 %v2244
        %v2638 = vunpack.c.l.b16 %v2245
        %v2639 = vunpack.c.l.b16 %v2246
        %v2640 = vunpack.c.l.b16 %v2247
        %v2641 = vunpack.c.l.b16 %v2248
        %v2642 = vunpack.c.l.b16 %v2249
        %v2643 = vunpack.c.l.b16 %v2250
        %v2644 = vunpack.c.l.b16 %v2251
        %v2645 = vunpack.c.l.b16 %v2252
        %v2646 = vunpack.c.l.b16 %v2253
        %v2647 = vunpack.c.l.b16 %v2254
        %v2648 = vunpack.c.l.b16 %v2255
        %v2649 = vunpack.c.l.b16 %v2256
        %v2650 = vunpack.c.l.b16 %v2257
        %v2651 = vunpack.c.l.b16 %v2258
        %v2652 = vunpack.c.l.b16 %v2259
        %v2653 = vunpack.c.l.b16 %v2260
        %v2654 = vunpack.c.l.b16 %v2261
        %v2655 = vunpack.c.l.b16 %v2262
        %v2656 = vunpack.c.l.b16 %v2263
        %v2657 = vunpack.c.l.b16 %v2264
        %v2658 = vunpack.c.l.b16 %v2265
        %v2659 = vunpack.c.l.b16 %v2266
        %v2660 = vunpack.c.l.b16 %v2267
        %v2661 = vunpack.c.l.b16 %v2268
        %v2662 = vunpack.c.l.b16 %v2269
        %v2663 = vunpack.c.l.b16 %v2270
        %v2664 = vunpack.c.l.b16 %v2271
        %v2665 = vunpack.c.l.b16 %v2272
        %v2666 = vunpack.c.l.b16 %v2273
        %v2667 = vunpack.c.l.b16 %v2274
        %v2668 = vunpack.c.l.b16 %v2275
        %v2669 = vunpack.c.l.b16 %v2276
        %v2670 = vunpack.c.l.b16 %v2277
        %v2671 = vunpack.c.l.b16 %v2278
        %v2672 = vunpack.c.l.b16 %v2279
        %v2673 = vunpack.c.l.b16 %v2280
        %v2674 = vunpack.c.l.b16 %v2281
        %v2675 = vunpack.c.l.b16 %v2282
        %v2676 = vunpack.c.l.b16 %v2283
        %v2677 = vunpack.c.l.b16 %v2284
        %v2678 = vunpack.c.l.b16 %v2285
        %v2679 = vunpack.c.l.b16 %v2286
        %v2680 = vunpack.c.l.b16 %v2287
        %v2681 = vunpack.c.l.b16 %v2288
        %v2682 = vunpack.c.l.b16 %v2289
        %v2683 = vunpack.c.l.b16 %v2290
        %v2684 = vunpack.c.l.b16 %v2291
        %v2685 = vunpack.c.l.b16 %v2292
        %v2686 = vunpack.c.l.b16 %v2293
        %v2687 = vunpack.c.l.b16 %v2294
        %v2688 = vunpack.c.l.b16 %v2295
        %v2689 = vunpack.c.l.b16 %v2296
        %v2690 = vunpack.c.l.b16 %v2297
        %v2691 = vunpack.c.l.b16 %v2298
        %v2692 = vunpack.c.l.b16 %v2299
        %v2693 = vunpack.c.l.b16 %v2300
        %v2694 = vunpack.c.l.b16 %v2301
        %v2695 = vunpack.c.l.b16 %v2302
        %v2696 = vunpack.c.l.b16 %v2303
        %v2697 = vunpack.c.l.b16 %v2304
        %v2698 = vunpack.c.l.b16 %v2305
        %v2699 = vunpack.c.l.b16 %v2306
        %v2700 = vunpack.c.l.b16 %v2307
        %v2701 = vunpack.c.l.b16 %v2308
        %v2702 = vunpack.c.l.b16 %v2309
        %v2703 = vunpack.c.l.b16 %v2310
        %v2704 = vunpack.c.l.b16 %v2311
        %v2705 = vunpack.c.l.b16 %v2312
        %v2706 = vunpack.c.l.b16 %v2313
        %v2707 = vunpack.c.l.b16 %v2314
        %v2708 = vunpack.c.l.b16 %v2315
        %v2709 = vunpack.c.l.b16 %v2316
        %v2710 = vunpack.c.l.b16 %v2317
        %v2711 = vunpack.c.l.b16 %v2318
        %v2712 = vunpack.c.l.b16 %v2319
        %v2713 = vunpack.c.l.b16 %v2320
        %v2714 = vunpack.c.l.b16 %v2321
        %v2715 = vunpack.c.l.b16 %v2322
        %v2716 = vunpack.c.l.b16 %v2323
        %v2717 = vunpack.c.l.b16 %v2324
        %v2718 = vunpack.c.l.b16 %v2325
        %v2719 = vunpack.c.l.b16 %v2326
        %v2720 = vunpack.c.l.b16 %v2327
        %v2721 = vunpack.c.l.b16 %v2328
        %v2722 = vunpack.c.l.b16 %v2329
        %v2723 = vunpack.c.l.b16 %v2330
        %v2724 = vunpack.c.l.b16 %v2331
        %v2725 = vunpack.c.l.b16 %v2332
        %v2726 = vunpack.c.l.b16 %v2333
        %v2727 = vunpack.c.l.b16 %v2334
        %v2728 = vunpack.c.l.b16 %v2335
        %v2729 = vunpack.c.l.b16 %v2336
        %v2730 = vunpack.c.l.b16 %v2337
        %v2731 = vunpack.c.l.b16 %v2338
        %v2732 = vunpack.c.l.b16 %v2339
        %v2733 = vunpack.c.l.b16 %v2340
        %v2734 = vunpack.c.l.b16 %v2341
        %v2735 = vunpack.c.l.b16 %v2342
        %v2736 = vunpack.c.l.b16 %v2343
        %v2737 = vunpack.c.l.b16 %v2344
        %v2738 = vunpack.c.l.b16 %v2345
        %v2739 = vunpack.c.l.b16 %v2346
        %v2740 = vunpack.c.l.b16 %v2347
        %v2741 = vunpack.c.l.b16 %v2348
        %v2742 = vunpack.c.l.b16 %v2349
        %v2743 = vunpack.c.l.b16 %v2350
        %v2744 = vunpack.c.l.b16 %v2351
        %v2745 = vunpack.c.l.b16 %v2352
        %v2746 = vunpack.c.l.b16 %v2353
        %v2747 = vunpack.c.l.b16 %v2354
        %v2748 = vunpack.c.l.b16 %v2355
        %v2749 = vunpack.c.l.b16 %v2356
        %v2750 = vunpack.c.l.b16 %v2357
        %v2751 = vunpack.c.l.b16 %v2358
        %v2752 = vunpack.c.l.b16 %v2359
        %v2753 = vunpack.c.l.b16 %v2360
        %v2754 = vunpack.c.l.b16 %v2361
        %v2755 = vunpack.c.l.b16 %v2362
        %v2756 = vunpack.c.l.b16 %v2363
        %v2757 = vunpack.c.l.b16 %v2364
        %v2758 = vunpack.c.l.b16 %v2365
        %v2759 = vunpack.c.l.b16 %v2366
        %v2760 = vunpack.c.l.b16 %v2367
        %v2761 = vunpack.c.l.b16 %v2368
        %v2762 = vunpack.c.l.b16 %v2369
        %v2763 = vunpack.c.l.b16 %v2370
        %v2764 = vunpack.c.l.b16 %v2371
        %v2765 = vunpack.c.l.b16 %v2372
        %v2766 = vunpack.c.l.b16 %v2373
        %v2767 = vunpack.c.l.b16 %v2374
        %v2768 = vunpack.c.l.b16 %v2375
        %v2769 = vunpack.c.l.b16 %v2376
        %v2770 = vunpack.c.l.b16 %v2377
        %v2771 = vunpack.c.l.b16 %v2378
        %v2772 = vunpack.c.l.b16 %v2379
        %v2773 = vunpack.c.l.b16 %v2380
        %v2774 = vunpack.c.l.b16 %v2381
        %v2775 = vunpack.c.l.b16 %v2382
        %v2776 = vunpack.c.l.b16 %v2383
        %v2777 = vunpack.c.l.b16 %v2384
        %v2778 = vunpack.c.l.b16 %v2385
        %v2779 = vunpack.c.l.b16 %v2386
        %v2780 = vunpack.c.l.b16 %v2387
        %v2781 = vunpack.c.l.b16 %v2388
        %v2782 = vunpack.c.l.b16 %v2389
        %v2783 = vunpack.c.l.b16 %v2390
        %v2784 = vunpack.c.l.b16 %v2391
        %v2785 = vunpack.c.l.b16 %v2392
        %v2786 = vunpack.c.l.b16 %v2393
        %v2787 = vunpack.c.l.b16 %v2394
        %v2788 = vunpack.c.l.b16 %v2395
        %v2789 = vunpack.c.l.b16 %v2396
        %v2790 = vunpack.c.l.b16 %v2397
        %v2791 = vunpack.c.l.b16 %v2398
        %v2792 = vunpack.c.l.b16 %v2399
        %v2793 = vunpack.c.l.b16 %v2400
        %v2794 = vunpack.c.l.b16 %v2401
        %v2795 = vunpack.c.l.b16 %v2402
        %v2796 = vunpack.c.l.b16 %v2403
        %v2797 = vunpack.c.l.b16 %v2404
        %v2798 = vunpack.c.l.b16 %v2405
        %v2799 = vunpack.c.l.b16 %v2406
        %v2800 = vunpack.c.l.b16 %v2407
        %v2801 = vunpack.c.l.b16 %v2408
        %v2802 = vunpack.c.l.b16 %v2409
        %v2803 = vunpack.c.l.b16 %v2410
        %v2804 = vunpack.c.l.b16 %v2411
        %v2805 = vunpack.c.l.b16 %v2412
        %v2806 = vunpack.c.l.b16 %v2413
        %v2807 = vunpack.c.l.b16 %v2414
        %v2808 = vunpack.c.l.b16 %v2415
        %v2809 = vpack.c.b16 %v2636, %v2635
        %v2810 = vpack.c.b16 %v2638, %v2637
        %v2811 = vpack.c.b16 %v2640, %v2639
        %v2812 = vpack.c.b16 %v2642, %v2641
        %v2813 = vpack.c.b16 %v2644, %v2643
        %v2814 = vpack.c.b16 %v2646, %v2645
        %v2815 = vpack.c.b16 %v2648, %v2647
        %v2816 = vpack.c.b16 %v2650, %v2649
        %v2817 = vpack.c.b16 %v2652, %v2651
        %v2818 = vpack.c.b16 %v2654, %v2653
        %v2819 = vpack.c.b16 %v2656, %v2655
        %v2820 = vpack.c.b16 %v2658, %v2657
        %v2821 = vpack.c.b16 %v2660, %v2659
        %v2822 = vpack.c.b16 %v2662, %v2661
        %v2823 = vpack.c.b16 %v2664, %v2663
        %v2824 = vpack.c.b16 %v2666, %v2665
        %v2825 = vpack.c.b16 %v2668, %v2667
        %v2826 = vpack.c.b16 %v2670, %v2669
        %v2827 = vpack.c.b16 %v2672, %v2671
        %v2828 = vpack.c.b16 %v2674, %v2673
        %v2829 = vpack.c.b16 %v2676, %v2675
        %v2830 = vpack.c.b16 %v2678, %v2677
        %v2831 = vpack.c.b16 %v2680, %v2679
        %v2832 = vpack.c.b16 %v2682, %v2681
        %v2833 = vpack.c.b16 %v2684, %v2683
        %v2834 = vpack.c.b16 %v2686, %v2685
        %v2835 = vpack.c.b16 %v2688, %v2687
        %v2836 = vpack.c.b16 %v2690, %v2689
        %v2837 = vpack.c.b16 %v2692, %v2691
        %v2838 = vpack.c.b16 %v2694, %v2693
        %v2839 = vpack.c.b16 %v2696, %v2695
        %v2840 = vpack.c.b16 %v2698, %v2697
        %v2841 = vpack.c.b16 %v2700, %v2699
        %v2842 = vpack.c.b16 %v2702, %v2701
        %v2843 = vpack.c.b16 %v2704, %v2703
        %v2844 = vpack.c.b16 %v2706, %v2705
        %v2845 = vpack.c.b16 %v2708, %v2707
        %v2846 = vpack.c.b16 %v2710, %v2709
        %v2847 = vpack.c.b16 %v2712, %v2711
        %v2848 = vpack.c.b16 %v2714, %v2713
        %v2849 = vpack.c.b16 %v2716, %v2715
        %v2850 = vpack.c.b16 %v2718, %v2717
        %v2851 = vpack.c.b16 %v2720, %v2719
        %v2852 = vpack.c.b16 %v2722, %v2721
        %v2853 = vpack.c.b16 %v2724, %v2723
        %v2854 = vpack.c.b16 %v2726, %v2725
        %v2855 = vpack.c.b16 %v2728, %v2727
        %v2856 = vpack.c.b16 %v2730, %v2729
        %v2857 = vpack.c.b16 %v2732, %v2731
        %v2858 = vpack.c.b16 %v2734, %v2733
        %v2859 = vpack.c.b16 %v2736, %v2735
        %v2860 = vpack.c.b16 %v2738, %v2737
        %v2861 = vpack.c.b16 %v2740, %v2739
        %v2862 = vpack.c.b16 %v2742, %v2741
        %v2863 = vpack.c.b16 %v2744, %v2743
        %v2864 = vpack.c.b16 %v2746, %v2745
        %v2865 = vpack.c.b16 %v2748, %v2747
        %v2866 = vpack.c.b16 %v2750, %v2749
        %v2867 = vpack.c.b16 %v2752, %v2751
        %v2868 = vpack.c.b16 %v2754, %v2753
        %v2869 = vpack.c.b16 %v2756, %v2755
        %v2870 = vpack.c.b16 %v2758, %v2757
        %v2871 = vpack.c.b16 %v2760, %v2759
        %v2872 = vpack.c.b16 %v2762, %v2761
        %v2873 = vpack.c.b16 %v2764, %v2763
        %v2874 = vpack.c.b16 %v2766, %v2765
        %v2875 = vpack.c.b16 %v2768, %v2767
        %v2876 = vpack.c.b16 %v2770, %v2769
        %v2877 = vpack.c.b16 %v2772, %v2771
        %v2878 = vpack.c.b16 %v2774, %v2773
        %v2879 = vpack.c.b16 %v2776, %v2775
        %v2880 = vpack.c.b16 %v2778, %v2777
        %v2881 = vpack.c.b16 %v2780, %v2779
        %v2882 = vpack.c.b16 %v2782, %v2781
        %v2883 = vpack.c.b16 %v2784, %v2783
        %v2884 = vpack.c.b16 %v2786, %v2785
        %v2885 = vpack.c.b16 %v2788, %v2787
        %v2886 = vpack.c.b16 %v2790, %v2789
        %v2887 = vpack.c.b16 %v2792, %v2791
        %v2888 = vpack.c.b16 %v2794, %v2793
        %v2889 = vpack.c.b16 %v2796, %v2795
        %v2890 = vpack.c.b16 %v2798, %v2797
        %v2891 = vpack.c.b16 %v2800, %v2799
        %v2892 = vpack.c.b16 %v2802, %v2801
        %v2893 = vpack.c.b16 %v2804, %v2803
        %v2894 = vpack.c.b16 %v2806, %v2805
        %v2895 = vpack.c.b16 %v2808, %v2807
        %v2984 = vsel %vm1982, %v2450, 0
        %2986 = vmatprep.subr.bf16.mxu0 0
        %2987 = vmatpush1.bf16.msra.mxu0 %v2809
        %2988 = vmatprep.subr.bf16.mxu0 0
        %2989 = vmatpush1.bf16.msra.mxu0 %v2810
        %2990 = vmatprep.subr.bf16.mxu0 0
        %2991 = vmatpush1.bf16.msra.mxu0 %v2811
        %2992 = vmatprep.subr.bf16.mxu0 0
        %2993 = vmatpush1.bf16.msra.mxu0 %v2812
        %2994 = vmatprep.subr.bf16.mxu0 0
        %2995 = vmatpush1.bf16.msra.mxu0 %v2813
        %2996 = vmatprep.subr.bf16.mxu0 0
        %2997 = vmatpush1.bf16.msra.mxu0 %v2814
        %2998 = vmatprep.subr.bf16.mxu0 0
        %2999 = vmatpush1.bf16.msra.mxu0 %v2815
        %3000 = vmatprep.subr.bf16.mxu0 0
        %3001 = vmatpush1.bf16.msra.mxu0 %v2816
        %3002 = vmatprep.subr.bf16.mxu0 0
        %3003 = vmatpush1.bf16.msra.mxu0 %v2817
        %3004 = vmatprep.subr.bf16.mxu0 0
        %3005 = vmatpush1.bf16.msra.mxu0 %v2818
        %3006 = vmatprep.subr.bf16.mxu0 0
        %3007 = vmatpush1.bf16.msra.mxu0 %v2819
        %3008 = vmatprep.subr.bf16.mxu0 0
        %3009 = vmatpush1.bf16.msra.mxu0 %v2820
        %3010 = vmatprep.subr.bf16.mxu0 0
        %3011 = vmatpush1.bf16.msra.mxu0 %v2821
        %3012 = vmatprep.subr.bf16.mxu0 0
        %3013 = vmatpush1.bf16.msra.mxu0 %v2822
        %3014 = vmatprep.subr.bf16.mxu0 0
        %3015 = vmatpush1.bf16.msra.mxu0 %v2823
        %3016 = vmatprep.subr.bf16.mxu0 0
        %3017 = vmatpush1.bf16.msra.mxu0 %v2824
        %3018 = vmatprep.mubr.bf16.mxu0 %v2441
        %3019 = vmatmul.mubr.bf16.gmra.mrb[0].mxu0 %v2440
        %v3020 = vpop.f32.mrb[0].mxu0
        %v3021 = vadd.f32 %v2421, %v3020
        %v3022 = vpop.f32.mrb[0].mxu0
        %v3023 = vpop.f32.mrb[0].mxu0
        %v3024 = vpop.f32.mrb[0].mxu0
        %3025 = vdwg.mxu0
        %3026 = vmatprep.subr.bf16.mxu0 0
        %3027 = vmatpush1.bf16.msra.mxu0 %v2825
        %3028 = vmatprep.subr.bf16.mxu0 0
        %3029 = vmatpush1.bf16.msra.mxu0 %v2826
        %3030 = vmatprep.subr.bf16.mxu0 0
        %3031 = vmatpush1.bf16.msra.mxu0 %v2827
        %3032 = vmatprep.subr.bf16.mxu0 0
        %3033 = vmatpush1.bf16.msra.mxu0 %v2828
        %3034 = vmatprep.subr.bf16.mxu0 0
        %3035 = vmatpush1.bf16.msra.mxu0 %v2829
        %3036 = vmatprep.subr.bf16.mxu0 0
        %3037 = vmatpush1.bf16.msra.mxu0 %v2830
        %3038 = vmatprep.subr.bf16.mxu0 0
        %3039 = vmatpush1.bf16.msra.mxu0 %v2831
        %3040 = vmatprep.subr.bf16.mxu0 0
        %3041 = vmatpush1.bf16.msra.mxu0 %v2832
        %3042 = vmatprep.subr.bf16.mxu0 0
        %3043 = vmatpush1.bf16.msra.mxu0 %v2833
        %3044 = vmatprep.subr.bf16.mxu0 0
        %3045 = vmatpush1.bf16.msra.mxu0 %v2834
        %3046 = vmatprep.subr.bf16.mxu0 0
        %3047 = vmatpush1.bf16.msra.mxu0 %v2835
        %3048 = vmatprep.subr.bf16.mxu0 0
        %3049 = vmatpush1.bf16.msra.mxu0 %v2836
        %3050 = vmatprep.subr.bf16.mxu0 0
        %3051 = vmatpush1.bf16.msra.mxu0 %v2837
        %3052 = vmatprep.subr.bf16.mxu0 0
        %3053 = vmatpush1.bf16.msra.mxu0 %v2838
        %3054 = vmatprep.subr.bf16.mxu0 0
        %3055 = vmatpush1.bf16.msra.mxu0 %v2839
        %3056 = vmatprep.subr.bf16.mxu0 0
        %3057 = vmatpush1.bf16.msra.mxu0 %v2840
        %3058 = vmatprep.mubr.bf16.mxu0 %v2443
        %3059 = vmatmul.mubr.bf16.gmra.mrb[0].mxu0 %v2442
        %v3060 = vpop.f32.mrb[0].mxu0
        %v3061 = vadd.f32 %v3021, %v3060
        %v3062 = vpop.f32.mrb[0].mxu0
        %v3063 = vpop.f32.mrb[0].mxu0
        %v3064 = vpop.f32.mrb[0].mxu0
        %3065 = vdwg.mxu0
        %3066 = vmatprep.subr.bf16.mxu0 0
        %3067 = vmatpush1.bf16.msra.mxu0 %v2841
        %3068 = vmatprep.subr.bf16.mxu0 0
        %3069 = vmatpush1.bf16.msra.mxu0 %v2842
        %3070 = vmatprep.subr.bf16.mxu0 0
        %3071 = vmatpush1.bf16.msra.mxu0 %v2843
        %3072 = vmatprep.subr.bf16.mxu0 0
        %3073 = vmatpush1.bf16.msra.mxu0 %v2844
        %3074 = vmatprep.subr.bf16.mxu0 0
        %3075 = vmatpush1.bf16.msra.mxu0 %v2845
        %3076 = vmatprep.subr.bf16.mxu0 0
        %3077 = vmatpush1.bf16.msra.mxu0 %v2846
        %3078 = vmatprep.subr.bf16.mxu0 0
        %3079 = vmatpush1.bf16.msra.mxu0 %v2847
        %3080 = vmatprep.subr.bf16.mxu0 0
        %3081 = vmatpush1.bf16.msra.mxu0 %v2848
        %3082 = vmatprep.subr.bf16.mxu0 0
        %3083 = vmatpush1.bf16.msra.mxu0 %v2849
        %3084 = vmatprep.subr.bf16.mxu0 0
        %3085 = vmatpush1.bf16.msra.mxu0 %v2850
        %3086 = vmatprep.subr.bf16.mxu0 0
        %3087 = vmatpush1.bf16.msra.mxu0 %v2851
        %3088 = vmatprep.subr.bf16.mxu0 0
        %3089 = vmatpush1.bf16.msra.mxu0 %v2852
        %3090 = vmatprep.subr.bf16.mxu0 0
        %3091 = vmatpush1.bf16.msra.mxu0 %v2853
        %3092 = vmatprep.subr.bf16.mxu0 0
        %3093 = vmatpush1.bf16.msra.mxu0 %v2854
        %3094 = vmatprep.subr.bf16.mxu0 0
        %3095 = vmatpush1.bf16.msra.mxu0 %v2855
        %3096 = vmatprep.subr.bf16.mxu0 0
        %3097 = vmatpush1.bf16.msra.mxu0 %v2856
        %3098 = vmatprep.mubr.bf16.mxu0 %v2445
        %3099 = vmatmul.mubr.bf16.gmra.mrb[0].mxu0 %v2444
        %v3100 = vpop.f32.mrb[0].mxu0
        %v3101 = vadd.f32 %v3061, %v3100
        %v3102 = vpop.f32.mrb[0].mxu0
        %v3103 = vpop.f32.mrb[0].mxu0
        %v3104 = vpop.f32.mrb[0].mxu0
        %3105 = vdwg.mxu0
        %3106 = vmatprep.subr.bf16.mxu0 0
        %3107 = vmatpush1.bf16.msra.mxu0 %v2857
        %3108 = vmatprep.subr.bf16.mxu0 0
        %3109 = vmatpush1.bf16.msra.mxu0 %v2858
        %3110 = vmatprep.subr.bf16.mxu0 0
        %3111 = vmatpush1.bf16.msra.mxu0 %v2859
        %3112 = vmatprep.subr.bf16.mxu0 0
        %3113 = vmatpush1.bf16.msra.mxu0 %v2860
        %3114 = vmatprep.subr.bf16.mxu0 0
        %3115 = vmatpush1.bf16.msra.mxu0 %v2861
        %3116 = vmatprep.subr.bf16.mxu0 0
        %3117 = vmatpush1.bf16.msra.mxu0 %v2862
        %3118 = vmatprep.subr.bf16.mxu0 0
        %3119 = vmatpush1.bf16.msra.mxu0 %v2863
        %3120 = vmatprep.subr.bf16.mxu0 0
        %3121 = vmatpush1.bf16.msra.mxu0 %v2864
        %3122 = vmatprep.subr.bf16.mxu0 0
        %3123 = vmatpush1.bf16.msra.mxu0 %v2865
        %3124 = vmatprep.subr.bf16.mxu0 0
        %3125 = vmatpush1.bf16.msra.mxu0 %v2866
        %3126 = vmatprep.subr.bf16.mxu0 0
        %3127 = vmatpush1.bf16.msra.mxu0 %v2867
        %3128 = vmatprep.subr.bf16.mxu0 0
        %3129 = vmatpush1.bf16.msra.mxu0 %v2868
        %3130 = vmatprep.subr.bf16.mxu0 0
        %3131 = vmatpush1.bf16.msra.mxu0 %v2869
        %3132 = vmatprep.subr.bf16.mxu0 0
        %3133 = vmatpush1.bf16.msra.mxu0 %v2870
        %3134 = vmatprep.subr.bf16.mxu0 0
        %3135 = vmatpush1.bf16.msra.mxu0 %v2871
        %3136 = vmatprep.subr.bf16.mxu0 0
        %3137 = vmatpush1.bf16.msra.mxu0 %v2872
        %3138 = vmatprep.mubr.bf16.mxu0 %v2447
        %3139 = vmatmul.mubr.bf16.gmra.mrb[0].mxu0 %v2446
        %v3140 = vpop.f32.mrb[0].mxu0
        %v3141 = vadd.f32 %v3101, %v3140
        %v3142 = vpop.f32.mrb[0].mxu0
        %v3143 = vpop.f32.mrb[0].mxu0
        %v3144 = vpop.f32.mrb[0].mxu0
        %3145 = vdwg.mxu0
        %3146 = vmatprep.subr.bf16.mxu0 0
        %3147 = vmatpush1.bf16.msra.mxu0 %v2873
        %3148 = vmatprep.subr.bf16.mxu0 0
        %3149 = vmatpush1.bf16.msra.mxu0 %v2874
        %3150 = vmatprep.subr.bf16.mxu0 0
        %3151 = vmatpush1.bf16.msra.mxu0 %v2875
        %3152 = vmatprep.subr.bf16.mxu0 0
        %3153 = vmatpush1.bf16.msra.mxu0 %v2876
        %3154 = vmatprep.subr.bf16.mxu0 0
        %3155 = vmatpush1.bf16.msra.mxu0 %v2877
        %3156 = vmatprep.subr.bf16.mxu0 0
        %3157 = vmatpush1.bf16.msra.mxu0 %v2878
        %3158 = vmatprep.subr.bf16.mxu0 0
        %3159 = vmatpush1.bf16.msra.mxu0 %v2879
        %3160 = vmatprep.subr.bf16.mxu0 0
        %3161 = vmatpush1.bf16.msra.mxu0 %v2880
        %3162 = vmatprep.subr.bf16.mxu0 0
        %3163 = vmatpush1.bf16.msra.mxu0 %v2881
        %3164 = vmatprep.subr.bf16.mxu0 0
        %3165 = vmatpush1.bf16.msra.mxu0 %v2882
        %3166 = vmatprep.subr.bf16.mxu0 0
        %3167 = vmatpush1.bf16.msra.mxu0 %v2883
        %3168 = vmatprep.subr.bf16.mxu0 0
        %3169 = vmatpush1.bf16.msra.mxu0 %v2884
        %3170 = vmatprep.subr.bf16.mxu0 0
        %3171 = vmatpush1.bf16.msra.mxu0 %v2885
        %3172 = vmatprep.subr.bf16.mxu0 0
        %3173 = vmatpush1.bf16.msra.mxu0 %v2886
        %3174 = vmatprep.subr.bf16.mxu0 0
        %3175 = vmatpush1.bf16.msra.mxu0 %v2887
        %3176 = vmatprep.subr.bf16.mxu0 0
        %3177 = vmatpush1.bf16.msra.mxu0 %v2888
        %3178 = vmatprep.mubr.bf16.mxu0 %v2449
        %3179 = vmatmul.mubr.bf16.gmra.mrb[0].mxu0 %v2448
        %v3180 = vpop.f32.mrb[0].mxu0
        %v3181 = vadd.f32 %v3141, %v3180
        %v3182 = vpop.f32.mrb[0].mxu0
        %v3183 = vpop.f32.mrb[0].mxu0
        %v3184 = vpop.f32.mrb[0].mxu0
        %3185 = vdwg.mxu0
        %3186 = vmatprep.subr.bf16.mxu0 0
        %3187 = vmatpush1.bf16.msra.mxu0 %v2889
        %3188 = vmatprep.subr.bf16.mxu0 0
        %3189 = vmatpush1.bf16.msra.mxu0 %v2890
        %3190 = vmatprep.subr.bf16.mxu0 0
        %3191 = vmatpush1.bf16.msra.mxu0 %v2891
        %3192 = vmatprep.subr.bf16.mxu0 0
        %3193 = vmatpush1.bf16.msra.mxu0 %v2892
        %3194 = vmatprep.subr.bf16.mxu0 0
        %3195 = vmatpush1.bf16.msra.mxu0 %v2893
        %3196 = vmatprep.subr.bf16.mxu0 0
        %3197 = vmatpush1.bf16.msra.mxu0 %v2894
        %3198 = vmatprep.subr.bf16.mxu0 0
        %3199 = vmatpush1.bf16.msra.mxu0 %v2895
        %3200 = vmatprep.subr.bf16.mxu0 0
        %3201 = vmatpush1.bf16.msra.mxu0 0
        %3202 = vmatprep.subr.bf16.mxu0 0
        %3203 = vmatpush1.bf16.msra.mxu0 0
        %3204 = vmatprep.subr.bf16.mxu0 0
        %3205 = vmatpush1.bf16.msra.mxu0 0
        %3206 = vmatprep.subr.bf16.mxu0 0
        %3207 = vmatpush1.bf16.msra.mxu0 0
        %3208 = vmatprep.subr.bf16.mxu0 0
        %3209 = vmatpush1.bf16.msra.mxu0 0
        %3210 = vmatprep.subr.bf16.mxu0 0
        %3211 = vmatpush1.bf16.msra.mxu0 0
        %3212 = vmatprep.subr.bf16.mxu0 0
        %3213 = vmatpush1.bf16.msra.mxu0 0
        %3214 = vmatprep.subr.bf16.mxu0 0
        %3215 = vmatpush1.bf16.msra.mxu0 0
        %3216 = vmatprep.subr.bf16.mxu0 0
        %3217 = vmatpush1.bf16.msra.mxu0 0
        %3218 = vmatprep.mubr.bf16.mxu0 0
        %3219 = vmatmul.mubr.bf16.gmra.mrb[0].mxu0 %v2984
        %v3220 = vpop.f32.mrb[0].mxu0
        %v3221 = vadd.f32 %v3181, %v3220
        %v3222 = vpop.f32.mrb[0].mxu0
        %v3223 = vpop.f32.mrb[0].mxu0
        %v3224 = vpop.f32.mrb[0].mxu0
        %3225 = vdwg.mxu0
        %v3226 = vmax.f32 %v3221, 0.0
        %v3227 = vpack.c.bf16 %v3226, %v3226
        %v3228 = vld [vmem:[%s760] sm:$0xff]
        %v3229 = vld [vmem:[%s760 + $0x8] sm:$0xf]
        %v3230 = vld [vmem:[#allocation14] sm:$0xf]
        %v3231 = vld [vmem:[#allocation14 + $0x4] sm:$0xf]
        %v3232 = vld [vmem:[#allocation14 + $0x8] sm:$0xf]
        %v3233 = vld [vmem:[#allocation14 + $0xc] sm:$0xf]
        %v3234 = vld [vmem:[#allocation14 + $0x10] sm:$0xf]
        %v3235 = vld [vmem:[#allocation14 + $0x14] sm:$0xf]
        %v3236 = vld [vmem:[#allocation14 + $0x18] sm:$0xf]
        %v3237 = vld [vmem:[#allocation14 + $0x1c] sm:$0xf]
        %v3238 = vld [vmem:[#allocation14 + $0x20] sm:$0xf]
        %v3239 = vld [vmem:[#allocation14 + $0x24] sm:$0xf]
        %v3240 = vld [vmem:[#allocation14 + $0x28] sm:$0xf]
        %v3241 = vld [vmem:[#allocation14 + $0x2c] sm:$0xf]
        %v3242 = vld [vmem:[#allocation14 + $0x30] sm:$0xf]
        %v3243 = vld [vmem:[#allocation14 + $0x34] sm:$0xf]
        %v3244 = vld [vmem:[#allocation14 + $0x38] sm:$0xf]
        %v3245 = vld [vmem:[#allocation14 + $0x3c] sm:$0xf]
        %v3246 = vld [vmem:[#allocation14 + $0x40] sm:$0xf]
        %v3247 = vld [vmem:[#allocation14 + $0x44] sm:$0xf]
        %v3248 = vld [vmem:[#allocation14 + $0x48] sm:$0xf]
        %v3249 = vld [vmem:[#allocation14 + $0x4c] sm:$0xf]
        %v3250 = vld [vmem:[#allocation14 + $0x50] sm:$0xf]
        %v3251 = vld [vmem:[#allocation14 + $0x54] sm:$0xf]
        %v3252 = vld [vmem:[#allocation14 + $0x58] sm:$0xf]
        %v3253 = vld [vmem:[#allocation14 + $0x5c] sm:$0xf]
        %v3254 = vld [vmem:[#allocation14 + $0x60] sm:$0xf]
        %v3255 = vld [vmem:[#allocation14 + $0x64] sm:$0xf]
        %v3256 = vld [vmem:[#allocation14 + $0x68] sm:$0xf]
        %v3257 = vld [vmem:[#allocation14 + $0x6c] sm:$0xf]
        %v3258 = vld [vmem:[#allocation14 + $0x70] sm:$0xf]
        %v3259 = vld [vmem:[#allocation14 + $0x74] sm:$0xf]
        %v3260 = vld [vmem:[#allocation14 + $0x78] sm:$0xf]
        %v3261 = vld [vmem:[#allocation14 + $0x7c] sm:$0xf]
        %v3262 = vld [vmem:[#allocation14 + $0x80] sm:$0xf]
        %v3263 = vld [vmem:[#allocation14 + $0x84] sm:$0xf]
        %v3264 = vld [vmem:[#allocation14 + $0x88] sm:$0xf]
        %v3265 = vld [vmem:[#allocation14 + $0x8c] sm:$0xf]
        %v3266 = vld [vmem:[#allocation16] sm:$0x1]
        %v3268 = vlaneseq
        %v3269 = vshrl.u32 %v3268, 7
        %v3270 = vsub.s32 0, %v3269
        %v3271 = vrot.slane %v3266, %v3270
        %v3275 = vunpack.c.l.b16 %v3228
        %v3276 = vunpack.c.h.b16 %v3228
        %v3277 = vunpack.c.l.b16 %v3229
        %v3278 = vpack.c.b16 %v3275, %v3275
        %v3279 = vpack.c.b16 %v3276, %v3276
        %v3280 = vpack.c.b16 %v3277, %v3277
        %v3319 = vunpack.c.l.b16 %v3230
        %v3320 = vunpack.c.l.b16 %v3231
        %v3321 = vunpack.c.l.b16 %v3232
        %v3322 = vunpack.c.l.b16 %v3233
        %v3323 = vunpack.c.l.b16 %v3234
        %v3324 = vunpack.c.l.b16 %v3235
        %v3325 = vunpack.c.l.b16 %v3236
        %v3326 = vunpack.c.l.b16 %v3237
        %v3327 = vunpack.c.l.b16 %v3238
        %v3328 = vunpack.c.l.b16 %v3239
        %v3329 = vunpack.c.l.b16 %v3240
        %v3330 = vunpack.c.l.b16 %v3241
        %v3331 = vunpack.c.l.b16 %v3242
        %v3332 = vunpack.c.l.b16 %v3243
        %v3333 = vunpack.c.l.b16 %v3244
        %v3334 = vunpack.c.l.b16 %v3245
        %v3335 = vunpack.c.l.b16 %v3246
        %v3336 = vunpack.c.l.b16 %v3247
        %v3337 = vunpack.c.l.b16 %v3248
        %v3338 = vunpack.c.l.b16 %v3249
        %v3339 = vunpack.c.l.b16 %v3250
        %v3340 = vunpack.c.l.b16 %v3251
        %v3341 = vunpack.c.l.b16 %v3252
        %v3342 = vunpack.c.l.b16 %v3253
        %v3343 = vunpack.c.l.b16 %v3254
        %v3344 = vunpack.c.l.b16 %v3255
        %v3345 = vunpack.c.l.b16 %v3256
        %v3346 = vunpack.c.l.b16 %v3257
        %v3347 = vunpack.c.l.b16 %v3258
        %v3348 = vunpack.c.l.b16 %v3259
        %v3349 = vunpack.c.l.b16 %v3260
        %v3350 = vunpack.c.l.b16 %v3261
        %v3351 = vunpack.c.l.b16 %v3262
        %v3352 = vunpack.c.l.b16 %v3263
        %v3353 = vunpack.c.l.b16 %v3264
        %v3354 = vunpack.c.l.b16 %v3265
        %v3355 = vpack.c.b16 %v3320, %v3319
        %v3356 = vpack.c.b16 %v3322, %v3321
        %v3357 = vpack.c.b16 %v3324, %v3323
        %v3358 = vpack.c.b16 %v3326, %v3325
        %v3359 = vpack.c.b16 %v3328, %v3327
        %v3360 = vpack.c.b16 %v3330, %v3329
        %v3361 = vpack.c.b16 %v3332, %v3331
        %v3362 = vpack.c.b16 %v3334, %v3333
        %v3363 = vpack.c.b16 %v3336, %v3335
        %v3364 = vpack.c.b16 %v3338, %v3337
        %v3365 = vpack.c.b16 %v3340, %v3339
        %v3366 = vpack.c.b16 %v3342, %v3341
        %v3367 = vpack.c.b16 %v3344, %v3343
        %v3368 = vpack.c.b16 %v3346, %v3345
        %v3369 = vpack.c.b16 %v3348, %v3347
        %v3370 = vpack.c.b16 %v3350, %v3349
        %v3371 = vpack.c.b16 %v3352, %v3351
        %v3372 = vpack.c.b16 %v3354, %v3353
        %vm3391 = vcmask 261120
        %v3393 = vsel %vm3391, %v3280, 0
        %3395 = vmatprep.subr.bf16.mxu0 0
        %3396 = vmatpush1.bf16.msra.mxu0 %v3355
        %3397 = vmatprep.subr.bf16.mxu0 0
        %3398 = vmatpush1.bf16.msra.mxu0 %v3356
        %3399 = vmatprep.subr.bf16.mxu0 0
        %3400 = vmatpush1.bf16.msra.mxu0 %v3357
        %3401 = vmatprep.subr.bf16.mxu0 0
        %3402 = vmatpush1.bf16.msra.mxu0 %v3358
        %3403 = vmatprep.subr.bf16.mxu0 0
        %3404 = vmatpush1.bf16.msra.mxu0 %v3359
        %3405 = vmatprep.subr.bf16.mxu0 0
        %3406 = vmatpush1.bf16.msra.mxu0 %v3360
        %3407 = vmatprep.subr.bf16.mxu0 0
        %3408 = vmatpush1.bf16.msra.mxu0 %v3361
        %3409 = vmatprep.subr.bf16.mxu0 0
        %3410 = vmatpush1.bf16.msra.mxu0 %v3362
        %3411 = vmatprep.subr.bf16.mxu0 0
        %3412 = vmatpush1.bf16.msra.mxu0 %v3363
        %3413 = vmatprep.subr.bf16.mxu0 0
        %3414 = vmatpush1.bf16.msra.mxu0 %v3364
        %3415 = vmatprep.subr.bf16.mxu0 0
        %3416 = vmatpush1.bf16.msra.mxu0 %v3365
        %3417 = vmatprep.subr.bf16.mxu0 0
        %3418 = vmatpush1.bf16.msra.mxu0 %v3366
        %3419 = vmatprep.subr.bf16.mxu0 0
        %3420 = vmatpush1.bf16.msra.mxu0 %v3367
        %3421 = vmatprep.subr.bf16.mxu0 0
        %3422 = vmatpush1.bf16.msra.mxu0 %v3368
        %3423 = vmatprep.subr.bf16.mxu0 0
        %3424 = vmatpush1.bf16.msra.mxu0 %v3369
        %3425 = vmatprep.subr.bf16.mxu0 0
        %3426 = vmatpush1.bf16.msra.mxu0 %v3370
        %3427 = vmatprep.mubr.bf16.mxu0 %v3279
        %3428 = vmatmul.mubr.bf16.gmra.mrb[0].mxu0 %v3278
        %v3429 = vpop.f32.mrb[0].mxu0
        %v3430 = vadd.f32 %v3271, %v3429
        %v3431 = vpop.f32.mrb[0].mxu0
        %v3432 = vpop.f32.mrb[0].mxu0
        %v3433 = vpop.f32.mrb[0].mxu0
        %3434 = vdwg.mxu0
        %3435 = vmatprep.subr.bf16.mxu0 0
        %3436 = vmatpush1.bf16.msra.mxu0 %v3371
        %3437 = vmatprep.subr.bf16.mxu0 0
        %3438 = vmatpush1.bf16.msra.mxu0 %v3372
        %3439 = vmatprep.subr.bf16.mxu0 0
        %3440 = vmatpush1.bf16.msra.mxu0 0
        %3441 = vmatprep.subr.bf16.mxu0 0
        %3442 = vmatpush1.bf16.msra.mxu0 0
        %3443 = vmatprep.subr.bf16.mxu0 0
        %3444 = vmatpush1.bf16.msra.mxu0 0
        %3445 = vmatprep.subr.bf16.mxu0 0
        %3446 = vmatpush1.bf16.msra.mxu0 0
        %3447 = vmatprep.subr.bf16.mxu0 0
        %3448 = vmatpush1.bf16.msra.mxu0 0
        %3449 = vmatprep.subr.bf16.mxu0 0
        %3450 = vmatpush1.bf16.msra.mxu0 0
        %3451 = vmatprep.subr.bf16.mxu0 0
        %3452 = vmatpush1.bf16.msra.mxu0 0
        %3453 = vmatprep.subr.bf16.mxu0 0
        %3454 = vmatpush1.bf16.msra.mxu0 0
        %3455 = vmatprep.subr.bf16.mxu0 0
        %3456 = vmatpush1.bf16.msra.mxu0 0
        %3457 = vmatprep.subr.bf16.mxu0 0
        %3458 = vmatpush1.bf16.msra.mxu0 0
        %3459 = vmatprep.subr.bf16.mxu0 0
        %3460 = vmatpush1.bf16.msra.mxu0 0
        %3461 = vmatprep.subr.bf16.mxu0 0
        %3462 = vmatpush1.bf16.msra.mxu0 0
        %3463 = vmatprep.subr.bf16.mxu0 0
        %3464 = vmatpush1.bf16.msra.mxu0 0
        %3465 = vmatprep.subr.bf16.mxu0 0
        %3466 = vmatpush1.bf16.msra.mxu0 0
        %3467 = vmatprep.mubr.bf16.mxu0 0
        %3468 = vmatmul.mubr.bf16.gmra.mrb[0].mxu0 %v3393
        %v3469 = vpop.f32.mrb[0].mxu0
        %v3470 = vadd.f32 %v3430, %v3469
        %v3471 = vpop.f32.mrb[0].mxu0
        %v3472 = vpop.f32.mrb[0].mxu0
        %v3473 = vpop.f32.mrb[0].mxu0
        %3474 = vdwg.mxu0
        %v3475 = vmax.f32 %v3470, 0.0
        %v3476 = vpack.c.bf16 %v3475, %v3475
        %v3477 = vld [vmem:[#allocation17] sm:$0xff]
        %v3478 = vld [vmem:[#allocation17 + $0x8] sm:$0xff]
        %v3479 = vld [vmem:[#allocation17 + $0x10] sm:$0xff]
        %v3480 = vld [vmem:[#allocation17 + $0x18] sm:$0xff]
        %v3481 = vld [vmem:[#allocation17 + $0x20] sm:$0xff]
        %v3482 = vld [vmem:[#allocation17 + $0x28] sm:$0xff]
        %v3483 = vld [vmem:[#allocation17 + $0x30] sm:$0xff]
        %v3484 = vld [vmem:[#allocation17 + $0x38] sm:$0xff]
        %v3485 = vld [vmem:[#allocation17 + $0x40] sm:$0xff]
        %v3486 = vld [vmem:[#allocation17 + $0x48] sm:$0xff]
        %v3487 = vld [vmem:[#allocation17 + $0x50] sm:$0xff]
        %v3488 = vld [vmem:[#allocation17 + $0x58] sm:$0xff]
        %v3489 = vld [vmem:[#allocation17 + $0x60] sm:$0xff]
        %v3490 = vld [vmem:[#allocation17 + $0x68] sm:$0xff]
        %v3491 = vld [vmem:[#allocation17 + $0x70] sm:$0xff]
        %v3492 = vld [vmem:[#allocation17 + $0x78] sm:$0xff]
        %v3493 = vld [vmem:[#allocation17 + $0x80] sm:$0xff]
        %v3494 = vld [vmem:[#allocation17 + $0x88] sm:$0xff]
        %v3495 = vld [vmem:[#allocation17 + $0x90] sm:$0xff]
        %v3496 = vld [vmem:[#allocation17 + $0x98] sm:$0xff]
        %v3497 = vld [vmem:[#allocation17 + $0xa0] sm:$0xff]
        %v3498 = vld [vmem:[#allocation17 + $0xa8] sm:$0xff]
        %v3499 = vld [vmem:[#allocation17 + $0xb0] sm:$0xff]
        %v3500 = vld [vmem:[#allocation17 + $0xb8] sm:$0xff]
        %v3501 = vld [vmem:[#allocation17 + $0xc0] sm:$0xff]
        %v3502 = vld [vmem:[#allocation17 + $0xc8] sm:$0xff]
        %v3503 = vld [vmem:[#allocation17 + $0xd0] sm:$0xff]
        %v3504 = vld [vmem:[#allocation17 + $0xd8] sm:$0xff]
        %v3505 = vld [vmem:[#allocation17 + $0xe0] sm:$0xff]
        %v3506 = vld [vmem:[#allocation17 + $0xe8] sm:$0xff]
        %v3507 = vld [vmem:[#allocation17 + $0xf0] sm:$0xff]
        %v3508 = vld [vmem:[#allocation17 + $0xf8] sm:$0xff]
        %v3509 = vld [vmem:[#allocation17 + $0x100] sm:$0xff]
        %v3510 = vld [vmem:[#allocation17 + $0x108] sm:$0xff]
        %v3511 = vld [vmem:[#allocation17 + $0x110] sm:$0xff]
        %v3512 = vld [vmem:[#allocation17 + $0x118] sm:$0xff]
        %v3513 = vld [vmem:[#allocation17 + $0x120] sm:$0xff]
        %v3514 = vld [vmem:[#allocation17 + $0x128] sm:$0xff]
        %v3515 = vld [vmem:[#allocation17 + $0x130] sm:$0xff]
        %v3516 = vld [vmem:[#allocation17 + $0x138] sm:$0xff]
        %v3517 = vld [vmem:[#allocation17 + $0x140] sm:$0xff]
        %v3518 = vld [vmem:[#allocation17 + $0x148] sm:$0xff]
        %v3519 = vld [vmem:[#allocation17 + $0x150] sm:$0xff]
        %v3520 = vld [vmem:[#allocation17 + $0x158] sm:$0xff]
        %v3521 = vld [vmem:[#allocation17 + $0x160] sm:$0xff]
        %v3522 = vld [vmem:[#allocation17 + $0x168] sm:$0xff]
        %v3523 = vld [vmem:[#allocation17 + $0x170] sm:$0xff]
        %v3524 = vld [vmem:[#allocation17 + $0x178] sm:$0xff]
        %v3525 = vld [vmem:[#allocation17 + $0x180] sm:$0xff]
        %v3526 = vld [vmem:[#allocation17 + $0x188] sm:$0xff]
        %v3527 = vld [vmem:[#allocation17 + $0x190] sm:$0xff]
        %v3528 = vld [vmem:[#allocation17 + $0x198] sm:$0xff]
        %v3529 = vld [vmem:[#allocation17 + $0x1a0] sm:$0xff]
        %v3530 = vld [vmem:[#allocation17 + $0x1a8] sm:$0xff]
        %v3531 = vld [vmem:[#allocation17 + $0x1b0] sm:$0xff]
        %v3532 = vld [vmem:[#allocation17 + $0x1b8] sm:$0xff]
        %v3533 = vld [vmem:[#allocation17 + $0x1c0] sm:$0xff]
        %v3534 = vld [vmem:[#allocation17 + $0x1c8] sm:$0xff]
        %v3535 = vld [vmem:[#allocation17 + $0x1d0] sm:$0xff]
        %v3536 = vld [vmem:[#allocation17 + $0x1d8] sm:$0xff]
        %v3537 = vld [vmem:[#allocation17 + $0x1e0] sm:$0xff]
        %v3538 = vld [vmem:[#allocation17 + $0x1e8] sm:$0xff]
        %v3539 = vld [vmem:[#allocation17 + $0x1f0] sm:$0xff]
        %v3540 = vld [vmem:[#allocation17 + $0x1f8] sm:$0xff]
        %v3541 = vld [vmem:[#allocation19] sm:$0x3]
        %v3543 = vlaneseq
        %v3544 = vshrl.u32 %v3543, 7
        %v3545 = vsub.s32 0, %v3544
        %v3546 = vrot.slane %v3541, %v3545
        %v3547 = vlaneseq
        %v3548 = vshrl.u32 %v3547, 7
        %v3549 = vsub.s32 1, %v3548
        %v3550 = vrot.slane %v3541, %v3549
        %v3617 = vunpack.c.l.b16 %v3477
        %v3618 = vunpack.c.h.b16 %v3477
        %v3619 = vunpack.c.l.b16 %v3478
        %v3620 = vunpack.c.h.b16 %v3478
        %v3621 = vunpack.c.l.b16 %v3479
        %v3622 = vunpack.c.h.b16 %v3479
        %v3623 = vunpack.c.l.b16 %v3480
        %v3624 = vunpack.c.h.b16 %v3480
        %v3625 = vunpack.c.l.b16 %v3481
        %v3626 = vunpack.c.h.b16 %v3481
        %v3627 = vunpack.c.l.b16 %v3482
        %v3628 = vunpack.c.h.b16 %v3482
        %v3629 = vunpack.c.l.b16 %v3483
        %v3630 = vunpack.c.h.b16 %v3483
        %v3631 = vunpack.c.l.b16 %v3484
        %v3632 = vunpack.c.h.b16 %v3484
        %v3633 = vunpack.c.l.b16 %v3485
        %v3634 = vunpack.c.h.b16 %v3485
        %v3635 = vunpack.c.l.b16 %v3486
        %v3636 = vunpack.c.h.b16 %v3486
        %v3637 = vunpack.c.l.b16 %v3487
        %v3638 = vunpack.c.h.b16 %v3487
        %v3639 = vunpack.c.l.b16 %v3488
        %v3640 = vunpack.c.h.b16 %v3488
        %v3641 = vunpack.c.l.b16 %v3489
        %v3642 = vunpack.c.h.b16 %v3489
        %v3643 = vunpack.c.l.b16 %v3490
        %v3644 = vunpack.c.h.b16 %v3490
        %v3645 = vunpack.c.l.b16 %v3491
        %v3646 = vunpack.c.h.b16 %v3491
        %v3647 = vunpack.c.l.b16 %v3492
        %v3648 = vunpack.c.h.b16 %v3492
        %v3649 = vunpack.c.l.b16 %v3493
        %v3650 = vunpack.c.h.b16 %v3493
        %v3651 = vunpack.c.l.b16 %v3494
        %v3652 = vunpack.c.h.b16 %v3494
        %v3653 = vunpack.c.l.b16 %v3495
        %v3654 = vunpack.c.h.b16 %v3495
        %v3655 = vunpack.c.l.b16 %v3496
        %v3656 = vunpack.c.h.b16 %v3496
        %v3657 = vunpack.c.l.b16 %v3497
        %v3658 = vunpack.c.h.b16 %v3497
        %v3659 = vunpack.c.l.b16 %v3498
        %v3660 = vunpack.c.h.b16 %v3498
        %v3661 = vunpack.c.l.b16 %v3499
        %v3662 = vunpack.c.h.b16 %v3499
        %v3663 = vunpack.c.l.b16 %v3500
        %v3664 = vunpack.c.h.b16 %v3500
        %v3665 = vunpack.c.l.b16 %v3501
        %v3666 = vunpack.c.h.b16 %v3501
        %v3667 = vunpack.c.l.b16 %v3502
        %v3668 = vunpack.c.h.b16 %v3502
        %v3669 = vunpack.c.l.b16 %v3503
        %v3670 = vunpack.c.h.b16 %v3503
        %v3671 = vunpack.c.l.b16 %v3504
        %v3672 = vunpack.c.h.b16 %v3504
        %v3673 = vunpack.c.l.b16 %v3505
        %v3674 = vunpack.c.h.b16 %v3505
        %v3675 = vunpack.c.l.b16 %v3506
        %v3676 = vunpack.c.h.b16 %v3506
        %v3677 = vunpack.c.l.b16 %v3507
        %v3678 = vunpack.c.h.b16 %v3507
        %v3679 = vunpack.c.l.b16 %v3508
        %v3680 = vunpack.c.h.b16 %v3508
        %v3681 = vunpack.c.l.b16 %v3509
        %v3682 = vunpack.c.h.b16 %v3509
        %v3683 = vunpack.c.l.b16 %v3510
        %v3684 = vunpack.c.h.b16 %v3510
        %v3685 = vunpack.c.l.b16 %v3511
        %v3686 = vunpack.c.h.b16 %v3511
        %v3687 = vunpack.c.l.b16 %v3512
        %v3688 = vunpack.c.h.b16 %v3512
        %v3689 = vunpack.c.l.b16 %v3513
        %v3690 = vunpack.c.h.b16 %v3513
        %v3691 = vunpack.c.l.b16 %v3514
        %v3692 = vunpack.c.h.b16 %v3514
        %v3693 = vunpack.c.l.b16 %v3515
        %v3694 = vunpack.c.h.b16 %v3515
        %v3695 = vunpack.c.l.b16 %v3516
        %v3696 = vunpack.c.h.b16 %v3516
        %v3697 = vunpack.c.l.b16 %v3517
        %v3698 = vunpack.c.h.b16 %v3517
        %v3699 = vunpack.c.l.b16 %v3518
        %v3700 = vunpack.c.h.b16 %v3518
        %v3701 = vunpack.c.l.b16 %v3519
        %v3702 = vunpack.c.h.b16 %v3519
        %v3703 = vunpack.c.l.b16 %v3520
        %v3704 = vunpack.c.h.b16 %v3520
        %v3705 = vunpack.c.l.b16 %v3521
        %v3706 = vunpack.c.h.b16 %v3521
        %v3707 = vunpack.c.l.b16 %v3522
        %v3708 = vunpack.c.h.b16 %v3522
        %v3709 = vunpack.c.l.b16 %v3523
        %v3710 = vunpack.c.h.b16 %v3523
        %v3711 = vunpack.c.l.b16 %v3524
        %v3712 = vunpack.c.h.b16 %v3524
        %v3713 = vunpack.c.l.b16 %v3525
        %v3714 = vunpack.c.h.b16 %v3525
        %v3715 = vunpack.c.l.b16 %v3526
        %v3716 = vunpack.c.h.b16 %v3526
        %v3717 = vunpack.c.l.b16 %v3527
        %v3718 = vunpack.c.h.b16 %v3527
        %v3719 = vunpack.c.l.b16 %v3528
        %v3720 = vunpack.c.h.b16 %v3528
        %v3721 = vunpack.c.l.b16 %v3529
        %v3722 = vunpack.c.h.b16 %v3529
        %v3723 = vunpack.c.l.b16 %v3530
        %v3724 = vunpack.c.h.b16 %v3530
        %v3725 = vunpack.c.l.b16 %v3531
        %v3726 = vunpack.c.h.b16 %v3531
        %v3727 = vunpack.c.l.b16 %v3532
        %v3728 = vunpack.c.h.b16 %v3532
        %v3729 = vunpack.c.l.b16 %v3533
        %v3730 = vunpack.c.h.b16 %v3533
        %v3731 = vunpack.c.l.b16 %v3534
        %v3732 = vunpack.c.h.b16 %v3534
        %v3733 = vunpack.c.l.b16 %v3535
        %v3734 = vunpack.c.h.b16 %v3535
        %v3735 = vunpack.c.l.b16 %v3536
        %v3736 = vunpack.c.h.b16 %v3536
        %v3737 = vunpack.c.l.b16 %v3537
        %v3738 = vunpack.c.h.b16 %v3537
        %v3739 = vunpack.c.l.b16 %v3538
        %v3740 = vunpack.c.h.b16 %v3538
        %v3741 = vunpack.c.l.b16 %v3539
        %v3742 = vunpack.c.h.b16 %v3539
        %v3743 = vunpack.c.l.b16 %v3540
        %v3744 = vunpack.c.h.b16 %v3540
        %v3745 = vpack.c.b16 %v3619, %v3617
        %v3746 = vpack.c.b16 %v3620, %v3618
        %v3747 = vpack.c.b16 %v3623, %v3621
        %v3748 = vpack.c.b16 %v3624, %v3622
        %v3749 = vpack.c.b16 %v3627, %v3625
        %v3750 = vpack.c.b16 %v3628, %v3626
        %v3751 = vpack.c.b16 %v3631, %v3629
        %v3752 = vpack.c.b16 %v3632, %v3630
        %v3753 = vpack.c.b16 %v3635, %v3633
        %v3754 = vpack.c.b16 %v3636, %v3634
        %v3755 = vpack.c.b16 %v3639, %v3637
        %v3756 = vpack.c.b16 %v3640, %v3638
        %v3757 = vpack.c.b16 %v3643, %v3641
        %v3758 = vpack.c.b16 %v3644, %v3642
        %v3759 = vpack.c.b16 %v3647, %v3645
        %v3760 = vpack.c.b16 %v3648, %v3646
        %v3761 = vpack.c.b16 %v3651, %v3649
        %v3762 = vpack.c.b16 %v3652, %v3650
        %v3763 = vpack.c.b16 %v3655, %v3653
        %v3764 = vpack.c.b16 %v3656, %v3654
        %v3765 = vpack.c.b16 %v3659, %v3657
        %v3766 = vpack.c.b16 %v3660, %v3658
        %v3767 = vpack.c.b16 %v3663, %v3661
        %v3768 = vpack.c.b16 %v3664, %v3662
        %v3769 = vpack.c.b16 %v3667, %v3665
        %v3770 = vpack.c.b16 %v3668, %v3666
        %v3771 = vpack.c.b16 %v3671, %v3669
        %v3772 = vpack.c.b16 %v3672, %v3670
        %v3773 = vpack.c.b16 %v3675, %v3673
        %v3774 = vpack.c.b16 %v3676, %v3674
        %v3775 = vpack.c.b16 %v3679, %v3677
        %v3776 = vpack.c.b16 %v3680, %v3678
        %v3777 = vpack.c.b16 %v3683, %v3681
        %v3778 = vpack.c.b16 %v3684, %v3682
        %v3779 = vpack.c.b16 %v3687, %v3685
        %v3780 = vpack.c.b16 %v3688, %v3686
        %v3781 = vpack.c.b16 %v3691, %v3689
        %v3782 = vpack.c.b16 %v3692, %v3690
        %v3783 = vpack.c.b16 %v3695, %v3693
        %v3784 = vpack.c.b16 %v3696, %v3694
        %v3785 = vpack.c.b16 %v3699, %v3697
        %v3786 = vpack.c.b16 %v3700, %v3698
        %v3787 = vpack.c.b16 %v3703, %v3701
        %v3788 = vpack.c.b16 %v3704, %v3702
        %v3789 = vpack.c.b16 %v3707, %v3705
        %v3790 = vpack.c.b16 %v3708, %v3706
        %v3791 = vpack.c.b16 %v3711, %v3709
        %v3792 = vpack.c.b16 %v3712, %v3710
        %v3793 = vpack.c.b16 %v3715, %v3713
        %v3794 = vpack.c.b16 %v3716, %v3714
        %v3795 = vpack.c.b16 %v3719, %v3717
        %v3796 = vpack.c.b16 %v3720, %v3718
        %v3797 = vpack.c.b16 %v3723, %v3721
        %v3798 = vpack.c.b16 %v3724, %v3722
        %v3799 = vpack.c.b16 %v3727, %v3725
        %v3800 = vpack.c.b16 %v3728, %v3726
        %v3801 = vpack.c.b16 %v3731, %v3729
        %v3802 = vpack.c.b16 %v3732, %v3730
        %v3803 = vpack.c.b16 %v3735, %v3733
        %v3804 = vpack.c.b16 %v3736, %v3734
        %v3805 = vpack.c.b16 %v3739, %v3737
        %v3806 = vpack.c.b16 %v3740, %v3738
        %v3807 = vpack.c.b16 %v3743, %v3741
        %v3808 = vpack.c.b16 %v3744, %v3742
        %3873 = vmatprep.subr.bf16.mxu0 %v3746
        %3874 = vmatpush1.bf16.msra.mxu0 %v3745
        %3875 = vmatprep.subr.bf16.mxu0 %v3748
        %3876 = vmatpush1.bf16.msra.mxu0 %v3747
        %3877 = vmatprep.subr.bf16.mxu0 %v3750
        %3878 = vmatpush1.bf16.msra.mxu0 %v3749
        %3879 = vmatprep.subr.bf16.mxu0 %v3752
        %3880 = vmatpush1.bf16.msra.mxu0 %v3751
        %3881 = vmatprep.subr.bf16.mxu0 %v3754
        %3882 = vmatpush1.bf16.msra.mxu0 %v3753
        %3883 = vmatprep.subr.bf16.mxu0 %v3756
        %3884 = vmatpush1.bf16.msra.mxu0 %v3755
        %3885 = vmatprep.subr.bf16.mxu0 %v3758
        %3886 = vmatpush1.bf16.msra.mxu0 %v3757
        %3887 = vmatprep.subr.bf16.mxu0 %v3760
        %3888 = vmatpush1.bf16.msra.mxu0 %v3759
        %3889 = vmatprep.subr.bf16.mxu0 %v3762
        %3890 = vmatpush1.bf16.msra.mxu0 %v3761
        %3891 = vmatprep.subr.bf16.mxu0 %v3764
        %3892 = vmatpush1.bf16.msra.mxu0 %v3763
        %3893 = vmatprep.subr.bf16.mxu0 %v3766
        %3894 = vmatpush1.bf16.msra.mxu0 %v3765
        %3895 = vmatprep.subr.bf16.mxu0 %v3768
        %3896 = vmatpush1.bf16.msra.mxu0 %v3767
        %3897 = vmatprep.subr.bf16.mxu0 %v3770
        %3898 = vmatpush1.bf16.msra.mxu0 %v3769
        %3899 = vmatprep.subr.bf16.mxu0 %v3772
        %3900 = vmatpush1.bf16.msra.mxu0 %v3771
        %3901 = vmatprep.subr.bf16.mxu0 %v3774
        %3902 = vmatpush1.bf16.msra.mxu0 %v3773
        %3903 = vmatprep.subr.bf16.mxu0 %v3776
        %3904 = vmatpush1.bf16.msra.mxu0 %v3775
        %3905 = vmatprep.mubr.bf16.mxu0 %v2235
        %3906 = vmatmul.mubr.bf16.gmra.mrb[0].mxu0 %v2234
        %v3907 = vpop.f32.mrb[0].mxu0
        %v3908 = vadd.f32 %v3546, %v3907
        %v3909 = vpop.f32.mrb[0].mxu0
        %v3910 = vadd.f32 %v3550, %v3909
        %v3911 = vpop.f32.mrb[0].mxu0
        %v3912 = vpop.f32.mrb[0].mxu0
        %3913 = vdwg.mxu0
        %3914 = vmatprep.subr.bf16.mxu0 %v3778
        %3915 = vmatpush1.bf16.msra.mxu0 %v3777
        %3916 = vmatprep.subr.bf16.mxu0 %v3780
        %3917 = vmatpush1.bf16.msra.mxu0 %v3779
        %3918 = vmatprep.subr.bf16.mxu0 %v3782
        %3919 = vmatpush1.bf16.msra.mxu0 %v3781
        %3920 = vmatprep.subr.bf16.mxu0 %v3784
        %3921 = vmatpush1.bf16.msra.mxu0 %v3783
        %3922 = vmatprep.subr.bf16.mxu0 %v3786
        %3923 = vmatpush1.bf16.msra.mxu0 %v3785
        %3924 = vmatprep.subr.bf16.mxu0 %v3788
        %3925 = vmatpush1.bf16.msra.mxu0 %v3787
        %3926 = vmatprep.subr.bf16.mxu0 %v3790
        %3927 = vmatpush1.bf16.msra.mxu0 %v3789
        %3928 = vmatprep.subr.bf16.mxu0 %v3792
        %3929 = vmatpush1.bf16.msra.mxu0 %v3791
        %3930 = vmatprep.subr.bf16.mxu0 %v3794
        %3931 = vmatpush1.bf16.msra.mxu0 %v3793
        %3932 = vmatprep.subr.bf16.mxu0 %v3796
        %3933 = vmatpush1.bf16.msra.mxu0 %v3795
        %3934 = vmatprep.subr.bf16.mxu0 %v3798
        %3935 = vmatpush1.bf16.msra.mxu0 %v3797
        %3936 = vmatprep.subr.bf16.mxu0 %v3800
        %3937 = vmatpush1.bf16.msra.mxu0 %v3799
        %3938 = vmatprep.subr.bf16.mxu0 %v3802
        %3939 = vmatpush1.bf16.msra.mxu0 %v3801
        %3940 = vmatprep.subr.bf16.mxu0 %v3804
        %3941 = vmatpush1.bf16.msra.mxu0 %v3803
        %3942 = vmatprep.subr.bf16.mxu0 %v3806
        %3943 = vmatpush1.bf16.msra.mxu0 %v3805
        %3944 = vmatprep.subr.bf16.mxu0 %v3808
        %3945 = vmatpush1.bf16.msra.mxu0 %v3807
        %3946 = vmatprep.mubr.bf16.mxu0 %v3476
        %3947 = vmatmul.mubr.bf16.gmra.mrb[0].mxu0 %v3227
        %v3948 = vpop.f32.mrb[0].mxu0
        %v3949 = vadd.f32 %v3908, %v3948
        %v3950 = vpop.f32.mrb[0].mxu0
        %v3951 = vadd.f32 %v3910, %v3950
        %v3952 = vpop.f32.mrb[0].mxu0
        %v3953 = vpop.f32.mrb[0].mxu0
        %3954 = vdwg.mxu0
        %v3955 = vmax.f32 %v3949, 0.0
        %v3956 = vmax.f32 %v3951, 0.0
        %v3957 = vpack.c.bf16 %v3955, %v3955
        %v3958 = vpack.c.bf16 %v3956, %v3956
        %v3959 = vld [vmem:[#allocation20] sm:$0xf]
        %v3960 = vld [vmem:[#allocation20 + $0x4] sm:$0xf]
        %v3961 = vld [vmem:[#allocation20 + $0x8] sm:$0xf]
        %v3962 = vld [vmem:[#allocation20 + $0xc] sm:$0xf]
        %v3963 = vld [vmem:[#allocation20 + $0x10] sm:$0xf]
        %v3964 = vld [vmem:[#allocation20 + $0x14] sm:$0xf]
        %v3965 = vld [vmem:[#allocation20 + $0x18] sm:$0xf]
        %v3966 = vld [vmem:[#allocation20 + $0x1c] sm:$0xf]
        %v3967 = vld [vmem:[#allocation20 + $0x20] sm:$0xf]
        %v3968 = vld [vmem:[#allocation20 + $0x24] sm:$0xf]
        %v3969 = vld [vmem:[#allocation20 + $0x28] sm:$0xf]
        %v3970 = vld [vmem:[#allocation20 + $0x2c] sm:$0xf]
        %v3971 = vld [vmem:[#allocation20 + $0x30] sm:$0xf]
        %v3972 = vld [vmem:[#allocation20 + $0x34] sm:$0xf]
        %v3973 = vld [vmem:[#allocation20 + $0x38] sm:$0xf]
        %v3974 = vld [vmem:[#allocation20 + $0x3c] sm:$0xf]
        %v3975 = vld [vmem:[#allocation20 + $0x40] sm:$0xf]
        %v3976 = vld [vmem:[#allocation20 + $0x44] sm:$0xf]
        %v3977 = vld [vmem:[#allocation20 + $0x48] sm:$0xf]
        %v3978 = vld [vmem:[#allocation20 + $0x4c] sm:$0xf]
        %v3979 = vld [vmem:[#allocation20 + $0x50] sm:$0xf]
        %v3980 = vld [vmem:[#allocation20 + $0x54] sm:$0xf]
        %v3981 = vld [vmem:[#allocation20 + $0x58] sm:$0xf]
        %v3982 = vld [vmem:[#allocation20 + $0x5c] sm:$0xf]
        %v3983 = vld [vmem:[#allocation20 + $0x60] sm:$0xf]
        %v3984 = vld [vmem:[#allocation20 + $0x64] sm:$0xf]
        %v3985 = vld [vmem:[#allocation20 + $0x68] sm:$0xf]
        %v3986 = vld [vmem:[#allocation20 + $0x6c] sm:$0xf]
        %v3987 = vld [vmem:[#allocation20 + $0x70] sm:$0xf]
        %v3988 = vld [vmem:[#allocation20 + $0x74] sm:$0xf]
        %v3989 = vld [vmem:[#allocation20 + $0x78] sm:$0xf]
        %v3990 = vld [vmem:[#allocation20 + $0x7c] sm:$0xf]
        %v3991 = vld [vmem:[#allocation22] sm:$0x1]
        %v3993 = vlaneseq
        %v3994 = vshrl.u32 %v3993, 7
        %v3995 = vsub.s32 0, %v3994
        %v3996 = vrot.slane %v3991, %v3995
        %v4030 = vunpack.c.l.b16 %v3959
        %v4031 = vunpack.c.l.b16 %v3960
        %v4032 = vunpack.c.l.b16 %v3961
        %v4033 = vunpack.c.l.b16 %v3962
        %v4034 = vunpack.c.l.b16 %v3963
        %v4035 = vunpack.c.l.b16 %v3964
        %v4036 = vunpack.c.l.b16 %v3965
        %v4037 = vunpack.c.l.b16 %v3966
        %v4038 = vunpack.c.l.b16 %v3967
        %v4039 = vunpack.c.l.b16 %v3968
        %v4040 = vunpack.c.l.b16 %v3969
        %v4041 = vunpack.c.l.b16 %v3970
        %v4042 = vunpack.c.l.b16 %v3971
        %v4043 = vunpack.c.l.b16 %v3972
        %v4044 = vunpack.c.l.b16 %v3973
        %v4045 = vunpack.c.l.b16 %v3974
        %v4046 = vunpack.c.l.b16 %v3975
        %v4047 = vunpack.c.l.b16 %v3976
        %v4048 = vunpack.c.l.b16 %v3977
        %v4049 = vunpack.c.l.b16 %v3978
        %v4050 = vunpack.c.l.b16 %v3979
        %v4051 = vunpack.c.l.b16 %v3980
        %v4052 = vunpack.c.l.b16 %v3981
        %v4053 = vunpack.c.l.b16 %v3982
        %v4054 = vunpack.c.l.b16 %v3983
        %v4055 = vunpack.c.l.b16 %v3984
        %v4056 = vunpack.c.l.b16 %v3985
        %v4057 = vunpack.c.l.b16 %v3986
        %v4058 = vunpack.c.l.b16 %v3987
        %v4059 = vunpack.c.l.b16 %v3988
        %v4060 = vunpack.c.l.b16 %v3989
        %v4061 = vunpack.c.l.b16 %v3990
        %v4062 = vpack.c.b16 %v4031, %v4030
        %v4063 = vpack.c.b16 %v4033, %v4032
        %v4064 = vpack.c.b16 %v4035, %v4034
        %v4065 = vpack.c.b16 %v4037, %v4036
        %v4066 = vpack.c.b16 %v4039, %v4038
        %v4067 = vpack.c.b16 %v4041, %v4040
        %v4068 = vpack.c.b16 %v4043, %v4042
        %v4069 = vpack.c.b16 %v4045, %v4044
        %v4070 = vpack.c.b16 %v4047, %v4046
        %v4071 = vpack.c.b16 %v4049, %v4048
        %v4072 = vpack.c.b16 %v4051, %v4050
        %v4073 = vpack.c.b16 %v4053, %v4052
        %v4074 = vpack.c.b16 %v4055, %v4054
        %v4075 = vpack.c.b16 %v4057, %v4056
        %v4076 = vpack.c.b16 %v4059, %v4058
        %v4077 = vpack.c.b16 %v4061, %v4060
        %4094 = vmatprep.subr.bf16.mxu0 0
        %4095 = vmatpush1.bf16.msra.mxu0 %v4062
        %4096 = vmatprep.subr.bf16.mxu0 0
        %4097 = vmatpush1.bf16.msra.mxu0 %v4063
        %4098 = vmatprep.subr.bf16.mxu0 0
        %4099 = vmatpush1.bf16.msra.mxu0 %v4064
        %4100 = vmatprep.subr.bf16.mxu0 0
        %4101 = vmatpush1.bf16.msra.mxu0 %v4065
        %4102 = vmatprep.subr.bf16.mxu0 0
        %4103 = vmatpush1.bf16.msra.mxu0 %v4066
        %4104 = vmatprep.subr.bf16.mxu0 0
        %4105 = vmatpush1.bf16.msra.mxu0 %v4067
        %4106 = vmatprep.subr.bf16.mxu0 0
        %4107 = vmatpush1.bf16.msra.mxu0 %v4068
        %4108 = vmatprep.subr.bf16.mxu0 0
        %4109 = vmatpush1.bf16.msra.mxu0 %v4069
        %4110 = vmatprep.subr.bf16.mxu0 0
        %4111 = vmatpush1.bf16.msra.mxu0 %v4070
        %4112 = vmatprep.subr.bf16.mxu0 0
        %4113 = vmatpush1.bf16.msra.mxu0 %v4071
        %4114 = vmatprep.subr.bf16.mxu0 0
        %4115 = vmatpush1.bf16.msra.mxu0 %v4072
        %4116 = vmatprep.subr.bf16.mxu0 0
        %4117 = vmatpush1.bf16.msra.mxu0 %v4073
        %4118 = vmatprep.subr.bf16.mxu0 0
        %4119 = vmatpush1.bf16.msra.mxu0 %v4074
        %4120 = vmatprep.subr.bf16.mxu0 0
        %4121 = vmatpush1.bf16.msra.mxu0 %v4075
        %4122 = vmatprep.subr.bf16.mxu0 0
        %4123 = vmatpush1.bf16.msra.mxu0 %v4076
        %4124 = vmatprep.subr.bf16.mxu0 0
        %4125 = vmatpush1.bf16.msra.mxu0 %v4077
        %4126 = vmatprep.mubr.bf16.mxu0 %v3958
        %4127 = vmatmul.mubr.bf16.gmra.mrb[0].mxu0 %v3957
        %v4128 = vpop.f32.mrb[0].mxu0
        %v4129 = vadd.f32 %v3996, %v4128
        %v4130 = vpop.f32.mrb[0].mxu0
        %v4131 = vpop.f32.mrb[0].mxu0
        %v4132 = vpop.f32.mrb[0].mxu0
        %4133 = vdwg.mxu0
        %v4134 = vmax.f32 %v4129, 0.0
        %v4135 = vpack.c.bf16 %v4134, %v4134
        %v4136 = vld [vmem:[#allocation23] sm:$0xf]
        %v4137 = vld [vmem:[#allocation23 + $0x4] sm:$0xf]
        %v4138 = vld [vmem:[#allocation23 + $0x8] sm:$0xf]
        %v4139 = vld [vmem:[#allocation23 + $0xc] sm:$0xf]
        %v4140 = vld [vmem:[#allocation23 + $0x10] sm:$0xf]
        %v4141 = vld [vmem:[#allocation23 + $0x14] sm:$0xf]
        %v4142 = vld [vmem:[#allocation23 + $0x18] sm:$0xf]
        %v4143 = vld [vmem:[#allocation23 + $0x1c] sm:$0xf]
        %v4144 = vld [vmem:[#allocation23 + $0x20] sm:$0xf]
        %v4145 = vld [vmem:[#allocation23 + $0x24] sm:$0xf]
        %v4146 = vld [vmem:[#allocation23 + $0x28] sm:$0xf]
        %v4147 = vld [vmem:[#allocation23 + $0x2c] sm:$0xf]
        %v4148 = vld [vmem:[#allocation23 + $0x30] sm:$0xf]
        %v4149 = vld [vmem:[#allocation23 + $0x34] sm:$0xf]
        %v4150 = vld [vmem:[#allocation23 + $0x38] sm:$0xf]
        %v4151 = vld [vmem:[#allocation23 + $0x3c] sm:$0xf]
        %v4152 = vld [vmem:[#allocation25] sm:$0x1]
        %v4154 = vlaneseq
        %v4155 = vshrl.u32 %v4154, 7
        %v4156 = vsub.s32 0, %v4155
        %v4157 = vrot.slane %v4152, %v4156
        %v4175 = vunpack.c.l.b16 %v4136
        %v4176 = vunpack.c.l.b16 %v4137
        %v4177 = vunpack.c.l.b16 %v4138
        %v4178 = vunpack.c.l.b16 %v4139
        %v4179 = vunpack.c.l.b16 %v4140
        %v4180 = vunpack.c.l.b16 %v4141
        %v4181 = vunpack.c.l.b16 %v4142
        %v4182 = vunpack.c.l.b16 %v4143
        %v4183 = vunpack.c.l.b16 %v4144
        %v4184 = vunpack.c.l.b16 %v4145
        %v4185 = vunpack.c.l.b16 %v4146
        %v4186 = vunpack.c.l.b16 %v4147
        %v4187 = vunpack.c.l.b16 %v4148
        %v4188 = vunpack.c.l.b16 %v4149
        %v4189 = vunpack.c.l.b16 %v4150
        %v4190 = vunpack.c.l.b16 %v4151
        %v4191 = vpack.c.b16 %v4176, %v4175
        %v4192 = vpack.c.b16 %v4178, %v4177
        %v4193 = vpack.c.b16 %v4180, %v4179
        %v4194 = vpack.c.b16 %v4182, %v4181
        %v4195 = vpack.c.b16 %v4184, %v4183
        %v4196 = vpack.c.b16 %v4186, %v4185
        %v4197 = vpack.c.b16 %v4188, %v4187
        %v4198 = vpack.c.b16 %v4190, %v4189
        %4207 = vmatprep.subr.bf16.mxu0 0
        %4208 = vmatpush1.bf16.msra.mxu0 %v4191
        %4209 = vmatprep.subr.bf16.mxu0 0
        %4210 = vmatpush1.bf16.msra.mxu0 %v4192
        %4211 = vmatprep.subr.bf16.mxu0 0
        %4212 = vmatpush1.bf16.msra.mxu0 %v4193
        %4213 = vmatprep.subr.bf16.mxu0 0
        %4214 = vmatpush1.bf16.msra.mxu0 %v4194
        %4215 = vmatprep.subr.bf16.mxu0 0
        %4216 = vmatpush1.bf16.msra.mxu0 %v4195
        %4217 = vmatprep.subr.bf16.mxu0 0
        %4218 = vmatpush1.bf16.msra.mxu0 %v4196
        %4219 = vmatprep.subr.bf16.mxu0 0
        %4220 = vmatpush1.bf16.msra.mxu0 %v4197
        %4221 = vmatprep.subr.bf16.mxu0 0
        %4222 = vmatpush1.bf16.msra.mxu0 %v4198
        %4223 = vmatprep.subr.bf16.mxu0 0
        %4224 = vmatpush1.bf16.msra.mxu0 0
        %4225 = vmatprep.subr.bf16.mxu0 0
        %4226 = vmatpush1.bf16.msra.mxu0 0
        %4227 = vmatprep.subr.bf16.mxu0 0
        %4228 = vmatpush1.bf16.msra.mxu0 0
        %4229 = vmatprep.subr.bf16.mxu0 0
        %4230 = vmatpush1.bf16.msra.mxu0 0
        %4231 = vmatprep.subr.bf16.mxu0 0
        %4232 = vmatpush1.bf16.msra.mxu0 0
        %4233 = vmatprep.subr.bf16.mxu0 0
        %4234 = vmatpush1.bf16.msra.mxu0 0
        %4235 = vmatprep.subr.bf16.mxu0 0
        %4236 = vmatpush1.bf16.msra.mxu0 0
        %4237 = vmatprep.subr.bf16.mxu0 0
        %4238 = vmatpush1.bf16.msra.mxu0 0
        %4239 = vmatprep.mubr.bf16.mxu0 0
        %4240 = vmatmul.mubr.bf16.gmra.mrb[0].mxu0 %v4135
        %v4241 = vpop.f32.mrb[0].mxu0
        %v4242 = vadd.f32 %v4157, %v4241
        %v4243 = vpop.f32.mrb[0].mxu0
        %v4244 = vpop.f32.mrb[0].mxu0
        %v4245 = vpop.f32.mrb[0].mxu0
        %4246 = vdwg.mxu0
        %v4247 = vmax.f32 %v4242, 0.0
        %v4248 = vpack.c.bf16 %v4247, %v4247
        %v4249 = vld [vmem:[#allocation26] sm:$0xf]
        %v4250 = vld [vmem:[#allocation26 + $0x4] sm:$0xf]
        %v4251 = vld [vmem:[#allocation26 + $0x8] sm:$0xf]
        %v4252 = vld [vmem:[#allocation26 + $0xc] sm:$0xf]
        %v4253 = vld [vmem:[#allocation26 + $0x10] sm:$0xf]
        %v4254 = vld [vmem:[#allocation26 + $0x14] sm:$0xf]
        %v4255 = vld [vmem:[#allocation26 + $0x18] sm:$0xf]
        %v4256 = vld [vmem:[#allocation26 + $0x1c] sm:$0xf]
        %v4257 = vld [vmem:[#allocation26 + $0x20] sm:$0xf]
        %v4258 = vld [vmem:[#allocation26 + $0x24] sm:$0xf]
        %v4259 = vld [vmem:[#allocation26 + $0x28] sm:$0xf]
        %v4260 = vld [vmem:[#allocation26 + $0x2c] sm:$0xf]
        %v4261 = vld [vmem:[#allocation26 + $0x30] sm:$0xf]
        %v4262 = vld [vmem:[#allocation26 + $0x34] sm:$0xf]
        %v4263 = vld [vmem:[#allocation26 + $0x38] sm:$0xf]
        %v4264 = vld [vmem:[#allocation26 + $0x3c] sm:$0xf]
        %v4265 = vld [vmem:[#allocation28] sm:$0x1]
        %v4267 = vlaneseq
        %v4268 = vshrl.u32 %v4267, 7
        %v4269 = vsub.s32 0, %v4268
        %v4270 = vrot.slane %v4265, %v4269
        %v4288 = vunpack.c.l.b16 %v4249
        %v4289 = vunpack.c.l.b16 %v4250
        %v4290 = vunpack.c.l.b16 %v4251
        %v4291 = vunpack.c.l.b16 %v4252
        %v4292 = vunpack.c.l.b16 %v4253
        %v4293 = vunpack.c.l.b16 %v4254
        %v4294 = vunpack.c.l.b16 %v4255
        %v4295 = vunpack.c.l.b16 %v4256
        %v4296 = vunpack.c.l.b16 %v4257
        %v4297 = vunpack.c.l.b16 %v4258
        %v4298 = vunpack.c.l.b16 %v4259
        %v4299 = vunpack.c.l.b16 %v4260
        %v4300 = vunpack.c.l.b16 %v4261
        %v4301 = vunpack.c.l.b16 %v4262
        %v4302 = vunpack.c.l.b16 %v4263
        %v4303 = vunpack.c.l.b16 %v4264
        %v4304 = vpack.c.b16 %v4289, %v4288
        %v4305 = vpack.c.b16 %v4291, %v4290
        %v4306 = vpack.c.b16 %v4293, %v4292
        %v4307 = vpack.c.b16 %v4295, %v4294
        %v4308 = vpack.c.b16 %v4297, %v4296
        %v4309 = vpack.c.b16 %v4299, %v4298
        %v4310 = vpack.c.b16 %v4301, %v4300
        %v4311 = vpack.c.b16 %v4303, %v4302
        %4320 = vmatprep.subr.bf16.mxu0 0
        %4321 = vmatpush1.bf16.msra.mxu0 %v4304
        %4322 = vmatprep.subr.bf16.mxu0 0
        %4323 = vmatpush1.bf16.msra.mxu0 %v4305
        %4324 = vmatprep.subr.bf16.mxu0 0
        %4325 = vmatpush1.bf16.msra.mxu0 %v4306
        %4326 = vmatprep.subr.bf16.mxu0 0
        %4327 = vmatpush1.bf16.msra.mxu0 %v4307
        %4328 = vmatprep.subr.bf16.mxu0 0
        %4329 = vmatpush1.bf16.msra.mxu0 %v4308
        %4330 = vmatprep.subr.bf16.mxu0 0
        %4331 = vmatpush1.bf16.msra.mxu0 %v4309
        %4332 = vmatprep.subr.bf16.mxu0 0
        %4333 = vmatpush1.bf16.msra.mxu0 %v4310
        %4334 = vmatprep.subr.bf16.mxu0 0
        %4335 = vmatpush1.bf16.msra.mxu0 %v4311
        %4336 = vmatprep.subr.bf16.mxu0 0
        %4337 = vmatpush1.bf16.msra.mxu0 0
        %4338 = vmatprep.subr.bf16.mxu0 0
        %4339 = vmatpush1.bf16.msra.mxu0 0
        %4340 = vmatprep.subr.bf16.mxu0 0
        %4341 = vmatpush1.bf16.msra.mxu0 0
        %4342 = vmatprep.subr.bf16.mxu0 0
        %4343 = vmatpush1.bf16.msra.mxu0 0
        %4344 = vmatprep.subr.bf16.mxu0 0
        %4345 = vmatpush1.bf16.msra.mxu0 0
        %4346 = vmatprep.subr.bf16.mxu0 0
        %4347 = vmatpush1.bf16.msra.mxu0 0
        %4348 = vmatprep.subr.bf16.mxu0 0
        %4349 = vmatpush1.bf16.msra.mxu0 0
        %4350 = vmatprep.subr.bf16.mxu0 0
        %4351 = vmatpush1.bf16.msra.mxu0 0
        %4352 = vmatprep.mubr.bf16.mxu0 0
        %4353 = vmatmul.mubr.bf16.gmra.mrb[0].mxu0 %v4248
        %v4354 = vpop.f32.mrb[0].mxu0
        %v4355 = vadd.f32 %v4270, %v4354
        %v4356 = vpop.f32.mrb[0].mxu0
        %v4357 = vpop.f32.mrb[0].mxu0
        %v4358 = vpop.f32.mrb[0].mxu0
        %4359 = vdwg.mxu0
        %v4360 = vmax.f32 %v4355, 0.0
        %v4361 = vpack.c.bf16 %v4360, %v4360
        %v4362 = vld [vmem:[%s17] sm:$0xf]
        %v4363 = vld [vmem:[%s17 + $0x4] sm:$0xf]
        %v4364 = vld [vmem:[%s17 + $0x8] sm:$0xf]
        %v4365 = vld [vmem:[%s17 + $0xc] sm:$0xf]
        %v4366 = vld [vmem:[%s17 + $0x10] sm:$0xf]
        %v4367 = vld [vmem:[%s17 + $0x14] sm:$0xf]
        %v4368 = vld [vmem:[%s17 + $0x18] sm:$0xf]
        %v4369 = vld [vmem:[%s17 + $0x1c] sm:$0xf]
        %v4370 = vld [vmem:[%s17 + $0x20] sm:$0xf]
        %v4371 = vld [vmem:[%s17 + $0x24] sm:$0xf]
        %v4372 = vld [vmem:[%s17 + $0x28] sm:$0xf]
        %v4373 = vld [vmem:[%s17 + $0x2c] sm:$0xf]
        %v4374 = vld [vmem:[%s17 + $0x30] sm:$0xf]
        %v4375 = vld [vmem:[%s17 + $0x34] sm:$0xf]
        %v4376 = vld [vmem:[%s17 + $0x38] sm:$0xf]
        %v4377 = vld [vmem:[%s17 + $0x3c] sm:$0xf]
        %v4378 = vld [vmem:[%s18] sm:$0x1]
        %v4380 = vlaneseq
        %v4381 = vshrl.u32 %v4380, 7
        %v4382 = vsub.s32 0, %v4381
        %v4383 = vrot.slane %v4378, %v4382
        %v4401 = vunpack.c.l.b16 %v4362
        %v4402 = vunpack.c.l.b16 %v4363
        %v4403 = vunpack.c.l.b16 %v4364
        %v4404 = vunpack.c.l.b16 %v4365
        %v4405 = vunpack.c.l.b16 %v4366
        %v4406 = vunpack.c.l.b16 %v4367
        %v4407 = vunpack.c.l.b16 %v4368
        %v4408 = vunpack.c.l.b16 %v4369
        %v4409 = vunpack.c.l.b16 %v4370
        %v4410 = vunpack.c.l.b16 %v4371
        %v4411 = vunpack.c.l.b16 %v4372
        %v4412 = vunpack.c.l.b16 %v4373
        %v4413 = vunpack.c.l.b16 %v4374
        %v4414 = vunpack.c.l.b16 %v4375
        %v4415 = vunpack.c.l.b16 %v4376
        %v4416 = vunpack.c.l.b16 %v4377
        %v4417 = vpack.c.b16 %v4402, %v4401
        %v4418 = vpack.c.b16 %v4404, %v4403
        %v4419 = vpack.c.b16 %v4406, %v4405
        %v4420 = vpack.c.b16 %v4408, %v4407
        %v4421 = vpack.c.b16 %v4410, %v4409
        %v4422 = vpack.c.b16 %v4412, %v4411
        %v4423 = vpack.c.b16 %v4414, %v4413
        %v4424 = vpack.c.b16 %v4416, %v4415
        %4433 = vmatprep.subr.bf16.mxu0 0
        %4434 = vmatpush1.bf16.msra.mxu0 %v4417
        %4435 = vmatprep.subr.bf16.mxu0 0
        %4436 = vmatpush1.bf16.msra.mxu0 %v4418
        %4437 = vmatprep.subr.bf16.mxu0 0
        %4438 = vmatpush1.bf16.msra.mxu0 %v4419
        %4439 = vmatprep.subr.bf16.mxu0 0
        %4440 = vmatpush1.bf16.msra.mxu0 %v4420
        %4441 = vmatprep.subr.bf16.mxu0 0
        %4442 = vmatpush1.bf16.msra.mxu0 %v4421
        %4443 = vmatprep.subr.bf16.mxu0 0
        %4444 = vmatpush1.bf16.msra.mxu0 %v4422
        %4445 = vmatprep.subr.bf16.mxu0 0
        %4446 = vmatpush1.bf16.msra.mxu0 %v4423
        %4447 = vmatprep.subr.bf16.mxu0 0
        %4448 = vmatpush1.bf16.msra.mxu0 %v4424
        %4449 = vmatprep.subr.bf16.mxu0 0
        %4450 = vmatpush1.bf16.msra.mxu0 0
        %4451 = vmatprep.subr.bf16.mxu0 0
        %4452 = vmatpush1.bf16.msra.mxu0 0
        %4453 = vmatprep.subr.bf16.mxu0 0
        %4454 = vmatpush1.bf16.msra.mxu0 0
        %4455 = vmatprep.subr.bf16.mxu0 0
        %4456 = vmatpush1.bf16.msra.mxu0 0
        %4457 = vmatprep.subr.bf16.mxu0 0
        %4458 = vmatpush1.bf16.msra.mxu0 0
        %4459 = vmatprep.subr.bf16.mxu0 0
        %4460 = vmatpush1.bf16.msra.mxu0 0
        %4461 = vmatprep.subr.bf16.mxu0 0
        %4462 = vmatpush1.bf16.msra.mxu0 0
        %4463 = vmatprep.subr.bf16.mxu0 0
        %4464 = vmatpush1.bf16.msra.mxu0 0
        %4465 = vmatprep.mubr.bf16.mxu0 0
        %4466 = vmatmul.mubr.bf16.gmra.mrb[0].mxu0 %v4361
        %v4467 = vpop.f32.mrb[0].mxu0
        %v4468 = vadd.f32 %v4383, %v4467
        %v4469 = vpop.f32.mrb[0].mxu0
        %v4470 = vpop.f32.mrb[0].mxu0
        %v4471 = vpop.f32.mrb[0].mxu0
        %4472 = vdwg.mxu0
        %4473 = vst [vmem:[%s880] sm:$0xff] %v4468
        %s4474 = sand.u32 %s468, 1
        %s4475 = scalar_lea.sflag [#allocation4], %s4474
        %s4476 = sand.u32 %s468, 1
        %s4477 = smul.addr %s4476, 8
        %s4478 = scalar_lea.vmem [#allocation29], %s4477
        // Predicated region
        $region165: #{tpu_custom_call.1} parent=95 // pred_check
          %p4479 = pneg %p478
        $region166: #{tpu_custom_call.1} parent=95 // pred_check_branch
          %4481 = sbr.rel (%p4479) target = $region168
        $region167: #{tpu_custom_call.1} parent=95 // pred_region
          %s4483 = ssub.s32 128, 128
          %4484 = vsyncadd %s4475, %s4483
          %s4485 = smul.addr %s46, 128
          %s4486 = scalar_lea.hbm %s19, %s4485
          %s4488 = sshll.u32 %s4478, 4
          %s4489 = int_to_ptr.vmem [resolvable:$true] %s4488
          %4491 = dma.vmem_to_hbm [thread:$0]  %s4489, 128, %s4486, %s4475
        $region168: #{tpu_custom_call.1} parent=95 // pred_fallthru
          _
      $region96: #{tpu_custom_call.1} parent=5 // pred_fallthru
        _
      %p4492 = scmp.le.s32.totalorder 2, %s41
      // Predicated region
      $region169: #{tpu_custom_call.1} parent=5 // pred_check
        %p4493 = pneg %p4492
      $region170: #{tpu_custom_call.1} parent=5 // pred_check_branch
        %4495 = sbr.rel (%p4493) target = $region172
      $region171: #{tpu_custom_call.1} parent=5 // pred_region
        %s4496 = ssub.s32 %s41, 2
        // Predicated region
        $region173: #{tpu_custom_call.1} parent=171 // pred_check
          %p4497 = pneg %p484
        $region174: #{tpu_custom_call.1} parent=171 // pred_check_branch
          %4499 = sbr.rel (%p4497) target = $region176
        $region175: #{tpu_custom_call.1} parent=171 // pred_region
          %s4500 = sand.u32 %s469, 1
          %s4501 = scalar_lea.sflag [#allocation4], %s4500
          %s4502 = sand.u32 %s469, 1
          %s4503 = smul.addr %s4502, 8
          %s4504 = scalar_lea.vmem [#allocation29], %s4503
          %4505 = dma.done %s4501, 128
        $region176: #{tpu_custom_call.1} parent=171 // pred_fallthru
          _
      $region172: #{tpu_custom_call.1} parent=5 // pred_fallthru
        _
    $region6: #{tpu_custom_call.1} parent=1 // loop_footer
      %s45 = sadd.s32 1, %s41
    $region7: #{tpu_custom_call.1} parent=1 // loop_footer_branch
      %40 = sbr.rel target = $region3
    $region8: #{tpu_custom_call.1} parent=1 // loop_exit
      _
    %4506 = vsyncpa [#allocation3], 1
    %s4507 = scalar_lea.sflag [#allocation3], 1
    %4508 = vsyncpa %s4507, 1
    %4509 = vsyncpa [#allocation6], 1
    %s4510 = scalar_lea.sflag [#allocation6], 1
    %4511 = vsyncpa %s4510, 1
    %4512 = vsyncpa [#allocation9], 1
    %4513 = vsyncpa [#allocation12], 1
    %4514 = vsyncpa [#allocation15], 1
    %4515 = vsyncpa [#allocation18], 1
    %4516 = vsyncpa [#allocation21], 1
    %4517 = vsyncpa [#allocation24], 1
    %4518 = vsyncpa [#allocation27], 1
    %4519 = vsyncpa [#allocation4], 1
    %s4520 = scalar_lea.sflag [#allocation4], 1
    %4521 = vsyncpa %s4520, 1

// kernel: tpu_custom_call.1
$region0: #{tpu_custom_call.1}
  #allocation0 [shape = 'u32[]', space=smem, size = 0x4, offset = 0x4, fixed_abs, tag = 'smem constant byte address 0x4 - core index']
  #allocation1 [shape = 'u32[144,128]{1,0:T(1,128)}', space=vmem, size = 0x12000, scoped, tag = 'internal scratch']
  %s0 = inlined_call_operand.hbm [shape: bf16[16,1392], index: 0, kind: input, shape index: {}]
  %s1 = inlined_call_operand.hbm [shape: bf16[16,1392], index: 1, kind: input, shape index: {}]
  %s2 = inlined_call_operand.hbm [shape: bf16[16,288], index: 2, kind: input, shape index: {}]
  %s3 = inlined_call_operand.hbm [shape: bf16[1392,256], index: 3, kind: input, shape index: {}]
  %s4 = inlined_call_operand.hbm [shape: f32[1,256], index: 4, kind: input, shape index: {}]
  %s5 = inlined_call_operand.hbm [shape: bf16[1392,128], index: 5, kind: input, shape index: {}]
  %s6 = inlined_call_operand.hbm [shape: f32[1,128], index: 6, kind: input, shape index: {}]
  %s7 = inlined_call_operand.hbm [shape: bf16[288,128], index: 7, kind: input, shape index: {}]
  %s8 = inlined_call_operand.hbm [shape: f32[1,128], index: 8, kind: input, shape index: {}]
  %s9 = inlined_call_operand.hbm [shape: bf16[512,256], index: 9, kind: input, shape index: {}]
  %s10 = inlined_call_operand.hbm [shape: f32[1,256], index: 10, kind: input, shape index: {}]
  %s11 = inlined_call_operand.hbm [shape: bf16[256,128], index: 11, kind: input, shape index: {}]
  %s12 = inlined_call_operand.hbm [shape: f32[1,128], index: 12, kind: input, shape index: {}]
  %s13 = inlined_call_operand.hbm [shape: bf16[128,128], index: 13, kind: input, shape index: {}]
  %s14 = inlined_call_operand.hbm [shape: f32[1,128], index: 14, kind: input, shape index: {}]
  %s15 = inlined_call_operand.hbm [shape: bf16[128,128], index: 15, kind: input, shape index: {}]
  %s16 = inlined_call_operand.hbm [shape: f32[1,128], index: 16, kind: input, shape index: {}]
  %s17 = inlined_call_operand.vmem [shape: bf16[128,128], index: 17, kind: input, shape index: {}]
  %s18 = inlined_call_operand.vmem [shape: f32[1,128], index: 18, kind: input, shape index: {}]
  %s19 = inlined_call_operand.hbm [shape: f32[16,128], index: 19, kind: output, shape index: {}]
  %s20 = sld [smem:[#allocation0]]
  $region177: #{tpu_custom_call.1} parent=0
    _
  %s22 = ssub.s32 1, %s20
  %s23 = scalar_select 0, %s22, %s20
  $region1: #{tpu_custom_call.1} parent=0
    #allocation2 [shape = 'u8[45056]{0}', space=vmem, size = 0xb000, scoped, tag = 'input window, operand 0']
    #allocation3 [shape = 's32[2]{0}', space=sflag, size = 0x8, scoped, tag = 'scoped memory for tpu_custom_call.1']
    #allocation4 [shape = 's32[2]{0}', space=sflag, size = 0x8, scoped, tag = 'scoped memory for tpu_custom_call.1']
    #allocation5 [shape = 'u8[45056]{0}', space=vmem, size = 0xb000, scoped, tag = 'input window, operand 1']
    #allocation6 [shape = 's32[2]{0}', space=sflag, size = 0x8, scoped, tag = 'scoped memory for tpu_custom_call.1']
    #allocation7 [shape = 'u8[12288]{0}', space=vmem, size = 0x3000, scoped, tag = 'input window, operand 2']
    #allocation8 [shape = 'u8[712704]{0}', space=vmem, size = 0xae000, scoped, tag = 'input window, operand 3, single buffered']
    #allocation9 [shape = 's32[1]{0}', space=sflag, size = 0x4, scoped, tag = 'scoped memory for tpu_custom_call.1']
    #allocation10 [shape = 'u8[1024]{0}', space=vmem, size = 0x400, scoped, tag = 'input window, operand 4, single buffered']
    #allocation11 [shape = 'u8[356352]{0}', space=vmem, size = 0x57000, scoped, tag = 'input window, operand 5, single buffered']
    #allocation12 [shape = 's32[1]{0}', space=sflag, size = 0x4, scoped, tag = 'scoped memory for tpu_custom_call.1']
    #allocation13 [shape = 'u8[512]{0}', space=vmem, size = 0x400, scoped, tag = 'input window, operand 6, single buffered']
    #allocation14 [shape = 'u8[73728]{0}', space=vmem, size = 0x12000, scoped, tag = 'input window, operand 7, single buffered']
    #allocation15 [shape = 's32[1]{0}', space=sflag, size = 0x4, scoped, tag = 'scoped memory for tpu_custom_call.1']
    #allocation16 [shape = 'u8[512]{0}', space=vmem, size = 0x400, scoped, tag = 'input window, operand 8, single buffered']
    #allocation17 [shape = 'u8[262144]{0}', space=vmem, size = 0x40000, scoped, tag = 'input window, operand 9, single buffered']
    #allocation18 [shape = 's32[1]{0}', space=sflag, size = 0x4, scoped, tag = 'scoped memory for tpu_custom_call.1']
    #allocation19 [shape = 'u8[1024]{0}', space=vmem, size = 0x400, scoped, tag = 'input window, operand 10, single buffered']
    #allocation20 [shape = 'u8[65536]{0}', space=vmem, size = 0x10000, scoped, tag = 'input window, operand 11, single buffered']
    #allocation21 [shape = 's32[1]{0}', space=sflag, size = 0x4, scoped, tag = 'scoped memory for tpu_custom_call.1']
    #allocation22 [shape = 'u8[512]{0}', space=vmem, size = 0x400, scoped, tag = 'input window, operand 12, single buffered']
    #allocation23 [shape = 'u8[32768]{0}', space=vmem, size = 0x8000, scoped, tag = 'input window, operand 13, single buffered']
    #allocation24 [shape = 's32[1]{0}', space=sflag, size = 0x4, scoped, tag = 'scoped memory for tpu_custom_call.1']
    #allocation25 [shape = 'u8[512]{0}', space=vmem, size = 0x400, scoped, tag = 'input window, operand 14, single buffered']
    #allocation26 [shape = 'u8[32768]{0}', space=vmem, size = 0x8000, scoped, tag = 'input window, operand 15, single buffered']
    #allocation27 [shape = 's32[1]{0}', space=sflag, size = 0x4, scoped, tag = 'scoped memory for tpu_custom_call.1']
    #allocation28 [shape = 'u8[512]{0}', space=vmem, size = 0x400, scoped, tag = 'input window, operand 16, single buffered']
    #allocation29 [shape = 'u8[8192]{0}', space=vmem, size = 0x2000, scoped, tag = 'output window, operand 0']
    %24 = vsyncpa [#allocation3], 0
    %s25 = scalar_lea.sflag [#allocation3], 1
    %26 = vsyncpa %s25, 0
    %27 = vsyncpa [#allocation6], 0
    %s28 = scalar_lea.sflag [#allocation6], 1
    %29 = vsyncpa %s28, 0
    %30 = vsyncpa [#allocation9], 0
    %31 = vsyncpa [#allocation12], 0
    %32 = vsyncpa [#allocation15], 0
    %33 = vsyncpa [#allocation18], 0
    %34 = vsyncpa [#allocation21], 0
    %35 = vsyncpa [#allocation24], 0
    %36 = vsyncpa [#allocation27], 0
    %37 = vsyncpa [#allocation4], 0
    %s38 = scalar_lea.sflag [#allocation4], 1
    %39 = vsyncpa %s38, 0
    loop: start=0, step=1, limit=4
    $region2: #{tpu_custom_call.1} parent=1 // loop_pre_header
      _
    $region3: #{tpu_custom_call.1} parent=1 // loop_header
      %s41 = sphi 0, %s45
      %p42 = scmp.ge.s32.totalorder %s41, 4
      %s51 = sphi 0, %s53
      %s54 = sphi 0, %s51
      %s55 = sphi 0, %s54
      %s71 = sphi 0, %s55
      %s77 = sphi 0, %s79
      %s80 = sphi 0, %s77
      %s81 = sphi 0, %s80
      %s97 = sphi 0, %s81
      %s103 = sphi 0, %s105
      %s106 = sphi 0, %s103
      %s107 = sphi 0, %s106
      %s123 = sphi 0, %s107
      %s127 = sphi 0, %s127
      %s129 = sphi 0, %s127
      %s130 = sphi 0, %s129
      %s144 = sphi 0, %s130
      %s148 = sphi 0, %s148
      %s150 = sphi 0, %s148
      %s151 = sphi 0, %s150
      %s165 = sphi 0, %s151
      %s169 = sphi 0, %s169
      %s171 = sphi 0, %s169
      %s172 = sphi 0, %s171
      %s186 = sphi 0, %s172
      %s190 = sphi 0, %s190
      %s192 = sphi 0, %s190
      %s193 = sphi 0, %s192
      %s207 = sphi 0, %s193
      %s211 = sphi 0, %s211
      %s213 = sphi 0, %s211
      %s214 = sphi 0, %s213
      %s228 = sphi 0, %s214
      %s232 = sphi 0, %s232
      %s234 = sphi 0, %s232
      %s235 = sphi 0, %s234
      %s249 = sphi 0, %s235
      %s253 = sphi 0, %s253
      %s255 = sphi 0, %s253
      %s256 = sphi 0, %s255
      %s270 = sphi 0, %s256
      %s274 = sphi 0, %s274
      %s276 = sphi 0, %s274
      %s277 = sphi 0, %s276
      %s291 = sphi 0, %s277
      %s295 = sphi 0, %s295
      %s297 = sphi 0, %s295
      %s298 = sphi 0, %s297
      %s312 = sphi 0, %s298
      %s316 = sphi 0, %s316
      %s318 = sphi 0, %s316
      %s319 = sphi 0, %s318
      %s333 = sphi 0, %s319
      %s337 = sphi 0, %s337
      %s339 = sphi 0, %s337
      %s340 = sphi 0, %s339
      %s354 = sphi 0, %s340
      %s358 = sphi 0, %s358
      %s360 = sphi 0, %s358
      %s361 = sphi 0, %s360
      %s375 = sphi 0, %s361
      %s379 = sphi 0, %s379
      %s381 = sphi 0, %s379
      %s382 = sphi 0, %s381
      %s396 = sphi 0, %s382
      %s400 = sphi 0, %s400
      %s402 = sphi 0, %s400
      %s403 = sphi 0, %s402
      %s417 = sphi 0, %s403
      %s421 = sphi 0, %s421
      %s423 = sphi 0, %s421
      %s424 = sphi 0, %s423
      %s438 = sphi 0, %s424
      %s442 = sphi 0, %s442
      %s444 = sphi 0, %s442
      %s445 = sphi 0, %s444
      %s459 = sphi 0, %s445
      %s465 = sphi 0, %s467
      %s468 = sphi 0, %s465
      %s469 = sphi 0, %s468
      %s485 = sphi 0, %s469
    $region4: #{tpu_custom_call.1} parent=1 // loop_header_branch
      %44 = sbr.rel (%p42) target = $region8
    $region5: #{tpu_custom_call.1} parent=1 // loop_body
      %s46 = ssub.s32 %s41, 1
      %s47 = ssub.s32 %s41, 2
      %s48 = sadd.s32 %s41, 1
      %s49 = ssub.s32 %s41, %s48
      %p50 = scmp.eq.s32.totalorder %s49, 0
      %s52 = sadd.s32 %s51, 1
      %s53 = scalar_select %p50, %s51, %s52
      %p56 = pneg %p50
      %p57 = scmp.eq.s32.totalorder %s41, 1
      %p58 = por %p56, %p57
      %p59 = scmp.ne.s32.totalorder %s51, %s54
      %p60 = scmp.eq.s32.totalorder %s41, 0
      %p61 = por %p59, %p60
      %p62 = scmp.ne.s32.totalorder %s51, %s54
      %p63 = scmp.eq.s32.totalorder %s46, 1
      %p64 = por %p62, %p63
      %p65 = scmp.ne.s32.totalorder %s54, %s55
      %p66 = scmp.eq.s32.totalorder %s46, 0
      %p67 = por %p65, %p66
      %p68 = scmp.ne.s32.totalorder %s54, %s55
      %p69 = scmp.eq.s32.totalorder %s47, 1
      %p70 = por %p68, %p69
      %p72 = scmp.ne.s32.totalorder %s55, %s71
      %p73 = scmp.eq.s32.totalorder %s47, 0
      %p74 = por %p72, %p73
      %s75 = ssub.s32 %s41, %s48
      %p76 = scmp.eq.s32.totalorder %s75, 0
      %s78 = sadd.s32 %s77, 1
      %s79 = scalar_select %p76, %s77, %s78
      %p82 = pneg %p76
      %p83 = scmp.eq.s32.totalorder %s41, 1
      %p84 = por %p82, %p83
      %p85 = scmp.ne.s32.totalorder %s77, %s80
      %p86 = scmp.eq.s32.totalorder %s41, 0
      %p87 = por %p85, %p86
      %p88 = scmp.ne.s32.totalorder %s77, %s80
      %p89 = scmp.eq.s32.totalorder %s46, 1
      %p90 = por %p88, %p89
      %p91 = scmp.ne.s32.totalorder %s80, %s81
      %p92 = scmp.eq.s32.totalorder %s46, 0
      %p93 = por %p91, %p92
      %p94 = scmp.ne.s32.totalorder %s80, %s81
      %p95 = scmp.eq.s32.totalorder %s47, 1
      %p96 = por %p94, %p95
      %p98 = scmp.ne.s32.totalorder %s81, %s97
      %p99 = scmp.eq.s32.totalorder %s47, 0
      %p100 = por %p98, %p99
      %s101 = ssub.s32 %s41, %s48
      %p102 = scmp.eq.s32.totalorder %s101, 0
      %s104 = sadd.s32 %s103, 1
      %s105 = scalar_select %p102, %s103, %s104
      %p108 = pneg %p102
      %p109 = scmp.eq.s32.totalorder %s41, 1
      %p110 = por %p108, %p109
      %p111 = scmp.ne.s32.totalorder %s103, %s106
      %p112 = scmp.eq.s32.totalorder %s41, 0
      %p113 = por %p111, %p112
      %p114 = scmp.ne.s32.totalorder %s103, %s106
      %p115 = scmp.eq.s32.totalorder %s46, 1
      %p116 = por %p114, %p115
      %p117 = scmp.ne.s32.totalorder %s106, %s107
      %p118 = scmp.eq.s32.totalorder %s46, 0
      %p119 = por %p117, %p118
      %p120 = scmp.ne.s32.totalorder %s106, %s107
      %p121 = scmp.eq.s32.totalorder %s47, 1
      %p122 = por %p120, %p121
      %p124 = scmp.ne.s32.totalorder %s107, %s123
      %p125 = scmp.eq.s32.totalorder %s47, 0
      %p126 = por %p124, %p125
      %s128 = sadd.s32 %s127, 1
      %p131 = scmp.eq.s32.totalorder %s41, 1
      %p132 = scmp.ne.s32.totalorder %s127, %s129
      %p133 = scmp.eq.s32.totalorder %s41, 0
      %p134 = por %p132, %p133
      %p135 = scmp.ne.s32.totalorder %s127, %s129
      %p136 = scmp.eq.s32.totalorder %s46, 1
      %p137 = por %p135, %p136
      %p138 = scmp.ne.s32.totalorder %s129, %s130
      %p139 = scmp.eq.s32.totalorder %s46, 0
      %p140 = por %p138, %p139
      %p141 = scmp.ne.s32.totalorder %s129, %s130
      %p142 = scmp.eq.s32.totalorder %s47, 1
      %p143 = por %p141, %p142
      %p145 = scmp.ne.s32.totalorder %s130, %s144
      %p146 = scmp.eq.s32.totalorder %s47, 0
      %p147 = por %p145, %p146
      %s149 = sadd.s32 %s148, 1
      %p152 = scmp.eq.s32.totalorder %s41, 1
      %p153 = scmp.ne.s32.totalorder %s148, %s150
      %p154 = scmp.eq.s32.totalorder %s41, 0
      %p155 = por %p153, %p154
      %p156 = scmp.ne.s32.totalorder %s148, %s150
      %p157 = scmp.eq.s32.totalorder %s46, 1
      %p158 = por %p156, %p157
      %p159 = scmp.ne.s32.totalorder %s150, %s151
      %p160 = scmp.eq.s32.totalorder %s46, 0
      %p161 = por %p159, %p160
      %p162 = scmp.ne.s32.totalorder %s150, %s151
      %p163 = scmp.eq.s32.totalorder %s47, 1
      %p164 = por %p162, %p163
      %p166 = scmp.ne.s32.totalorder %s151, %s165
      %p167 = scmp.eq.s32.totalorder %s47, 0
      %p168 = por %p166, %p167
      %s170 = sadd.s32 %s169, 1
      %p173 = scmp.eq.s32.totalorder %s41, 1
      %p174 = scmp.ne.s32.totalorder %s169, %s171
      %p175 = scmp.eq.s32.totalorder %s41, 0
      %p176 = por %p174, %p175
      %p177 = scmp.ne.s32.totalorder %s169, %s171
      %p178 = scmp.eq.s32.totalorder %s46, 1
      %p179 = por %p177, %p178
      %p180 = scmp.ne.s32.totalorder %s171, %s172
      %p181 = scmp.eq.s32.totalorder %s46, 0
      %p182 = por %p180, %p181
      %p183 = scmp.ne.s32.totalorder %s171, %s172
      %p184 = scmp.eq.s32.totalorder %s47, 1
      %p185 = por %p183, %p184
      %p187 = scmp.ne.s32.totalorder %s172, %s186
      %p188 = scmp.eq.s32.totalorder %s47, 0
      %p189 = por %p187, %p188
      %s191 = sadd.s32 %s190, 1
      %p194 = scmp.eq.s32.totalorder %s41, 1
      %p195 = scmp.ne.s32.totalorder %s190, %s192
      %p196 = scmp.eq.s32.totalorder %s41, 0
      %p197 = por %p195, %p196
      %p198 = scmp.ne.s32.totalorder %s190, %s192
      %p199 = scmp.eq.s32.totalorder %s46, 1
      %p200 = por %p198, %p199
      %p201 = scmp.ne.s32.totalorder %s192, %s193
      %p202 = scmp.eq.s32.totalorder %s46, 0
      %p203 = por %p201, %p202
      %p204 = scmp.ne.s32.totalorder %s192, %s193
      %p205 = scmp.eq.s32.totalorder %s47, 1
      %p206 = por %p204, %p205
      %p208 = scmp.ne.s32.totalorder %s193, %s207
      %p209 = scmp.eq.s32.totalorder %s47, 0
      %p210 = por %p208, %p209
      %s212 = sadd.s32 %s211, 1
      %p215 = scmp.eq.s32.totalorder %s41, 1
      %p216 = scmp.ne.s32.totalorder %s211, %s213
      %p217 = scmp.eq.s32.totalorder %s41, 0
      %p218 = por %p216, %p217
      %p219 = scmp.ne.s32.totalorder %s211, %s213
      %p220 = scmp.eq.s32.totalorder %s46, 1
      %p221 = por %p219, %p220
      %p222 = scmp.ne.s32.totalorder %s213, %s214
      %p223 = scmp.eq.s32.totalorder %s46, 0
      %p224 = por %p222, %p223
      %p225 = scmp.ne.s32.totalorder %s213, %s214
      %p226 = scmp.eq.s32.totalorder %s47, 1
      %p227 = por %p225, %p226
      %p229 = scmp.ne.s32.totalorder %s214, %s228
      %p230 = scmp.eq.s32.totalorder %s47, 0
      %p231 = por %p229, %p230
      %s233 = sadd.s32 %s232, 1
      %p236 = scmp.eq.s32.totalorder %s41, 1
      %p237 = scmp.ne.s32.totalorder %s232, %s234
      %p238 = scmp.eq.s32.totalorder %s41, 0
      %p239 = por %p237, %p238
      %p240 = scmp.ne.s32.totalorder %s232, %s234
      %p241 = scmp.eq.s32.totalorder %s46, 1
      %p242 = por %p240, %p241
      %p243 = scmp.ne.s32.totalorder %s234, %s235
      %p244 = scmp.eq.s32.totalorder %s46, 0
      %p245 = por %p243, %p244
      %p246 = scmp.ne.s32.totalorder %s234, %s235
      %p247 = scmp.eq.s32.totalorder %s47, 1
      %p248 = por %p246, %p247
      %p250 = scmp.ne.s32.totalorder %s235, %s249
      %p251 = scmp.eq.s32.totalorder %s47, 0
      %p252 = por %p250, %p251
      %s254 = sadd.s32 %s253, 1
      %p257 = scmp.eq.s32.totalorder %s41, 1
      %p258 = scmp.ne.s32.totalorder %s253, %s255
      %p259 = scmp.eq.s32.totalorder %s41, 0
      %p260 = por %p258, %p259
      %p261 = scmp.ne.s32.totalorder %s253, %s255
      %p262 = scmp.eq.s32.totalorder %s46, 1
      %p263 = por %p261, %p262
      %p264 = scmp.ne.s32.totalorder %s255, %s256
      %p265 = scmp.eq.s32.totalorder %s46, 0
      %p266 = por %p264, %p265
      %p267 = scmp.ne.s32.totalorder %s255, %s256
      %p268 = scmp.eq.s32.totalorder %s47, 1
      %p269 = por %p267, %p268
      %p271 = scmp.ne.s32.totalorder %s256, %s270
      %p272 = scmp.eq.s32.totalorder %s47, 0
      %p273 = por %p271, %p272
      %s275 = sadd.s32 %s274, 1
      %p278 = scmp.eq.s32.totalorder %s41, 1
      %p279 = scmp.ne.s32.totalorder %s274, %s276
      %p280 = scmp.eq.s32.totalorder %s41, 0
      %p281 = por %p279, %p280
      %p282 = scmp.ne.s32.totalorder %s274, %s276
      %p283 = scmp.eq.s32.totalorder %s46, 1
      %p284 = por %p282, %p283
      %p285 = scmp.ne.s32.totalorder %s276, %s277
      %p286 = scmp.eq.s32.totalorder %s46, 0
      %p287 = por %p285, %p286
      %p288 = scmp.ne.s32.totalorder %s276, %s277
      %p289 = scmp.eq.s32.totalorder %s47, 1
      %p290 = por %p288, %p289
      %p292 = scmp.ne.s32.totalorder %s277, %s291
      %p293 = scmp.eq.s32.totalorder %s47, 0
      %p294 = por %p292, %p293
      %s296 = sadd.s32 %s295, 1
      %p299 = scmp.eq.s32.totalorder %s41, 1
      %p300 = scmp.ne.s32.totalorder %s295, %s297
      %p301 = scmp.eq.s32.totalorder %s41, 0
      %p302 = por %p300, %p301
      %p303 = scmp.ne.s32.totalorder %s295, %s297
      %p304 = scmp.eq.s32.totalorder %s46, 1
      %p305 = por %p303, %p304
      %p306 = scmp.ne.s32.totalorder %s297, %s298
      %p307 = scmp.eq.s32.totalorder %s46, 0
      %p308 = por %p306, %p307
      %p309 = scmp.ne.s32.totalorder %s297, %s298
      %p310 = scmp.eq.s32.totalorder %s47, 1
      %p311 = por %p309, %p310
      %p313 = scmp.ne.s32.totalorder %s298, %s312
      %p314 = scmp.eq.s32.totalorder %s47, 0
      %p315 = por %p313, %p314
      %s317 = sadd.s32 %s316, 1
      %p320 = scmp.eq.s32.totalorder %s41, 1
      %p321 = scmp.ne.s32.totalorder %s316, %s318
      %p322 = scmp.eq.s32.totalorder %s41, 0
      %p323 = por %p321, %p322
      %p324 = scmp.ne.s32.totalorder %s316, %s318
      %p325 = scmp.eq.s32.totalorder %s46, 1
      %p326 = por %p324, %p325
      %p327 = scmp.ne.s32.totalorder %s318, %s319
      %p328 = scmp.eq.s32.totalorder %s46, 0
      %p329 = por %p327, %p328
      %p330 = scmp.ne.s32.totalorder %s318, %s319
      %p331 = scmp.eq.s32.totalorder %s47, 1
      %p332 = por %p330, %p331
      %p334 = scmp.ne.s32.totalorder %s319, %s333
      %p335 = scmp.eq.s32.totalorder %s47, 0
      %p336 = por %p334, %p335
      %s338 = sadd.s32 %s337, 1
      %p341 = scmp.eq.s32.totalorder %s41, 1
      %p342 = scmp.ne.s32.totalorder %s337, %s339
      %p343 = scmp.eq.s32.totalorder %s41, 0
      %p344 = por %p342, %p343
      %p345 = scmp.ne.s32.totalorder %s337, %s339
      %p346 = scmp.eq.s32.totalorder %s46, 1
      %p347 = por %p345, %p346
      %p348 = scmp.ne.s32.totalorder %s339, %s340
      %p349 = scmp.eq.s32.totalorder %s46, 0
      %p350 = por %p348, %p349
      %p351 = scmp.ne.s32.totalorder %s339, %s340
      %p352 = scmp.eq.s32.totalorder %s47, 1
      %p353 = por %p351, %p352
      %p355 = scmp.ne.s32.totalorder %s340, %s354
      %p356 = scmp.eq.s32.totalorder %s47, 0
      %p357 = por %p355, %p356
      %s359 = sadd.s32 %s358, 1
      %p362 = scmp.eq.s32.totalorder %s41, 1
      %p363 = scmp.ne.s32.totalorder %s358, %s360
      %p364 = scmp.eq.s32.totalorder %s41, 0
      %p365 = por %p363, %p364
      %p366 = scmp.ne.s32.totalorder %s358, %s360
      %p367 = scmp.eq.s32.totalorder %s46, 1
      %p368 = por %p366, %p367
      %p369 = scmp.ne.s32.totalorder %s360, %s361
      %p370 = scmp.eq.s32.totalorder %s46, 0
      %p371 = por %p369, %p370
      %p372 = scmp.ne.s32.totalorder %s360, %s361
      %p373 = scmp.eq.s32.totalorder %s47, 1
      %p374 = por %p372, %p373
      %p376 = scmp.ne.s32.totalorder %s361, %s375
      %p377 = scmp.eq.s32.totalorder %s47, 0
      %p378 = por %p376, %p377
      %s380 = sadd.s32 %s379, 1
      %p383 = scmp.eq.s32.totalorder %s41, 1
      %p384 = scmp.ne.s32.totalorder %s379, %s381
      %p385 = scmp.eq.s32.totalorder %s41, 0
      %p386 = por %p384, %p385
      %p387 = scmp.ne.s32.totalorder %s379, %s381
      %p388 = scmp.eq.s32.totalorder %s46, 1
      %p389 = por %p387, %p388
      %p390 = scmp.ne.s32.totalorder %s381, %s382
      %p391 = scmp.eq.s32.totalorder %s46, 0
      %p392 = por %p390, %p391
      %p393 = scmp.ne.s32.totalorder %s381, %s382
      %p394 = scmp.eq.s32.totalorder %s47, 1
      %p395 = por %p393, %p394
      %p397 = scmp.ne.s32.totalorder %s382, %s396
      %p398 = scmp.eq.s32.totalorder %s47, 0
      %p399 = por %p397, %p398
      %s401 = sadd.s32 %s400, 1
      %p404 = scmp.eq.s32.totalorder %s41, 1
      %p405 = scmp.ne.s32.totalorder %s400, %s402
      %p406 = scmp.eq.s32.totalorder %s41, 0
      %p407 = por %p405, %p406
      %p408 = scmp.ne.s32.totalorder %s400, %s402
      %p409 = scmp.eq.s32.totalorder %s46, 1
      %p410 = por %p408, %p409
      %p411 = scmp.ne.s32.totalorder %s402, %s403
      %p412 = scmp.eq.s32.totalorder %s46, 0
      %p413 = por %p411, %p412
      %p414 = scmp.ne.s32.totalorder %s402, %s403
      %p415 = scmp.eq.s32.totalorder %s47, 1
      %p416 = por %p414, %p415
      %p418 = scmp.ne.s32.totalorder %s403, %s417
      %p419 = scmp.eq.s32.totalorder %s47, 0
      %p420 = por %p418, %p419
      %s422 = sadd.s32 %s421, 1
      %p425 = scmp.eq.s32.totalorder %s41, 1
      %p426 = scmp.ne.s32.totalorder %s421, %s423
      %p427 = scmp.eq.s32.totalorder %s41, 0
      %p428 = por %p426, %p427
      %p429 = scmp.ne.s32.totalorder %s421, %s423
      %p430 = scmp.eq.s32.totalorder %s46, 1
      %p431 = por %p429, %p430
      %p432 = scmp.ne.s32.totalorder %s423, %s424
      %p433 = scmp.eq.s32.totalorder %s46, 0
      %p434 = por %p432, %p433
      %p435 = scmp.ne.s32.totalorder %s423, %s424
      %p436 = scmp.eq.s32.totalorder %s47, 1
      %p437 = por %p435, %p436
      %p439 = scmp.ne.s32.totalorder %s424, %s438
      %p440 = scmp.eq.s32.totalorder %s47, 0
      %p441 = por %p439, %p440
      %s443 = sadd.s32 %s442, 1
      %p446 = scmp.eq.s32.totalorder %s41, 1
      %p447 = scmp.ne.s32.totalorder %s442, %s444
      %p448 = scmp.eq.s32.totalorder %s41, 0
      %p449 = por %p447, %p448
      %p450 = scmp.ne.s32.totalorder %s442, %s444
      %p451 = scmp.eq.s32.totalorder %s46, 1
      %p452 = por %p450, %p451
      %p453 = scmp.ne.s32.totalorder %s444, %s445
      %p454 = scmp.eq.s32.totalorder %s46, 0
      %p455 = por %p453, %p454
      %p456 = scmp.ne.s32.totalorder %s444, %s445
      %p457 = scmp.eq.s32.totalorder %s47, 1
      %p458 = por %p456, %p457
      %p460 = scmp.ne.s32.totalorder %s445, %s459
      %p461 = scmp.eq.s32.totalorder %s47, 0
      %p462 = por %p460, %p461
      %s463 = ssub.s32 %s41, %s48
      %p464 = scmp.eq.s32.totalorder %s463, 0
      %s466 = sadd.s32 %s465, 1
      %s467 = scalar_select %p464, %s465, %s466
      %p470 = pneg %p464
      %p471 = scmp.eq.s32.totalorder %s41, 1
      %p472 = por %p470, %p471
      %p473 = scmp.ne.s32.totalorder %s465, %s468
      %p474 = scmp.eq.s32.totalorder %s41, 0
      %p475 = por %p473, %p474
      %p476 = scmp.ne.s32.totalorder %s465, %s468
      %p477 = scmp.eq.s32.totalorder %s46, 1
      %p478 = por %p476, %p477
      %p479 = scmp.ne.s32.totalorder %s468, %s469
      %p480 = scmp.eq.s32.totalorder %s46, 0
      %p481 = por %p479, %p480
      %p482 = scmp.ne.s32.totalorder %s468, %s469
      %p483 = scmp.eq.s32.totalorder %s47, 1
      %p484 = por %p482, %p483
      %p486 = scmp.ne.s32.totalorder %s469, %s485
      %p487 = scmp.eq.s32.totalorder %s47, 0
      %p488 = por %p486, %p487
      %p489 = scmp.le.s32.totalorder 1, %s41
      %p490 = scmp.lt.s32.totalorder %s41, 3
      %p491 = pnand %p489, %p490
      %p492 = pneg %p491
      // Predicated region
      $region9: #{tpu_custom_call.1} parent=5 // pred_check
        _
      $region10: #{tpu_custom_call.1} parent=5 // pred_check_branch
        %494 = sbr.rel (%p491) target = $region12
      $region11: #{tpu_custom_call.1} parent=5 // pred_region
        %s495 = ssub.s32 %s41, 1
        // Predicated region
        $region13: #{tpu_custom_call.1} parent=11 // pred_check
          %p496 = pneg %p140
        $region14: #{tpu_custom_call.1} parent=11 // pred_check_branch
          %498 = sbr.rel (%p496) target = $region16
        $region15: #{tpu_custom_call.1} parent=11 // pred_region
          %s500 = ssub.s32 22272, 22272
          %501 = vsyncadd [#allocation9], %s500
          %s502 = sshll.u32 [#allocation8], 4
          %s503 = int_to_ptr.vmem [resolvable:$true] %s502
          %508 = dma.hbm_to_vmem [thread:$0]  %s3, 22272, %s503, [#allocation9], 128, 128, 8
        $region16: #{tpu_custom_call.1} parent=11 // pred_fallthru
          _
        // Predicated region
        $region17: #{tpu_custom_call.1} parent=11 // pred_check
          %p509 = pneg %p161
        $region18: #{tpu_custom_call.1} parent=11 // pred_check_branch
          %511 = sbr.rel (%p509) target = $region20
        $region19: #{tpu_custom_call.1} parent=11 // pred_region
          %s513 = ssub.s32 32, 32
          %514 = vsyncadd [#allocation9], %s513
          %s516 = sshll.u32 [#allocation10], 4
          %s517 = int_to_ptr.vmem [resolvable:$true] %s516
          %519 = dma.hbm_to_vmem [thread:$0]  %s4, 32, %s517, [#allocation9]
        $region20: #{tpu_custom_call.1} parent=11 // pred_fallthru
          _
        // Predicated region
        $region21: #{tpu_custom_call.1} parent=11 // pred_check
          %p520 = pneg %p182
        $region22: #{tpu_custom_call.1} parent=11 // pred_check_branch
          %522 = sbr.rel (%p520) target = $region24
        $region23: #{tpu_custom_call.1} parent=11 // pred_region
          %s524 = ssub.s32 11136, 11136
          %525 = vsyncadd [#allocation12], %s524
          %s526 = sshll.u32 [#allocation11], 4
          %s527 = int_to_ptr.vmem [resolvable:$true] %s526
          %532 = dma.hbm_to_vmem [thread:$0]  %s5, 11136, %s527, [#allocation12], 64, 64, 4
        $region24: #{tpu_custom_call.1} parent=11 // pred_fallthru
          _
        // Predicated region
        $region25: #{tpu_custom_call.1} parent=11 // pred_check
          %p533 = pneg %p203
        $region26: #{tpu_custom_call.1} parent=11 // pred_check_branch
          %535 = sbr.rel (%p533) target = $region28
        $region27: #{tpu_custom_call.1} parent=11 // pred_region
          %s537 = ssub.s32 16, 16
          %538 = vsyncadd [#allocation12], %s537
          %s540 = sshll.u32 [#allocation13], 4
          %s541 = int_to_ptr.vmem [resolvable:$true] %s540
          %543 = dma.hbm_to_vmem [thread:$0]  %s6, 16, %s541, [#allocation12]
        $region28: #{tpu_custom_call.1} parent=11 // pred_fallthru
          _
        // Predicated region
        $region29: #{tpu_custom_call.1} parent=11 // pred_check
          %p544 = pneg %p224
        $region30: #{tpu_custom_call.1} parent=11 // pred_check_branch
          %546 = sbr.rel (%p544) target = $region32
        $region31: #{tpu_custom_call.1} parent=11 // pred_region
          %s548 = ssub.s32 2304, 2304
          %549 = vsyncadd [#allocation15], %s548
          %s550 = sshll.u32 [#allocation14], 4
          %s551 = int_to_ptr.vmem [resolvable:$true] %s550
          %556 = dma.hbm_to_vmem [thread:$0]  %s7, 2304, %s551, [#allocation15], 64, 64, 4
        $region32: #{tpu_custom_call.1} parent=11 // pred_fallthru
          _
        // Predicated region
        $region33: #{tpu_custom_call.1} parent=11 // pred_check
          %p557 = pneg %p245
        $region34: #{tpu_custom_call.1} parent=11 // pred_check_branch
          %559 = sbr.rel (%p557) target = $region36
        $region35: #{tpu_custom_call.1} parent=11 // pred_region
          %s561 = ssub.s32 16, 16
          %562 = vsyncadd [#allocation15], %s561
          %s564 = sshll.u32 [#allocation16], 4
          %s565 = int_to_ptr.vmem [resolvable:$true] %s564
          %567 = dma.hbm_to_vmem [thread:$0]  %s8, 16, %s565, [#allocation15]
        $region36: #{tpu_custom_call.1} parent=11 // pred_fallthru
          _
        // Predicated region
        $region37: #{tpu_custom_call.1} parent=11 // pred_check
          %p568 = pneg %p266
        $region38: #{tpu_custom_call.1} parent=11 // pred_check_branch
          %570 = sbr.rel (%p568) target = $region40
        $region39: #{tpu_custom_call.1} parent=11 // pred_region
          %s572 = ssub.s32 8192, 8192
          %573 = vsyncadd [#allocation18], %s572
          %s574 = sshll.u32 [#allocation17], 4
          %s575 = int_to_ptr.vmem [resolvable:$true] %s574
          %580 = dma.hbm_to_vmem [thread:$0]  %s9, 8192, %s575, [#allocation18], 128, 128, 8
        $region40: #{tpu_custom_call.1} parent=11 // pred_fallthru
          _
        // Predicated region
        $region41: #{tpu_custom_call.1} parent=11 // pred_check
          %p581 = pneg %p287
        $region42: #{tpu_custom_call.1} parent=11 // pred_check_branch
          %583 = sbr.rel (%p581) target = $region44
        $region43: #{tpu_custom_call.1} parent=11 // pred_region
          %s585 = ssub.s32 32, 32
          %586 = vsyncadd [#allocation18], %s585
          %s588 = sshll.u32 [#allocation19], 4
          %s589 = int_to_ptr.vmem [resolvable:$true] %s588
          %591 = dma.hbm_to_vmem [thread:$0]  %s10, 32, %s589, [#allocation18]
        $region44: #{tpu_custom_call.1} parent=11 // pred_fallthru
          _
        // Predicated region
        $region45: #{tpu_custom_call.1} parent=11 // pred_check
          %p592 = pneg %p308
        $region46: #{tpu_custom_call.1} parent=11 // pred_check_branch
          %594 = sbr.rel (%p592) target = $region48
        $region47: #{tpu_custom_call.1} parent=11 // pred_region
          %s596 = ssub.s32 2048, 2048
          %597 = vsyncadd [#allocation21], %s596
          %s598 = sshll.u32 [#allocation20], 4
          %s599 = int_to_ptr.vmem [resolvable:$true] %s598
          %604 = dma.hbm_to_vmem [thread:$0]  %s11, 2048, %s599, [#allocation21], 64, 64, 4
        $region48: #{tpu_custom_call.1} parent=11 // pred_fallthru
          _
        // Predicated region
        $region49: #{tpu_custom_call.1} parent=11 // pred_check
          %p605 = pneg %p329
        $region50: #{tpu_custom_call.1} parent=11 // pred_check_branch
          %607 = sbr.rel (%p605) target = $region52
        $region51: #{tpu_custom_call.1} parent=11 // pred_region
          %s609 = ssub.s32 16, 16
          %610 = vsyncadd [#allocation21], %s609
          %s612 = sshll.u32 [#allocation22], 4
          %s613 = int_to_ptr.vmem [resolvable:$true] %s612
          %615 = dma.hbm_to_vmem [thread:$0]  %s12, 16, %s613, [#allocation21]
        $region52: #{tpu_custom_call.1} parent=11 // pred_fallthru
          _
        // Predicated region
        $region53: #{tpu_custom_call.1} parent=11 // pred_check
          %p616 = pneg %p350
        $region54: #{tpu_custom_call.1} parent=11 // pred_check_branch
          %618 = sbr.rel (%p616) target = $region56
        $region55: #{tpu_custom_call.1} parent=11 // pred_region
          %s620 = ssub.s32 1024, 1024
          %621 = vsyncadd [#allocation24], %s620
          %s622 = sshll.u32 [#allocation23], 4
          %s623 = int_to_ptr.vmem [resolvable:$true] %s622
          %628 = dma.hbm_to_vmem [thread:$0]  %s13, 1024, %s623, [#allocation24], 64, 64, 4
        $region56: #{tpu_custom_call.1} parent=11 // pred_fallthru
          _
        // Predicated region
        $region57: #{tpu_custom_call.1} parent=11 // pred_check
          %p629 = pneg %p371
        $region58: #{tpu_custom_call.1} parent=11 // pred_check_branch
          %631 = sbr.rel (%p629) target = $region60
        $region59: #{tpu_custom_call.1} parent=11 // pred_region
          %s633 = ssub.s32 16, 16
          %634 = vsyncadd [#allocation24], %s633
          %s636 = sshll.u32 [#allocation25], 4
          %s637 = int_to_ptr.vmem [resolvable:$true] %s636
          %639 = dma.hbm_to_vmem [thread:$0]  %s14, 16, %s637, [#allocation24]
        $region60: #{tpu_custom_call.1} parent=11 // pred_fallthru
          _
        // Predicated region
        $region61: #{tpu_custom_call.1} parent=11 // pred_check
          %p640 = pneg %p392
        $region62: #{tpu_custom_call.1} parent=11 // pred_check_branch
          %642 = sbr.rel (%p640) target = $region64
        $region63: #{tpu_custom_call.1} parent=11 // pred_region
          %s644 = ssub.s32 1024, 1024
          %645 = vsyncadd [#allocation27], %s644
          %s646 = sshll.u32 [#allocation26], 4
          %s647 = int_to_ptr.vmem [resolvable:$true] %s646
          %652 = dma.hbm_to_vmem [thread:$0]  %s15, 1024, %s647, [#allocation27], 64, 64, 4
        $region64: #{tpu_custom_call.1} parent=11 // pred_fallthru
          _
        // Predicated region
        $region65: #{tpu_custom_call.1} parent=11 // pred_check
          %p653 = pneg %p413
        $region66: #{tpu_custom_call.1} parent=11 // pred_check_branch
          %655 = sbr.rel (%p653) target = $region68
        $region67: #{tpu_custom_call.1} parent=11 // pred_region
          %s657 = ssub.s32 16, 16
          %658 = vsyncadd [#allocation27], %s657
          %s660 = sshll.u32 [#allocation28], 4
          %s661 = int_to_ptr.vmem [resolvable:$true] %s660
          %663 = dma.hbm_to_vmem [thread:$0]  %s16, 16, %s661, [#allocation27]
        $region68: #{tpu_custom_call.1} parent=11 // pred_fallthru
          _
        // Predicated region
        $region69: #{tpu_custom_call.1} parent=11 // pred_check
          %p664 = pneg %p434
        $region70: #{tpu_custom_call.1} parent=11 // pred_check_branch
          %666 = sbr.rel (%p664) target = $region72
        $region71: #{tpu_custom_call.1} parent=11 // pred_region
          _
        $region72: #{tpu_custom_call.1} parent=11 // pred_fallthru
          _
        // Predicated region
        $region73: #{tpu_custom_call.1} parent=11 // pred_check
          %p667 = pneg %p455
        $region74: #{tpu_custom_call.1} parent=11 // pred_check_branch
          %669 = sbr.rel (%p667) target = $region76
        $region75: #{tpu_custom_call.1} parent=11 // pred_region
          _
        $region76: #{tpu_custom_call.1} parent=11 // pred_fallthru
          _
      $region12: #{tpu_custom_call.1} parent=5 // pred_fallthru
        _
      %p670 = scmp.lt.s32.totalorder %s41, 2
      // Predicated region
      $region77: #{tpu_custom_call.1} parent=5 // pred_check
        %p671 = pneg %p670
      $region78: #{tpu_custom_call.1} parent=5 // pred_check_branch
        %673 = sbr.rel (%p671) target = $region80
      $region79: #{tpu_custom_call.1} parent=5 // pred_region
        // Predicated region
        $region81: #{tpu_custom_call.1} parent=79 // pred_check
          %p674 = pneg %p61
        $region82: #{tpu_custom_call.1} parent=79 // pred_check_branch
          %676 = sbr.rel (%p674) target = $region84
        $region83: #{tpu_custom_call.1} parent=79 // pred_region
          %s677 = sand.u32 %s51, 1
          %s678 = scalar_lea.sflag [#allocation3], %s677
          %s679 = sand.u32 %s51, 1
          %s680 = smul.addr %s679, 44
          %s681 = scalar_lea.vmem [#allocation2], %s680
          %s683 = ssub.s32 704, 704
          %684 = vsyncadd %s678, %s683
          %s685 = smul.addr %s41, 11
          %s686 = smul.addr %s685, 64
          %s687 = scalar_lea.hbm %s0, %s686
          %s689 = sshll.u32 %s681, 4
          %s690 = int_to_ptr.vmem [resolvable:$true] %s689
          %692 = dma.hbm_to_vmem [thread:$0]  %s687, 704, %s690, %s678
        $region84: #{tpu_custom_call.1} parent=79 // pred_fallthru
          _
        // Predicated region
        $region85: #{tpu_custom_call.1} parent=79 // pred_check
          %p693 = pneg %p87
        $region86: #{tpu_custom_call.1} parent=79 // pred_check_branch
          %695 = sbr.rel (%p693) target = $region88
        $region87: #{tpu_custom_call.1} parent=79 // pred_region
          %s696 = sand.u32 %s41, 1
          %s697 = scalar_lea.sflag [#allocation6], %s696
          %s698 = sand.u32 %s77, 1
          %s699 = smul.addr %s698, 44
          %s700 = scalar_lea.vmem [#allocation5], %s699
          %s702 = ssub.s32 704, 704
          %703 = vsyncadd %s697, %s702
          %s704 = smul.addr %s41, 11
          %s705 = smul.addr %s704, 64
          %s706 = scalar_lea.hbm %s1, %s705
          %s708 = sshll.u32 %s700, 4
          %s709 = int_to_ptr.vmem [resolvable:$true] %s708
          %711 = dma.hbm_to_vmem [thread:$0]  %s706, 704, %s709, %s697
        $region88: #{tpu_custom_call.1} parent=79 // pred_fallthru
          _
        // Predicated region
        $region89: #{tpu_custom_call.1} parent=79 // pred_check
          %p712 = pneg %p113
        $region90: #{tpu_custom_call.1} parent=79 // pred_check_branch
          %714 = sbr.rel (%p712) target = $region92
        $region91: #{tpu_custom_call.1} parent=79 // pred_region
          %s715 = sand.u32 %s41, 1
          %s716 = scalar_lea.sflag [#allocation6], %s715
          %s717 = sand.u32 %s103, 1
          %s718 = smul.addr %s717, 12
          %s719 = scalar_lea.vmem [#allocation7], %s718
          %s721 = ssub.s32 192, 192
          %722 = vsyncadd %s716, %s721
          %s723 = smul.addr %s41, 3
          %s724 = smul.addr %s723, 64
          %s725 = scalar_lea.hbm %s2, %s724
          %s727 = sshll.u32 %s719, 4
          %s728 = int_to_ptr.vmem [resolvable:$true] %s727
          %730 = dma.hbm_to_vmem [thread:$0]  %s725, 192, %s728, %s716
        $region92: #{tpu_custom_call.1} parent=79 // pred_fallthru
          _
      $region80: #{tpu_custom_call.1} parent=5 // pred_fallthru
        _
      %p731 = scmp.le.s32.totalorder 1, %s41
      %p732 = scmp.lt.s32.totalorder %s41, 3
      %p733 = pnand %p731, %p732
      %p734 = pneg %p733
      // Predicated region
      $region93: #{tpu_custom_call.1} parent=5 // pred_check
        _
      $region94: #{tpu_custom_call.1} parent=5 // pred_check_branch
        %736 = sbr.rel (%p733) target = $region96
      $region95: #{tpu_custom_call.1} parent=5 // pred_region
        %s737 = ssub.s32 %s41, 1
        %s738 = sand.u32 %s54, 1
        %s739 = scalar_lea.sflag [#allocation3], %s738
        %s740 = sand.u32 %s54, 1
        %s741 = smul.addr %s740, 44
        %s742 = scalar_lea.vmem [#allocation2], %s741
        // Predicated region
        $region97: #{tpu_custom_call.1} parent=95 // pred_check
          %p743 = pneg %p67
        $region98: #{tpu_custom_call.1} parent=95 // pred_check_branch
          %745 = sbr.rel (%p743) target = $region100
        $region99: #{tpu_custom_call.1} parent=95 // pred_region
          %746 = dma.done %s739, 704
        $region100: #{tpu_custom_call.1} parent=95 // pred_fallthru
          _
        %s747 = sand.u32 %s46, 1
        %s748 = scalar_lea.sflag [#allocation6], %s747
        %s749 = sand.u32 %s80, 1
        %s750 = smul.addr %s749, 44
        %s751 = scalar_lea.vmem [#allocation5], %s750
        // Predicated region
        $region101: #{tpu_custom_call.1} parent=95 // pred_check
          %p752 = pneg %p93
        $region102: #{tpu_custom_call.1} parent=95 // pred_check_branch
          %754 = sbr.rel (%p752) target = $region104
        $region103: #{tpu_custom_call.1} parent=95 // pred_region
          %755 = dma.done %s748, 704
        $region104: #{tpu_custom_call.1} parent=95 // pred_fallthru
          _
        %s756 = sand.u32 %s46, 1
        %s757 = scalar_lea.sflag [#allocation6], %s756
        %s758 = sand.u32 %s106, 1
        %s759 = smul.addr %s758, 12
        %s760 = scalar_lea.vmem [#allocation7], %s759
        // Predicated region
        $region105: #{tpu_custom_call.1} parent=95 // pred_check
          %p761 = pneg %p119
        $region106: #{tpu_custom_call.1} parent=95 // pred_check_branch
          %763 = sbr.rel (%p761) target = $region108
        $region107: #{tpu_custom_call.1} parent=95 // pred_region
          %764 = dma.done %s757, 192
        $region108: #{tpu_custom_call.1} parent=95 // pred_fallthru
          _
        // Predicated region
        $region109: #{tpu_custom_call.1} parent=95 // pred_check
          %p765 = pneg %p140
        $region110: #{tpu_custom_call.1} parent=95 // pred_check_branch
          %767 = sbr.rel (%p765) target = $region112
        $region111: #{tpu_custom_call.1} parent=95 // pred_region
          %768 = dma.done [#allocation9], 22272
        $region112: #{tpu_custom_call.1} parent=95 // pred_fallthru
          _
        // Predicated region
        $region113: #{tpu_custom_call.1} parent=95 // pred_check
          %p769 = pneg %p161
        $region114: #{tpu_custom_call.1} parent=95 // pred_check_branch
          %771 = sbr.rel (%p769) target = $region116
        $region115: #{tpu_custom_call.1} parent=95 // pred_region
          %772 = dma.done [#allocation9], 32
        $region116: #{tpu_custom_call.1} parent=95 // pred_fallthru
          _
        // Predicated region
        $region117: #{tpu_custom_call.1} parent=95 // pred_check
          %p773 = pneg %p182
        $region118: #{tpu_custom_call.1} parent=95 // pred_check_branch
          %775 = sbr.rel (%p773) target = $region120
        $region119: #{tpu_custom_call.1} parent=95 // pred_region
          %776 = dma.done [#allocation12], 11136
        $region120: #{tpu_custom_call.1} parent=95 // pred_fallthru
          _
        // Predicated region
        $region121: #{tpu_custom_call.1} parent=95 // pred_check
          %p777 = pneg %p203
        $region122: #{tpu_custom_call.1} parent=95 // pred_check_branch
          %779 = sbr.rel (%p777) target = $region124
        $region123: #{tpu_custom_call.1} parent=95 // pred_region
          %780 = dma.done [#allocation12], 16
        $region124: #{tpu_custom_call.1} parent=95 // pred_fallthru
          _
        // Predicated region
        $region125: #{tpu_custom_call.1} parent=95 // pred_check
          %p781 = pneg %p224
        $region126: #{tpu_custom_call.1} parent=95 // pred_check_branch
          %783 = sbr.rel (%p781) target = $region128
        $region127: #{tpu_custom_call.1} parent=95 // pred_region
          %784 = dma.done [#allocation15], 2304
        $region128: #{tpu_custom_call.1} parent=95 // pred_fallthru
          _
        // Predicated region
        $region129: #{tpu_custom_call.1} parent=95 // pred_check
          %p785 = pneg %p245
        $region130: #{tpu_custom_call.1} parent=95 // pred_check_branch
          %787 = sbr.rel (%p785) target = $region132
        $region131: #{tpu_custom_call.1} parent=95 // pred_region
          %788 = dma.done [#allocation15], 16
        $region132: #{tpu_custom_call.1} parent=95 // pred_fallthru
          _
        // Predicated region
        $region133: #{tpu_custom_call.1} parent=95 // pred_check
          %p789 = pneg %p266
        $region134: #{tpu_custom_call.1} parent=95 // pred_check_branch
          %791 = sbr.rel (%p789) target = $region136
        $region135: #{tpu_custom_call.1} parent=95 // pred_region
          %792 = dma.done [#allocation18], 8192
        $region136: #{tpu_custom_call.1} parent=95 // pred_fallthru
          _
        // Predicated region
        $region137: #{tpu_custom_call.1} parent=95 // pred_check
          %p793 = pneg %p287
        $region138: #{tpu_custom_call.1} parent=95 // pred_check_branch
          %795 = sbr.rel (%p793) target = $region140
        $region139: #{tpu_custom_call.1} parent=95 // pred_region
          %796 = dma.done [#allocation18], 32
        $region140: #{tpu_custom_call.1} parent=95 // pred_fallthru
          _
        // Predicated region
        $region141: #{tpu_custom_call.1} parent=95 // pred_check
          %p797 = pneg %p308
        $region142: #{tpu_custom_call.1} parent=95 // pred_check_branch
          %799 = sbr.rel (%p797) target = $region144
        $region143: #{tpu_custom_call.1} parent=95 // pred_region
          %800 = dma.done [#allocation21], 2048
        $region144: #{tpu_custom_call.1} parent=95 // pred_fallthru
          _
        // Predicated region
        $region145: #{tpu_custom_call.1} parent=95 // pred_check
          %p801 = pneg %p329
        $region146: #{tpu_custom_call.1} parent=95 // pred_check_branch
          %803 = sbr.rel (%p801) target = $region148
        $region147: #{tpu_custom_call.1} parent=95 // pred_region
          %804 = dma.done [#allocation21], 16
        $region148: #{tpu_custom_call.1} parent=95 // pred_fallthru
          _
        // Predicated region
        $region149: #{tpu_custom_call.1} parent=95 // pred_check
          %p805 = pneg %p350
        $region150: #{tpu_custom_call.1} parent=95 // pred_check_branch
          %807 = sbr.rel (%p805) target = $region152
        $region151: #{tpu_custom_call.1} parent=95 // pred_region
          %808 = dma.done [#allocation24], 1024
        $region152: #{tpu_custom_call.1} parent=95 // pred_fallthru
          _
        // Predicated region
        $region153: #{tpu_custom_call.1} parent=95 // pred_check
          %p809 = pneg %p371
        $region154: #{tpu_custom_call.1} parent=95 // pred_check_branch
          %811 = sbr.rel (%p809) target = $region156
        $region155: #{tpu_custom_call.1} parent=95 // pred_region
          %812 = dma.done [#allocation24], 16
        $region156: #{tpu_custom_call.1} parent=95 // pred_fallthru
          _
        // Predicated region
        $region157: #{tpu_custom_call.1} parent=95 // pred_check
          %p813 = pneg %p392
        $region158: #{tpu_custom_call.1} parent=95 // pred_check_branch
          %815 = sbr.rel (%p813) target = $region160
        $region159: #{tpu_custom_call.1} parent=95 // pred_region
          %816 = dma.done [#allocation27], 1024
        $region160: #{tpu_custom_call.1} parent=95 // pred_fallthru
          _
        // Predicated region
        $region161: #{tpu_custom_call.1} parent=95 // pred_check
          %p817 = pneg %p413
        $region162: #{tpu_custom_call.1} parent=95 // pred_check_branch
          %819 = sbr.rel (%p817) target = $region164
        $region163: #{tpu_custom_call.1} parent=95 // pred_region
          %820 = dma.done [#allocation27], 16
        $region164: #{tpu_custom_call.1} parent=95 // pred_fallthru
          _
        %s821 = sand.u32 %s54, 1
        %s822 = scalar_lea.sflag [#allocation3], %s821
        %s823 = sand.u32 %s54, 1
        %s824 = smul.addr %s823, 44
        %s825 = scalar_lea.vmem [#allocation2], %s824
        %p826 = pneg %p67
        %p827 = pneg %p64
        %s828 = sand.u32 %s46, 1
        %s829 = scalar_lea.sflag [#allocation6], %s828
        %s830 = sand.u32 %s80, 1
        %s831 = smul.addr %s830, 44
        %s832 = scalar_lea.vmem [#allocation5], %s831
        %p833 = pneg %p93
        %p834 = pneg %p90
        %s835 = sand.u32 %s46, 1
        %s836 = scalar_lea.sflag [#allocation6], %s835
        %s837 = sand.u32 %s106, 1
        %s838 = smul.addr %s837, 12
        %s839 = scalar_lea.vmem [#allocation7], %s838
        %p840 = pneg %p119
        %p841 = pneg %p116
        %p842 = pneg %p140
        %p843 = pneg %p137
        %p844 = pneg %p161
        %p845 = pneg %p158
        %p846 = pneg %p182
        %p847 = pneg %p179
        %p848 = pneg %p203
        %p849 = pneg %p200
        %p850 = pneg %p224
        %p851 = pneg %p221
        %p852 = pneg %p245
        %p853 = pneg %p242
        %p854 = pneg %p266
        %p855 = pneg %p263
        %p856 = pneg %p287
        %p857 = pneg %p284
        %p858 = pneg %p308
        %p859 = pneg %p305
        %p860 = pneg %p329
        %p861 = pneg %p326
        %p862 = pneg %p350
        %p863 = pneg %p347
        %p864 = pneg %p371
        %p865 = pneg %p368
        %p866 = pneg %p392
        %p867 = pneg %p389
        %p868 = pneg %p413
        %p869 = pneg %p410
        %p870 = pneg %p434
        %p871 = pneg %p431
        %p872 = pneg %p455
        %p873 = pneg %p452
        %p874 = pneg %p481
        %p875 = pneg %p478
        %s876 = sand.u32 %s468, 1
        %s877 = scalar_lea.sflag [#allocation4], %s876
        %s878 = sand.u32 %s468, 1
        %s879 = smul.addr %s878, 8
        %s880 = scalar_lea.vmem [#allocation29], %s879
        %v882 = vld [vmem:[%s742] sm:$0xff]
        %v883 = vld [vmem:[%s742 + $0x8] sm:$0xff]
        %v884 = vld [vmem:[%s742 + $0x10] sm:$0xff]
        %v885 = vld [vmem:[%s742 + $0x18] sm:$0xff]
        %v886 = vld [vmem:[%s742 + $0x20] sm:$0xff]
        %v887 = vld [vmem:[%s742 + $0x28] sm:$0xf]
        %v888 = vld [vmem:[#allocation8] sm:$0xff]
        %v889 = vld [vmem:[#allocation8 + $0x8] sm:$0xff]
        %v890 = vld [vmem:[#allocation8 + $0x10] sm:$0xff]
        %v891 = vld [vmem:[#allocation8 + $0x18] sm:$0xff]
        %v892 = vld [vmem:[#allocation8 + $0x20] sm:$0xff]
        %v893 = vld [vmem:[#allocation8 + $0x28] sm:$0xff]
        %v894 = vld [vmem:[#allocation8 + $0x30] sm:$0xff]
        %v895 = vld [vmem:[#allocation8 + $0x38] sm:$0xff]
        %v896 = vld [vmem:[#allocation8 + $0x40] sm:$0xff]
        %v897 = vld [vmem:[#allocation8 + $0x48] sm:$0xff]
        %v898 = vld [vmem:[#allocation8 + $0x50] sm:$0xff]
        %v899 = vld [vmem:[#allocation8 + $0x58] sm:$0xff]
        %v900 = vld [vmem:[#allocation8 + $0x60] sm:$0xff]
        %v901 = vld [vmem:[#allocation8 + $0x68] sm:$0xff]
        %v902 = vld [vmem:[#allocation8 + $0x70] sm:$0xff]
        %v903 = vld [vmem:[#allocation8 + $0x78] sm:$0xff]
        %v904 = vld [vmem:[#allocation8 + $0x80] sm:$0xff]
        %v905 = vld [vmem:[#allocation8 + $0x88] sm:$0xff]
        %v906 = vld [vmem:[#allocation8 + $0x90] sm:$0xff]
        %v907 = vld [vmem:[#allocation8 + $0x98] sm:$0xff]
        %v908 = vld [vmem:[#allocation8 + $0xa0] sm:$0xff]
        %v909 = vld [vmem:[#allocation8 + $0xa8] sm:$0xff]
        %v910 = vld [vmem:[#allocation8 + $0xb0] sm:$0xff]
        %v911 = vld [vmem:[#allocation8 + $0xb8] sm:$0xff]
        %v912 = vld [vmem:[#allocation8 + $0xc0] sm:$0xff]
        %v913 = vld [vmem:[#allocation8 + $0xc8] sm:$0xff]
        %v914 = vld [vmem:[#allocation8 + $0xd0] sm:$0xff]
        %v915 = vld [vmem:[#allocation8 + $0xd8] sm:$0xff]
        %v916 = vld [vmem:[#allocation8 + $0xe0] sm:$0xff]
        %v917 = vld [vmem:[#allocation8 + $0xe8] sm:$0xff]
        %v918 = vld [vmem:[#allocation8 + $0xf0] sm:$0xff]
        %v919 = vld [vmem:[#allocation8 + $0xf8] sm:$0xff]
        %v920 = vld [vmem:[#allocation8 + $0x100] sm:$0xff]
        %v921 = vld [vmem:[#allocation8 + $0x108] sm:$0xff]
        %v922 = vld [vmem:[#allocation8 + $0x110] sm:$0xff]
        %v923 = vld [vmem:[#allocation8 + $0x118] sm:$0xff]
        %v924 = vld [vmem:[#allocation8 + $0x120] sm:$0xff]
        %v925 = vld [vmem:[#allocation8 + $0x128] sm:$0xff]
        %v926 = vld [vmem:[#allocation8 + $0x130] sm:$0xff]
        %v927 = vld [vmem:[#allocation8 + $0x138] sm:$0xff]
        %v928 = vld [vmem:[#allocation8 + $0x140] sm:$0xff]
        %v929 = vld [vmem:[#allocation8 + $0x148] sm:$0xff]
        %v930 = vld [vmem:[#allocation8 + $0x150] sm:$0xff]
        %v931 = vld [vmem:[#allocation8 + $0x158] sm:$0xff]
        %v932 = vld [vmem:[#allocation8 + $0x160] sm:$0xff]
        %v933 = vld [vmem:[#allocation8 + $0x168] sm:$0xff]
        %v934 = vld [vmem:[#allocation8 + $0x170] sm:$0xff]
        %v935 = vld [vmem:[#allocation8 + $0x178] sm:$0xff]
        %v936 = vld [vmem:[#allocation8 + $0x180] sm:$0xff]
        %v937 = vld [vmem:[#allocation8 + $0x188] sm:$0xff]
        %v938 = vld [vmem:[#allocation8 + $0x190] sm:$0xff]
        %v939 = vld [vmem:[#allocation8 + $0x198] sm:$0xff]
        %v940 = vld [vmem:[#allocation8 + $0x1a0] sm:$0xff]
        %v941 = vld [vmem:[#allocation8 + $0x1a8] sm:$0xff]
        %v942 = vld [vmem:[#allocation8 + $0x1b0] sm:$0xff]
        %v943 = vld [vmem:[#allocation8 + $0x1b8] sm:$0xff]
        %v944 = vld [vmem:[#allocation8 + $0x1c0] sm:$0xff]
        %v945 = vld [vmem:[#allocation8 + $0x1c8] sm:$0xff]
        %v946 = vld [vmem:[#allocation8 + $0x1d0] sm:$0xff]
        %v947 = vld [vmem:[#allocation8 + $0x1d8] sm:$0xff]
        %v948 = vld [vmem:[#allocation8 + $0x1e0] sm:$0xff]
        %v949 = vld [vmem:[#allocation8 + $0x1e8] sm:$0xff]
        %v950 = vld [vmem:[#allocation8 + $0x1f0] sm:$0xff]
        %v951 = vld [vmem:[#allocation8 + $0x1f8] sm:$0xff]
        %v952 = vld [vmem:[#allocation8 + $0x200] sm:$0xff]
        %v953 = vld [vmem:[#allocation8 + $0x208] sm:$0xff]
        %v954 = vld [vmem:[#allocation8 + $0x210] sm:$0xff]
        %v955 = vld [vmem:[#allocation8 + $0x218] sm:$0xff]
        %v956 = vld [vmem:[#allocation8 + $0x220] sm:$0xff]
        %v957 = vld [vmem:[#allocation8 + $0x228] sm:$0xff]
        %v958 = vld [vmem:[#allocation8 + $0x230] sm:$0xff]
        %v959 = vld [vmem:[#allocation8 + $0x238] sm:$0xff]
        %v960 = vld [vmem:[#allocation8 + $0x240] sm:$0xff]
        %v961 = vld [vmem:[#allocation8 + $0x248] sm:$0xff]
        %v962 = vld [vmem:[#allocation8 + $0x250] sm:$0xff]
        %v963 = vld [vmem:[#allocation8 + $0x258] sm:$0xff]
        %v964 = vld [vmem:[#allocation8 + $0x260] sm:$0xff]
        %v965 = vld [vmem:[#allocation8 + $0x268] sm:$0xff]
        %v966 = vld [vmem:[#allocation8 + $0x270] sm:$0xff]
        %v967 = vld [vmem:[#allocation8 + $0x278] sm:$0xff]
        %v968 = vld [vmem:[#allocation8 + $0x280] sm:$0xff]
        %v969 = vld [vmem:[#allocation8 + $0x288] sm:$0xff]
        %v970 = vld [vmem:[#allocation8 + $0x290] sm:$0xff]
        %v971 = vld [vmem:[#allocation8 + $0x298] sm:$0xff]
        %v972 = vld [vmem:[#allocation8 + $0x2a0] sm:$0xff]
        %v973 = vld [vmem:[#allocation8 + $0x2a8] sm:$0xff]
        %v974 = vld [vmem:[#allocation8 + $0x2b0] sm:$0xff]
        %v975 = vld [vmem:[#allocation8 + $0x2b8] sm:$0xff]
        %v976 = vld [vmem:[#allocation8 + $0x2c0] sm:$0xff]
        %v977 = vld [vmem:[#allocation8 + $0x2c8] sm:$0xff]
        %v978 = vld [vmem:[#allocation8 + $0x2d0] sm:$0xff]
        %v979 = vld [vmem:[#allocation8 + $0x2d8] sm:$0xff]
        %v980 = vld [vmem:[#allocation8 + $0x2e0] sm:$0xff]
        %v981 = vld [vmem:[#allocation8 + $0x2e8] sm:$0xff]
        %v982 = vld [vmem:[#allocation8 + $0x2f0] sm:$0xff]
        %v983 = vld [vmem:[#allocation8 + $0x2f8] sm:$0xff]
        %v984 = vld [vmem:[#allocation8 + $0x300] sm:$0xff]
        %v985 = vld [vmem:[#allocation8 + $0x308] sm:$0xff]
        %v986 = vld [vmem:[#allocation8 + $0x310] sm:$0xff]
        %v987 = vld [vmem:[#allocation8 + $0x318] sm:$0xff]
        %v988 = vld [vmem:[#allocation8 + $0x320] sm:$0xff]
        %v989 = vld [vmem:[#allocation8 + $0x328] sm:$0xff]
        %v990 = vld [vmem:[#allocation8 + $0x330] sm:$0xff]
        %v991 = vld [vmem:[#allocation8 + $0x338] sm:$0xff]
        %v992 = vld [vmem:[#allocation8 + $0x340] sm:$0xff]
        %v993 = vld [vmem:[#allocation8 + $0x348] sm:$0xff]
        %v994 = vld [vmem:[#allocation8 + $0x350] sm:$0xff]
        %v995 = vld [vmem:[#allocation8 + $0x358] sm:$0xff]
        %v996 = vld [vmem:[#allocation8 + $0x360] sm:$0xff]
        %v997 = vld [vmem:[#allocation8 + $0x368] sm:$0xff]
        %v998 = vld [vmem:[#allocation8 + $0x370] sm:$0xff]
        %v999 = vld [vmem:[#allocation8 + $0x378] sm:$0xff]
        %v1000 = vld [vmem:[#allocation8 + $0x380] sm:$0xff]
        %v1001 = vld [vmem:[#allocation8 + $0x388] sm:$0xff]
        %v1002 = vld [vmem:[#allocation8 + $0x390] sm:$0xff]
        %v1003 = vld [vmem:[#allocation8 + $0x398] sm:$0xff]
        %v1004 = vld [vmem:[#allocation8 + $0x3a0] sm:$0xff]
        %v1005 = vld [vmem:[#allocation8 + $0x3a8] sm:$0xff]
        %v1006 = vld [vmem:[#allocation8 + $0x3b0] sm:$0xff]
        %v1007 = vld [vmem:[#allocation8 + $0x3b8] sm:$0xff]
        %v1008 = vld [vmem:[#allocation8 + $0x3c0] sm:$0xff]
        %v1009 = vld [vmem:[#allocation8 + $0x3c8] sm:$0xff]
        %v1010 = vld [vmem:[#allocation8 + $0x3d0] sm:$0xff]
        %v1011 = vld [vmem:[#allocation8 + $0x3d8] sm:$0xff]
        %v1012 = vld [vmem:[#allocation8 + $0x3e0] sm:$0xff]
        %v1013 = vld [vmem:[#allocation8 + $0x3e8] sm:$0xff]
        %v1014 = vld [vmem:[#allocation8 + $0x3f0] sm:$0xff]
        %v1015 = vld [vmem:[#allocation8 + $0x3f8] sm:$0xff]
        %v1016 = vld [vmem:[#allocation8 + $0x400] sm:$0xff]
        %v1017 = vld [vmem:[#allocation8 + $0x408] sm:$0xff]
        %v1018 = vld [vmem:[#allocation8 + $0x410] sm:$0xff]
        %v1019 = vld [vmem:[#allocation8 + $0x418] sm:$0xff]
        %v1020 = vld [vmem:[#allocation8 + $0x420] sm:$0xff]
        %v1021 = vld [vmem:[#allocation8 + $0x428] sm:$0xff]
        %v1022 = vld [vmem:[#allocation8 + $0x430] sm:$0xff]
        %v1023 = vld [vmem:[#allocation8 + $0x438] sm:$0xff]
        %v1024 = vld [vmem:[#allocation8 + $0x440] sm:$0xff]
        %v1025 = vld [vmem:[#allocation8 + $0x448] sm:$0xff]
        %v1026 = vld [vmem:[#allocation8 + $0x450] sm:$0xff]
        %v1027 = vld [vmem:[#allocation8 + $0x458] sm:$0xff]
        %v1028 = vld [vmem:[#allocation8 + $0x460] sm:$0xff]
        %v1029 = vld [vmem:[#allocation8 + $0x468] sm:$0xff]
        %v1030 = vld [vmem:[#allocation8 + $0x470] sm:$0xff]
        %v1031 = vld [vmem:[#allocation8 + $0x478] sm:$0xff]
        %v1032 = vld [vmem:[#allocation8 + $0x480] sm:$0xff]
        %v1033 = vld [vmem:[#allocation8 + $0x488] sm:$0xff]
        %v1034 = vld [vmem:[#allocation8 + $0x490] sm:$0xff]
        %v1035 = vld [vmem:[#allocation8 + $0x498] sm:$0xff]
        %v1036 = vld [vmem:[#allocation8 + $0x4a0] sm:$0xff]
        %v1037 = vld [vmem:[#allocation8 + $0x4a8] sm:$0xff]
        %v1038 = vld [vmem:[#allocation8 + $0x4b0] sm:$0xff]
        %v1039 = vld [vmem:[#allocation8 + $0x4b8] sm:$0xff]
        %v1040 = vld [vmem:[#allocation8 + $0x4c0] sm:$0xff]
        %v1041 = vld [vmem:[#allocation8 + $0x4c8] sm:$0xff]
        %v1042 = vld [vmem:[#allocation8 + $0x4d0] sm:$0xff]
        %v1043 = vld [vmem:[#allocation8 + $0x4d8] sm:$0xff]
        %v1044 = vld [vmem:[#allocation8 + $0x4e0] sm:$0xff]
        %v1045 = vld [vmem:[#allocation8 + $0x4e8] sm:$0xff]
        %v1046 = vld [vmem:[#allocation8 + $0x4f0] sm:$0xff]
        %v1047 = vld [vmem:[#allocation8 + $0x4f8] sm:$0xff]
        %v1048 = vld [vmem:[#allocation8 + $0x500] sm:$0xff]
        %v1049 = vld [vmem:[#allocation8 + $0x508] sm:$0xff]
        %v1050 = vld [vmem:[#allocation8 + $0x510] sm:$0xff]
        %v1051 = vld [vmem:[#allocation8 + $0x518] sm:$0xff]
        %v1052 = vld [vmem:[#allocation8 + $0x520] sm:$0xff]
        %v1053 = vld [vmem:[#allocation8 + $0x528] sm:$0xff]
        %v1054 = vld [vmem:[#allocation8 + $0x530] sm:$0xff]
        %v1055 = vld [vmem:[#allocation8 + $0x538] sm:$0xff]
        %v1056 = vld [vmem:[#allocation8 + $0x540] sm:$0xff]
        %v1057 = vld [vmem:[#allocation8 + $0x548] sm:$0xff]
        %v1058 = vld [vmem:[#allocation8 + $0x550] sm:$0xff]
        %v1059 = vld [vmem:[#allocation8 + $0x558] sm:$0xff]
        %v1060 = vld [vmem:[#allocation8 + $0x560] sm:$0xff]
        %v1061 = vld [vmem:[#allocation8 + $0x568] sm:$0xff]
        %v1062 = vld [vmem:[#allocation10] sm:$0x3]
        %v1064 = vlaneseq
        %v1065 = vshrl.u32 %v1064, 7
        %v1066 = vsub.s32 0, %v1065
        %v1067 = vrot.slane %v1062, %v1066
        %v1068 = vlaneseq
        %v1069 = vshrl.u32 %v1068, 7
        %v1070 = vsub.s32 1, %v1069
        %v1071 = vrot.slane %v1062, %v1070
        %v1080 = vunpack.c.l.b16 %v882
        %v1081 = vunpack.c.h.b16 %v882
        %v1082 = vunpack.c.l.b16 %v883
        %v1083 = vunpack.c.h.b16 %v883
        %v1084 = vunpack.c.l.b16 %v884
        %v1085 = vunpack.c.h.b16 %v884
        %v1086 = vunpack.c.l.b16 %v885
        %v1087 = vunpack.c.h.b16 %v885
        %v1088 = vunpack.c.l.b16 %v886
        %v1089 = vunpack.c.h.b16 %v886
        %v1090 = vunpack.c.l.b16 %v887
        %v1091 = vpack.c.b16 %v1080, %v1080
        %v1092 = vpack.c.b16 %v1081, %v1081
        %v1093 = vpack.c.b16 %v1082, %v1082
        %v1094 = vpack.c.b16 %v1083, %v1083
        %v1095 = vpack.c.b16 %v1084, %v1084
        %v1096 = vpack.c.b16 %v1085, %v1085
        %v1097 = vpack.c.b16 %v1086, %v1086
        %v1098 = vpack.c.b16 %v1087, %v1087
        %v1099 = vpack.c.b16 %v1088, %v1088
        %v1100 = vpack.c.b16 %v1089, %v1089
        %v1101 = vpack.c.b16 %v1090, %v1090
        %v1286 = vunpack.c.l.b16 %v888
        %v1287 = vunpack.c.h.b16 %v888
        %v1288 = vunpack.c.l.b16 %v889
        %v1289 = vunpack.c.h.b16 %v889
        %v1290 = vunpack.c.l.b16 %v890
        %v1291 = vunpack.c.h.b16 %v890
        %v1292 = vunpack.c.l.b16 %v891
        %v1293 = vunpack.c.h.b16 %v891
        %v1294 = vunpack.c.l.b16 %v892
        %v1295 = vunpack.c.h.b16 %v892
        %v1296 = vunpack.c.l.b16 %v893
        %v1297 = vunpack.c.h.b16 %v893
        %v1298 = vunpack.c.l.b16 %v894
        %v1299 = vunpack.c.h.b16 %v894
        %v1300 = vunpack.c.l.b16 %v895
        %v1301 = vunpack.c.h.b16 %v895
        %v1302 = vunpack.c.l.b16 %v896
        %v1303 = vunpack.c.h.b16 %v896
        %v1304 = vunpack.c.l.b16 %v897
        %v1305 = vunpack.c.h.b16 %v897
        %v1306 = vunpack.c.l.b16 %v898
        %v1307 = vunpack.c.h.b16 %v898
        %v1308 = vunpack.c.l.b16 %v899
        %v1309 = vunpack.c.h.b16 %v899
        %v1310 = vunpack.c.l.b16 %v900
        %v1311 = vunpack.c.h.b16 %v900
        %v1312 = vunpack.c.l.b16 %v901
        %v1313 = vunpack.c.h.b16 %v901
        %v1314 = vunpack.c.l.b16 %v902
        %v1315 = vunpack.c.h.b16 %v902
        %v1316 = vunpack.c.l.b16 %v903
        %v1317 = vunpack.c.h.b16 %v903
        %v1318 = vunpack.c.l.b16 %v904
        %v1319 = vunpack.c.h.b16 %v904
        %v1320 = vunpack.c.l.b16 %v905
        %v1321 = vunpack.c.h.b16 %v905
        %v1322 = vunpack.c.l.b16 %v906
        %v1323 = vunpack.c.h.b16 %v906
        %v1324 = vunpack.c.l.b16 %v907
        %v1325 = vunpack.c.h.b16 %v907
        %v1326 = vunpack.c.l.b16 %v908
        %v1327 = vunpack.c.h.b16 %v908
        %v1328 = vunpack.c.l.b16 %v909
        %v1329 = vunpack.c.h.b16 %v909
        %v1330 = vunpack.c.l.b16 %v910
        %v1331 = vunpack.c.h.b16 %v910
        %v1332 = vunpack.c.l.b16 %v911
        %v1333 = vunpack.c.h.b16 %v911
        %v1334 = vunpack.c.l.b16 %v912
        %v1335 = vunpack.c.h.b16 %v912
        %v1336 = vunpack.c.l.b16 %v913
        %v1337 = vunpack.c.h.b16 %v913
        %v1338 = vunpack.c.l.b16 %v914
        %v1339 = vunpack.c.h.b16 %v914
        %v1340 = vunpack.c.l.b16 %v915
        %v1341 = vunpack.c.h.b16 %v915
        %v1342 = vunpack.c.l.b16 %v916
        %v1343 = vunpack.c.h.b16 %v916
        %v1344 = vunpack.c.l.b16 %v917
        %v1345 = vunpack.c.h.b16 %v917
        %v1346 = vunpack.c.l.b16 %v918
        %v1347 = vunpack.c.h.b16 %v918
        %v1348 = vunpack.c.l.b16 %v919
        %v1349 = vunpack.c.h.b16 %v919
        %v1350 = vunpack.c.l.b16 %v920
        %v1351 = vunpack.c.h.b16 %v920
        %v1352 = vunpack.c.l.b16 %v921
        %v1353 = vunpack.c.h.b16 %v921
        %v1354 = vunpack.c.l.b16 %v922
        %v1355 = vunpack.c.h.b16 %v922
        %v1356 = vunpack.c.l.b16 %v923
        %v1357 = vunpack.c.h.b16 %v923
        %v1358 = vunpack.c.l.b16 %v924
        %v1359 = vunpack.c.h.b16 %v924
        %v1360 = vunpack.c.l.b16 %v925
        %v1361 = vunpack.c.h.b16 %v925
        %v1362 = vunpack.c.l.b16 %v926
        %v1363 = vunpack.c.h.b16 %v926
        %v1364 = vunpack.c.l.b16 %v927
        %v1365 = vunpack.c.h.b16 %v927
        %v1366 = vunpack.c.l.b16 %v928
        %v1367 = vunpack.c.h.b16 %v928
        %v1368 = vunpack.c.l.b16 %v929
        %v1369 = vunpack.c.h.b16 %v929
        %v1370 = vunpack.c.l.b16 %v930
        %v1371 = vunpack.c.h.b16 %v930
        %v1372 = vunpack.c.l.b16 %v931
        %v1373 = vunpack.c.h.b16 %v931
        %v1374 = vunpack.c.l.b16 %v932
        %v1375 = vunpack.c.h.b16 %v932
        %v1376 = vunpack.c.l.b16 %v933
        %v1377 = vunpack.c.h.b16 %v933
        %v1378 = vunpack.c.l.b16 %v934
        %v1379 = vunpack.c.h.b16 %v934
        %v1380 = vunpack.c.l.b16 %v935
        %v1381 = vunpack.c.h.b16 %v935
        %v1382 = vunpack.c.l.b16 %v936
        %v1383 = vunpack.c.h.b16 %v936
        %v1384 = vunpack.c.l.b16 %v937
        %v1385 = vunpack.c.h.b16 %v937
        %v1386 = vunpack.c.l.b16 %v938
        %v1387 = vunpack.c.h.b16 %v938
        %v1388 = vunpack.c.l.b16 %v939
        %v1389 = vunpack.c.h.b16 %v939
        %v1390 = vunpack.c.l.b16 %v940
        %v1391 = vunpack.c.h.b16 %v940
        %v1392 = vunpack.c.l.b16 %v941
        %v1393 = vunpack.c.h.b16 %v941
        %v1394 = vunpack.c.l.b16 %v942
        %v1395 = vunpack.c.h.b16 %v942
        %v1396 = vunpack.c.l.b16 %v943
        %v1397 = vunpack.c.h.b16 %v943
        %v1398 = vunpack.c.l.b16 %v944
        %v1399 = vunpack.c.h.b16 %v944
        %v1400 = vunpack.c.l.b16 %v945
        %v1401 = vunpack.c.h.b16 %v945
        %v1402 = vunpack.c.l.b16 %v946
        %v1403 = vunpack.c.h.b16 %v946
        %v1404 = vunpack.c.l.b16 %v947
        %v1405 = vunpack.c.h.b16 %v947
        %v1406 = vunpack.c.l.b16 %v948
        %v1407 = vunpack.c.h.b16 %v948
        %v1408 = vunpack.c.l.b16 %v949
        %v1409 = vunpack.c.h.b16 %v949
        %v1410 = vunpack.c.l.b16 %v950
        %v1411 = vunpack.c.h.b16 %v950
        %v1412 = vunpack.c.l.b16 %v951
        %v1413 = vunpack.c.h.b16 %v951
        %v1414 = vunpack.c.l.b16 %v952
        %v1415 = vunpack.c.h.b16 %v952
        %v1416 = vunpack.c.l.b16 %v953
        %v1417 = vunpack.c.h.b16 %v953
        %v1418 = vunpack.c.l.b16 %v954
        %v1419 = vunpack.c.h.b16 %v954
        %v1420 = vunpack.c.l.b16 %v955
        %v1421 = vunpack.c.h.b16 %v955
        %v1422 = vunpack.c.l.b16 %v956
        %v1423 = vunpack.c.h.b16 %v956
        %v1424 = vunpack.c.l.b16 %v957
        %v1425 = vunpack.c.h.b16 %v957
        %v1426 = vunpack.c.l.b16 %v958
        %v1427 = vunpack.c.h.b16 %v958
        %v1428 = vunpack.c.l.b16 %v959
        %v1429 = vunpack.c.h.b16 %v959
        %v1430 = vunpack.c.l.b16 %v960
        %v1431 = vunpack.c.h.b16 %v960
        %v1432 = vunpack.c.l.b16 %v961
        %v1433 = vunpack.c.h.b16 %v961
        %v1434 = vunpack.c.l.b16 %v962
        %v1435 = vunpack.c.h.b16 %v962
        %v1436 = vunpack.c.l.b16 %v963
        %v1437 = vunpack.c.h.b16 %v963
        %v1438 = vunpack.c.l.b16 %v964
        %v1439 = vunpack.c.h.b16 %v964
        %v1440 = vunpack.c.l.b16 %v965
        %v1441 = vunpack.c.h.b16 %v965
        %v1442 = vunpack.c.l.b16 %v966
        %v1443 = vunpack.c.h.b16 %v966
        %v1444 = vunpack.c.l.b16 %v967
        %v1445 = vunpack.c.h.b16 %v967
        %v1446 = vunpack.c.l.b16 %v968
        %v1447 = vunpack.c.h.b16 %v968
        %v1448 = vunpack.c.l.b16 %v969
        %v1449 = vunpack.c.h.b16 %v969
        %v1450 = vunpack.c.l.b16 %v970
        %v1451 = vunpack.c.h.b16 %v970
        %v1452 = vunpack.c.l.b16 %v971
        %v1453 = vunpack.c.h.b16 %v971
        %v1454 = vunpack.c.l.b16 %v972
        %v1455 = vunpack.c.h.b16 %v972
        %v1456 = vunpack.c.l.b16 %v973
        %v1457 = vunpack.c.h.b16 %v973
        %v1458 = vunpack.c.l.b16 %v974
        %v1459 = vunpack.c.h.b16 %v974
        %v1460 = vunpack.c.l.b16 %v975
        %v1461 = vunpack.c.h.b16 %v975
        %v1462 = vunpack.c.l.b16 %v976
        %v1463 = vunpack.c.h.b16 %v976
        %v1464 = vunpack.c.l.b16 %v977
        %v1465 = vunpack.c.h.b16 %v977
        %v1466 = vunpack.c.l.b16 %v978
        %v1467 = vunpack.c.h.b16 %v978
        %v1468 = vunpack.c.l.b16 %v979
        %v1469 = vunpack.c.h.b16 %v979
        %v1470 = vunpack.c.l.b16 %v980
        %v1471 = vunpack.c.h.b16 %v980
        %v1472 = vunpack.c.l.b16 %v981
        %v1473 = vunpack.c.h.b16 %v981
        %v1474 = vunpack.c.l.b16 %v982
        %v1475 = vunpack.c.h.b16 %v982
        %v1476 = vunpack.c.l.b16 %v983
        %v1477 = vunpack.c.h.b16 %v983
        %v1478 = vunpack.c.l.b16 %v984
        %v1479 = vunpack.c.h.b16 %v984
        %v1480 = vunpack.c.l.b16 %v985
        %v1481 = vunpack.c.h.b16 %v985
        %v1482 = vunpack.c.l.b16 %v986
        %v1483 = vunpack.c.h.b16 %v986
        %v1484 = vunpack.c.l.b16 %v987
        %v1485 = vunpack.c.h.b16 %v987
        %v1486 = vunpack.c.l.b16 %v988
        %v1487 = vunpack.c.h.b16 %v988
        %v1488 = vunpack.c.l.b16 %v989
        %v1489 = vunpack.c.h.b16 %v989
        %v1490 = vunpack.c.l.b16 %v990
        %v1491 = vunpack.c.h.b16 %v990
        %v1492 = vunpack.c.l.b16 %v991
        %v1493 = vunpack.c.h.b16 %v991
        %v1494 = vunpack.c.l.b16 %v992
        %v1495 = vunpack.c.h.b16 %v992
        %v1496 = vunpack.c.l.b16 %v993
        %v1497 = vunpack.c.h.b16 %v993
        %v1498 = vunpack.c.l.b16 %v994
        %v1499 = vunpack.c.h.b16 %v994
        %v1500 = vunpack.c.l.b16 %v995
        %v1501 = vunpack.c.h.b16 %v995
        %v1502 = vunpack.c.l.b16 %v996
        %v1503 = vunpack.c.h.b16 %v996
        %v1504 = vunpack.c.l.b16 %v997
        %v1505 = vunpack.c.h.b16 %v997
        %v1506 = vunpack.c.l.b16 %v998
        %v1507 = vunpack.c.h.b16 %v998
        %v1508 = vunpack.c.l.b16 %v999
        %v1509 = vunpack.c.h.b16 %v999
        %v1510 = vunpack.c.l.b16 %v1000
        %v1511 = vunpack.c.h.b16 %v1000
        %v1512 = vunpack.c.l.b16 %v1001
        %v1513 = vunpack.c.h.b16 %v1001
        %v1514 = vunpack.c.l.b16 %v1002
        %v1515 = vunpack.c.h.b16 %v1002
        %v1516 = vunpack.c.l.b16 %v1003
        %v1517 = vunpack.c.h.b16 %v1003
        %v1518 = vunpack.c.l.b16 %v1004
        %v1519 = vunpack.c.h.b16 %v1004
        %v1520 = vunpack.c.l.b16 %v1005
        %v1521 = vunpack.c.h.b16 %v1005
        %v1522 = vunpack.c.l.b16 %v1006
        %v1523 = vunpack.c.h.b16 %v1006
        %v1524 = vunpack.c.l.b16 %v1007
        %v1525 = vunpack.c.h.b16 %v1007
        %v1526 = vunpack.c.l.b16 %v1008
        %v1527 = vunpack.c.h.b16 %v1008
        %v1528 = vunpack.c.l.b16 %v1009
        %v1529 = vunpack.c.h.b16 %v1009
        %v1530 = vunpack.c.l.b16 %v1010
        %v1531 = vunpack.c.h.b16 %v1010
        %v1532 = vunpack.c.l.b16 %v1011
        %v1533 = vunpack.c.h.b16 %v1011
        %v1534 = vunpack.c.l.b16 %v1012
        %v1535 = vunpack.c.h.b16 %v1012
        %v1536 = vunpack.c.l.b16 %v1013
        %v1537 = vunpack.c.h.b16 %v1013
        %v1538 = vunpack.c.l.b16 %v1014
        %v1539 = vunpack.c.h.b16 %v1014
        %v1540 = vunpack.c.l.b16 %v1015
        %v1541 = vunpack.c.h.b16 %v1015
        %v1542 = vunpack.c.l.b16 %v1016
        %v1543 = vunpack.c.h.b16 %v1016
        %v1544 = vunpack.c.l.b16 %v1017
        %v1545 = vunpack.c.h.b16 %v1017
        %v1546 = vunpack.c.l.b16 %v1018
        %v1547 = vunpack.c.h.b16 %v1018
        %v1548 = vunpack.c.l.b16 %v1019
        %v1549 = vunpack.c.h.b16 %v1019
        %v1550 = vunpack.c.l.b16 %v1020
        %v1551 = vunpack.c.h.b16 %v1020
        %v1552 = vunpack.c.l.b16 %v1021
        %v1553 = vunpack.c.h.b16 %v1021
        %v1554 = vunpack.c.l.b16 %v1022
        %v1555 = vunpack.c.h.b16 %v1022
        %v1556 = vunpack.c.l.b16 %v1023
        %v1557 = vunpack.c.h.b16 %v1023
        %v1558 = vunpack.c.l.b16 %v1024
        %v1559 = vunpack.c.h.b16 %v1024
        %v1560 = vunpack.c.l.b16 %v1025
        %v1561 = vunpack.c.h.b16 %v1025
        %v1562 = vunpack.c.l.b16 %v1026
        %v1563 = vunpack.c.h.b16 %v1026
        %v1564 = vunpack.c.l.b16 %v1027
        %v1565 = vunpack.c.h.b16 %v1027
        %v1566 = vunpack.c.l.b16 %v1028
        %v1567 = vunpack.c.h.b16 %v1028
        %v1568 = vunpack.c.l.b16 %v1029
        %v1569 = vunpack.c.h.b16 %v1029
        %v1570 = vunpack.c.l.b16 %v1030
        %v1571 = vunpack.c.h.b16 %v1030
        %v1572 = vunpack.c.l.b16 %v1031
        %v1573 = vunpack.c.h.b16 %v1031
        %v1574 = vunpack.c.l.b16 %v1032
        %v1575 = vunpack.c.h.b16 %v1032
        %v1576 = vunpack.c.l.b16 %v1033
        %v1577 = vunpack.c.h.b16 %v1033
        %v1578 = vunpack.c.l.b16 %v1034
        %v1579 = vunpack.c.h.b16 %v1034
        %v1580 = vunpack.c.l.b16 %v1035
        %v1581 = vunpack.c.h.b16 %v1035
        %v1582 = vunpack.c.l.b16 %v1036
        %v1583 = vunpack.c.h.b16 %v1036
        %v1584 = vunpack.c.l.b16 %v1037
        %v1585 = vunpack.c.h.b16 %v1037
        %v1586 = vunpack.c.l.b16 %v1038
        %v1587 = vunpack.c.h.b16 %v1038
        %v1588 = vunpack.c.l.b16 %v1039
        %v1589 = vunpack.c.h.b16 %v1039
        %v1590 = vunpack.c.l.b16 %v1040
        %v1591 = vunpack.c.h.b16 %v1040
        %v1592 = vunpack.c.l.b16 %v1041
        %v1593 = vunpack.c.h.b16 %v1041
        %v1594 = vunpack.c.l.b16 %v1042
        %v1595 = vunpack.c.h.b16 %v1042
        %v1596 = vunpack.c.l.b16 %v1043
        %v1597 = vunpack.c.h.b16 %v1043
        %v1598 = vunpack.c.l.b16 %v1044
        %v1599 = vunpack.c.h.b16 %v1044
        %v1600 = vunpack.c.l.b16 %v1045
        %v1601 = vunpack.c.h.b16 %v1045
        %v1602 = vunpack.c.l.b16 %v1046
        %v1603 = vunpack.c.h.b16 %v1046
        %v1604 = vunpack.c.l.b16 %v1047
        %v1605 = vunpack.c.h.b16 %v1047
        %v1606 = vunpack.c.l.b16 %v1048
        %v1607 = vunpack.c.h.b16 %v1048
        %v1608 = vunpack.c.l.b16 %v1049
        %v1609 = vunpack.c.h.b16 %v1049
        %v1610 = vunpack.c.l.b16 %v1050
        %v1611 = vunpack.c.h.b16 %v1050
        %v1612 = vunpack.c.l.b16 %v1051
        %v1613 = vunpack.c.h.b16 %v1051
        %v1614 = vunpack.c.l.b16 %v1052
        %v1615 = vunpack.c.h.b16 %v1052
        %v1616 = vunpack.c.l.b16 %v1053
        %v1617 = vunpack.c.h.b16 %v1053
        %v1618 = vunpack.c.l.b16 %v1054
        %v1619 = vunpack.c.h.b16 %v1054
        %v1620 = vunpack.c.l.b16 %v1055
        %v1621 = vunpack.c.h.b16 %v1055
        %v1622 = vunpack.c.l.b16 %v1056
        %v1623 = vunpack.c.h.b16 %v1056
        %v1624 = vunpack.c.l.b16 %v1057
        %v1625 = vunpack.c.h.b16 %v1057
        %v1626 = vunpack.c.l.b16 %v1058
        %v1627 = vunpack.c.h.b16 %v1058
        %v1628 = vunpack.c.l.b16 %v1059
        %v1629 = vunpack.c.h.b16 %v1059
        %v1630 = vunpack.c.l.b16 %v1060
        %v1631 = vunpack.c.h.b16 %v1060
        %v1632 = vunpack.c.l.b16 %v1061
        %v1633 = vunpack.c.h.b16 %v1061
        %v1634 = vpack.c.b16 %v1288, %v1286
        %v1635 = vpack.c.b16 %v1289, %v1287
        %v1636 = vpack.c.b16 %v1292, %v1290
        %v1637 = vpack.c.b16 %v1293, %v1291
        %v1638 = vpack.c.b16 %v1296, %v1294
        %v1639 = vpack.c.b16 %v1297, %v1295
        %v1640 = vpack.c.b16 %v1300, %v1298
        %v1641 = vpack.c.b16 %v1301, %v1299
        %v1642 = vpack.c.b16 %v1304, %v1302
        %v1643 = vpack.c.b16 %v1305, %v1303
        %v1644 = vpack.c.b16 %v1308, %v1306
        %v1645 = vpack.c.b16 %v1309, %v1307
        %v1646 = vpack.c.b16 %v1312, %v1310
        %v1647 = vpack.c.b16 %v1313, %v1311
        %v1648 = vpack.c.b16 %v1316, %v1314
        %v1649 = vpack.c.b16 %v1317, %v1315
        %v1650 = vpack.c.b16 %v1320, %v1318
        %v1651 = vpack.c.b16 %v1321, %v1319
        %v1652 = vpack.c.b16 %v1324, %v1322
        %v1653 = vpack.c.b16 %v1325, %v1323
        %v1654 = vpack.c.b16 %v1328, %v1326
        %v1655 = vpack.c.b16 %v1329, %v1327
        %v1656 = vpack.c.b16 %v1332, %v1330
        %v1657 = vpack.c.b16 %v1333, %v1331
        %v1658 = vpack.c.b16 %v1336, %v1334
        %v1659 = vpack.c.b16 %v1337, %v1335
        %v1660 = vpack.c.b16 %v1340, %v1338
        %v1661 = vpack.c.b16 %v1341, %v1339
        %v1662 = vpack.c.b16 %v1344, %v1342
        %v1663 = vpack.c.b16 %v1345, %v1343
        %v1664 = vpack.c.b16 %v1348, %v1346
        %v1665 = vpack.c.b16 %v1349, %v1347
        %v1666 = vpack.c.b16 %v1352, %v1350
        %v1667 = vpack.c.b16 %v1353, %v1351
        %v1668 = vpack.c.b16 %v1356, %v1354
        %v1669 = vpack.c.b16 %v1357, %v1355
        %v1670 = vpack.c.b16 %v1360, %v1358
        %v1671 = vpack.c.b16 %v1361, %v1359
        %v1672 = vpack.c.b16 %v1364, %v1362
        %v1673 = vpack.c.b16 %v1365, %v1363
        %v1674 = vpack.c.b16 %v1368, %v1366
        %v1675 = vpack.c.b16 %v1369, %v1367
        %v1676 = vpack.c.b16 %v1372, %v1370
        %v1677 = vpack.c.b16 %v1373, %v1371
        %v1678 = vpack.c.b16 %v1376, %v1374
        %v1679 = vpack.c.b16 %v1377, %v1375
        %v1680 = vpack.c.b16 %v1380, %v1378
        %v1681 = vpack.c.b16 %v1381, %v1379
        %v1682 = vpack.c.b16 %v1384, %v1382
        %v1683 = vpack.c.b16 %v1385, %v1383
        %v1684 = vpack.c.b16 %v1388, %v1386
        %v1685 = vpack.c.b16 %v1389, %v1387
        %v1686 = vpack.c.b16 %v1392, %v1390
        %v1687 = vpack.c.b16 %v1393, %v1391
        %v1688 = vpack.c.b16 %v1396, %v1394
        %v1689 = vpack.c.b16 %v1397, %v1395
        %v1690 = vpack.c.b16 %v1400, %v1398
        %v1691 = vpack.c.b16 %v1401, %v1399
        %v1692 = vpack.c.b16 %v1404, %v1402
        %v1693 = vpack.c.b16 %v1405, %v1403
        %v1694 = vpack.c.b16 %v1408, %v1406
        %v1695 = vpack.c.b16 %v1409, %v1407
        %v1696 = vpack.c.b16 %v1412, %v1410
        %v1697 = vpack.c.b16 %v1413, %v1411
        %v1698 = vpack.c.b16 %v1416, %v1414
        %v1699 = vpack.c.b16 %v1417, %v1415
        %v1700 = vpack.c.b16 %v1420, %v1418
        %v1701 = vpack.c.b16 %v1421, %v1419
        %v1702 = vpack.c.b16 %v1424, %v1422
        %v1703 = vpack.c.b16 %v1425, %v1423
        %v1704 = vpack.c.b16 %v1428, %v1426
        %v1705 = vpack.c.b16 %v1429, %v1427
        %v1706 = vpack.c.b16 %v1432, %v1430
        %v1707 = vpack.c.b16 %v1433, %v1431
        %v1708 = vpack.c.b16 %v1436, %v1434
        %v1709 = vpack.c.b16 %v1437, %v1435
        %v1710 = vpack.c.b16 %v1440, %v1438
        %v1711 = vpack.c.b16 %v1441, %v1439
        %v1712 = vpack.c.b16 %v1444, %v1442
        %v1713 = vpack.c.b16 %v1445, %v1443
        %v1714 = vpack.c.b16 %v1448, %v1446
        %v1715 = vpack.c.b16 %v1449, %v1447
        %v1716 = vpack.c.b16 %v1452, %v1450
        %v1717 = vpack.c.b16 %v1453, %v1451
        %v1718 = vpack.c.b16 %v1456, %v1454
        %v1719 = vpack.c.b16 %v1457, %v1455
        %v1720 = vpack.c.b16 %v1460, %v1458
        %v1721 = vpack.c.b16 %v1461, %v1459
        %v1722 = vpack.c.b16 %v1464, %v1462
        %v1723 = vpack.c.b16 %v1465, %v1463
        %v1724 = vpack.c.b16 %v1468, %v1466
        %v1725 = vpack.c.b16 %v1469, %v1467
        %v1726 = vpack.c.b16 %v1472, %v1470
        %v1727 = vpack.c.b16 %v1473, %v1471
        %v1728 = vpack.c.b16 %v1476, %v1474
        %v1729 = vpack.c.b16 %v1477, %v1475
        %v1730 = vpack.c.b16 %v1480, %v1478
        %v1731 = vpack.c.b16 %v1481, %v1479
        %v1732 = vpack.c.b16 %v1484, %v1482
        %v1733 = vpack.c.b16 %v1485, %v1483
        %v1734 = vpack.c.b16 %v1488, %v1486
        %v1735 = vpack.c.b16 %v1489, %v1487
        %v1736 = vpack.c.b16 %v1492, %v1490
        %v1737 = vpack.c.b16 %v1493, %v1491
        %v1738 = vpack.c.b16 %v1496, %v1494
        %v1739 = vpack.c.b16 %v1497, %v1495
        %v1740 = vpack.c.b16 %v1500, %v1498
        %v1741 = vpack.c.b16 %v1501, %v1499
        %v1742 = vpack.c.b16 %v1504, %v1502
        %v1743 = vpack.c.b16 %v1505, %v1503
        %v1744 = vpack.c.b16 %v1508, %v1506
        %v1745 = vpack.c.b16 %v1509, %v1507
        %v1746 = vpack.c.b16 %v1512, %v1510
        %v1747 = vpack.c.b16 %v1513, %v1511
        %v1748 = vpack.c.b16 %v1516, %v1514
        %v1749 = vpack.c.b16 %v1517, %v1515
        %v1750 = vpack.c.b16 %v1520, %v1518
        %v1751 = vpack.c.b16 %v1521, %v1519
        %v1752 = vpack.c.b16 %v1524, %v1522
        %v1753 = vpack.c.b16 %v1525, %v1523
        %v1754 = vpack.c.b16 %v1528, %v1526
        %v1755 = vpack.c.b16 %v1529, %v1527
        %v1756 = vpack.c.b16 %v1532, %v1530
        %v1757 = vpack.c.b16 %v1533, %v1531
        %v1758 = vpack.c.b16 %v1536, %v1534
        %v1759 = vpack.c.b16 %v1537, %v1535
        %v1760 = vpack.c.b16 %v1540, %v1538
        %v1761 = vpack.c.b16 %v1541, %v1539
        %v1762 = vpack.c.b16 %v1544, %v1542
        %v1763 = vpack.c.b16 %v1545, %v1543
        %v1764 = vpack.c.b16 %v1548, %v1546
        %v1765 = vpack.c.b16 %v1549, %v1547
        %v1766 = vpack.c.b16 %v1552, %v1550
        %v1767 = vpack.c.b16 %v1553, %v1551
        %v1768 = vpack.c.b16 %v1556, %v1554
        %v1769 = vpack.c.b16 %v1557, %v1555
        %v1770 = vpack.c.b16 %v1560, %v1558
        %v1771 = vpack.c.b16 %v1561, %v1559
        %v1772 = vpack.c.b16 %v1564, %v1562
        %v1773 = vpack.c.b16 %v1565, %v1563
        %v1774 = vpack.c.b16 %v1568, %v1566
        %v1775 = vpack.c.b16 %v1569, %v1567
        %v1776 = vpack.c.b16 %v1572, %v1570
        %v1777 = vpack.c.b16 %v1573, %v1571
        %v1778 = vpack.c.b16 %v1576, %v1574
        %v1779 = vpack.c.b16 %v1577, %v1575
        %v1780 = vpack.c.b16 %v1580, %v1578
        %v1781 = vpack.c.b16 %v1581, %v1579
        %v1782 = vpack.c.b16 %v1584, %v1582
        %v1783 = vpack.c.b16 %v1585, %v1583
        %v1784 = vpack.c.b16 %v1588, %v1586
        %v1785 = vpack.c.b16 %v1589, %v1587
        %v1786 = vpack.c.b16 %v1592, %v1590
        %v1787 = vpack.c.b16 %v1593, %v1591
        %v1788 = vpack.c.b16 %v1596, %v1594
        %v1789 = vpack.c.b16 %v1597, %v1595
        %v1790 = vpack.c.b16 %v1600, %v1598
        %v1791 = vpack.c.b16 %v1601, %v1599
        %v1792 = vpack.c.b16 %v1604, %v1602
        %v1793 = vpack.c.b16 %v1605, %v1603
        %v1794 = vpack.c.b16 %v1608, %v1606
        %v1795 = vpack.c.b16 %v1609, %v1607
        %v1796 = vpack.c.b16 %v1612, %v1610
        %v1797 = vpack.c.b16 %v1613, %v1611
        %v1798 = vpack.c.b16 %v1616, %v1614
        %v1799 = vpack.c.b16 %v1617, %v1615
        %v1800 = vpack.c.b16 %v1620, %v1618
        %v1801 = vpack.c.b16 %v1621, %v1619
        %v1802 = vpack.c.b16 %v1624, %v1622
        %v1803 = vpack.c.b16 %v1625, %v1623
        %v1804 = vpack.c.b16 %v1628, %v1626
        %v1805 = vpack.c.b16 %v1629, %v1627
        %v1806 = vpack.c.b16 %v1632, %v1630
        %v1807 = vpack.c.b16 %v1633, %v1631
        %vm1982 = vcmask 916480
        %v1984 = vsel %vm1982, %v1101, 0
        %1986 = vmatprep.subr.bf16.mxu0 %v1635
        %1987 = vmatpush1.bf16.msra.mxu0 %v1634
        %1988 = vmatprep.subr.bf16.mxu0 %v1637
        %1989 = vmatpush1.bf16.msra.mxu0 %v1636
        %1990 = vmatprep.subr.bf16.mxu0 %v1639
        %1991 = vmatpush1.bf16.msra.mxu0 %v1638
        %1992 = vmatprep.subr.bf16.mxu0 %v1641
        %1993 = vmatpush1.bf16.msra.mxu0 %v1640
        %1994 = vmatprep.subr.bf16.mxu0 %v1643
        %1995 = vmatpush1.bf16.msra.mxu0 %v1642
        %1996 = vmatprep.subr.bf16.mxu0 %v1645
        %1997 = vmatpush1.bf16.msra.mxu0 %v1644
        %1998 = vmatprep.subr.bf16.mxu0 %v1647
        %1999 = vmatpush1.bf16.msra.mxu0 %v1646
        %2000 = vmatprep.subr.bf16.mxu0 %v1649
        %2001 = vmatpush1.bf16.msra.mxu0 %v1648
        %2002 = vmatprep.subr.bf16.mxu0 %v1651
        %2003 = vmatpush1.bf16.msra.mxu0 %v1650
        %2004 = vmatprep.subr.bf16.mxu0 %v1653
        %2005 = vmatpush1.bf16.msra.mxu0 %v1652
        %2006 = vmatprep.subr.bf16.mxu0 %v1655
        %2007 = vmatpush1.bf16.msra.mxu0 %v1654
        %2008 = vmatprep.subr.bf16.mxu0 %v1657
        %2009 = vmatpush1.bf16.msra.mxu0 %v1656
        %2010 = vmatprep.subr.bf16.mxu0 %v1659
        %2011 = vmatpush1.bf16.msra.mxu0 %v1658
        %2012 = vmatprep.subr.bf16.mxu0 %v1661
        %2013 = vmatpush1.bf16.msra.mxu0 %v1660
        %2014 = vmatprep.subr.bf16.mxu0 %v1663
        %2015 = vmatpush1.bf16.msra.mxu0 %v1662
        %2016 = vmatprep.subr.bf16.mxu0 %v1665
        %2017 = vmatpush1.bf16.msra.mxu0 %v1664
        %2018 = vmatprep.mubr.bf16.mxu0 %v1092
        %2019 = vmatmul.mubr.bf16.gmra.mrb[0].mxu0 %v1091
        %v2020 = vpop.f32.mrb[0].mxu0
        %v2021 = vadd.f32 %v1067, %v2020
        %v2022 = vpop.f32.mrb[0].mxu0
        %v2023 = vadd.f32 %v1071, %v2022
        %v2024 = vpop.f32.mrb[0].mxu0
        %v2025 = vpop.f32.mrb[0].mxu0
        %2026 = vdwg.mxu0
        %2027 = vmatprep.subr.bf16.mxu0 %v1667
        %2028 = vmatpush1.bf16.msra.mxu0 %v1666
        %2029 = vmatprep.subr.bf16.mxu0 %v1669
        %2030 = vmatpush1.bf16.msra.mxu0 %v1668
        %2031 = vmatprep.subr.bf16.mxu0 %v1671
        %2032 = vmatpush1.bf16.msra.mxu0 %v1670
        %2033 = vmatprep.subr.bf16.mxu0 %v1673
        %2034 = vmatpush1.bf16.msra.mxu0 %v1672
        %2035 = vmatprep.subr.bf16.mxu0 %v1675
        %2036 = vmatpush1.bf16.msra.mxu0 %v1674
        %2037 = vmatprep.subr.bf16.mxu0 %v1677
        %2038 = vmatpush1.bf16.msra.mxu0 %v1676
        %2039 = vmatprep.subr.bf16.mxu0 %v1679
        %2040 = vmatpush1.bf16.msra.mxu0 %v1678
        %2041 = vmatprep.subr.bf16.mxu0 %v1681
        %2042 = vmatpush1.bf16.msra.mxu0 %v1680
        %2043 = vmatprep.subr.bf16.mxu0 %v1683
        %2044 = vmatpush1.bf16.msra.mxu0 %v1682
        %2045 = vmatprep.subr.bf16.mxu0 %v1685
        %2046 = vmatpush1.bf16.msra.mxu0 %v1684
        %2047 = vmatprep.subr.bf16.mxu0 %v1687
        %2048 = vmatpush1.bf16.msra.mxu0 %v1686
        %2049 = vmatprep.subr.bf16.mxu0 %v1689
        %2050 = vmatpush1.bf16.msra.mxu0 %v1688
        %2051 = vmatprep.subr.bf16.mxu0 %v1691
        %2052 = vmatpush1.bf16.msra.mxu0 %v1690
        %2053 = vmatprep.subr.bf16.mxu0 %v1693
        %2054 = vmatpush1.bf16.msra.mxu0 %v1692
        %2055 = vmatprep.subr.bf16.mxu0 %v1695
        %2056 = vmatpush1.bf16.msra.mxu0 %v1694
        %2057 = vmatprep.subr.bf16.mxu0 %v1697
        %2058 = vmatpush1.bf16.msra.mxu0 %v1696
        %2059 = vmatprep.mubr.bf16.mxu0 %v1094
        %2060 = vmatmul.mubr.bf16.gmra.mrb[0].mxu0 %v1093
        %v2061 = vpop.f32.mrb[0].mxu0
        %v2062 = vadd.f32 %v2021, %v2061
        %v2063 = vpop.f32.mrb[0].mxu0
        %v2064 = vadd.f32 %v2023, %v2063
        %v2065 = vpop.f32.mrb[0].mxu0
        %v2066 = vpop.f32.mrb[0].mxu0
        %2067 = vdwg.mxu0
        %2068 = vmatprep.subr.bf16.mxu0 %v1699
        %2069 = vmatpush1.bf16.msra.mxu0 %v1698
        %2070 = vmatprep.subr.bf16.mxu0 %v1701
        %2071 = vmatpush1.bf16.msra.mxu0 %v1700
        %2072 = vmatprep.subr.bf16.mxu0 %v1703
        %2073 = vmatpush1.bf16.msra.mxu0 %v1702
        %2074 = vmatprep.subr.bf16.mxu0 %v1705
        %2075 = vmatpush1.bf16.msra.mxu0 %v1704
        %2076 = vmatprep.subr.bf16.mxu0 %v1707
        %2077 = vmatpush1.bf16.msra.mxu0 %v1706
        %2078 = vmatprep.subr.bf16.mxu0 %v1709
        %2079 = vmatpush1.bf16.msra.mxu0 %v1708
        %2080 = vmatprep.subr.bf16.mxu0 %v1711
        %2081 = vmatpush1.bf16.msra.mxu0 %v1710
        %2082 = vmatprep.subr.bf16.mxu0 %v1713
        %2083 = vmatpush1.bf16.msra.mxu0 %v1712
        %2084 = vmatprep.subr.bf16.mxu0 %v1715
        %2085 = vmatpush1.bf16.msra.mxu0 %v1714
        %2086 = vmatprep.subr.bf16.mxu0 %v1717
        %2087 = vmatpush1.bf16.msra.mxu0 %v1716
        %2088 = vmatprep.subr.bf16.mxu0 %v1719
        %2089 = vmatpush1.bf16.msra.mxu0 %v1718
        %2090 = vmatprep.subr.bf16.mxu0 %v1721
        %2091 = vmatpush1.bf16.msra.mxu0 %v1720
        %2092 = vmatprep.subr.bf16.mxu0 %v1723
        %2093 = vmatpush1.bf16.msra.mxu0 %v1722
        %2094 = vmatprep.subr.bf16.mxu0 %v1725
        %2095 = vmatpush1.bf16.msra.mxu0 %v1724
        %2096 = vmatprep.subr.bf16.mxu0 %v1727
        %2097 = vmatpush1.bf16.msra.mxu0 %v1726
        %2098 = vmatprep.subr.bf16.mxu0 %v1729
        %2099 = vmatpush1.bf16.msra.mxu0 %v1728
        %2100 = vmatprep.mubr.bf16.mxu0 %v1096
        %2101 = vmatmul.mubr.bf16.gmra.mrb[0].mxu0 %v1095
        %v2102 = vpop.f32.mrb[0].mxu0
        %v2103 = vadd.f32 %v2062, %v2102
        %v2104 = vpop.f32.mrb[0].mxu0
        %v2105 = vadd.f32 %v2064, %v2104
        %v2106 = vpop.f32.mrb[0].mxu0
        %v2107 = vpop.f32.mrb[0].mxu0
        %2108 = vdwg.mxu0
        %2109 = vmatprep.subr.bf16.mxu0 %v1731
        %2110 = vmatpush1.bf16.msra.mxu0 %v1730
        %2111 = vmatprep.subr.bf16.mxu0 %v1733
        %2112 = vmatpush1.bf16.msra.mxu0 %v1732
        %2113 = vmatprep.subr.bf16.mxu0 %v1735
        %2114 = vmatpush1.bf16.msra.mxu0 %v1734
        %2115 = vmatprep.subr.bf16.mxu0 %v1737
        %2116 = vmatpush1.bf16.msra.mxu0 %v1736
        %2117 = vmatprep.subr.bf16.mxu0 %v1739
        %2118 = vmatpush1.bf16.msra.mxu0 %v1738
        %2119 = vmatprep.subr.bf16.mxu0 %v1741
        %2120 = vmatpush1.bf16.msra.mxu0 %v1740
        %2121 = vmatprep.subr.bf16.mxu0 %v1743
        %2122 = vmatpush1.bf16.msra.mxu0 %v1742
        %2123 = vmatprep.subr.bf16.mxu0 %v1745
        %2124 = vmatpush1.bf16.msra.mxu0 %v1744
        %2125 = vmatprep.subr.bf16.mxu0 %v1747
        %2126 = vmatpush1.bf16.msra.mxu0 %v1746
        %2127 = vmatprep.subr.bf16.mxu0 %v1749
        %2128 = vmatpush1.bf16.msra.mxu0 %v1748
        %2129 = vmatprep.subr.bf16.mxu0 %v1751
        %2130 = vmatpush1.bf16.msra.mxu0 %v1750
        %2131 = vmatprep.subr.bf16.mxu0 %v1753
        %2132 = vmatpush1.bf16.msra.mxu0 %v1752
        %2133 = vmatprep.subr.bf16.mxu0 %v1755
        %2134 = vmatpush1.bf16.msra.mxu0 %v1754
        %2135 = vmatprep.subr.bf16.mxu0 %v1757
        %2136 = vmatpush1.bf16.msra.mxu0 %v1756
        %2137 = vmatprep.subr.bf16.mxu0 %v1759
        %2138 = vmatpush1.bf16.msra.mxu0 %v1758
        %2139 = vmatprep.subr.bf16.mxu0 %v1761
        %2140 = vmatpush1.bf16.msra.mxu0 %v1760
        %2141 = vmatprep.mubr.bf16.mxu0 %v1098
        %2142 = vmatmul.mubr.bf16.gmra.mrb[0].mxu0 %v1097
        %v2143 = vpop.f32.mrb[0].mxu0
        %v2144 = vadd.f32 %v2103, %v2143
        %v2145 = vpop.f32.mrb[0].mxu0
        %v2146 = vadd.f32 %v2105, %v2145
        %v2147 = vpop.f32.mrb[0].mxu0
        %v2148 = vpop.f32.mrb[0].mxu0
        %2149 = vdwg.mxu0
        %2150 = vmatprep.subr.bf16.mxu0 %v1763
        %2151 = vmatpush1.bf16.msra.mxu0 %v1762
        %2152 = vmatprep.subr.bf16.mxu0 %v1765
        %2153 = vmatpush1.bf16.msra.mxu0 %v1764
        %2154 = vmatprep.subr.bf16.mxu0 %v1767
        %2155 = vmatpush1.bf16.msra.mxu0 %v1766
        %2156 = vmatprep.subr.bf16.mxu0 %v1769
        %2157 = vmatpush1.bf16.msra.mxu0 %v1768
        %2158 = vmatprep.subr.bf16.mxu0 %v1771
        %2159 = vmatpush1.bf16.msra.mxu0 %v1770
        %2160 = vmatprep.subr.bf16.mxu0 %v1773
        %2161 = vmatpush1.bf16.msra.mxu0 %v1772
        %2162 = vmatprep.subr.bf16.mxu0 %v1775
        %2163 = vmatpush1.bf16.msra.mxu0 %v1774
        %2164 = vmatprep.subr.bf16.mxu0 %v1777
        %2165 = vmatpush1.bf16.msra.mxu0 %v1776
        %2166 = vmatprep.subr.bf16.mxu0 %v1779
        %2167 = vmatpush1.bf16.msra.mxu0 %v1778
        %2168 = vmatprep.subr.bf16.mxu0 %v1781
        %2169 = vmatpush1.bf16.msra.mxu0 %v1780
        %2170 = vmatprep.subr.bf16.mxu0 %v1783
        %2171 = vmatpush1.bf16.msra.mxu0 %v1782
        %2172 = vmatprep.subr.bf16.mxu0 %v1785
        %2173 = vmatpush1.bf16.msra.mxu0 %v1784
        %2174 = vmatprep.subr.bf16.mxu0 %v1787
        %2175 = vmatpush1.bf16.msra.mxu0 %v1786
        %2176 = vmatprep.subr.bf16.mxu0 %v1789
        %2177 = vmatpush1.bf16.msra.mxu0 %v1788
        %2178 = vmatprep.subr.bf16.mxu0 %v1791
        %2179 = vmatpush1.bf16.msra.mxu0 %v1790
        %2180 = vmatprep.subr.bf16.mxu0 %v1793
        %2181 = vmatpush1.bf16.msra.mxu0 %v1792
        %2182 = vmatprep.mubr.bf16.mxu0 %v1100
        %2183 = vmatmul.mubr.bf16.gmra.mrb[0].mxu0 %v1099
        %v2184 = vpop.f32.mrb[0].mxu0
        %v2185 = vadd.f32 %v2144, %v2184
        %v2186 = vpop.f32.mrb[0].mxu0
        %v2187 = vadd.f32 %v2146, %v2186
        %v2188 = vpop.f32.mrb[0].mxu0
        %v2189 = vpop.f32.mrb[0].mxu0
        %2190 = vdwg.mxu0
        %2191 = vmatprep.subr.bf16.mxu0 %v1795
        %2192 = vmatpush1.bf16.msra.mxu0 %v1794
        %2193 = vmatprep.subr.bf16.mxu0 %v1797
        %2194 = vmatpush1.bf16.msra.mxu0 %v1796
        %2195 = vmatprep.subr.bf16.mxu0 %v1799
        %2196 = vmatpush1.bf16.msra.mxu0 %v1798
        %2197 = vmatprep.subr.bf16.mxu0 %v1801
        %2198 = vmatpush1.bf16.msra.mxu0 %v1800
        %2199 = vmatprep.subr.bf16.mxu0 %v1803
        %2200 = vmatpush1.bf16.msra.mxu0 %v1802
        %2201 = vmatprep.subr.bf16.mxu0 %v1805
        %2202 = vmatpush1.bf16.msra.mxu0 %v1804
        %2203 = vmatprep.subr.bf16.mxu0 %v1807
        %2204 = vmatpush1.bf16.msra.mxu0 %v1806
        %2205 = vmatprep.subr.bf16.mxu0 0
        %2206 = vmatpush1.bf16.msra.mxu0 0
        %2207 = vmatprep.subr.bf16.mxu0 0
        %2208 = vmatpush1.bf16.msra.mxu0 0
        %2209 = vmatprep.subr.bf16.mxu0 0
        %2210 = vmatpush1.bf16.msra.mxu0 0
        %2211 = vmatprep.subr.bf16.mxu0 0
        %2212 = vmatpush1.bf16.msra.mxu0 0
        %2213 = vmatprep.subr.bf16.mxu0 0
        %2214 = vmatpush1.bf16.msra.mxu0 0
        %2215 = vmatprep.subr.bf16.mxu0 0
        %2216 = vmatpush1.bf16.msra.mxu0 0
        %2217 = vmatprep.subr.bf16.mxu0 0
        %2218 = vmatpush1.bf16.msra.mxu0 0
        %2219 = vmatprep.subr.bf16.mxu0 0
        %2220 = vmatpush1.bf16.msra.mxu0 0
        %2221 = vmatprep.subr.bf16.mxu0 0
        %2222 = vmatpush1.bf16.msra.mxu0 0
        %2223 = vmatprep.mubr.bf16.mxu0 0
        %2224 = vmatmul.mubr.bf16.gmra.mrb[0].mxu0 %v1984
        %v2225 = vpop.f32.mrb[0].mxu0
        %v2226 = vadd.f32 %v2185, %v2225
        %v2227 = vpop.f32.mrb[0].mxu0
        %v2228 = vadd.f32 %v2187, %v2227
        %v2229 = vpop.f32.mrb[0].mxu0
        %v2230 = vpop.f32.mrb[0].mxu0
        %2231 = vdwg.mxu0
        %v2232 = vmax.f32 %v2226, 0.0
        %v2233 = vmax.f32 %v2228, 0.0
        %v2234 = vpack.c.bf16 %v2232, %v2232
        %v2235 = vpack.c.bf16 %v2233, %v2233
        %v2236 = vld [vmem:[%s751] sm:$0xff]
        %v2237 = vld [vmem:[%s751 + $0x8] sm:$0xff]
        %v2238 = vld [vmem:[%s751 + $0x10] sm:$0xff]
        %v2239 = vld [vmem:[%s751 + $0x18] sm:$0xff]
        %v2240 = vld [vmem:[%s751 + $0x20] sm:$0xff]
        %v2241 = vld [vmem:[%s751 + $0x28] sm:$0xf]
        %v2242 = vld [vmem:[#allocation11] sm:$0xf]
        %v2243 = vld [vmem:[#allocation11 + $0x4] sm:$0xf]
        %v2244 = vld [vmem:[#allocation11 + $0x8] sm:$0xf]
        %v2245 = vld [vmem:[#allocation11 + $0xc] sm:$0xf]
        %v2246 = vld [vmem:[#allocation11 + $0x10] sm:$0xf]
        %v2247 = vld [vmem:[#allocation11 + $0x14] sm:$0xf]
        %v2248 = vld [vmem:[#allocation11 + $0x18] sm:$0xf]
        %v2249 = vld [vmem:[#allocation11 + $0x1c] sm:$0xf]
        %v2250 = vld [vmem:[#allocation11 + $0x20] sm:$0xf]
        %v2251 = vld [vmem:[#allocation11 + $0x24] sm:$0xf]
        %v2252 = vld [vmem:[#allocation11 + $0x28] sm:$0xf]
        %v2253 = vld [vmem:[#allocation11 + $0x2c] sm:$0xf]
        %v2254 = vld [vmem:[#allocation11 + $0x30] sm:$0xf]
        %v2255 = vld [vmem:[#allocation11 + $0x34] sm:$0xf]
        %v2256 = vld [vmem:[#allocation11 + $0x38] sm:$0xf]
        %v2257 = vld [vmem:[#allocation11 + $0x3c] sm:$0xf]
        %v2258 = vld [vmem:[#allocation11 + $0x40] sm:$0xf]
        %v2259 = vld [vmem:[#allocation11 + $0x44] sm:$0xf]
        %v2260 = vld [vmem:[#allocation11 + $0x48] sm:$0xf]
        %v2261 = vld [vmem:[#allocation11 + $0x4c] sm:$0xf]
        %v2262 = vld [vmem:[#allocation11 + $0x50] sm:$0xf]
        %v2263 = vld [vmem:[#allocation11 + $0x54] sm:$0xf]
        %v2264 = vld [vmem:[#allocation11 + $0x58] sm:$0xf]
        %v2265 = vld [vmem:[#allocation11 + $0x5c] sm:$0xf]
        %v2266 = vld [vmem:[#allocation11 + $0x60] sm:$0xf]
        %v2267 = vld [vmem:[#allocation11 + $0x64] sm:$0xf]
        %v2268 = vld [vmem:[#allocation11 + $0x68] sm:$0xf]
        %v2269 = vld [vmem:[#allocation11 + $0x6c] sm:$0xf]
        %v2270 = vld [vmem:[#allocation11 + $0x70] sm:$0xf]
        %v2271 = vld [vmem:[#allocation11 + $0x74] sm:$0xf]
        %v2272 = vld [vmem:[#allocation11 + $0x78] sm:$0xf]
        %v2273 = vld [vmem:[#allocation11 + $0x7c] sm:$0xf]
        %v2274 = vld [vmem:[#allocation11 + $0x80] sm:$0xf]
        %v2275 = vld [vmem:[#allocation11 + $0x84] sm:$0xf]
        %v2276 = vld [vmem:[#allocation11 + $0x88] sm:$0xf]
        %v2277 = vld [vmem:[#allocation11 + $0x8c] sm:$0xf]
        %v2278 = vld [vmem:[#allocation11 + $0x90] sm:$0xf]
        %v2279 = vld [vmem:[#allocation11 + $0x94] sm:$0xf]
        %v2280 = vld [vmem:[#allocation11 + $0x98] sm:$0xf]
        %v2281 = vld [vmem:[#allocation11 + $0x9c] sm:$0xf]
        %v2282 = vld [vmem:[#allocation11 + $0xa0] sm:$0xf]
        %v2283 = vld [vmem:[#allocation11 + $0xa4] sm:$0xf]
        %v2284 = vld [vmem:[#allocation11 + $0xa8] sm:$0xf]
        %v2285 = vld [vmem:[#allocation11 + $0xac] sm:$0xf]
        %v2286 = vld [vmem:[#allocation11 + $0xb0] sm:$0xf]
        %v2287 = vld [vmem:[#allocation11 + $0xb4] sm:$0xf]
        %v2288 = vld [vmem:[#allocation11 + $0xb8] sm:$0xf]
        %v2289 = vld [vmem:[#allocation11 + $0xbc] sm:$0xf]
        %v2290 = vld [vmem:[#allocation11 + $0xc0] sm:$0xf]
        %v2291 = vld [vmem:[#allocation11 + $0xc4] sm:$0xf]
        %v2292 = vld [vmem:[#allocation11 + $0xc8] sm:$0xf]
        %v2293 = vld [vmem:[#allocation11 + $0xcc] sm:$0xf]
        %v2294 = vld [vmem:[#allocation11 + $0xd0] sm:$0xf]
        %v2295 = vld [vmem:[#allocation11 + $0xd4] sm:$0xf]
        %v2296 = vld [vmem:[#allocation11 + $0xd8] sm:$0xf]
        %v2297 = vld [vmem:[#allocation11 + $0xdc] sm:$0xf]
        %v2298 = vld [vmem:[#allocation11 + $0xe0] sm:$0xf]
        %v2299 = vld [vmem:[#allocation11 + $0xe4] sm:$0xf]
        %v2300 = vld [vmem:[#allocation11 + $0xe8] sm:$0xf]
        %v2301 = vld [vmem:[#allocation11 + $0xec] sm:$0xf]
        %v2302 = vld [vmem:[#allocation11 + $0xf0] sm:$0xf]
        %v2303 = vld [vmem:[#allocation11 + $0xf4] sm:$0xf]
        %v2304 = vld [vmem:[#allocation11 + $0xf8] sm:$0xf]
        %v2305 = vld [vmem:[#allocation11 + $0xfc] sm:$0xf]
        %v2306 = vld [vmem:[#allocation11 + $0x100] sm:$0xf]
        %v2307 = vld [vmem:[#allocation11 + $0x104] sm:$0xf]
        %v2308 = vld [vmem:[#allocation11 + $0x108] sm:$0xf]
        %v2309 = vld [vmem:[#allocation11 + $0x10c] sm:$0xf]
        %v2310 = vld [vmem:[#allocation11 + $0x110] sm:$0xf]
        %v2311 = vld [vmem:[#allocation11 + $0x114] sm:$0xf]
        %v2312 = vld [vmem:[#allocation11 + $0x118] sm:$0xf]
        %v2313 = vld [vmem:[#allocation11 + $0x11c] sm:$0xf]
        %v2314 = vld [vmem:[#allocation11 + $0x120] sm:$0xf]
        %v2315 = vld [vmem:[#allocation11 + $0x124] sm:$0xf]
        %v2316 = vld [vmem:[#allocation11 + $0x128] sm:$0xf]
        %v2317 = vld [vmem:[#allocation11 + $0x12c] sm:$0xf]
        %v2318 = vld [vmem:[#allocation11 + $0x130] sm:$0xf]
        %v2319 = vld [vmem:[#allocation11 + $0x134] sm:$0xf]
        %v2320 = vld [vmem:[#allocation11 + $0x138] sm:$0xf]
        %v2321 = vld [vmem:[#allocation11 + $0x13c] sm:$0xf]
        %v2322 = vld [vmem:[#allocation11 + $0x140] sm:$0xf]
        %v2323 = vld [vmem:[#allocation11 + $0x144] sm:$0xf]
        %v2324 = vld [vmem:[#allocation11 + $0x148] sm:$0xf]
        %v2325 = vld [vmem:[#allocation11 + $0x14c] sm:$0xf]
        %v2326 = vld [vmem:[#allocation11 + $0x150] sm:$0xf]
        %v2327 = vld [vmem:[#allocation11 + $0x154] sm:$0xf]
        %v2328 = vld [vmem:[#allocation11 + $0x158] sm:$0xf]
        %v2329 = vld [vmem:[#allocation11 + $0x15c] sm:$0xf]
        %v2330 = vld [vmem:[#allocation11 + $0x160] sm:$0xf]
        %v2331 = vld [vmem:[#allocation11 + $0x164] sm:$0xf]
        %v2332 = vld [vmem:[#allocation11 + $0x168] sm:$0xf]
        %v2333 = vld [vmem:[#allocation11 + $0x16c] sm:$0xf]
        %v2334 = vld [vmem:[#allocation11 + $0x170] sm:$0xf]
        %v2335 = vld [vmem:[#allocation11 + $0x174] sm:$0xf]
        %v2336 = vld [vmem:[#allocation11 + $0x178] sm:$0xf]
        %v2337 = vld [vmem:[#allocation11 + $0x17c] sm:$0xf]
        %v2338 = vld [vmem:[#allocation11 + $0x180] sm:$0xf]
        %v2339 = vld [vmem:[#allocation11 + $0x184] sm:$0xf]
        %v2340 = vld [vmem:[#allocation11 + $0x188] sm:$0xf]
        %v2341 = vld [vmem:[#allocation11 + $0x18c] sm:$0xf]
        %v2342 = vld [vmem:[#allocation11 + $0x190] sm:$0xf]
        %v2343 = vld [vmem:[#allocation11 + $0x194] sm:$0xf]
        %v2344 = vld [vmem:[#allocation11 + $0x198] sm:$0xf]
        %v2345 = vld [vmem:[#allocation11 + $0x19c] sm:$0xf]
        %v2346 = vld [vmem:[#allocation11 + $0x1a0] sm:$0xf]
        %v2347 = vld [vmem:[#allocation11 + $0x1a4] sm:$0xf]
        %v2348 = vld [vmem:[#allocation11 + $0x1a8] sm:$0xf]
        %v2349 = vld [vmem:[#allocation11 + $0x1ac] sm:$0xf]
        %v2350 = vld [vmem:[#allocation11 + $0x1b0] sm:$0xf]
        %v2351 = vld [vmem:[#allocation11 + $0x1b4] sm:$0xf]
        %v2352 = vld [vmem:[#allocation11 + $0x1b8] sm:$0xf]
        %v2353 = vld [vmem:[#allocation11 + $0x1bc] sm:$0xf]
        %v2354 = vld [vmem:[#allocation11 + $0x1c0] sm:$0xf]
        %v2355 = vld [vmem:[#allocation11 + $0x1c4] sm:$0xf]
        %v2356 = vld [vmem:[#allocation11 + $0x1c8] sm:$0xf]
        %v2357 = vld [vmem:[#allocation11 + $0x1cc] sm:$0xf]
        %v2358 = vld [vmem:[#allocation11 + $0x1d0] sm:$0xf]
        %v2359 = vld [vmem:[#allocation11 + $0x1d4] sm:$0xf]
        %v2360 = vld [vmem:[#allocation11 + $0x1d8] sm:$0xf]
        %v2361 = vld [vmem:[#allocation11 + $0x1dc] sm:$0xf]
        %v2362 = vld [vmem:[#allocation11 + $0x1e0] sm:$0xf]
        %v2363 = vld [vmem:[#allocation11 + $0x1e4] sm:$0xf]
        %v2364 = vld [vmem:[#allocation11 + $0x1e8] sm:$0xf]
        %v2365 = vld [vmem:[#allocation11 + $0x1ec] sm:$0xf]
        %v2366 = vld [vmem:[#allocation11 + $0x1f0] sm:$0xf]
        %v2367 = vld [vmem:[#allocation11 + $0x1f4] sm:$0xf]
        %v2368 = vld [vmem:[#allocation11 + $0x1f8] sm:$0xf]
        %v2369 = vld [vmem:[#allocation11 + $0x1fc] sm:$0xf]
        %v2370 = vld [vmem:[#allocation11 + $0x200] sm:$0xf]
        %v2371 = vld [vmem:[#allocation11 + $0x204] sm:$0xf]
        %v2372 = vld [vmem:[#allocation11 + $0x208] sm:$0xf]
        %v2373 = vld [vmem:[#allocation11 + $0x20c] sm:$0xf]
        %v2374 = vld [vmem:[#allocation11 + $0x210] sm:$0xf]
        %v2375 = vld [vmem:[#allocation11 + $0x214] sm:$0xf]
        %v2376 = vld [vmem:[#allocation11 + $0x218] sm:$0xf]
        %v2377 = vld [vmem:[#allocation11 + $0x21c] sm:$0xf]
        %v2378 = vld [vmem:[#allocation11 + $0x220] sm:$0xf]
        %v2379 = vld [vmem:[#allocation11 + $0x224] sm:$0xf]
        %v2380 = vld [vmem:[#allocation11 + $0x228] sm:$0xf]
        %v2381 = vld [vmem:[#allocation11 + $0x22c] sm:$0xf]
        %v2382 = vld [vmem:[#allocation11 + $0x230] sm:$0xf]
        %v2383 = vld [vmem:[#allocation11 + $0x234] sm:$0xf]
        %v2384 = vld [vmem:[#allocation11 + $0x238] sm:$0xf]
        %v2385 = vld [vmem:[#allocation11 + $0x23c] sm:$0xf]
        %v2386 = vld [vmem:[#allocation11 + $0x240] sm:$0xf]
        %v2387 = vld [vmem:[#allocation11 + $0x244] sm:$0xf]
        %v2388 = vld [vmem:[#allocation11 + $0x248] sm:$0xf]
        %v2389 = vld [vmem:[#allocation11 + $0x24c] sm:$0xf]
        %v2390 = vld [vmem:[#allocation11 + $0x250] sm:$0xf]
        %v2391 = vld [vmem:[#allocation11 + $0x254] sm:$0xf]
        %v2392 = vld [vmem:[#allocation11 + $0x258] sm:$0xf]
        %v2393 = vld [vmem:[#allocation11 + $0x25c] sm:$0xf]
        %v2394 = vld [vmem:[#allocation11 + $0x260] sm:$0xf]
        %v2395 = vld [vmem:[#allocation11 + $0x264] sm:$0xf]
        %v2396 = vld [vmem:[#allocation11 + $0x268] sm:$0xf]
        %v2397 = vld [vmem:[#allocation11 + $0x26c] sm:$0xf]
        %v2398 = vld [vmem:[#allocation11 + $0x270] sm:$0xf]
        %v2399 = vld [vmem:[#allocation11 + $0x274] sm:$0xf]
        %v2400 = vld [vmem:[#allocation11 + $0x278] sm:$0xf]
        %v2401 = vld [vmem:[#allocation11 + $0x27c] sm:$0xf]
        %v2402 = vld [vmem:[#allocation11 + $0x280] sm:$0xf]
        %v2403 = vld [vmem:[#allocation11 + $0x284] sm:$0xf]
        %v2404 = vld [vmem:[#allocation11 + $0x288] sm:$0xf]
        %v2405 = vld [vmem:[#allocation11 + $0x28c] sm:$0xf]
        %v2406 = vld [vmem:[#allocation11 + $0x290] sm:$0xf]
        %v2407 = vld [vmem:[#allocation11 + $0x294] sm:$0xf]
        %v2408 = vld [vmem:[#allocation11 + $0x298] sm:$0xf]
        %v2409 = vld [vmem:[#allocation11 + $0x29c] sm:$0xf]
        %v2410 = vld [vmem:[#allocation11 + $0x2a0] sm:$0xf]
        %v2411 = vld [vmem:[#allocation11 + $0x2a4] sm:$0xf]
        %v2412 = vld [vmem:[#allocation11 + $0x2a8] sm:$0xf]
        %v2413 = vld [vmem:[#allocation11 + $0x2ac] sm:$0xf]
        %v2414 = vld [vmem:[#allocation11 + $0x2b0] sm:$0xf]
        %v2415 = vld [vmem:[#allocation11 + $0x2b4] sm:$0xf]
        %v2416 = vld [vmem:[#allocation13] sm:$0x1]
        %v2418 = vlaneseq
        %v2419 = vshrl.u32 %v2418, 7
        %v2420 = vsub.s32 0, %v2419
        %v2421 = vrot.slane %v2416, %v2420
        %v2429 = vunpack.c.l.b16 %v2236
        %v2430 = vunpack.c.h.b16 %v2236
        %v2431 = vunpack.c.l.b16 %v2237
        %v2432 = vunpack.c.h.b16 %v2237
        %v2433 = vunpack.c.l.b16 %v2238
        %v2434 = vunpack.c.h.b16 %v2238
        %v2435 = vunpack.c.l.b16 %v2239
        %v2436 = vunpack.c.h.b16 %v2239
        %v2437 = vunpack.c.l.b16 %v2240
        %v2438 = vunpack.c.h.b16 %v2240
        %v2439 = vunpack.c.l.b16 %v2241
        %v2440 = vpack.c.b16 %v2429, %v2429
        %v2441 = vpack.c.b16 %v2430, %v2430
        %v2442 = vpack.c.b16 %v2431, %v2431
        %v2443 = vpack.c.b16 %v2432, %v2432
        %v2444 = vpack.c.b16 %v2433, %v2433
        %v2445 = vpack.c.b16 %v2434, %v2434
        %v2446 = vpack.c.b16 %v2435, %v2435
        %v2447 = vpack.c.b16 %v2436, %v2436
        %v2448 = vpack.c.b16 %v2437, %v2437
        %v2449 = vpack.c.b16 %v2438, %v2438
        %v2450 = vpack.c.b16 %v2439, %v2439
        %v2635 = vunpack.c.l.b16 %v2242
        %v2636 = vunpack.c.l.b16 %v2243
        %v2637 = vunpack.c.l.b16 %v2244
        %v2638 = vunpack.c.l.b16 %v2245
        %v2639 = vunpack.c.l.b16 %v2246
        %v2640 = vunpack.c.l.b16 %v2247
        %v2641 = vunpack.c.l.b16 %v2248
        %v2642 = vunpack.c.l.b16 %v2249
        %v2643 = vunpack.c.l.b16 %v2250
        %v2644 = vunpack.c.l.b16 %v2251
        %v2645 = vunpack.c.l.b16 %v2252
        %v2646 = vunpack.c.l.b16 %v2253
        %v2647 = vunpack.c.l.b16 %v2254
        %v2648 = vunpack.c.l.b16 %v2255
        %v2649 = vunpack.c.l.b16 %v2256
        %v2650 = vunpack.c.l.b16 %v2257
        %v2651 = vunpack.c.l.b16 %v2258
        %v2652 = vunpack.c.l.b16 %v2259
        %v2653 = vunpack.c.l.b16 %v2260
        %v2654 = vunpack.c.l.b16 %v2261
        %v2655 = vunpack.c.l.b16 %v2262
        %v2656 = vunpack.c.l.b16 %v2263
        %v2657 = vunpack.c.l.b16 %v2264
        %v2658 = vunpack.c.l.b16 %v2265
        %v2659 = vunpack.c.l.b16 %v2266
        %v2660 = vunpack.c.l.b16 %v2267
        %v2661 = vunpack.c.l.b16 %v2268
        %v2662 = vunpack.c.l.b16 %v2269
        %v2663 = vunpack.c.l.b16 %v2270
        %v2664 = vunpack.c.l.b16 %v2271
        %v2665 = vunpack.c.l.b16 %v2272
        %v2666 = vunpack.c.l.b16 %v2273
        %v2667 = vunpack.c.l.b16 %v2274
        %v2668 = vunpack.c.l.b16 %v2275
        %v2669 = vunpack.c.l.b16 %v2276
        %v2670 = vunpack.c.l.b16 %v2277
        %v2671 = vunpack.c.l.b16 %v2278
        %v2672 = vunpack.c.l.b16 %v2279
        %v2673 = vunpack.c.l.b16 %v2280
        %v2674 = vunpack.c.l.b16 %v2281
        %v2675 = vunpack.c.l.b16 %v2282
        %v2676 = vunpack.c.l.b16 %v2283
        %v2677 = vunpack.c.l.b16 %v2284
        %v2678 = vunpack.c.l.b16 %v2285
        %v2679 = vunpack.c.l.b16 %v2286
        %v2680 = vunpack.c.l.b16 %v2287
        %v2681 = vunpack.c.l.b16 %v2288
        %v2682 = vunpack.c.l.b16 %v2289
        %v2683 = vunpack.c.l.b16 %v2290
        %v2684 = vunpack.c.l.b16 %v2291
        %v2685 = vunpack.c.l.b16 %v2292
        %v2686 = vunpack.c.l.b16 %v2293
        %v2687 = vunpack.c.l.b16 %v2294
        %v2688 = vunpack.c.l.b16 %v2295
        %v2689 = vunpack.c.l.b16 %v2296
        %v2690 = vunpack.c.l.b16 %v2297
        %v2691 = vunpack.c.l.b16 %v2298
        %v2692 = vunpack.c.l.b16 %v2299
        %v2693 = vunpack.c.l.b16 %v2300
        %v2694 = vunpack.c.l.b16 %v2301
        %v2695 = vunpack.c.l.b16 %v2302
        %v2696 = vunpack.c.l.b16 %v2303
        %v2697 = vunpack.c.l.b16 %v2304
        %v2698 = vunpack.c.l.b16 %v2305
        %v2699 = vunpack.c.l.b16 %v2306
        %v2700 = vunpack.c.l.b16 %v2307
        %v2701 = vunpack.c.l.b16 %v2308
        %v2702 = vunpack.c.l.b16 %v2309
        %v2703 = vunpack.c.l.b16 %v2310
        %v2704 = vunpack.c.l.b16 %v2311
        %v2705 = vunpack.c.l.b16 %v2312
        %v2706 = vunpack.c.l.b16 %v2313
        %v2707 = vunpack.c.l.b16 %v2314
        %v2708 = vunpack.c.l.b16 %v2315
        %v2709 = vunpack.c.l.b16 %v2316
        %v2710 = vunpack.c.l.b16 %v2317
        %v2711 = vunpack.c.l.b16 %v2318
        %v2712 = vunpack.c.l.b16 %v2319
        %v2713 = vunpack.c.l.b16 %v2320
        %v2714 = vunpack.c.l.b16 %v2321
        %v2715 = vunpack.c.l.b16 %v2322
        %v2716 = vunpack.c.l.b16 %v2323
        %v2717 = vunpack.c.l.b16 %v2324
        %v2718 = vunpack.c.l.b16 %v2325
        %v2719 = vunpack.c.l.b16 %v2326
        %v2720 = vunpack.c.l.b16 %v2327
        %v2721 = vunpack.c.l.b16 %v2328
        %v2722 = vunpack.c.l.b16 %v2329
        %v2723 = vunpack.c.l.b16 %v2330
        %v2724 = vunpack.c.l.b16 %v2331
        %v2725 = vunpack.c.l.b16 %v2332
        %v2726 = vunpack.c.l.b16 %v2333
        %v2727 = vunpack.c.l.b16 %v2334
        %v2728 = vunpack.c.l.b16 %v2335
        %v2729 = vunpack.c.l.b16 %v2336
        %v2730 = vunpack.c.l.b16 %v2337
        %v2731 = vunpack.c.l.b16 %v2338
        %v2732 = vunpack.c.l.b16 %v2339
        %v2733 = vunpack.c.l.b16 %v2340
        %v2734 = vunpack.c.l.b16 %v2341
        %v2735 = vunpack.c.l.b16 %v2342
        %v2736 = vunpack.c.l.b16 %v2343
        %v2737 = vunpack.c.l.b16 %v2344
        %v2738 = vunpack.c.l.b16 %v2345
        %v2739 = vunpack.c.l.b16 %v2346
        %v2740 = vunpack.c.l.b16 %v2347
        %v2741 = vunpack.c.l.b16 %v2348
        %v2742 = vunpack.c.l.b16 %v2349
        %v2743 = vunpack.c.l.b16 %v2350
        %v2744 = vunpack.c.l.b16 %v2351
        %v2745 = vunpack.c.l.b16 %v2352
        %v2746 = vunpack.c.l.b16 %v2353
        %v2747 = vunpack.c.l.b16 %v2354
        %v2748 = vunpack.c.l.b16 %v2355
        %v2749 = vunpack.c.l.b16 %v2356
        %v2750 = vunpack.c.l.b16 %v2357
        %v2751 = vunpack.c.l.b16 %v2358
        %v2752 = vunpack.c.l.b16 %v2359
        %v2753 = vunpack.c.l.b16 %v2360
        %v2754 = vunpack.c.l.b16 %v2361
        %v2755 = vunpack.c.l.b16 %v2362
        %v2756 = vunpack.c.l.b16 %v2363
        %v2757 = vunpack.c.l.b16 %v2364
        %v2758 = vunpack.c.l.b16 %v2365
        %v2759 = vunpack.c.l.b16 %v2366
        %v2760 = vunpack.c.l.b16 %v2367
        %v2761 = vunpack.c.l.b16 %v2368
        %v2762 = vunpack.c.l.b16 %v2369
        %v2763 = vunpack.c.l.b16 %v2370
        %v2764 = vunpack.c.l.b16 %v2371
        %v2765 = vunpack.c.l.b16 %v2372
        %v2766 = vunpack.c.l.b16 %v2373
        %v2767 = vunpack.c.l.b16 %v2374
        %v2768 = vunpack.c.l.b16 %v2375
        %v2769 = vunpack.c.l.b16 %v2376
        %v2770 = vunpack.c.l.b16 %v2377
        %v2771 = vunpack.c.l.b16 %v2378
        %v2772 = vunpack.c.l.b16 %v2379
        %v2773 = vunpack.c.l.b16 %v2380
        %v2774 = vunpack.c.l.b16 %v2381
        %v2775 = vunpack.c.l.b16 %v2382
        %v2776 = vunpack.c.l.b16 %v2383
        %v2777 = vunpack.c.l.b16 %v2384
        %v2778 = vunpack.c.l.b16 %v2385
        %v2779 = vunpack.c.l.b16 %v2386
        %v2780 = vunpack.c.l.b16 %v2387
        %v2781 = vunpack.c.l.b16 %v2388
        %v2782 = vunpack.c.l.b16 %v2389
        %v2783 = vunpack.c.l.b16 %v2390
        %v2784 = vunpack.c.l.b16 %v2391
        %v2785 = vunpack.c.l.b16 %v2392
        %v2786 = vunpack.c.l.b16 %v2393
        %v2787 = vunpack.c.l.b16 %v2394
        %v2788 = vunpack.c.l.b16 %v2395
        %v2789 = vunpack.c.l.b16 %v2396
        %v2790 = vunpack.c.l.b16 %v2397
        %v2791 = vunpack.c.l.b16 %v2398
        %v2792 = vunpack.c.l.b16 %v2399
        %v2793 = vunpack.c.l.b16 %v2400
        %v2794 = vunpack.c.l.b16 %v2401
        %v2795 = vunpack.c.l.b16 %v2402
        %v2796 = vunpack.c.l.b16 %v2403
        %v2797 = vunpack.c.l.b16 %v2404
        %v2798 = vunpack.c.l.b16 %v2405
        %v2799 = vunpack.c.l.b16 %v2406
        %v2800 = vunpack.c.l.b16 %v2407
        %v2801 = vunpack.c.l.b16 %v2408
        %v2802 = vunpack.c.l.b16 %v2409
        %v2803 = vunpack.c.l.b16 %v2410
        %v2804 = vunpack.c.l.b16 %v2411
        %v2805 = vunpack.c.l.b16 %v2412
        %v2806 = vunpack.c.l.b16 %v2413
        %v2807 = vunpack.c.l.b16 %v2414
        %v2808 = vunpack.c.l.b16 %v2415
        %v2809 = vpack.c.b16 %v2636, %v2635
        %v2810 = vpack.c.b16 %v2638, %v2637
        %v2811 = vpack.c.b16 %v2640, %v2639
        %v2812 = vpack.c.b16 %v2642, %v2641
        %v2813 = vpack.c.b16 %v2644, %v2643
        %v2814 = vpack.c.b16 %v2646, %v2645
        %v2815 = vpack.c.b16 %v2648, %v2647
        %v2816 = vpack.c.b16 %v2650, %v2649
        %v2817 = vpack.c.b16 %v2652, %v2651
        %v2818 = vpack.c.b16 %v2654, %v2653
        %v2819 = vpack.c.b16 %v2656, %v2655
        %v2820 = vpack.c.b16 %v2658, %v2657
        %v2821 = vpack.c.b16 %v2660, %v2659
        %v2822 = vpack.c.b16 %v2662, %v2661
        %v2823 = vpack.c.b16 %v2664, %v2663
        %v2824 = vpack.c.b16 %v2666, %v2665
        %v2825 = vpack.c.b16 %v2668, %v2667
        %v2826 = vpack.c.b16 %v2670, %v2669
        %v2827 = vpack.c.b16 %v2672, %v2671
        %v2828 = vpack.c.b16 %v2674, %v2673
        %v2829 = vpack.c.b16 %v2676, %v2675
        %v2830 = vpack.c.b16 %v2678, %v2677
        %v2831 = vpack.c.b16 %v2680, %v2679
        %v2832 = vpack.c.b16 %v2682, %v2681
        %v2833 = vpack.c.b16 %v2684, %v2683
        %v2834 = vpack.c.b16 %v2686, %v2685
        %v2835 = vpack.c.b16 %v2688, %v2687
        %v2836 = vpack.c.b16 %v2690, %v2689
        %v2837 = vpack.c.b16 %v2692, %v2691
        %v2838 = vpack.c.b16 %v2694, %v2693
        %v2839 = vpack.c.b16 %v2696, %v2695
        %v2840 = vpack.c.b16 %v2698, %v2697
        %v2841 = vpack.c.b16 %v2700, %v2699
        %v2842 = vpack.c.b16 %v2702, %v2701
        %v2843 = vpack.c.b16 %v2704, %v2703
        %v2844 = vpack.c.b16 %v2706, %v2705
        %v2845 = vpack.c.b16 %v2708, %v2707
        %v2846 = vpack.c.b16 %v2710, %v2709
        %v2847 = vpack.c.b16 %v2712, %v2711
        %v2848 = vpack.c.b16 %v2714, %v2713
        %v2849 = vpack.c.b16 %v2716, %v2715
        %v2850 = vpack.c.b16 %v2718, %v2717
        %v2851 = vpack.c.b16 %v2720, %v2719
        %v2852 = vpack.c.b16 %v2722, %v2721
        %v2853 = vpack.c.b16 %v2724, %v2723
        %v2854 = vpack.c.b16 %v2726, %v2725
        %v2855 = vpack.c.b16 %v2728, %v2727
        %v2856 = vpack.c.b16 %v2730, %v2729
        %v2857 = vpack.c.b16 %v2732, %v2731
        %v2858 = vpack.c.b16 %v2734, %v2733
        %v2859 = vpack.c.b16 %v2736, %v2735
        %v2860 = vpack.c.b16 %v2738, %v2737
        %v2861 = vpack.c.b16 %v2740, %v2739
        %v2862 = vpack.c.b16 %v2742, %v2741
        %v2863 = vpack.c.b16 %v2744, %v2743
        %v2864 = vpack.c.b16 %v2746, %v2745
        %v2865 = vpack.c.b16 %v2748, %v2747
        %v2866 = vpack.c.b16 %v2750, %v2749
        %v2867 = vpack.c.b16 %v2752, %v2751
        %v2868 = vpack.c.b16 %v2754, %v2753
        %v2869 = vpack.c.b16 %v2756, %v2755
        %v2870 = vpack.c.b16 %v2758, %v2757
        %v2871 = vpack.c.b16 %v2760, %v2759
        %v2872 = vpack.c.b16 %v2762, %v2761
        %v2873 = vpack.c.b16 %v2764, %v2763
        %v2874 = vpack.c.b16 %v2766, %v2765
        %v2875 = vpack.c.b16 %v2768, %v2767
        %v2876 = vpack.c.b16 %v2770, %v2769
        %v2877 = vpack.c.b16 %v2772, %v2771
        %v2878 = vpack.c.b16 %v2774, %v2773
        %v2879 = vpack.c.b16 %v2776, %v2775
        %v2880 = vpack.c.b16 %v2778, %v2777
        %v2881 = vpack.c.b16 %v2780, %v2779
        %v2882 = vpack.c.b16 %v2782, %v2781
        %v2883 = vpack.c.b16 %v2784, %v2783
        %v2884 = vpack.c.b16 %v2786, %v2785
        %v2885 = vpack.c.b16 %v2788, %v2787
        %v2886 = vpack.c.b16 %v2790, %v2789
        %v2887 = vpack.c.b16 %v2792, %v2791
        %v2888 = vpack.c.b16 %v2794, %v2793
        %v2889 = vpack.c.b16 %v2796, %v2795
        %v2890 = vpack.c.b16 %v2798, %v2797
        %v2891 = vpack.c.b16 %v2800, %v2799
        %v2892 = vpack.c.b16 %v2802, %v2801
        %v2893 = vpack.c.b16 %v2804, %v2803
        %v2894 = vpack.c.b16 %v2806, %v2805
        %v2895 = vpack.c.b16 %v2808, %v2807
        %v2984 = vsel %vm1982, %v2450, 0
        %2986 = vmatprep.subr.bf16.mxu0 0
        %2987 = vmatpush1.bf16.msra.mxu0 %v2809
        %2988 = vmatprep.subr.bf16.mxu0 0
        %2989 = vmatpush1.bf16.msra.mxu0 %v2810
        %2990 = vmatprep.subr.bf16.mxu0 0
        %2991 = vmatpush1.bf16.msra.mxu0 %v2811
        %2992 = vmatprep.subr.bf16.mxu0 0
        %2993 = vmatpush1.bf16.msra.mxu0 %v2812
        %2994 = vmatprep.subr.bf16.mxu0 0
        %2995 = vmatpush1.bf16.msra.mxu0 %v2813
        %2996 = vmatprep.subr.bf16.mxu0 0
        %2997 = vmatpush1.bf16.msra.mxu0 %v2814
        %2998 = vmatprep.subr.bf16.mxu0 0
        %2999 = vmatpush1.bf16.msra.mxu0 %v2815
        %3000 = vmatprep.subr.bf16.mxu0 0
        %3001 = vmatpush1.bf16.msra.mxu0 %v2816
        %3002 = vmatprep.subr.bf16.mxu0 0
        %3003 = vmatpush1.bf16.msra.mxu0 %v2817
        %3004 = vmatprep.subr.bf16.mxu0 0
        %3005 = vmatpush1.bf16.msra.mxu0 %v2818
        %3006 = vmatprep.subr.bf16.mxu0 0
        %3007 = vmatpush1.bf16.msra.mxu0 %v2819
        %3008 = vmatprep.subr.bf16.mxu0 0
        %3009 = vmatpush1.bf16.msra.mxu0 %v2820
        %3010 = vmatprep.subr.bf16.mxu0 0
        %3011 = vmatpush1.bf16.msra.mxu0 %v2821
        %3012 = vmatprep.subr.bf16.mxu0 0
        %3013 = vmatpush1.bf16.msra.mxu0 %v2822
        %3014 = vmatprep.subr.bf16.mxu0 0
        %3015 = vmatpush1.bf16.msra.mxu0 %v2823
        %3016 = vmatprep.subr.bf16.mxu0 0
        %3017 = vmatpush1.bf16.msra.mxu0 %v2824
        %3018 = vmatprep.mubr.bf16.mxu0 %v2441
        %3019 = vmatmul.mubr.bf16.gmra.mrb[0].mxu0 %v2440
        %v3020 = vpop.f32.mrb[0].mxu0
        %v3021 = vadd.f32 %v2421, %v3020
        %v3022 = vpop.f32.mrb[0].mxu0
        %v3023 = vpop.f32.mrb[0].mxu0
        %v3024 = vpop.f32.mrb[0].mxu0
        %3025 = vdwg.mxu0
        %3026 = vmatprep.subr.bf16.mxu0 0
        %3027 = vmatpush1.bf16.msra.mxu0 %v2825
        %3028 = vmatprep.subr.bf16.mxu0 0
        %3029 = vmatpush1.bf16.msra.mxu0 %v2826
        %3030 = vmatprep.subr.bf16.mxu0 0
        %3031 = vmatpush1.bf16.msra.mxu0 %v2827
        %3032 = vmatprep.subr.bf16.mxu0 0
        %3033 = vmatpush1.bf16.msra.mxu0 %v2828
        %3034 = vmatprep.subr.bf16.mxu0 0
        %3035 = vmatpush1.bf16.msra.mxu0 %v2829
        %3036 = vmatprep.subr.bf16.mxu0 0
        %3037 = vmatpush1.bf16.msra.mxu0 %v2830
        %3038 = vmatprep.subr.bf16.mxu0 0
        %3039 = vmatpush1.bf16.msra.mxu0 %v2831
        %3040 = vmatprep.subr.bf16.mxu0 0
        %3041 = vmatpush1.bf16.msra.mxu0 %v2832
        %3042 = vmatprep.subr.bf16.mxu0 0
        %3043 = vmatpush1.bf16.msra.mxu0 %v2833
        %3044 = vmatprep.subr.bf16.mxu0 0
        %3045 = vmatpush1.bf16.msra.mxu0 %v2834
        %3046 = vmatprep.subr.bf16.mxu0 0
        %3047 = vmatpush1.bf16.msra.mxu0 %v2835
        %3048 = vmatprep.subr.bf16.mxu0 0
        %3049 = vmatpush1.bf16.msra.mxu0 %v2836
        %3050 = vmatprep.subr.bf16.mxu0 0
        %3051 = vmatpush1.bf16.msra.mxu0 %v2837
        %3052 = vmatprep.subr.bf16.mxu0 0
        %3053 = vmatpush1.bf16.msra.mxu0 %v2838
        %3054 = vmatprep.subr.bf16.mxu0 0
        %3055 = vmatpush1.bf16.msra.mxu0 %v2839
        %3056 = vmatprep.subr.bf16.mxu0 0
        %3057 = vmatpush1.bf16.msra.mxu0 %v2840
        %3058 = vmatprep.mubr.bf16.mxu0 %v2443
        %3059 = vmatmul.mubr.bf16.gmra.mrb[0].mxu0 %v2442
        %v3060 = vpop.f32.mrb[0].mxu0
        %v3061 = vadd.f32 %v3021, %v3060
        %v3062 = vpop.f32.mrb[0].mxu0
        %v3063 = vpop.f32.mrb[0].mxu0
        %v3064 = vpop.f32.mrb[0].mxu0
        %3065 = vdwg.mxu0
        %3066 = vmatprep.subr.bf16.mxu0 0
        %3067 = vmatpush1.bf16.msra.mxu0 %v2841
        %3068 = vmatprep.subr.bf16.mxu0 0
        %3069 = vmatpush1.bf16.msra.mxu0 %v2842
        %3070 = vmatprep.subr.bf16.mxu0 0
        %3071 = vmatpush1.bf16.msra.mxu0 %v2843
        %3072 = vmatprep.subr.bf16.mxu0 0
        %3073 = vmatpush1.bf16.msra.mxu0 %v2844
        %3074 = vmatprep.subr.bf16.mxu0 0
        %3075 = vmatpush1.bf16.msra.mxu0 %v2845
        %3076 = vmatprep.subr.bf16.mxu0 0
        %3077 = vmatpush1.bf16.msra.mxu0 %v2846
        %3078 = vmatprep.subr.bf16.mxu0 0
        %3079 = vmatpush1.bf16.msra.mxu0 %v2847
        %3080 = vmatprep.subr.bf16.mxu0 0
        %3081 = vmatpush1.bf16.msra.mxu0 %v2848
        %3082 = vmatprep.subr.bf16.mxu0 0
        %3083 = vmatpush1.bf16.msra.mxu0 %v2849
        %3084 = vmatprep.subr.bf16.mxu0 0
        %3085 = vmatpush1.bf16.msra.mxu0 %v2850
        %3086 = vmatprep.subr.bf16.mxu0 0
        %3087 = vmatpush1.bf16.msra.mxu0 %v2851
        %3088 = vmatprep.subr.bf16.mxu0 0
        %3089 = vmatpush1.bf16.msra.mxu0 %v2852
        %3090 = vmatprep.subr.bf16.mxu0 0
        %3091 = vmatpush1.bf16.msra.mxu0 %v2853
        %3092 = vmatprep.subr.bf16.mxu0 0
        %3093 = vmatpush1.bf16.msra.mxu0 %v2854
        %3094 = vmatprep.subr.bf16.mxu0 0
        %3095 = vmatpush1.bf16.msra.mxu0 %v2855
        %3096 = vmatprep.subr.bf16.mxu0 0
        %3097 = vmatpush1.bf16.msra.mxu0 %v2856
        %3098 = vmatprep.mubr.bf16.mxu0 %v2445
        %3099 = vmatmul.mubr.bf16.gmra.mrb[0].mxu0 %v2444
        %v3100 = vpop.f32.mrb[0].mxu0
        %v3101 = vadd.f32 %v3061, %v3100
        %v3102 = vpop.f32.mrb[0].mxu0
        %v3103 = vpop.f32.mrb[0].mxu0
        %v3104 = vpop.f32.mrb[0].mxu0
        %3105 = vdwg.mxu0
        %3106 = vmatprep.subr.bf16.mxu0 0
        %3107 = vmatpush1.bf16.msra.mxu0 %v2857
        %3108 = vmatprep.subr.bf16.mxu0 0
        %3109 = vmatpush1.bf16.msra.mxu0 %v2858
        %3110 = vmatprep.subr.bf16.mxu0 0
        %3111 = vmatpush1.bf16.msra.mxu0 %v2859
        %3112 = vmatprep.subr.bf16.mxu0 0
        %3113 = vmatpush1.bf16.msra.mxu0 %v2860
        %3114 = vmatprep.subr.bf16.mxu0 0
        %3115 = vmatpush1.bf16.msra.mxu0 %v2861
        %3116 = vmatprep.subr.bf16.mxu0 0
        %3117 = vmatpush1.bf16.msra.mxu0 %v2862
        %3118 = vmatprep.subr.bf16.mxu0 0
        %3119 = vmatpush1.bf16.msra.mxu0 %v2863
        %3120 = vmatprep.subr.bf16.mxu0 0
        %3121 = vmatpush1.bf16.msra.mxu0 %v2864
        %3122 = vmatprep.subr.bf16.mxu0 0
        %3123 = vmatpush1.bf16.msra.mxu0 %v2865
        %3124 = vmatprep.subr.bf16.mxu0 0
        %3125 = vmatpush1.bf16.msra.mxu0 %v2866
        %3126 = vmatprep.subr.bf16.mxu0 0
        %3127 = vmatpush1.bf16.msra.mxu0 %v2867
        %3128 = vmatprep.subr.bf16.mxu0 0
        %3129 = vmatpush1.bf16.msra.mxu0 %v2868
        %3130 = vmatprep.subr.bf16.mxu0 0
        %3131 = vmatpush1.bf16.msra.mxu0 %v2869
        %3132 = vmatprep.subr.bf16.mxu0 0
        %3133 = vmatpush1.bf16.msra.mxu0 %v2870
        %3134 = vmatprep.subr.bf16.mxu0 0
        %3135 = vmatpush1.bf16.msra.mxu0 %v2871
        %3136 = vmatprep.subr.bf16.mxu0 0
        %3137 = vmatpush1.bf16.msra.mxu0 %v2872
        %3138 = vmatprep.mubr.bf16.mxu0 %v2447
        %3139 = vmatmul.mubr.bf16.gmra.mrb[0].mxu0 %v2446
        %v3140 = vpop.f32.mrb[0].mxu0
        %v3141 = vadd.f32 %v3101, %v3140
        %v3142 = vpop.f32.mrb[0].mxu0
        %v3143 = vpop.f32.mrb[0].mxu0
        %v3144 = vpop.f32.mrb[0].mxu0
        %3145 = vdwg.mxu0
        %3146 = vmatprep.subr.bf16.mxu0 0
        %3147 = vmatpush1.bf16.msra.mxu0 %v2873
        %3148 = vmatprep.subr.bf16.mxu0 0
        %3149 = vmatpush1.bf16.msra.mxu0 %v2874
        %3150 = vmatprep.subr.bf16.mxu0 0
        %3151 = vmatpush1.bf16.msra.mxu0 %v2875
        %3152 = vmatprep.subr.bf16.mxu0 0
        %3153 = vmatpush1.bf16.msra.mxu0 %v2876
        %3154 = vmatprep.subr.bf16.mxu0 0
        %3155 = vmatpush1.bf16.msra.mxu0 %v2877
        %3156 = vmatprep.subr.bf16.mxu0 0
        %3157 = vmatpush1.bf16.msra.mxu0 %v2878
        %3158 = vmatprep.subr.bf16.mxu0 0
        %3159 = vmatpush1.bf16.msra.mxu0 %v2879
        %3160 = vmatprep.subr.bf16.mxu0 0
        %3161 = vmatpush1.bf16.msra.mxu0 %v2880
        %3162 = vmatprep.subr.bf16.mxu0 0
        %3163 = vmatpush1.bf16.msra.mxu0 %v2881
        %3164 = vmatprep.subr.bf16.mxu0 0
        %3165 = vmatpush1.bf16.msra.mxu0 %v2882
        %3166 = vmatprep.subr.bf16.mxu0 0
        %3167 = vmatpush1.bf16.msra.mxu0 %v2883
        %3168 = vmatprep.subr.bf16.mxu0 0
        %3169 = vmatpush1.bf16.msra.mxu0 %v2884
        %3170 = vmatprep.subr.bf16.mxu0 0
        %3171 = vmatpush1.bf16.msra.mxu0 %v2885
        %3172 = vmatprep.subr.bf16.mxu0 0
        %3173 = vmatpush1.bf16.msra.mxu0 %v2886
        %3174 = vmatprep.subr.bf16.mxu0 0
        %3175 = vmatpush1.bf16.msra.mxu0 %v2887
        %3176 = vmatprep.subr.bf16.mxu0 0
        %3177 = vmatpush1.bf16.msra.mxu0 %v2888
        %3178 = vmatprep.mubr.bf16.mxu0 %v2449
        %3179 = vmatmul.mubr.bf16.gmra.mrb[0].mxu0 %v2448
        %v3180 = vpop.f32.mrb[0].mxu0
        %v3181 = vadd.f32 %v3141, %v3180
        %v3182 = vpop.f32.mrb[0].mxu0
        %v3183 = vpop.f32.mrb[0].mxu0
        %v3184 = vpop.f32.mrb[0].mxu0
        %3185 = vdwg.mxu0
        %3186 = vmatprep.subr.bf16.mxu0 0
        %3187 = vmatpush1.bf16.msra.mxu0 %v2889
        %3188 = vmatprep.subr.bf16.mxu0 0
        %3189 = vmatpush1.bf16.msra.mxu0 %v2890
        %3190 = vmatprep.subr.bf16.mxu0 0
        %3191 = vmatpush1.bf16.msra.mxu0 %v2891
        %3192 = vmatprep.subr.bf16.mxu0 0
        %3193 = vmatpush1.bf16.msra.mxu0 %v2892
        %3194 = vmatprep.subr.bf16.mxu0 0
        %3195 = vmatpush1.bf16.msra.mxu0 %v2893
        %3196 = vmatprep.subr.bf16.mxu0 0
        %3197 = vmatpush1.bf16.msra.mxu0 %v2894
        %3198 = vmatprep.subr.bf16.mxu0 0
        %3199 = vmatpush1.bf16.msra.mxu0 %v2895
        %3200 = vmatprep.subr.bf16.mxu0 0
        %3201 = vmatpush1.bf16.msra.mxu0 0
        %3202 = vmatprep.subr.bf16.mxu0 0
        %3203 = vmatpush1.bf16.msra.mxu0 0
        %3204 = vmatprep.subr.bf16.mxu0 0
        %3205 = vmatpush1.bf16.msra.mxu0 0
        %3206 = vmatprep.subr.bf16.mxu0 0
        %3207 = vmatpush1.bf16.msra.mxu0 0
        %3208 = vmatprep.subr.bf16.mxu0 0
        %3209 = vmatpush1.bf16.msra.mxu0 0
        %3210 = vmatprep.subr.bf16.mxu0 0
        %3211 = vmatpush1.bf16.msra.mxu0 0
        %3212 = vmatprep.subr.bf16.mxu0 0
        %3213 = vmatpush1.bf16.msra.mxu0 0
        %3214 = vmatprep.subr.bf16.mxu0 0
        %3215 = vmatpush1.bf16.msra.mxu0 0
        %3216 = vmatprep.subr.bf16.mxu0 0
        %3217 = vmatpush1.bf16.msra.mxu0 0
        %3218 = vmatprep.mubr.bf16.mxu0 0
        %3219 = vmatmul.mubr.bf16.gmra.mrb[0].mxu0 %v2984
        %v3220 = vpop.f32.mrb[0].mxu0
        %v3221 = vadd.f32 %v3181, %v3220
        %v3222 = vpop.f32.mrb[0].mxu0
        %v3223 = vpop.f32.mrb[0].mxu0
        %v3224 = vpop.f32.mrb[0].mxu0
        %3225 = vdwg.mxu0
        %v3226 = vmax.f32 %v3221, 0.0
        %v3227 = vpack.c.bf16 %v3226, %v3226
        %v3228 = vld [vmem:[%s760] sm:$0xff]
        %v3229 = vld [vmem:[%s760 + $0x8] sm:$0xf]
        %v3230 = vld [vmem:[#allocation14] sm:$0xf]
        %v3231 = vld [vmem:[#allocation14 + $0x4] sm:$0xf]
        %v3232 = vld [vmem:[#allocation14 + $0x8] sm:$0xf]
        %v3233 = vld [vmem:[#allocation14 + $0xc] sm:$0xf]
        %v3234 = vld [vmem:[#allocation14 + $0x10] sm:$0xf]
        %v3235 = vld [vmem:[#allocation14 + $0x14] sm:$0xf]
        %v3236 = vld [vmem:[#allocation14 + $0x18] sm:$0xf]
        %v3237 = vld [vmem:[#allocation14 + $0x1c] sm:$0xf]
        %v3238 = vld [vmem:[#allocation14 + $0x20] sm:$0xf]
        %v3239 = vld [vmem:[#allocation14 + $0x24] sm:$0xf]
        %v3240 = vld [vmem:[#allocation14 + $0x28] sm:$0xf]
        %v3241 = vld [vmem:[#allocation14 + $0x2c] sm:$0xf]
        %v3242 = vld [vmem:[#allocation14 + $0x30] sm:$0xf]
        %v3243 = vld [vmem:[#allocation14 + $0x34] sm:$0xf]
        %v3244 = vld [vmem:[#allocation14 + $0x38] sm:$0xf]
        %v3245 = vld [vmem:[#allocation14 + $0x3c] sm:$0xf]
        %v3246 = vld [vmem:[#allocation14 + $0x40] sm:$0xf]
        %v3247 = vld [vmem:[#allocation14 + $0x44] sm:$0xf]
        %v3248 = vld [vmem:[#allocation14 + $0x48] sm:$0xf]
        %v3249 = vld [vmem:[#allocation14 + $0x4c] sm:$0xf]
        %v3250 = vld [vmem:[#allocation14 + $0x50] sm:$0xf]
        %v3251 = vld [vmem:[#allocation14 + $0x54] sm:$0xf]
        %v3252 = vld [vmem:[#allocation14 + $0x58] sm:$0xf]
        %v3253 = vld [vmem:[#allocation14 + $0x5c] sm:$0xf]
        %v3254 = vld [vmem:[#allocation14 + $0x60] sm:$0xf]
        %v3255 = vld [vmem:[#allocation14 + $0x64] sm:$0xf]
        %v3256 = vld [vmem:[#allocation14 + $0x68] sm:$0xf]
        %v3257 = vld [vmem:[#allocation14 + $0x6c] sm:$0xf]
        %v3258 = vld [vmem:[#allocation14 + $0x70] sm:$0xf]
        %v3259 = vld [vmem:[#allocation14 + $0x74] sm:$0xf]
        %v3260 = vld [vmem:[#allocation14 + $0x78] sm:$0xf]
        %v3261 = vld [vmem:[#allocation14 + $0x7c] sm:$0xf]
        %v3262 = vld [vmem:[#allocation14 + $0x80] sm:$0xf]
        %v3263 = vld [vmem:[#allocation14 + $0x84] sm:$0xf]
        %v3264 = vld [vmem:[#allocation14 + $0x88] sm:$0xf]
        %v3265 = vld [vmem:[#allocation14 + $0x8c] sm:$0xf]
        %v3266 = vld [vmem:[#allocation16] sm:$0x1]
        %v3268 = vlaneseq
        %v3269 = vshrl.u32 %v3268, 7
        %v3270 = vsub.s32 0, %v3269
        %v3271 = vrot.slane %v3266, %v3270
        %v3275 = vunpack.c.l.b16 %v3228
        %v3276 = vunpack.c.h.b16 %v3228
        %v3277 = vunpack.c.l.b16 %v3229
        %v3278 = vpack.c.b16 %v3275, %v3275
        %v3279 = vpack.c.b16 %v3276, %v3276
        %v3280 = vpack.c.b16 %v3277, %v3277
        %v3319 = vunpack.c.l.b16 %v3230
        %v3320 = vunpack.c.l.b16 %v3231
        %v3321 = vunpack.c.l.b16 %v3232
        %v3322 = vunpack.c.l.b16 %v3233
        %v3323 = vunpack.c.l.b16 %v3234
        %v3324 = vunpack.c.l.b16 %v3235
        %v3325 = vunpack.c.l.b16 %v3236
        %v3326 = vunpack.c.l.b16 %v3237
        %v3327 = vunpack.c.l.b16 %v3238
        %v3328 = vunpack.c.l.b16 %v3239
        %v3329 = vunpack.c.l.b16 %v3240
        %v3330 = vunpack.c.l.b16 %v3241
        %v3331 = vunpack.c.l.b16 %v3242
        %v3332 = vunpack.c.l.b16 %v3243
        %v3333 = vunpack.c.l.b16 %v3244
        %v3334 = vunpack.c.l.b16 %v3245
        %v3335 = vunpack.c.l.b16 %v3246
        %v3336 = vunpack.c.l.b16 %v3247
        %v3337 = vunpack.c.l.b16 %v3248
        %v3338 = vunpack.c.l.b16 %v3249
        %v3339 = vunpack.c.l.b16 %v3250
        %v3340 = vunpack.c.l.b16 %v3251
        %v3341 = vunpack.c.l.b16 %v3252
        %v3342 = vunpack.c.l.b16 %v3253
        %v3343 = vunpack.c.l.b16 %v3254
        %v3344 = vunpack.c.l.b16 %v3255
        %v3345 = vunpack.c.l.b16 %v3256
        %v3346 = vunpack.c.l.b16 %v3257
        %v3347 = vunpack.c.l.b16 %v3258
        %v3348 = vunpack.c.l.b16 %v3259
        %v3349 = vunpack.c.l.b16 %v3260
        %v3350 = vunpack.c.l.b16 %v3261
        %v3351 = vunpack.c.l.b16 %v3262
        %v3352 = vunpack.c.l.b16 %v3263
        %v3353 = vunpack.c.l.b16 %v3264
        %v3354 = vunpack.c.l.b16 %v3265
        %v3355 = vpack.c.b16 %v3320, %v3319
        %v3356 = vpack.c.b16 %v3322, %v3321
        %v3357 = vpack.c.b16 %v3324, %v3323
        %v3358 = vpack.c.b16 %v3326, %v3325
        %v3359 = vpack.c.b16 %v3328, %v3327
        %v3360 = vpack.c.b16 %v3330, %v3329
        %v3361 = vpack.c.b16 %v3332, %v3331
        %v3362 = vpack.c.b16 %v3334, %v3333
        %v3363 = vpack.c.b16 %v3336, %v3335
        %v3364 = vpack.c.b16 %v3338, %v3337
        %v3365 = vpack.c.b16 %v3340, %v3339
        %v3366 = vpack.c.b16 %v3342, %v3341
        %v3367 = vpack.c.b16 %v3344, %v3343
        %v3368 = vpack.c.b16 %v3346, %v3345
        %v3369 = vpack.c.b16 %v3348, %v3347
        %v3370 = vpack.c.b16 %v3350, %v3349
        %v3371 = vpack.c.b16 %v3352, %v3351
        %v3372 = vpack.c.b16 %v3354, %v3353
        %vm3391 = vcmask 261120
        %v3393 = vsel %vm3391, %v3280, 0
        %3395 = vmatprep.subr.bf16.mxu0 0
        %3396 = vmatpush1.bf16.msra.mxu0 %v3355
        %3397 = vmatprep.subr.bf16.mxu0 0
        %3398 = vmatpush1.bf16.msra.mxu0 %v3356
        %3399 = vmatprep.subr.bf16.mxu0 0
        %3400 = vmatpush1.bf16.msra.mxu0 %v3357
        %3401 = vmatprep.subr.bf16.mxu0 0
        %3402 = vmatpush1.bf16.msra.mxu0 %v3358
        %3403 = vmatprep.subr.bf16.mxu0 0
        %3404 = vmatpush1.bf16.msra.mxu0 %v3359
        %3405 = vmatprep.subr.bf16.mxu0 0
        %3406 = vmatpush1.bf16.msra.mxu0 %v3360
        %3407 = vmatprep.subr.bf16.mxu0 0
        %3408 = vmatpush1.bf16.msra.mxu0 %v3361
        %3409 = vmatprep.subr.bf16.mxu0 0
        %3410 = vmatpush1.bf16.msra.mxu0 %v3362
        %3411 = vmatprep.subr.bf16.mxu0 0
        %3412 = vmatpush1.bf16.msra.mxu0 %v3363
        %3413 = vmatprep.subr.bf16.mxu0 0
        %3414 = vmatpush1.bf16.msra.mxu0 %v3364
        %3415 = vmatprep.subr.bf16.mxu0 0
        %3416 = vmatpush1.bf16.msra.mxu0 %v3365
        %3417 = vmatprep.subr.bf16.mxu0 0
        %3418 = vmatpush1.bf16.msra.mxu0 %v3366
        %3419 = vmatprep.subr.bf16.mxu0 0
        %3420 = vmatpush1.bf16.msra.mxu0 %v3367
        %3421 = vmatprep.subr.bf16.mxu0 0
        %3422 = vmatpush1.bf16.msra.mxu0 %v3368
        %3423 = vmatprep.subr.bf16.mxu0 0
        %3424 = vmatpush1.bf16.msra.mxu0 %v3369
        %3425 = vmatprep.subr.bf16.mxu0 0
        %3426 = vmatpush1.bf16.msra.mxu0 %v3370
        %3427 = vmatprep.mubr.bf16.mxu0 %v3279
        %3428 = vmatmul.mubr.bf16.gmra.mrb[0].mxu0 %v3278
        %v3429 = vpop.f32.mrb[0].mxu0
        %v3430 = vadd.f32 %v3271, %v3429
        %v3431 = vpop.f32.mrb[0].mxu0
        %v3432 = vpop.f32.mrb[0].mxu0
        %v3433 = vpop.f32.mrb[0].mxu0
        %3434 = vdwg.mxu0
        %3435 = vmatprep.subr.bf16.mxu0 0
        %3436 = vmatpush1.bf16.msra.mxu0 %v3371
        %3437 = vmatprep.subr.bf16.mxu0 0
        %3438 = vmatpush1.bf16.msra.mxu0 %v3372
        %3439 = vmatprep.subr.bf16.mxu0 0
        %3440 = vmatpush1.bf16.msra.mxu0 0
        %3441 = vmatprep.subr.bf16.mxu0 0
        %3442 = vmatpush1.bf16.msra.mxu0 0
        %3443 = vmatprep.subr.bf16.mxu0 0
        %3444 = vmatpush1.bf16.msra.mxu0 0
        %3445 = vmatprep.subr.bf16.mxu0 0
        %3446 = vmatpush1.bf16.msra.mxu0 0
        %3447 = vmatprep.subr.bf16.mxu0 0
        %3448 = vmatpush1.bf16.msra.mxu0 0
        %3449 = vmatprep.subr.bf16.mxu0 0
        %3450 = vmatpush1.bf16.msra.mxu0 0
        %3451 = vmatprep.subr.bf16.mxu0 0
        %3452 = vmatpush1.bf16.msra.mxu0 0
        %3453 = vmatprep.subr.bf16.mxu0 0
        %3454 = vmatpush1.bf16.msra.mxu0 0
        %3455 = vmatprep.subr.bf16.mxu0 0
        %3456 = vmatpush1.bf16.msra.mxu0 0
        %3457 = vmatprep.subr.bf16.mxu0 0
        %3458 = vmatpush1.bf16.msra.mxu0 0
        %3459 = vmatprep.subr.bf16.mxu0 0
        %3460 = vmatpush1.bf16.msra.mxu0 0
        %3461 = vmatprep.subr.bf16.mxu0 0
        %3462 = vmatpush1.bf16.msra.mxu0 0
        %3463 = vmatprep.subr.bf16.mxu0 0
        %3464 = vmatpush1.bf16.msra.mxu0 0
        %3465 = vmatprep.subr.bf16.mxu0 0
        %3466 = vmatpush1.bf16.msra.mxu0 0
        %3467 = vmatprep.mubr.bf16.mxu0 0
        %3468 = vmatmul.mubr.bf16.gmra.mrb[0].mxu0 %v3393
        %v3469 = vpop.f32.mrb[0].mxu0
        %v3470 = vadd.f32 %v3430, %v3469
        %v3471 = vpop.f32.mrb[0].mxu0
        %v3472 = vpop.f32.mrb[0].mxu0
        %v3473 = vpop.f32.mrb[0].mxu0
        %3474 = vdwg.mxu0
        %v3475 = vmax.f32 %v3470, 0.0
        %v3476 = vpack.c.bf16 %v3475, %v3475
        %v3477 = vld [vmem:[#allocation17] sm:$0xff]
        %v3478 = vld [vmem:[#allocation17 + $0x8] sm:$0xff]
        %v3479 = vld [vmem:[#allocation17 + $0x10] sm:$0xff]
        %v3480 = vld [vmem:[#allocation17 + $0x18] sm:$0xff]
        %v3481 = vld [vmem:[#allocation17 + $0x20] sm:$0xff]
        %v3482 = vld [vmem:[#allocation17 + $0x28] sm:$0xff]
        %v3483 = vld [vmem:[#allocation17 + $0x30] sm:$0xff]
        %v3484 = vld [vmem:[#allocation17 + $0x38] sm:$0xff]
        %v3485 = vld [vmem:[#allocation17 + $0x40] sm:$0xff]
        %v3486 = vld [vmem:[#allocation17 + $0x48] sm:$0xff]
        %v3487 = vld [vmem:[#allocation17 + $0x50] sm:$0xff]
        %v3488 = vld [vmem:[#allocation17 + $0x58] sm:$0xff]
        %v3489 = vld [vmem:[#allocation17 + $0x60] sm:$0xff]
        %v3490 = vld [vmem:[#allocation17 + $0x68] sm:$0xff]
        %v3491 = vld [vmem:[#allocation17 + $0x70] sm:$0xff]
        %v3492 = vld [vmem:[#allocation17 + $0x78] sm:$0xff]
        %v3493 = vld [vmem:[#allocation17 + $0x80] sm:$0xff]
        %v3494 = vld [vmem:[#allocation17 + $0x88] sm:$0xff]
        %v3495 = vld [vmem:[#allocation17 + $0x90] sm:$0xff]
        %v3496 = vld [vmem:[#allocation17 + $0x98] sm:$0xff]
        %v3497 = vld [vmem:[#allocation17 + $0xa0] sm:$0xff]
        %v3498 = vld [vmem:[#allocation17 + $0xa8] sm:$0xff]
        %v3499 = vld [vmem:[#allocation17 + $0xb0] sm:$0xff]
        %v3500 = vld [vmem:[#allocation17 + $0xb8] sm:$0xff]
        %v3501 = vld [vmem:[#allocation17 + $0xc0] sm:$0xff]
        %v3502 = vld [vmem:[#allocation17 + $0xc8] sm:$0xff]
        %v3503 = vld [vmem:[#allocation17 + $0xd0] sm:$0xff]
        %v3504 = vld [vmem:[#allocation17 + $0xd8] sm:$0xff]
        %v3505 = vld [vmem:[#allocation17 + $0xe0] sm:$0xff]
        %v3506 = vld [vmem:[#allocation17 + $0xe8] sm:$0xff]
        %v3507 = vld [vmem:[#allocation17 + $0xf0] sm:$0xff]
        %v3508 = vld [vmem:[#allocation17 + $0xf8] sm:$0xff]
        %v3509 = vld [vmem:[#allocation17 + $0x100] sm:$0xff]
        %v3510 = vld [vmem:[#allocation17 + $0x108] sm:$0xff]
        %v3511 = vld [vmem:[#allocation17 + $0x110] sm:$0xff]
        %v3512 = vld [vmem:[#allocation17 + $0x118] sm:$0xff]
        %v3513 = vld [vmem:[#allocation17 + $0x120] sm:$0xff]
        %v3514 = vld [vmem:[#allocation17 + $0x128] sm:$0xff]
        %v3515 = vld [vmem:[#allocation17 + $0x130] sm:$0xff]
        %v3516 = vld [vmem:[#allocation17 + $0x138] sm:$0xff]
        %v3517 = vld [vmem:[#allocation17 + $0x140] sm:$0xff]
        %v3518 = vld [vmem:[#allocation17 + $0x148] sm:$0xff]
        %v3519 = vld [vmem:[#allocation17 + $0x150] sm:$0xff]
        %v3520 = vld [vmem:[#allocation17 + $0x158] sm:$0xff]
        %v3521 = vld [vmem:[#allocation17 + $0x160] sm:$0xff]
        %v3522 = vld [vmem:[#allocation17 + $0x168] sm:$0xff]
        %v3523 = vld [vmem:[#allocation17 + $0x170] sm:$0xff]
        %v3524 = vld [vmem:[#allocation17 + $0x178] sm:$0xff]
        %v3525 = vld [vmem:[#allocation17 + $0x180] sm:$0xff]
        %v3526 = vld [vmem:[#allocation17 + $0x188] sm:$0xff]
        %v3527 = vld [vmem:[#allocation17 + $0x190] sm:$0xff]
        %v3528 = vld [vmem:[#allocation17 + $0x198] sm:$0xff]
        %v3529 = vld [vmem:[#allocation17 + $0x1a0] sm:$0xff]
        %v3530 = vld [vmem:[#allocation17 + $0x1a8] sm:$0xff]
        %v3531 = vld [vmem:[#allocation17 + $0x1b0] sm:$0xff]
        %v3532 = vld [vmem:[#allocation17 + $0x1b8] sm:$0xff]
        %v3533 = vld [vmem:[#allocation17 + $0x1c0] sm:$0xff]
        %v3534 = vld [vmem:[#allocation17 + $0x1c8] sm:$0xff]
        %v3535 = vld [vmem:[#allocation17 + $0x1d0] sm:$0xff]
        %v3536 = vld [vmem:[#allocation17 + $0x1d8] sm:$0xff]
        %v3537 = vld [vmem:[#allocation17 + $0x1e0] sm:$0xff]
        %v3538 = vld [vmem:[#allocation17 + $0x1e8] sm:$0xff]
        %v3539 = vld [vmem:[#allocation17 + $0x1f0] sm:$0xff]
        %v3540 = vld [vmem:[#allocation17 + $0x1f8] sm:$0xff]
        %v3541 = vld [vmem:[#allocation19] sm:$0x3]
        %v3543 = vlaneseq
        %v3544 = vshrl.u32 %v3543, 7
        %v3545 = vsub.s32 0, %v3544
        %v3546 = vrot.slane %v3541, %v3545
        %v3547 = vlaneseq
        %v3548 = vshrl.u32 %v3547, 7
        %v3549 = vsub.s32 1, %v3548
        %v3550 = vrot.slane %v3541, %v3549
        %v3617 = vunpack.c.l.b16 %v3477
        %v3618 = vunpack.c.h.b16 %v3477
        %v3619 = vunpack.c.l.b16 %v3478
        %v3620 = vunpack.c.h.b16 %v3478
        %v3621 = vunpack.c.l.b16 %v3479
        %v3622 = vunpack.c.h.b16 %v3479
        %v3623 = vunpack.c.l.b16 %v3480
        %v3624 = vunpack.c.h.b16 %v3480
        %v3625 = vunpack.c.l.b16 %v3481
        %v3626 = vunpack.c.h.b16 %v3481
        %v3627 = vunpack.c.l.b16 %v3482
        %v3628 = vunpack.c.h.b16 %v3482
        %v3629 = vunpack.c.l.b16 %v3483
        %v3630 = vunpack.c.h.b16 %v3483
        %v3631 = vunpack.c.l.b16 %v3484
        %v3632 = vunpack.c.h.b16 %v3484
        %v3633 = vunpack.c.l.b16 %v3485
        %v3634 = vunpack.c.h.b16 %v3485
        %v3635 = vunpack.c.l.b16 %v3486
        %v3636 = vunpack.c.h.b16 %v3486
        %v3637 = vunpack.c.l.b16 %v3487
        %v3638 = vunpack.c.h.b16 %v3487
        %v3639 = vunpack.c.l.b16 %v3488
        %v3640 = vunpack.c.h.b16 %v3488
        %v3641 = vunpack.c.l.b16 %v3489
        %v3642 = vunpack.c.h.b16 %v3489
        %v3643 = vunpack.c.l.b16 %v3490
        %v3644 = vunpack.c.h.b16 %v3490
        %v3645 = vunpack.c.l.b16 %v3491
        %v3646 = vunpack.c.h.b16 %v3491
        %v3647 = vunpack.c.l.b16 %v3492
        %v3648 = vunpack.c.h.b16 %v3492
        %v3649 = vunpack.c.l.b16 %v3493
        %v3650 = vunpack.c.h.b16 %v3493
        %v3651 = vunpack.c.l.b16 %v3494
        %v3652 = vunpack.c.h.b16 %v3494
        %v3653 = vunpack.c.l.b16 %v3495
        %v3654 = vunpack.c.h.b16 %v3495
        %v3655 = vunpack.c.l.b16 %v3496
        %v3656 = vunpack.c.h.b16 %v3496
        %v3657 = vunpack.c.l.b16 %v3497
        %v3658 = vunpack.c.h.b16 %v3497
        %v3659 = vunpack.c.l.b16 %v3498
        %v3660 = vunpack.c.h.b16 %v3498
        %v3661 = vunpack.c.l.b16 %v3499
        %v3662 = vunpack.c.h.b16 %v3499
        %v3663 = vunpack.c.l.b16 %v3500
        %v3664 = vunpack.c.h.b16 %v3500
        %v3665 = vunpack.c.l.b16 %v3501
        %v3666 = vunpack.c.h.b16 %v3501
        %v3667 = vunpack.c.l.b16 %v3502
        %v3668 = vunpack.c.h.b16 %v3502
        %v3669 = vunpack.c.l.b16 %v3503
        %v3670 = vunpack.c.h.b16 %v3503
        %v3671 = vunpack.c.l.b16 %v3504
        %v3672 = vunpack.c.h.b16 %v3504
        %v3673 = vunpack.c.l.b16 %v3505
        %v3674 = vunpack.c.h.b16 %v3505
        %v3675 = vunpack.c.l.b16 %v3506
        %v3676 = vunpack.c.h.b16 %v3506
        %v3677 = vunpack.c.l.b16 %v3507
        %v3678 = vunpack.c.h.b16 %v3507
        %v3679 = vunpack.c.l.b16 %v3508
        %v3680 = vunpack.c.h.b16 %v3508
        %v3681 = vunpack.c.l.b16 %v3509
        %v3682 = vunpack.c.h.b16 %v3509
        %v3683 = vunpack.c.l.b16 %v3510
        %v3684 = vunpack.c.h.b16 %v3510
        %v3685 = vunpack.c.l.b16 %v3511
        %v3686 = vunpack.c.h.b16 %v3511
        %v3687 = vunpack.c.l.b16 %v3512
        %v3688 = vunpack.c.h.b16 %v3512
        %v3689 = vunpack.c.l.b16 %v3513
        %v3690 = vunpack.c.h.b16 %v3513
        %v3691 = vunpack.c.l.b16 %v3514
        %v3692 = vunpack.c.h.b16 %v3514
        %v3693 = vunpack.c.l.b16 %v3515
        %v3694 = vunpack.c.h.b16 %v3515
        %v3695 = vunpack.c.l.b16 %v3516
        %v3696 = vunpack.c.h.b16 %v3516
        %v3697 = vunpack.c.l.b16 %v3517
        %v3698 = vunpack.c.h.b16 %v3517
        %v3699 = vunpack.c.l.b16 %v3518
        %v3700 = vunpack.c.h.b16 %v3518
        %v3701 = vunpack.c.l.b16 %v3519
        %v3702 = vunpack.c.h.b16 %v3519
        %v3703 = vunpack.c.l.b16 %v3520
        %v3704 = vunpack.c.h.b16 %v3520
        %v3705 = vunpack.c.l.b16 %v3521
        %v3706 = vunpack.c.h.b16 %v3521
        %v3707 = vunpack.c.l.b16 %v3522
        %v3708 = vunpack.c.h.b16 %v3522
        %v3709 = vunpack.c.l.b16 %v3523
        %v3710 = vunpack.c.h.b16 %v3523
        %v3711 = vunpack.c.l.b16 %v3524
        %v3712 = vunpack.c.h.b16 %v3524
        %v3713 = vunpack.c.l.b16 %v3525
        %v3714 = vunpack.c.h.b16 %v3525
        %v3715 = vunpack.c.l.b16 %v3526
        %v3716 = vunpack.c.h.b16 %v3526
        %v3717 = vunpack.c.l.b16 %v3527
        %v3718 = vunpack.c.h.b16 %v3527
        %v3719 = vunpack.c.l.b16 %v3528
        %v3720 = vunpack.c.h.b16 %v3528
        %v3721 = vunpack.c.l.b16 %v3529
        %v3722 = vunpack.c.h.b16 %v3529
        %v3723 = vunpack.c.l.b16 %v3530
        %v3724 = vunpack.c.h.b16 %v3530
        %v3725 = vunpack.c.l.b16 %v3531
        %v3726 = vunpack.c.h.b16 %v3531
        %v3727 = vunpack.c.l.b16 %v3532
        %v3728 = vunpack.c.h.b16 %v3532
        %v3729 = vunpack.c.l.b16 %v3533
        %v3730 = vunpack.c.h.b16 %v3533
        %v3731 = vunpack.c.l.b16 %v3534
        %v3732 = vunpack.c.h.b16 %v3534
        %v3733 = vunpack.c.l.b16 %v3535
        %v3734 = vunpack.c.h.b16 %v3535
        %v3735 = vunpack.c.l.b16 %v3536
        %v3736 = vunpack.c.h.b16 %v3536
        %v3737 = vunpack.c.l.b16 %v3537
        %v3738 = vunpack.c.h.b16 %v3537
        %v3739 = vunpack.c.l.b16 %v3538
        %v3740 = vunpack.c.h.b16 %v3538
        %v3741 = vunpack.c.l.b16 %v3539
        %v3742 = vunpack.c.h.b16 %v3539
        %v3743 = vunpack.c.l.b16 %v3540
        %v3744 = vunpack.c.h.b16 %v3540
        %v3745 = vpack.c.b16 %v3619, %v3617
        %v3746 = vpack.c.b16 %v3620, %v3618
        %v3747 = vpack.c.b16 %v3623, %v3621
        %v3748 = vpack.c.b16 %v3624, %v3622
        %v3749 = vpack.c.b16 %v3627, %v3625
        %v3750 = vpack.c.b16 %v3628, %v3626
        %v3751 = vpack.c.b16 %v3631, %v3629
        %v3752 = vpack.c.b16 %v3632, %v3630
        %v3753 = vpack.c.b16 %v3635, %v3633
        %v3754 = vpack.c.b16 %v3636, %v3634
        %v3755 = vpack.c.b16 %v3639, %v3637
        %v3756 = vpack.c.b16 %v3640, %v3638
        %v3757 = vpack.c.b16 %v3643, %v3641
        %v3758 = vpack.c.b16 %v3644, %v3642
        %v3759 = vpack.c.b16 %v3647, %v3645
        %v3760 = vpack.c.b16 %v3648, %v3646
        %v3761 = vpack.c.b16 %v3651, %v3649
        %v3762 = vpack.c.b16 %v3652, %v3650
        %v3763 = vpack.c.b16 %v3655, %v3653
        %v3764 = vpack.c.b16 %v3656, %v3654
        %v3765 = vpack.c.b16 %v3659, %v3657
        %v3766 = vpack.c.b16 %v3660, %v3658
        %v3767 = vpack.c.b16 %v3663, %v3661
        %v3768 = vpack.c.b16 %v3664, %v3662
        %v3769 = vpack.c.b16 %v3667, %v3665
        %v3770 = vpack.c.b16 %v3668, %v3666
        %v3771 = vpack.c.b16 %v3671, %v3669
        %v3772 = vpack.c.b16 %v3672, %v3670
        %v3773 = vpack.c.b16 %v3675, %v3673
        %v3774 = vpack.c.b16 %v3676, %v3674
        %v3775 = vpack.c.b16 %v3679, %v3677
        %v3776 = vpack.c.b16 %v3680, %v3678
        %v3777 = vpack.c.b16 %v3683, %v3681
        %v3778 = vpack.c.b16 %v3684, %v3682
        %v3779 = vpack.c.b16 %v3687, %v3685
        %v3780 = vpack.c.b16 %v3688, %v3686
        %v3781 = vpack.c.b16 %v3691, %v3689
        %v3782 = vpack.c.b16 %v3692, %v3690
        %v3783 = vpack.c.b16 %v3695, %v3693
        %v3784 = vpack.c.b16 %v3696, %v3694
        %v3785 = vpack.c.b16 %v3699, %v3697
        %v3786 = vpack.c.b16 %v3700, %v3698
        %v3787 = vpack.c.b16 %v3703, %v3701
        %v3788 = vpack.c.b16 %v3704, %v3702
        %v3789 = vpack.c.b16 %v3707, %v3705
        %v3790 = vpack.c.b16 %v3708, %v3706
        %v3791 = vpack.c.b16 %v3711, %v3709
        %v3792 = vpack.c.b16 %v3712, %v3710
        %v3793 = vpack.c.b16 %v3715, %v3713
        %v3794 = vpack.c.b16 %v3716, %v3714
        %v3795 = vpack.c.b16 %v3719, %v3717
        %v3796 = vpack.c.b16 %v3720, %v3718
        %v3797 = vpack.c.b16 %v3723, %v3721
        %v3798 = vpack.c.b16 %v3724, %v3722
        %v3799 = vpack.c.b16 %v3727, %v3725
        %v3800 = vpack.c.b16 %v3728, %v3726
        %v3801 = vpack.c.b16 %v3731, %v3729
        %v3802 = vpack.c.b16 %v3732, %v3730
        %v3803 = vpack.c.b16 %v3735, %v3733
        %v3804 = vpack.c.b16 %v3736, %v3734
        %v3805 = vpack.c.b16 %v3739, %v3737
        %v3806 = vpack.c.b16 %v3740, %v3738
        %v3807 = vpack.c.b16 %v3743, %v3741
        %v3808 = vpack.c.b16 %v3744, %v3742
        %3873 = vmatprep.subr.bf16.mxu0 %v3746
        %3874 = vmatpush1.bf16.msra.mxu0 %v3745
        %3875 = vmatprep.subr.bf16.mxu0 %v3748
        %3876 = vmatpush1.bf16.msra.mxu0 %v3747
        %3877 = vmatprep.subr.bf16.mxu0 %v3750
        %3878 = vmatpush1.bf16.msra.mxu0 %v3749
        %3879 = vmatprep.subr.bf16.mxu0 %v3752
        %3880 = vmatpush1.bf16.msra.mxu0 %v3751
        %3881 = vmatprep.subr.bf16.mxu0 %v3754
        %3882 = vmatpush1.bf16.msra.mxu0 %v3753
        %3883 = vmatprep.subr.bf16.mxu0 %v3756
        %3884 = vmatpush1.bf16.msra.mxu0 %v3755
        %3885 = vmatprep.subr.bf16.mxu0 %v3758
        %3886 = vmatpush1.bf16.msra.mxu0 %v3757
        %3887 = vmatprep.subr.bf16.mxu0 %v3760
        %3888 = vmatpush1.bf16.msra.mxu0 %v3759
        %3889 = vmatprep.subr.bf16.mxu0 %v3762
        %3890 = vmatpush1.bf16.msra.mxu0 %v3761
        %3891 = vmatprep.subr.bf16.mxu0 %v3764
        %3892 = vmatpush1.bf16.msra.mxu0 %v3763
        %3893 = vmatprep.subr.bf16.mxu0 %v3766
        %3894 = vmatpush1.bf16.msra.mxu0 %v3765
        %3895 = vmatprep.subr.bf16.mxu0 %v3768
        %3896 = vmatpush1.bf16.msra.mxu0 %v3767
        %3897 = vmatprep.subr.bf16.mxu0 %v3770
        %3898 = vmatpush1.bf16.msra.mxu0 %v3769
        %3899 = vmatprep.subr.bf16.mxu0 %v3772
        %3900 = vmatpush1.bf16.msra.mxu0 %v3771
        %3901 = vmatprep.subr.bf16.mxu0 %v3774
        %3902 = vmatpush1.bf16.msra.mxu0 %v3773
        %3903 = vmatprep.subr.bf16.mxu0 %v3776
        %3904 = vmatpush1.bf16.msra.mxu0 %v3775
        %3905 = vmatprep.mubr.bf16.mxu0 %v2235
        %3906 = vmatmul.mubr.bf16.gmra.mrb[0].mxu0 %v2234
        %v3907 = vpop.f32.mrb[0].mxu0
        %v3908 = vadd.f32 %v3546, %v3907
        %v3909 = vpop.f32.mrb[0].mxu0
        %v3910 = vadd.f32 %v3550, %v3909
        %v3911 = vpop.f32.mrb[0].mxu0
        %v3912 = vpop.f32.mrb[0].mxu0
        %3913 = vdwg.mxu0
        %3914 = vmatprep.subr.bf16.mxu0 %v3778
        %3915 = vmatpush1.bf16.msra.mxu0 %v3777
        %3916 = vmatprep.subr.bf16.mxu0 %v3780
        %3917 = vmatpush1.bf16.msra.mxu0 %v3779
        %3918 = vmatprep.subr.bf16.mxu0 %v3782
        %3919 = vmatpush1.bf16.msra.mxu0 %v3781
        %3920 = vmatprep.subr.bf16.mxu0 %v3784
        %3921 = vmatpush1.bf16.msra.mxu0 %v3783
        %3922 = vmatprep.subr.bf16.mxu0 %v3786
        %3923 = vmatpush1.bf16.msra.mxu0 %v3785
        %3924 = vmatprep.subr.bf16.mxu0 %v3788
        %3925 = vmatpush1.bf16.msra.mxu0 %v3787
        %3926 = vmatprep.subr.bf16.mxu0 %v3790
        %3927 = vmatpush1.bf16.msra.mxu0 %v3789
        %3928 = vmatprep.subr.bf16.mxu0 %v3792
        %3929 = vmatpush1.bf16.msra.mxu0 %v3791
        %3930 = vmatprep.subr.bf16.mxu0 %v3794
        %3931 = vmatpush1.bf16.msra.mxu0 %v3793
        %3932 = vmatprep.subr.bf16.mxu0 %v3796
        %3933 = vmatpush1.bf16.msra.mxu0 %v3795
        %3934 = vmatprep.subr.bf16.mxu0 %v3798
        %3935 = vmatpush1.bf16.msra.mxu0 %v3797
        %3936 = vmatprep.subr.bf16.mxu0 %v3800
        %3937 = vmatpush1.bf16.msra.mxu0 %v3799
        %3938 = vmatprep.subr.bf16.mxu0 %v3802
        %3939 = vmatpush1.bf16.msra.mxu0 %v3801
        %3940 = vmatprep.subr.bf16.mxu0 %v3804
        %3941 = vmatpush1.bf16.msra.mxu0 %v3803
        %3942 = vmatprep.subr.bf16.mxu0 %v3806
        %3943 = vmatpush1.bf16.msra.mxu0 %v3805
        %3944 = vmatprep.subr.bf16.mxu0 %v3808
        %3945 = vmatpush1.bf16.msra.mxu0 %v3807
        %3946 = vmatprep.mubr.bf16.mxu0 %v3476
        %3947 = vmatmul.mubr.bf16.gmra.mrb[0].mxu0 %v3227
        %v3948 = vpop.f32.mrb[0].mxu0
        %v3949 = vadd.f32 %v3908, %v3948
        %v3950 = vpop.f32.mrb[0].mxu0
        %v3951 = vadd.f32 %v3910, %v3950
        %v3952 = vpop.f32.mrb[0].mxu0
        %v3953 = vpop.f32.mrb[0].mxu0
        %3954 = vdwg.mxu0
        %v3955 = vmax.f32 %v3949, 0.0
        %v3956 = vmax.f32 %v3951, 0.0
        %v3957 = vpack.c.bf16 %v3955, %v3955
        %v3958 = vpack.c.bf16 %v3956, %v3956
        %v3959 = vld [vmem:[#allocation20] sm:$0xf]
        %v3960 = vld [vmem:[#allocation20 + $0x4] sm:$0xf]
        %v3961 = vld [vmem:[#allocation20 + $0x8] sm:$0xf]
        %v3962 = vld [vmem:[#allocation20 + $0xc] sm:$0xf]
        %v3963 = vld [vmem:[#allocation20 + $0x10] sm:$0xf]
        %v3964 = vld [vmem:[#allocation20 + $0x14] sm:$0xf]
        %v3965 = vld [vmem:[#allocation20 + $0x18] sm:$0xf]
        %v3966 = vld [vmem:[#allocation20 + $0x1c] sm:$0xf]
        %v3967 = vld [vmem:[#allocation20 + $0x20] sm:$0xf]
        %v3968 = vld [vmem:[#allocation20 + $0x24] sm:$0xf]
        %v3969 = vld [vmem:[#allocation20 + $0x28] sm:$0xf]
        %v3970 = vld [vmem:[#allocation20 + $0x2c] sm:$0xf]
        %v3971 = vld [vmem:[#allocation20 + $0x30] sm:$0xf]
        %v3972 = vld [vmem:[#allocation20 + $0x34] sm:$0xf]
        %v3973 = vld [vmem:[#allocation20 + $0x38] sm:$0xf]
        %v3974 = vld [vmem:[#allocation20 + $0x3c] sm:$0xf]
        %v3975 = vld [vmem:[#allocation20 + $0x40] sm:$0xf]
        %v3976 = vld [vmem:[#allocation20 + $0x44] sm:$0xf]
        %v3977 = vld [vmem:[#allocation20 + $0x48] sm:$0xf]
        %v3978 = vld [vmem:[#allocation20 + $0x4c] sm:$0xf]
        %v3979 = vld [vmem:[#allocation20 + $0x50] sm:$0xf]
        %v3980 = vld [vmem:[#allocation20 + $0x54] sm:$0xf]
        %v3981 = vld [vmem:[#allocation20 + $0x58] sm:$0xf]
        %v3982 = vld [vmem:[#allocation20 + $0x5c] sm:$0xf]
        %v3983 = vld [vmem:[#allocation20 + $0x60] sm:$0xf]
        %v3984 = vld [vmem:[#allocation20 + $0x64] sm:$0xf]
        %v3985 = vld [vmem:[#allocation20 + $0x68] sm:$0xf]
        %v3986 = vld [vmem:[#allocation20 + $0x6c] sm:$0xf]
        %v3987 = vld [vmem:[#allocation20 + $0x70] sm:$0xf]
        %v3988 = vld [vmem:[#allocation20 + $0x74] sm:$0xf]
        %v3989 = vld [vmem:[#allocation20 + $0x78] sm:$0xf]
        %v3990 = vld [vmem:[#allocation20 + $0x7c] sm:$0xf]
        %v3991 = vld [vmem:[#allocation22] sm:$0x1]
        %v3993 = vlaneseq
        %v3994 = vshrl.u32 %v3993, 7
        %v3995 = vsub.s32 0, %v3994
        %v3996 = vrot.slane %v3991, %v3995
        %v4030 = vunpack.c.l.b16 %v3959
        %v4031 = vunpack.c.l.b16 %v3960
        %v4032 = vunpack.c.l.b16 %v3961
        %v4033 = vunpack.c.l.b16 %v3962
        %v4034 = vunpack.c.l.b16 %v3963
        %v4035 = vunpack.c.l.b16 %v3964
        %v4036 = vunpack.c.l.b16 %v3965
        %v4037 = vunpack.c.l.b16 %v3966
        %v4038 = vunpack.c.l.b16 %v3967
        %v4039 = vunpack.c.l.b16 %v3968
        %v4040 = vunpack.c.l.b16 %v3969
        %v4041 = vunpack.c.l.b16 %v3970
        %v4042 = vunpack.c.l.b16 %v3971
        %v4043 = vunpack.c.l.b16 %v3972
        %v4044 = vunpack.c.l.b16 %v3973
        %v4045 = vunpack.c.l.b16 %v3974
        %v4046 = vunpack.c.l.b16 %v3975
        %v4047 = vunpack.c.l.b16 %v3976
        %v4048 = vunpack.c.l.b16 %v3977
        %v4049 = vunpack.c.l.b16 %v3978
        %v4050 = vunpack.c.l.b16 %v3979
        %v4051 = vunpack.c.l.b16 %v3980
        %v4052 = vunpack.c.l.b16 %v3981
        %v4053 = vunpack.c.l.b16 %v3982
        %v4054 = vunpack.c.l.b16 %v3983
        %v4055 = vunpack.c.l.b16 %v3984
        %v4056 = vunpack.c.l.b16 %v3985
        %v4057 = vunpack.c.l.b16 %v3986
        %v4058 = vunpack.c.l.b16 %v3987
        %v4059 = vunpack.c.l.b16 %v3988
        %v4060 = vunpack.c.l.b16 %v3989
        %v4061 = vunpack.c.l.b16 %v3990
        %v4062 = vpack.c.b16 %v4031, %v4030
        %v4063 = vpack.c.b16 %v4033, %v4032
        %v4064 = vpack.c.b16 %v4035, %v4034
        %v4065 = vpack.c.b16 %v4037, %v4036
        %v4066 = vpack.c.b16 %v4039, %v4038
        %v4067 = vpack.c.b16 %v4041, %v4040
        %v4068 = vpack.c.b16 %v4043, %v4042
        %v4069 = vpack.c.b16 %v4045, %v4044
        %v4070 = vpack.c.b16 %v4047, %v4046
        %v4071 = vpack.c.b16 %v4049, %v4048
        %v4072 = vpack.c.b16 %v4051, %v4050
        %v4073 = vpack.c.b16 %v4053, %v4052
        %v4074 = vpack.c.b16 %v4055, %v4054
        %v4075 = vpack.c.b16 %v4057, %v4056
        %v4076 = vpack.c.b16 %v4059, %v4058
        %v4077 = vpack.c.b16 %v4061, %v4060
        %4094 = vmatprep.subr.bf16.mxu0 0
        %4095 = vmatpush1.bf16.msra.mxu0 %v4062
        %4096 = vmatprep.subr.bf16.mxu0 0
        %4097 = vmatpush1.bf16.msra.mxu0 %v4063
        %4098 = vmatprep.subr.bf16.mxu0 0
        %4099 = vmatpush1.bf16.msra.mxu0 %v4064
        %4100 = vmatprep.subr.bf16.mxu0 0
        %4101 = vmatpush1.bf16.msra.mxu0 %v4065
        %4102 = vmatprep.subr.bf16.mxu0 0
        %4103 = vmatpush1.bf16.msra.mxu0 %v4066
        %4104 = vmatprep.subr.bf16.mxu0 0
        %4105 = vmatpush1.bf16.msra.mxu0 %v4067
        %4106 = vmatprep.subr.bf16.mxu0 0
        %4107 = vmatpush1.bf16.msra.mxu0 %v4068
        %4108 = vmatprep.subr.bf16.mxu0 0
        %4109 = vmatpush1.bf16.msra.mxu0 %v4069
        %4110 = vmatprep.subr.bf16.mxu0 0
        %4111 = vmatpush1.bf16.msra.mxu0 %v4070
        %4112 = vmatprep.subr.bf16.mxu0 0
        %4113 = vmatpush1.bf16.msra.mxu0 %v4071
        %4114 = vmatprep.subr.bf16.mxu0 0
        %4115 = vmatpush1.bf16.msra.mxu0 %v4072
        %4116 = vmatprep.subr.bf16.mxu0 0
        %4117 = vmatpush1.bf16.msra.mxu0 %v4073
        %4118 = vmatprep.subr.bf16.mxu0 0
        %4119 = vmatpush1.bf16.msra.mxu0 %v4074
        %4120 = vmatprep.subr.bf16.mxu0 0
        %4121 = vmatpush1.bf16.msra.mxu0 %v4075
        %4122 = vmatprep.subr.bf16.mxu0 0
        %4123 = vmatpush1.bf16.msra.mxu0 %v4076
        %4124 = vmatprep.subr.bf16.mxu0 0
        %4125 = vmatpush1.bf16.msra.mxu0 %v4077
        %4126 = vmatprep.mubr.bf16.mxu0 %v3958
        %4127 = vmatmul.mubr.bf16.gmra.mrb[0].mxu0 %v3957
        %v4128 = vpop.f32.mrb[0].mxu0
        %v4129 = vadd.f32 %v3996, %v4128
        %v4130 = vpop.f32.mrb[0].mxu0
        %v4131 = vpop.f32.mrb[0].mxu0
        %v4132 = vpop.f32.mrb[0].mxu0
        %4133 = vdwg.mxu0
        %v4134 = vmax.f32 %v4129, 0.0
        %v4135 = vpack.c.bf16 %v4134, %v4134
        %v4136 = vld [vmem:[#allocation23] sm:$0xf]
        %v4137 = vld [vmem:[#allocation23 + $0x4] sm:$0xf]
        %v4138 = vld [vmem:[#allocation23 + $0x8] sm:$0xf]
        %v4139 = vld [vmem:[#allocation23 + $0xc] sm:$0xf]
        %v4140 = vld [vmem:[#allocation23 + $0x10] sm:$0xf]
        %v4141 = vld [vmem:[#allocation23 + $0x14] sm:$0xf]
        %v4142 = vld [vmem:[#allocation23 + $0x18] sm:$0xf]
        %v4143 = vld [vmem:[#allocation23 + $0x1c] sm:$0xf]
        %v4144 = vld [vmem:[#allocation23 + $0x20] sm:$0xf]
        %v4145 = vld [vmem:[#allocation23 + $0x24] sm:$0xf]
        %v4146 = vld [vmem:[#allocation23 + $0x28] sm:$0xf]
        %v4147 = vld [vmem:[#allocation23 + $0x2c] sm:$0xf]
        %v4148 = vld [vmem:[#allocation23 + $0x30] sm:$0xf]
        %v4149 = vld [vmem:[#allocation23 + $0x34] sm:$0xf]
        %v4150 = vld [vmem:[#allocation23 + $0x38] sm:$0xf]
        %v4151 = vld [vmem:[#allocation23 + $0x3c] sm:$0xf]
        %v4152 = vld [vmem:[#allocation25] sm:$0x1]
        %v4154 = vlaneseq
        %v4155 = vshrl.u32 %v4154, 7
        %v4156 = vsub.s32 0, %v4155
        %v4157 = vrot.slane %v4152, %v4156
        %v4175 = vunpack.c.l.b16 %v4136
        %v4176 = vunpack.c.l.b16 %v4137
        %v4177 = vunpack.c.l.b16 %v4138
        %v4178 = vunpack.c.l.b16 %v4139
        %v4179 = vunpack.c.l.b16 %v4140
        %v4180 = vunpack.c.l.b16 %v4141
        %v4181 = vunpack.c.l.b16 %v4142
        %v4182 = vunpack.c.l.b16 %v4143
        %v4183 = vunpack.c.l.b16 %v4144
        %v4184 = vunpack.c.l.b16 %v4145
        %v4185 = vunpack.c.l.b16 %v4146
        %v4186 = vunpack.c.l.b16 %v4147
        %v4187 = vunpack.c.l.b16 %v4148
        %v4188 = vunpack.c.l.b16 %v4149
        %v4189 = vunpack.c.l.b16 %v4150
        %v4190 = vunpack.c.l.b16 %v4151
        %v4191 = vpack.c.b16 %v4176, %v4175
        %v4192 = vpack.c.b16 %v4178, %v4177
        %v4193 = vpack.c.b16 %v4180, %v4179
        %v4194 = vpack.c.b16 %v4182, %v4181
        %v4195 = vpack.c.b16 %v4184, %v4183
        %v4196 = vpack.c.b16 %v4186, %v4185
        %v4197 = vpack.c.b16 %v4188, %v4187
        %v4198 = vpack.c.b16 %v4190, %v4189
        %4207 = vmatprep.subr.bf16.mxu0 0
        %4208 = vmatpush1.bf16.msra.mxu0 %v4191
        %4209 = vmatprep.subr.bf16.mxu0 0
        %4210 = vmatpush1.bf16.msra.mxu0 %v4192
        %4211 = vmatprep.subr.bf16.mxu0 0
        %4212 = vmatpush1.bf16.msra.mxu0 %v4193
        %4213 = vmatprep.subr.bf16.mxu0 0
        %4214 = vmatpush1.bf16.msra.mxu0 %v4194
        %4215 = vmatprep.subr.bf16.mxu0 0
        %4216 = vmatpush1.bf16.msra.mxu0 %v4195
        %4217 = vmatprep.subr.bf16.mxu0 0
        %4218 = vmatpush1.bf16.msra.mxu0 %v4196
        %4219 = vmatprep.subr.bf16.mxu0 0
        %4220 = vmatpush1.bf16.msra.mxu0 %v4197
        %4221 = vmatprep.subr.bf16.mxu0 0
        %4222 = vmatpush1.bf16.msra.mxu0 %v4198
        %4223 = vmatprep.subr.bf16.mxu0 0
        %4224 = vmatpush1.bf16.msra.mxu0 0
        %4225 = vmatprep.subr.bf16.mxu0 0
        %4226 = vmatpush1.bf16.msra.mxu0 0
        %4227 = vmatprep.subr.bf16.mxu0 0
        %4228 = vmatpush1.bf16.msra.mxu0 0
        %4229 = vmatprep.subr.bf16.mxu0 0
        %4230 = vmatpush1.bf16.msra.mxu0 0
        %4231 = vmatprep.subr.bf16.mxu0 0
        %4232 = vmatpush1.bf16.msra.mxu0 0
        %4233 = vmatprep.subr.bf16.mxu0 0
        %4234 = vmatpush1.bf16.msra.mxu0 0
        %4235 = vmatprep.subr.bf16.mxu0 0
        %4236 = vmatpush1.bf16.msra.mxu0 0
        %4237 = vmatprep.subr.bf16.mxu0 0
        %4238 = vmatpush1.bf16.msra.mxu0 0
        %4239 = vmatprep.mubr.bf16.mxu0 0
        %4240 = vmatmul.mubr.bf16.gmra.mrb[0].mxu0 %v4135
        %v4241 = vpop.f32.mrb[0].mxu0
        %v4242 = vadd.f32 %v4157, %v4241
        %v4243 = vpop.f32.mrb[0].mxu0
        %v4244 = vpop.f32.mrb[0].mxu0
        %v4245 = vpop.f32.mrb[0].mxu0
        %4246 = vdwg.mxu0
        %v4247 = vmax.f32 %v4242, 0.0
        %v4248 = vpack.c.bf16 %v4247, %v4247
        %v4249 = vld [vmem:[#allocation26] sm:$0xf]
        %v4250 = vld [vmem:[#allocation26 + $0x4] sm:$0xf]
        %v4251 = vld [vmem:[#allocation26 + $0x8] sm:$0xf]
        %v4252 = vld [vmem:[#allocation26 + $0xc] sm:$0xf]
        %v4253 = vld [vmem:[#allocation26 + $0x10] sm:$0xf]
        %v4254 = vld [vmem:[#allocation26 + $0x14] sm:$0xf]
        %v4255 = vld [vmem:[#allocation26 + $0x18] sm:$0xf]
        %v4256 = vld [vmem:[#allocation26 + $0x1c] sm:$0xf]
        %v4257 = vld [vmem:[#allocation26 + $0x20] sm:$0xf]
        %v4258 = vld [vmem:[#allocation26 + $0x24] sm:$0xf]
        %v4259 = vld [vmem:[#allocation26 + $0x28] sm:$0xf]
        %v4260 = vld [vmem:[#allocation26 + $0x2c] sm:$0xf]
        %v4261 = vld [vmem:[#allocation26 + $0x30] sm:$0xf]
        %v4262 = vld [vmem:[#allocation26 + $0x34] sm:$0xf]
        %v4263 = vld [vmem:[#allocation26 + $0x38] sm:$0xf]
        %v4264 = vld [vmem:[#allocation26 + $0x3c] sm:$0xf]
        %v4265 = vld [vmem:[#allocation28] sm:$0x1]
        %v4267 = vlaneseq
        %v4268 = vshrl.u32 %v4267, 7
        %v4269 = vsub.s32 0, %v4268
        %v4270 = vrot.slane %v4265, %v4269
        %v4288 = vunpack.c.l.b16 %v4249
        %v4289 = vunpack.c.l.b16 %v4250
        %v4290 = vunpack.c.l.b16 %v4251
        %v4291 = vunpack.c.l.b16 %v4252
        %v4292 = vunpack.c.l.b16 %v4253
        %v4293 = vunpack.c.l.b16 %v4254
        %v4294 = vunpack.c.l.b16 %v4255
        %v4295 = vunpack.c.l.b16 %v4256
        %v4296 = vunpack.c.l.b16 %v4257
        %v4297 = vunpack.c.l.b16 %v4258
        %v4298 = vunpack.c.l.b16 %v4259
        %v4299 = vunpack.c.l.b16 %v4260
        %v4300 = vunpack.c.l.b16 %v4261
        %v4301 = vunpack.c.l.b16 %v4262
        %v4302 = vunpack.c.l.b16 %v4263
        %v4303 = vunpack.c.l.b16 %v4264
        %v4304 = vpack.c.b16 %v4289, %v4288
        %v4305 = vpack.c.b16 %v4291, %v4290
        %v4306 = vpack.c.b16 %v4293, %v4292
        %v4307 = vpack.c.b16 %v4295, %v4294
        %v4308 = vpack.c.b16 %v4297, %v4296
        %v4309 = vpack.c.b16 %v4299, %v4298
        %v4310 = vpack.c.b16 %v4301, %v4300
        %v4311 = vpack.c.b16 %v4303, %v4302
        %4320 = vmatprep.subr.bf16.mxu0 0
        %4321 = vmatpush1.bf16.msra.mxu0 %v4304
        %4322 = vmatprep.subr.bf16.mxu0 0
        %4323 = vmatpush1.bf16.msra.mxu0 %v4305
        %4324 = vmatprep.subr.bf16.mxu0 0
        %4325 = vmatpush1.bf16.msra.mxu0 %v4306
        %4326 = vmatprep.subr.bf16.mxu0 0
        %4327 = vmatpush1.bf16.msra.mxu0 %v4307
        %4328 = vmatprep.subr.bf16.mxu0 0
        %4329 = vmatpush1.bf16.msra.mxu0 %v4308
        %4330 = vmatprep.subr.bf16.mxu0 0
        %4331 = vmatpush1.bf16.msra.mxu0 %v4309
        %4332 = vmatprep.subr.bf16.mxu0 0
        %4333 = vmatpush1.bf16.msra.mxu0 %v4310
        %4334 = vmatprep.subr.bf16.mxu0 0
        %4335 = vmatpush1.bf16.msra.mxu0 %v4311
        %4336 = vmatprep.subr.bf16.mxu0 0
        %4337 = vmatpush1.bf16.msra.mxu0 0
        %4338 = vmatprep.subr.bf16.mxu0 0
        %4339 = vmatpush1.bf16.msra.mxu0 0
        %4340 = vmatprep.subr.bf16.mxu0 0
        %4341 = vmatpush1.bf16.msra.mxu0 0
        %4342 = vmatprep.subr.bf16.mxu0 0
        %4343 = vmatpush1.bf16.msra.mxu0 0
        %4344 = vmatprep.subr.bf16.mxu0 0
        %4345 = vmatpush1.bf16.msra.mxu0 0
        %4346 = vmatprep.subr.bf16.mxu0 0
        %4347 = vmatpush1.bf16.msra.mxu0 0
        %4348 = vmatprep.subr.bf16.mxu0 0
        %4349 = vmatpush1.bf16.msra.mxu0 0
        %4350 = vmatprep.subr.bf16.mxu0 0
        %4351 = vmatpush1.bf16.msra.mxu0 0
        %4352 = vmatprep.mubr.bf16.mxu0 0
        %4353 = vmatmul.mubr.bf16.gmra.mrb[0].mxu0 %v4248
        %v4354 = vpop.f32.mrb[0].mxu0
        %v4355 = vadd.f32 %v4270, %v4354
        %v4356 = vpop.f32.mrb[0].mxu0
        %v4357 = vpop.f32.mrb[0].mxu0
        %v4358 = vpop.f32.mrb[0].mxu0
        %4359 = vdwg.mxu0
        %v4360 = vmax.f32 %v4355, 0.0
        %v4361 = vpack.c.bf16 %v4360, %v4360
        %v4362 = vld [vmem:[%s17] sm:$0xf]
        %v4363 = vld [vmem:[%s17 + $0x4] sm:$0xf]
        %v4364 = vld [vmem:[%s17 + $0x8] sm:$0xf]
        %v4365 = vld [vmem:[%s17 + $0xc] sm:$0xf]
        %v4366 = vld [vmem:[%s17 + $0x10] sm:$0xf]
        %v4367 = vld [vmem:[%s17 + $0x14] sm:$0xf]
        %v4368 = vld [vmem:[%s17 + $0x18] sm:$0xf]
        %v4369 = vld [vmem:[%s17 + $0x1c] sm:$0xf]
        %v4370 = vld [vmem:[%s17 + $0x20] sm:$0xf]
        %v4371 = vld [vmem:[%s17 + $0x24] sm:$0xf]
        %v4372 = vld [vmem:[%s17 + $0x28] sm:$0xf]
        %v4373 = vld [vmem:[%s17 + $0x2c] sm:$0xf]
        %v4374 = vld [vmem:[%s17 + $0x30] sm:$0xf]
        %v4375 = vld [vmem:[%s17 + $0x34] sm:$0xf]
        %v4376 = vld [vmem:[%s17 + $0x38] sm:$0xf]
        %v4377 = vld [vmem:[%s17 + $0x3c] sm:$0xf]
        %v4378 = vld [vmem:[%s18] sm:$0x1]
        %v4380 = vlaneseq
        %v4381 = vshrl.u32 %v4380, 7
        %v4382 = vsub.s32 0, %v4381
        %v4383 = vrot.slane %v4378, %v4382
        %v4401 = vunpack.c.l.b16 %v4362
        %v4402 = vunpack.c.l.b16 %v4363
        %v4403 = vunpack.c.l.b16 %v4364
        %v4404 = vunpack.c.l.b16 %v4365
        %v4405 = vunpack.c.l.b16 %v4366
        %v4406 = vunpack.c.l.b16 %v4367
        %v4407 = vunpack.c.l.b16 %v4368
        %v4408 = vunpack.c.l.b16 %v4369
        %v4409 = vunpack.c.l.b16 %v4370
        %v4410 = vunpack.c.l.b16 %v4371
        %v4411 = vunpack.c.l.b16 %v4372
        %v4412 = vunpack.c.l.b16 %v4373
        %v4413 = vunpack.c.l.b16 %v4374
        %v4414 = vunpack.c.l.b16 %v4375
        %v4415 = vunpack.c.l.b16 %v4376
        %v4416 = vunpack.c.l.b16 %v4377
        %v4417 = vpack.c.b16 %v4402, %v4401
        %v4418 = vpack.c.b16 %v4404, %v4403
        %v4419 = vpack.c.b16 %v4406, %v4405
        %v4420 = vpack.c.b16 %v4408, %v4407
        %v4421 = vpack.c.b16 %v4410, %v4409
        %v4422 = vpack.c.b16 %v4412, %v4411
        %v4423 = vpack.c.b16 %v4414, %v4413
        %v4424 = vpack.c.b16 %v4416, %v4415
        %4433 = vmatprep.subr.bf16.mxu0 0
        %4434 = vmatpush1.bf16.msra.mxu0 %v4417
        %4435 = vmatprep.subr.bf16.mxu0 0
        %4436 = vmatpush1.bf16.msra.mxu0 %v4418
        %4437 = vmatprep.subr.bf16.mxu0 0
        %4438 = vmatpush1.bf16.msra.mxu0 %v4419
        %4439 = vmatprep.subr.bf16.mxu0 0
        %4440 = vmatpush1.bf16.msra.mxu0 %v4420
        %4441 = vmatprep.subr.bf16.mxu0 0
        %4442 = vmatpush1.bf16.msra.mxu0 %v4421
        %4443 = vmatprep.subr.bf16.mxu0 0
        %4444 = vmatpush1.bf16.msra.mxu0 %v4422
        %4445 = vmatprep.subr.bf16.mxu0 0
        %4446 = vmatpush1.bf16.msra.mxu0 %v4423
        %4447 = vmatprep.subr.bf16.mxu0 0
        %4448 = vmatpush1.bf16.msra.mxu0 %v4424
        %4449 = vmatprep.subr.bf16.mxu0 0
        %4450 = vmatpush1.bf16.msra.mxu0 0
        %4451 = vmatprep.subr.bf16.mxu0 0
        %4452 = vmatpush1.bf16.msra.mxu0 0
        %4453 = vmatprep.subr.bf16.mxu0 0
        %4454 = vmatpush1.bf16.msra.mxu0 0
        %4455 = vmatprep.subr.bf16.mxu0 0
        %4456 = vmatpush1.bf16.msra.mxu0 0
        %4457 = vmatprep.subr.bf16.mxu0 0
        %4458 = vmatpush1.bf16.msra.mxu0 0
        %4459 = vmatprep.subr.bf16.mxu0 0
        %4460 = vmatpush1.bf16.msra.mxu0 0
        %4461 = vmatprep.subr.bf16.mxu0 0
        %4462 = vmatpush1.bf16.msra.mxu0 0
        %4463 = vmatprep.subr.bf16.mxu0 0
        %4464 = vmatpush1.bf16.msra.mxu0 0
        %4465 = vmatprep.mubr.bf16.mxu0 0
        %4466 = vmatmul.mubr.bf16.gmra.mrb[0].mxu0 %v4361
        %v4467 = vpop.f32.mrb[0].mxu0
        %v4468 = vadd.f32 %v4383, %v4467
        %v4469 = vpop.f32.mrb[0].mxu0
        %v4470 = vpop.f32.mrb[0].mxu0
        %v4471 = vpop.f32.mrb[0].mxu0
        %4472 = vdwg.mxu0
        %4473 = vst [vmem:[%s880] sm:$0xff] %v4468
        %s4474 = sand.u32 %s468, 1
        %s4475 = scalar_lea.sflag [#allocation4], %s4474
        %s4476 = sand.u32 %s468, 1
        %s4477 = smul.addr %s4476, 8
        %s4478 = scalar_lea.vmem [#allocation29], %s4477
        // Predicated region
        $region165: #{tpu_custom_call.1} parent=95 // pred_check
          %p4479 = pneg %p478
        $region166: #{tpu_custom_call.1} parent=95 // pred_check_branch
          %4481 = sbr.rel (%p4479) target = $region168
        $region167: #{tpu_custom_call.1} parent=95 // pred_region
          %s4483 = ssub.s32 128, 128
          %4484 = vsyncadd %s4475, %s4483
          %s4485 = smul.addr %s46, 128
          %s4486 = scalar_lea.hbm %s19, %s4485
          %s4488 = sshll.u32 %s4478, 4
          %s4489 = int_to_ptr.vmem [resolvable:$true] %s4488
          %4491 = dma.vmem_to_hbm [thread:$0]  %s4489, 128, %s4486, %s4475
        $region168: #{tpu_custom_call.1} parent=95 // pred_fallthru
          _
      $region96: #{tpu_custom_call.1} parent=5 // pred_fallthru
        _
      %p4492 = scmp.le.s32.totalorder 2, %s41
      // Predicated region
      $region169: #{tpu_custom_call.1} parent=5 // pred_check
        %p4493 = pneg %p4492
      $region170: #{tpu_custom_call.1} parent=5 // pred_check_branch
        %4495 = sbr.rel (%p4493) target = $region172
      $region171: #{tpu_custom_call.1} parent=5 // pred_region
        %s4496 = ssub.s32 %s41, 2
        // Predicated region
        $region173: #{tpu_custom_call.1} parent=171 // pred_check
          %p4497 = pneg %p484
        $region174: #{tpu_custom_call.1} parent=171 // pred_check_branch
          %4499 = sbr.rel (%p4497) target = $region176
        $region175: #{tpu_custom_call.1} parent=171 // pred_region
          %s4500 = sand.u32 %s469, 1
          %s4501 = scalar_lea.sflag [#allocation4], %s4500
          %s4502 = sand.u32 %s469, 1
          %s4503 = smul.addr %s4502, 8
          %s4504 = scalar_lea.vmem [#allocation29], %s4503
          %4505 = dma.done %s4501, 128
        $region176: #{tpu_custom_call.1} parent=171 // pred_fallthru
          _
      $region172: #{tpu_custom_call.1} parent=5 // pred_fallthru
        _
    $region6: #{tpu_custom_call.1} parent=1 // loop_footer
      %s45 = sadd.s32 1, %s41
    $region7: #{tpu_custom_call.1} parent=1 // loop_footer_branch
      %40 = sbr.rel target = $region3
    $region8: #{tpu_custom_call.1} parent=1 // loop_exit
      _
    %4506 = vsyncpa [#allocation3], 1
    %s4507 = scalar_lea.sflag [#allocation3], 1
    %4508 = vsyncpa %s4507, 1
    %4509 = vsyncpa [#allocation6], 1
    %s4510 = scalar_lea.sflag [#allocation6], 1
    %4511 = vsyncpa %s4510, 1
    %4512 = vsyncpa [#allocation9], 1
    %4513 = vsyncpa [#allocation12], 1
    %4514 = vsyncpa [#allocation15], 1
    %4515 = vsyncpa [#allocation18], 1
    %4516 = vsyncpa [#allocation21], 1
    %4517 = vsyncpa [#allocation24], 1
    %4518 = vsyncpa [#allocation27], 1
    %4519 = vsyncpa [#allocation4], 1
    %s4520 = scalar_lea.sflag [#allocation4], 1
    %4521 = vsyncpa %s4520, 1

</llo_original>
